<compile_context>
chip_gen: v6e
topology: v6e:2x2x1
jax: 0.10.0
libtpu: 0.0.40
codegen_flags: <defaults>
</compile_context>

<pallas_src>
import functools

import jax
import jax.numpy as jnp
from jax import lax
from jax.experimental import pallas as pl
from jax.experimental.pallas import tpu as pltpu

# ---- small, self-consistent "BERT" config ----
VOCAB = 50
MAX_POS = 16
HIDDEN = 32
HEADS = 2
HEAD_DIM = HIDDEN // HEADS
INTER = 64
LAYERS = 2
NUM_CLASSES = 3
LN_EPS = 1e-12

H_PAD = 128  # lane-dense padded feature width (holds HIDDEN, 3*HIDDEN, INTER, NUM_CLASSES)
assert 3 * HIDDEN <= H_PAD and INTER <= H_PAD and NUM_CLASSES <= H_PAD

# vslab row layout (per layer)
_BQKV, _BO, _LN1G, _LN1B, _B1, _B2, _LN2G, _LN2B = range(8)
# gvec row layout
_EMBG, _EMBB, _FCB = range(3)


# ---------------- in-kernel helpers ----------------
# f32 rational erf approximation (same form/coefficients as XLA's f32 erf expansion);
# only mul/add/div/clamp so it lowers cleanly in Mosaic. erf(0) == 0, so zero-padded
# lanes stay zero through GELU.
_ERF_P = (0.00022905065861350646, 0.0034082910107109506, 0.050955695062380861,
          0.18520832239976145, 1.128379143519084)
_ERF_Q = (-1.1791602954361697e-07, 2.3547966471313185e-05, 0.0010179625278914885,
          0.014070470171167667, 0.11098505178285362, 0.49746925110067538, 1.0)
_ERF_CLAMP = 3.832506856900711  # erfinv(1 - 2^-23); |erf| saturates to 1 beyond this


def _gelu_erf(x):
    """Exact (erf-based) GELU, matching nn.GELU / jax.nn.gelu(approximate=False)."""
    z = jnp.clip(x * 0.7071067811865476, -_ERF_CLAMP, _ERF_CLAMP)
    z2 = z * z
    num = _ERF_P[0]
    for c in _ERF_P[1:]:
        num = num * z2 + c
    den = _ERF_Q[0]
    for c in _ERF_Q[1:]:
        den = den * z2 + c
    erf = (z * num) / den
    return 0.5 * x * (1.0 + erf)


# ---------------- the fused whole-forward kernel ----------------
def _bert_fwd_kernel(x_ref, kmask_ref, gvec_ref, wslab_ref, vslab_ref, out_ref,
                     *, m_pad, b_pad, batch, seq, num_layers):
    f32, bf16 = jnp.float32, jnp.bfloat16

    # lane mask: the real HIDDEN features live in the first 32 lanes of the 128-lane slab.
    lane = lax.broadcasted_iota(jnp.int32, (m_pad, H_PAD), 1)
    feat_mask = lane < HIDDEN

    def layer_norm(x, g, b):
        # stats over the real HIDDEN lanes only (padded lanes of x are guaranteed zero).
        mean = jnp.sum(x, axis=-1, keepdims=True) * (1.0 / HIDDEN)
        xc = jnp.where(feat_mask, x - mean, 0.0)
        var = jnp.sum(xc * xc, axis=-1, keepdims=True) * (1.0 / HIDDEN)
        inv = lax.rsqrt(var + LN_EPS)
        return xc * inv * g + b          # g, b are zero beyond lane HIDDEN -> pad stays 0

    gvec = gvec_ref[...]                 # [8, H_PAD] f32
    x = layer_norm(x_ref[...], gvec[_EMBG:_EMBG + 1, :], gvec[_EMBB:_EMBB + 1, :])

    # Additive attention bias, built ONCE in-kernel (no O(M^2) HBM input).
    #   same-batch & valid key -> 0 ; same-batch & padded key -> -10000 (BERT extended mask)
    #   cross-batch / out-of-range row or key -> -1e9 (block-diagonal softmax == per-batch).
    rows = lax.broadcasted_iota(jnp.int32, (m_pad, m_pad), 0)
    cols = lax.broadcasted_iota(jnp.int32, (m_pad, m_pad), 1)
    blocks = []
    for b in range(batch):               # static unroll: pure VPU compares, no integer div
        lo, hi = b * seq, (b + 1) * seq
        blocks.append(((rows >= lo) & (rows < hi)) & ((cols >= lo) & (cols < hi)))
    same = blocks[0]
    for blk in blocks[1:]:
        same = same | blk
    kvalid = kmask_ref[...] > 0.5        # [1, m_pad], broadcasts along the query axis
    bias = jnp.where(same, jnp.where(kvalid, 0.0, -10000.0), -1e9).astype(f32)

    scale = 1.0 / float(HEAD_DIM) ** 0.5

    for l in range(num_layers):          # static unroll over layers (weights stay in VMEM)
        vec = vslab_ref[l]               # [8, H_PAD] f32: all per-layer bias/LN vectors
        x16 = x.astype(bf16)

        # fused Q/K/V projection: one lane-dense bf16 [M,128] @ [128,128] matmul (f32 acc)
        qkv = (jnp.dot(x16, wslab_ref[4 * l + 0], preferred_element_type=f32)
               + vec[_BQKV:_BQKV + 1, :])

        ctxs = []
        for h in range(HEADS):           # static unroll over heads
            q = qkv[:, h * HEAD_DIM:(h + 1) * HEAD_DIM].astype(bf16)
            k = qkv[:, HIDDEN + h * HEAD_DIM:HIDDEN + (h + 1) * HEAD_DIM].astype(bf16)
            v = qkv[:, 2 * HIDDEN + h * HEAD_DIM:2 * HIDDEN + (h + 1) * HEAD_DIM].astype(bf16)
            # q @ k^T without an explicit transpose (contract the head dims directly)
            s = lax.dot_general(q, k, (((1,), (1,)), ((), ())),
                                preferred_element_type=f32) * scale + bias
            s = s - jnp.max(s, axis=-1, keepdims=True)
            p = jnp.exp(s)
            p = p * pl.reciprocal(jnp.sum(p, axis=-1, keepdims=True), approx=True)
            ctxs.append(jnp.dot(p.astype(bf16), v, preferred_element_type=f32))  # [M, DH]

        # one output projection for all heads: lane-concat ctx -> [M,128], single matmul
        ctx_full = jnp.concatenate(
            ctxs + [jnp.zeros((m_pad, H_PAD - HIDDEN), f32)], axis=-1)
        attn = (jnp.dot(ctx_full.astype(bf16), wslab_ref[4 * l + 1],
                        preferred_element_type=f32) + vec[_BO:_BO + 1, :])
        x = layer_norm(attn + x, vec[_LN1G:_LN1G + 1, :], vec[_LN1B:_LN1B + 1, :])

        # feed-forward with fused exact-GELU epilogue
        inter = (jnp.dot(x.astype(bf16), wslab_ref[4 * l + 2],
                         preferred_element_type=f32) + vec[_B1:_B1 + 1, :])
        inter = _gelu_erf(inter)
        ffn = (jnp.dot(inter.astype(bf16), wslab_ref[4 * l + 3],
                       preferred_element_type=f32) + vec[_B2:_B2 + 1, :])
        x = layer_norm(ffn + x, vec[_LN2G:_LN2G + 1, :], vec[_LN2B:_LN2B + 1, :])

    # CLS-row gather via a tiny 0/1 selection matmul (no strided slice / relayout), then
    # the classifier only on those rows.  nn.Dropout -> identity at inference.
    srow = lax.broadcasted_iota(jnp.int32, (b_pad, m_pad), 0)
    scol = lax.broadcasted_iota(jnp.int32, (b_pad, m_pad), 1)
    sel = ((scol == srow * seq) & (srow < batch)).astype(bf16)      # sel[b, b*S] = 1
    x_cls = jnp.dot(sel, x.astype(bf16), preferred_element_type=f32)  # [b_pad, H_PAD]
    out_ref[...] = (jnp.dot(x_cls.astype(bf16), wslab_ref[4 * num_layers],
                            preferred_element_type=f32) + gvec[_FCB:_FCB + 1, :])


# ---------------- wrapper: glue (embedding gather) + one pallas_call ----------------
def bert_fc_forward(packed, input_ids, attention_mask):
    B, S = input_ids.shape
    M = B * S
    m_pad = max(16, ((M + 15) // 16) * 16)   # multiple of 16 (bf16 sublane packing)
    b_pad = max(8, ((B + 7) // 8) * 8)

    # embeddings: data-dependent gather kept as XLA glue, summed, then zero-padded to 128 lanes
    we = packed["word_emb"][input_ids]                # (B, S, H)
    pe = packed["pos_emb"][:S]                        # (S, H)
    te = packed["tok_emb"][0]                         # (H,)   token_type_ids == 0
    x = (we + pe[None, :, :] + te[None, None, :]).reshape(M, HIDDEN)
    x_pad = jnp.zeros((m_pad, H_PAD), jnp.float32).at[:M, :HIDDEN].set(x)

    # key-valid vector [1, m_pad]; the full additive bias is built inside the kernel.
    kmask = jnp.zeros((1, m_pad), jnp.float32).at[0, :M].set(
        attention_mask.reshape(M).astype(jnp.float32))

    out = pl.pallas_call(
        functools.partial(_bert_fwd_kernel, m_pad=m_pad, b_pad=b_pad,
                          batch=B, seq=S, num_layers=LAYERS),
        out_shape=jax.ShapeDtypeStruct((b_pad, H_PAD), jnp.float32),
        compiler_params=pltpu.CompilerParams(vmem_limit_bytes=32 * 1024 * 1024),
    )(x_pad, kmask, packed["gvec"], packed["wslab"], packed["vslab"])

    # logits for the B real batches / NUM_CLASSES real classes
    return out[:B, :NUM_CLASSES]


# ---------------- parameter init (PyTorch-like shapes) and slab packing ----------------
def init_params(key):
    def nrm(k, shape):
        return jax.random.normal(k, shape, jnp.float32) * 0.02

    keys = iter(jax.random.split(key, 8 + LAYERS * 8))
    params = dict(
        word_emb=nrm(next(keys), (VOCAB, HIDDEN)),
        pos_emb=nrm(next(keys), (MAX_POS, HIDDEN)),
        tok_emb=nrm(next(keys), (2, HIDDEN)),
        emb_ln_g=jnp.ones((HIDDEN,), jnp.float32),
        emb_ln_b=jnp.zeros((HIDDEN,), jnp.float32),
        fc_w=nrm(next(keys), (HIDDEN, NUM_CLASSES)),
        fc_b=jnp.zeros((NUM_CLASSES,), jnp.float32),
        layers=[],
    )
    for _ in range(LAYERS):
        params["layers"].append(dict(
            wq=nrm(next(keys), (HIDDEN, HIDDEN)), bq=jnp.zeros((HIDDEN,), jnp.float32),
            wk=nrm(next(keys), (HIDDEN, HIDDEN)), bk=jnp.zeros((HIDDEN,), jnp.float32),
            wv=nrm(next(keys), (HIDDEN, HIDDEN)), bv=jnp.zeros((HIDDEN,), jnp.float32),
            wo=nrm(next(keys), (HIDDEN, HIDDEN)), bo=jnp.zeros((HIDDEN,), jnp.float32),
            ln1_g=jnp.ones((HIDDEN,), jnp.float32), ln1_b=jnp.zeros((HIDDEN,), jnp.float32),
            w1=nrm(next(keys), (HIDDEN, INTER)), b1=jnp.zeros((INTER,), jnp.float32),
            w2=nrm(next(keys), (INTER, HIDDEN)), b2=jnp.zeros((HIDDEN,), jnp.float32),
            ln2_g=jnp.ones((HIDDEN,), jnp.float32), ln2_b=jnp.zeros((HIDDEN,), jnp.float32),
        ))
    return params


def pack_params(params):
    """One-time repack: consolidate ALL kernel weights into 3 lane-dense slabs."""
    def pad_w(w):
        out = jnp.zeros((H_PAD, H_PAD), jnp.float32)
        return out.at[:w.shape[0], :w.shape[1]].set(w)

    def pad_v(v):
        return jnp.zeros((H_PAD,), jnp.float32).at[:v.shape[0]].set(v)

    ls = params["layers"]

    # weight slab: [4*LAYERS + 1, 128, 128] bf16 (wqkv, wo, w1, w2 per layer, then fc_w)
    w_blocks = []
    for p in ls:
        w_blocks += [pad_w(jnp.concatenate([p["wq"], p["wk"], p["wv"]], axis=1)),
                     pad_w(p["wo"]), pad_w(p["w1"]), pad_w(p["w2"])]
    w_blocks.append(pad_w(params["fc_w"]))
    wslab = jnp.stack(w_blocks).astype(jnp.bfloat16)

    # per-layer vector slab: [LAYERS, 8, 128] f32
    vslab = jnp.stack([jnp.stack([
        pad_v(jnp.concatenate([p["bq"], p["bk"], p["bv"]])),
        pad_v(p["bo"]), pad_v(p["ln1_g"]), pad_v(p["ln1_b"]),
        pad_v(p["b1"]), pad_v(p["b2"]), pad_v(p["ln2_g"]), pad_v(p["ln2_b"])])
        for p in ls])

    # globals slab: [8, 128] f32 (embedding LN gamma/beta, fc bias)
    gvec = jnp.stack([pad_v(params["emb_ln_g"]), pad_v(params["emb_ln_b"]),
                      pad_v(params["fc_b"])]
                     + [jnp.zeros((H_PAD,), jnp.float32)] * 5)

    return dict(word_emb=params["word_emb"], pos_emb=params["pos_emb"],
                tok_emb=params["tok_emb"], wslab=wslab, vslab=vslab, gvec=gvec)


if __name__ == "__main__":
    key = jax.random.PRNGKey(0)
    pkey, ikey = jax.random.split(key)
    params = init_params(pkey)
    packed = pack_params(params)

    # B*S = 128 rows: fills the MXU's M dimension in a single call (per perf review).
    B, S = 8, 16
    input_ids = jax.random.randint(ikey, (B, S), 0, VOCAB, dtype=jnp.int32)
    attention_mask = jnp.ones((B, S), jnp.int32).at[1, 12:].set(0).at[5, 10:].set(0)

    logits = jax.jit(bert_fc_forward)(packed, input_ids, attention_mask)
    jax.block_until_ready(logits)
    assert logits.shape == (B, NUM_CLASSES)
    print("KERNEL_OK")
</pallas_src>

<mosaic_0001>
module attributes {stable_mosaic.version = 11 : i64} {
  func.func @_bert_fwd_kernel(%arg0: memref<128x128xf32, #tpu.memory_space<vmem>>, %arg1: memref<1x128xf32, #tpu.memory_space<vmem>>, %arg2: memref<8x128xf32, #tpu.memory_space<vmem>>, %arg3: memref<9x128x128xbf16, #tpu.memory_space<vmem>>, %arg4: memref<2x8x128xf32, #tpu.memory_space<vmem>>, %arg5: memref<8x128xf32, #tpu.memory_space<vmem>>) attributes {dimension_semantics = [], scalar_prefetch = 0 : i64, scratch_operands = 0 : i64, tpu.core_type = #tpu.core_type<tc>} {
    %0 = tpu.iota {dimensions = array<i32: 1>} : vector<128x128xi32>
    %c32_i32 = arith.constant 32 : i32
    %1 = vector.broadcast %c32_i32 : i32 to vector<128x128xi32>
    %2 = arith.cmpi slt, %0, %1 : vector<128x128xi32>
    %c0 = arith.constant 0 : index
    %c0_0 = arith.constant 0 : index
    %3 = vector.load %arg2[%c0, %c0_0] : memref<8x128xf32, #tpu.memory_space<vmem>>, vector<8x128xf32>
    %c0_1 = arith.constant 0 : index
    %c0_2 = arith.constant 0 : index
    %4 = vector.load %arg0[%c0_1, %c0_2] : memref<128x128xf32, #tpu.memory_space<vmem>>, vector<128x128xf32>
    %5 = vector.extract_strided_slice %3 {offsets = [0, 0], sizes = [1, 128], strides = [1, 1]} : vector<8x128xf32> to vector<1x128xf32>
    %6 = vector.extract_strided_slice %3 {offsets = [1, 0], sizes = [1, 128], strides = [1, 1]} : vector<8x128xf32> to vector<1x128xf32>
    %cst = arith.constant dense<0.000000e+00> : vector<128xf32>
    %7 = vector.multi_reduction <add>, %4, %cst [1] : vector<128x128xf32> to vector<128xf32>
    %8 = vector.shape_cast %7 : vector<128xf32> to vector<128x1xf32>
    %cst_3 = arith.constant 3.125000e-02 : f32
    %9 = vector.broadcast %cst_3 : f32 to vector<128x1xf32>
    %10 = arith.mulf %8, %9 : vector<128x1xf32>
    %11 = vector.broadcast %10 : vector<128x1xf32> to vector<128x128xf32>
    %12 = arith.subf %4, %11 : vector<128x128xf32>
    %cst_4 = arith.constant 0.000000e+00 : f32
    %13 = vector.broadcast %cst_4 : f32 to vector<128x128xf32>
    %14 = arith.select %2, %12, %13 : vector<128x128xi1>, vector<128x128xf32>
    %15 = arith.mulf %14, %14 : vector<128x128xf32>
    %cst_5 = arith.constant dense<0.000000e+00> : vector<128xf32>
    %16 = vector.multi_reduction <add>, %15, %cst_5 [1] : vector<128x128xf32> to vector<128xf32>
    %17 = vector.shape_cast %16 : vector<128xf32> to vector<128x1xf32>
    %cst_6 = arith.constant 3.125000e-02 : f32
    %18 = vector.broadcast %cst_6 : f32 to vector<128x1xf32>
    %19 = arith.mulf %17, %18 : vector<128x1xf32>
    %cst_7 = arith.constant 9.99999996E-13 : f32
    %20 = vector.broadcast %cst_7 : f32 to vector<128x1xf32>
    %21 = arith.addf %19, %20 : vector<128x1xf32>
    %22 = math.rsqrt %21 : vector<128x1xf32>
    %23 = vector.broadcast %22 : vector<128x1xf32> to vector<128x128xf32>
    %24 = arith.mulf %14, %23 : vector<128x128xf32>
    %25 = vector.broadcast %5 : vector<1x128xf32> to vector<128x128xf32>
    %26 = arith.mulf %24, %25 : vector<128x128xf32>
    %27 = vector.broadcast %6 : vector<1x128xf32> to vector<128x128xf32>
    %28 = arith.addf %26, %27 : vector<128x128xf32>
    %29 = tpu.iota {dimensions = array<i32: 0>} : vector<128x128xi32>
    %30 = tpu.iota {dimensions = array<i32: 1>} : vector<128x128xi32>
    %c0_i32 = arith.constant 0 : i32
    %31 = vector.broadcast %c0_i32 : i32 to vector<128x128xi32>
    %32 = arith.cmpi sge, %29, %31 : vector<128x128xi32>
    %c16_i32 = arith.constant 16 : i32
    %33 = vector.broadcast %c16_i32 : i32 to vector<128x128xi32>
    %34 = arith.cmpi slt, %29, %33 : vector<128x128xi32>
    %35 = arith.andi %32, %34 : vector<128x128xi1>
    %c0_i32_8 = arith.constant 0 : i32
    %36 = vector.broadcast %c0_i32_8 : i32 to vector<128x128xi32>
    %37 = arith.cmpi sge, %30, %36 : vector<128x128xi32>
    %c16_i32_9 = arith.constant 16 : i32
    %38 = vector.broadcast %c16_i32_9 : i32 to vector<128x128xi32>
    %39 = arith.cmpi slt, %30, %38 : vector<128x128xi32>
    %40 = arith.andi %37, %39 : vector<128x128xi1>
    %41 = arith.andi %35, %40 : vector<128x128xi1>
    %c16_i32_10 = arith.constant 16 : i32
    %42 = vector.broadcast %c16_i32_10 : i32 to vector<128x128xi32>
    %43 = arith.cmpi sge, %29, %42 : vector<128x128xi32>
    %c32_i32_11 = arith.constant 32 : i32
    %44 = vector.broadcast %c32_i32_11 : i32 to vector<128x128xi32>
    %45 = arith.cmpi slt, %29, %44 : vector<128x128xi32>
    %46 = arith.andi %43, %45 : vector<128x128xi1>
    %c16_i32_12 = arith.constant 16 : i32
    %47 = vector.broadcast %c16_i32_12 : i32 to vector<128x128xi32>
    %48 = arith.cmpi sge, %30, %47 : vector<128x128xi32>
    %c32_i32_13 = arith.constant 32 : i32
    %49 = vector.broadcast %c32_i32_13 : i32 to vector<128x128xi32>
    %50 = arith.cmpi slt, %30, %49 : vector<128x128xi32>
    %51 = arith.andi %48, %50 : vector<128x128xi1>
    %52 = arith.andi %46, %51 : vector<128x128xi1>
    %c32_i32_14 = arith.constant 32 : i32
    %53 = vector.broadcast %c32_i32_14 : i32 to vector<128x128xi32>
    %54 = arith.cmpi sge, %29, %53 : vector<128x128xi32>
    %c48_i32 = arith.constant 48 : i32
    %55 = vector.broadcast %c48_i32 : i32 to vector<128x128xi32>
    %56 = arith.cmpi slt, %29, %55 : vector<128x128xi32>
    %57 = arith.andi %54, %56 : vector<128x128xi1>
    %c32_i32_15 = arith.constant 32 : i32
    %58 = vector.broadcast %c32_i32_15 : i32 to vector<128x128xi32>
    %59 = arith.cmpi sge, %30, %58 : vector<128x128xi32>
    %c48_i32_16 = arith.constant 48 : i32
    %60 = vector.broadcast %c48_i32_16 : i32 to vector<128x128xi32>
    %61 = arith.cmpi slt, %30, %60 : vector<128x128xi32>
    %62 = arith.andi %59, %61 : vector<128x128xi1>
    %63 = arith.andi %57, %62 : vector<128x128xi1>
    %c48_i32_17 = arith.constant 48 : i32
    %64 = vector.broadcast %c48_i32_17 : i32 to vector<128x128xi32>
    %65 = arith.cmpi sge, %29, %64 : vector<128x128xi32>
    %c64_i32 = arith.constant 64 : i32
    %66 = vector.broadcast %c64_i32 : i32 to vector<128x128xi32>
    %67 = arith.cmpi slt, %29, %66 : vector<128x128xi32>
    %68 = arith.andi %65, %67 : vector<128x128xi1>
    %c48_i32_18 = arith.constant 48 : i32
    %69 = vector.broadcast %c48_i32_18 : i32 to vector<128x128xi32>
    %70 = arith.cmpi sge, %30, %69 : vector<128x128xi32>
    %c64_i32_19 = arith.constant 64 : i32
    %71 = vector.broadcast %c64_i32_19 : i32 to vector<128x128xi32>
    %72 = arith.cmpi slt, %30, %71 : vector<128x128xi32>
    %73 = arith.andi %70, %72 : vector<128x128xi1>
    %74 = arith.andi %68, %73 : vector<128x128xi1>
    %c64_i32_20 = arith.constant 64 : i32
    %75 = vector.broadcast %c64_i32_20 : i32 to vector<128x128xi32>
    %76 = arith.cmpi sge, %29, %75 : vector<128x128xi32>
    %c80_i32 = arith.constant 80 : i32
    %77 = vector.broadcast %c80_i32 : i32 to vector<128x128xi32>
    %78 = arith.cmpi slt, %29, %77 : vector<128x128xi32>
    %79 = arith.andi %76, %78 : vector<128x128xi1>
    %c64_i32_21 = arith.constant 64 : i32
    %80 = vector.broadcast %c64_i32_21 : i32 to vector<128x128xi32>
    %81 = arith.cmpi sge, %30, %80 : vector<128x128xi32>
    %c80_i32_22 = arith.constant 80 : i32
    %82 = vector.broadcast %c80_i32_22 : i32 to vector<128x128xi32>
    %83 = arith.cmpi slt, %30, %82 : vector<128x128xi32>
    %84 = arith.andi %81, %83 : vector<128x128xi1>
    %85 = arith.andi %79, %84 : vector<128x128xi1>
    %c80_i32_23 = arith.constant 80 : i32
    %86 = vector.broadcast %c80_i32_23 : i32 to vector<128x128xi32>
    %87 = arith.cmpi sge, %29, %86 : vector<128x128xi32>
    %c96_i32 = arith.constant 96 : i32
    %88 = vector.broadcast %c96_i32 : i32 to vector<128x128xi32>
    %89 = arith.cmpi slt, %29, %88 : vector<128x128xi32>
    %90 = arith.andi %87, %89 : vector<128x128xi1>
    %c80_i32_24 = arith.constant 80 : i32
    %91 = vector.broadcast %c80_i32_24 : i32 to vector<128x128xi32>
    %92 = arith.cmpi sge, %30, %91 : vector<128x128xi32>
    %c96_i32_25 = arith.constant 96 : i32
    %93 = vector.broadcast %c96_i32_25 : i32 to vector<128x128xi32>
    %94 = arith.cmpi slt, %30, %93 : vector<128x128xi32>
    %95 = arith.andi %92, %94 : vector<128x128xi1>
    %96 = arith.andi %90, %95 : vector<128x128xi1>
    %c96_i32_26 = arith.constant 96 : i32
    %97 = vector.broadcast %c96_i32_26 : i32 to vector<128x128xi32>
    %98 = arith.cmpi sge, %29, %97 : vector<128x128xi32>
    %c112_i32 = arith.constant 112 : i32
    %99 = vector.broadcast %c112_i32 : i32 to vector<128x128xi32>
    %100 = arith.cmpi slt, %29, %99 : vector<128x128xi32>
    %101 = arith.andi %98, %100 : vector<128x128xi1>
    %c96_i32_27 = arith.constant 96 : i32
    %102 = vector.broadcast %c96_i32_27 : i32 to vector<128x128xi32>
    %103 = arith.cmpi sge, %30, %102 : vector<128x128xi32>
    %c112_i32_28 = arith.constant 112 : i32
    %104 = vector.broadcast %c112_i32_28 : i32 to vector<128x128xi32>
    %105 = arith.cmpi slt, %30, %104 : vector<128x128xi32>
    %106 = arith.andi %103, %105 : vector<128x128xi1>
    %107 = arith.andi %101, %106 : vector<128x128xi1>
    %c112_i32_29 = arith.constant 112 : i32
    %108 = vector.broadcast %c112_i32_29 : i32 to vector<128x128xi32>
    %109 = arith.cmpi sge, %29, %108 : vector<128x128xi32>
    %c128_i32 = arith.constant 128 : i32
    %110 = vector.broadcast %c128_i32 : i32 to vector<128x128xi32>
    %111 = arith.cmpi slt, %29, %110 : vector<128x128xi32>
    %112 = arith.andi %109, %111 : vector<128x128xi1>
    %c112_i32_30 = arith.constant 112 : i32
    %113 = vector.broadcast %c112_i32_30 : i32 to vector<128x128xi32>
    %114 = arith.cmpi sge, %30, %113 : vector<128x128xi32>
    %c128_i32_31 = arith.constant 128 : i32
    %115 = vector.broadcast %c128_i32_31 : i32 to vector<128x128xi32>
    %116 = arith.cmpi slt, %30, %115 : vector<128x128xi32>
    %117 = arith.andi %114, %116 : vector<128x128xi1>
    %118 = arith.andi %112, %117 : vector<128x128xi1>
    %119 = arith.ori %41, %52 : vector<128x128xi1>
    %120 = arith.ori %119, %63 : vector<128x128xi1>
    %121 = arith.ori %120, %74 : vector<128x128xi1>
    %122 = arith.ori %121, %85 : vector<128x128xi1>
    %123 = arith.ori %122, %96 : vector<128x128xi1>
    %124 = arith.ori %123, %107 : vector<128x128xi1>
    %125 = arith.ori %124, %118 : vector<128x128xi1>
    %c0_32 = arith.constant 0 : index
    %c0_33 = arith.constant 0 : index
    %126 = vector.load %arg1[%c0_32, %c0_33] : memref<1x128xf32, #tpu.memory_space<vmem>>, vector<1x128xf32>
    %cst_34 = arith.constant 5.000000e-01 : f32
    %127 = vector.broadcast %cst_34 : f32 to vector<1x128xf32>
    %128 = arith.cmpf ogt, %126, %127 : vector<1x128xf32>
    %cst_35 = arith.constant 0.000000e+00 : f32
    %cst_36 = arith.constant -1.000000e+04 : f32
    %129 = vector.broadcast %cst_35 : f32 to vector<1x128xf32>
    %130 = vector.broadcast %cst_36 : f32 to vector<1x128xf32>
    %131 = arith.select %128, %129, %130 : vector<1x128xi1>, vector<1x128xf32>
    %cst_37 = arith.constant -1.000000e+09 : f32
    %132 = vector.shape_cast %131 : vector<1x128xf32> to vector<1x128xf32>
    %133 = vector.broadcast %132 : vector<1x128xf32> to vector<128x128xf32>
    %134 = vector.broadcast %cst_37 : f32 to vector<128x128xf32>
    %135 = arith.select %125, %133, %134 : vector<128x128xi1>, vector<128x128xf32>
    %c0_38 = arith.constant 0 : index
    %c0_39 = arith.constant 0 : index
    %c0_40 = arith.constant 0 : index
    %136 = vector.load %arg4[%c0_38, %c0_39, %c0_40] : memref<2x8x128xf32, #tpu.memory_space<vmem>>, vector<1x8x128xf32>
    %137 = vector.shape_cast %136 : vector<1x8x128xf32> to vector<8x128xf32>
    %138 = arith.truncf %28 : vector<128x128xf32> to vector<128x128xbf16>
    %c0_41 = arith.constant 0 : index
    %c0_42 = arith.constant 0 : index
    %c0_43 = arith.constant 0 : index
    %139 = vector.load %arg3[%c0_41, %c0_42, %c0_43] : memref<9x128x128xbf16, #tpu.memory_space<vmem>>, vector<1x128x128xbf16>
    %140 = vector.shape_cast %139 : vector<1x128x128xbf16> to vector<128x128xbf16>
    %cst_44 = arith.constant dense<0.000000e+00> : vector<128x128xf32>
    %141 = tpu.matmul %138, %140, %cst_44 {dimension_numbers = #tpu.dot_dimension_numbers<[1], [0], [0], [1], [0, 0, 1, 1], [], []>} : vector<128x128xbf16>, vector<128x128xbf16>, vector<128x128xf32> -> vector<128x128xf32>
    %142 = vector.extract_strided_slice %137 {offsets = [0, 0], sizes = [1, 128], strides = [1, 1]} : vector<8x128xf32> to vector<1x128xf32>
    %143 = vector.broadcast %142 : vector<1x128xf32> to vector<128x128xf32>
    %144 = arith.addf %141, %143 : vector<128x128xf32>
    %145 = vector.extract_strided_slice %144 {offsets = [0, 0], sizes = [128, 16], strides = [1, 1]} : vector<128x128xf32> to vector<128x16xf32>
    %146 = arith.truncf %145 : vector<128x16xf32> to vector<128x16xbf16>
    %147 = vector.extract_strided_slice %144 {offsets = [0, 32], sizes = [128, 16], strides = [1, 1]} : vector<128x128xf32> to vector<128x16xf32>
    %148 = arith.truncf %147 : vector<128x16xf32> to vector<128x16xbf16>
    %149 = vector.extract_strided_slice %144 {offsets = [0, 64], sizes = [128, 16], strides = [1, 1]} : vector<128x128xf32> to vector<128x16xf32>
    %150 = arith.truncf %149 : vector<128x16xf32> to vector<128x16xbf16>
    %cst_45 = arith.constant dense<0.000000e+00> : vector<128x128xf32>
    %151 = tpu.matmul %146, %148, %cst_45 {dimension_numbers = #tpu.dot_dimension_numbers<[1], [1], [0], [0], [0, 0, 1, 0], [], []>} : vector<128x16xbf16>, vector<128x16xbf16>, vector<128x128xf32> -> vector<128x128xf32>
    %cst_46 = arith.constant 2.500000e-01 : f32
    %152 = vector.broadcast %cst_46 : f32 to vector<128x128xf32>
    %153 = arith.mulf %151, %152 : vector<128x128xf32>
    %154 = arith.addf %153, %135 : vector<128x128xf32>
    %cst_47 = arith.constant dense<0xFF800000> : vector<128xf32>
    %155 = vector.multi_reduction <maximumf>, %154, %cst_47 [1] : vector<128x128xf32> to vector<128xf32>
    %156 = vector.shape_cast %155 : vector<128xf32> to vector<128x1xf32>
    %157 = vector.broadcast %156 : vector<128x1xf32> to vector<128x128xf32>
    %158 = arith.subf %154, %157 : vector<128x128xf32>
    %159 = math.exp %158 : vector<128x128xf32>
    %cst_48 = arith.constant dense<0.000000e+00> : vector<128xf32>
    %160 = vector.multi_reduction <add>, %159, %cst_48 [1] : vector<128x128xf32> to vector<128xf32>
    %161 = vector.shape_cast %160 : vector<128xf32> to vector<128x1xf32>
    %162 = tpu.reciprocal %161 {approx = true} : vector<128x1xf32> -> vector<128x1xf32>
    %163 = vector.broadcast %162 : vector<128x1xf32> to vector<128x128xf32>
    %164 = arith.mulf %159, %163 : vector<128x128xf32>
    %165 = arith.truncf %164 : vector<128x128xf32> to vector<128x128xbf16>
    %cst_49 = arith.constant dense<0.000000e+00> : vector<128x16xf32>
    %166 = tpu.matmul %165, %150, %cst_49 {dimension_numbers = #tpu.dot_dimension_numbers<[1], [0], [0], [1], [0, 0, 1, 1], [], []>} : vector<128x128xbf16>, vector<128x16xbf16>, vector<128x16xf32> -> vector<128x16xf32>
    %167 = vector.extract_strided_slice %144 {offsets = [0, 16], sizes = [128, 16], strides = [1, 1]} : vector<128x128xf32> to vector<128x16xf32>
    %168 = arith.truncf %167 : vector<128x16xf32> to vector<128x16xbf16>
    %169 = vector.extract_strided_slice %144 {offsets = [0, 48], sizes = [128, 16], strides = [1, 1]} : vector<128x128xf32> to vector<128x16xf32>
    %170 = arith.truncf %169 : vector<128x16xf32> to vector<128x16xbf16>
    %171 = vector.extract_strided_slice %144 {offsets = [0, 80], sizes = [128, 16], strides = [1, 1]} : vector<128x128xf32> to vector<128x16xf32>
    %172 = arith.truncf %171 : vector<128x16xf32> to vector<128x16xbf16>
    %cst_50 = arith.constant dense<0.000000e+00> : vector<128x128xf32>
    %173 = tpu.matmul %168, %170, %cst_50 {dimension_numbers = #tpu.dot_dimension_numbers<[1], [1], [0], [0], [0, 0, 1, 0], [], []>} : vector<128x16xbf16>, vector<128x16xbf16>, vector<128x128xf32> -> vector<128x128xf32>
    %cst_51 = arith.constant 2.500000e-01 : f32
    %174 = vector.broadcast %cst_51 : f32 to vector<128x128xf32>
    %175 = arith.mulf %173, %174 : vector<128x128xf32>
    %176 = arith.addf %175, %135 : vector<128x128xf32>
    %cst_52 = arith.constant dense<0xFF800000> : vector<128xf32>
    %177 = vector.multi_reduction <maximumf>, %176, %cst_52 [1] : vector<128x128xf32> to vector<128xf32>
    %178 = vector.shape_cast %177 : vector<128xf32> to vector<128x1xf32>
    %179 = vector.broadcast %178 : vector<128x1xf32> to vector<128x128xf32>
    %180 = arith.subf %176, %179 : vector<128x128xf32>
    %181 = math.exp %180 : vector<128x128xf32>
    %cst_53 = arith.constant dense<0.000000e+00> : vector<128xf32>
    %182 = vector.multi_reduction <add>, %181, %cst_53 [1] : vector<128x128xf32> to vector<128xf32>
    %183 = vector.shape_cast %182 : vector<128xf32> to vector<128x1xf32>
    %184 = tpu.reciprocal %183 {approx = true} : vector<128x1xf32> -> vector<128x1xf32>
    %185 = vector.broadcast %184 : vector<128x1xf32> to vector<128x128xf32>
    %186 = arith.mulf %181, %185 : vector<128x128xf32>
    %187 = arith.truncf %186 : vector<128x128xf32> to vector<128x128xbf16>
    %cst_54 = arith.constant dense<0.000000e+00> : vector<128x16xf32>
    %188 = tpu.matmul %187, %172, %cst_54 {dimension_numbers = #tpu.dot_dimension_numbers<[1], [0], [0], [1], [0, 0, 1, 1], [], []>} : vector<128x128xbf16>, vector<128x16xbf16>, vector<128x16xf32> -> vector<128x16xf32>
    %cst_55 = arith.constant 0.000000e+00 : f32
    %189 = vector.broadcast %cst_55 : f32 to vector<128x96xf32>
    %190 = tpu.concatenate %166, %188, %189 in 1 : vector<128x16xf32>, vector<128x16xf32>, vector<128x96xf32> -> vector<128x128xf32>
    %191 = arith.truncf %190 : vector<128x128xf32> to vector<128x128xbf16>
    %c1 = arith.constant 1 : index
    %c0_56 = arith.constant 0 : index
    %c0_57 = arith.constant 0 : index
    %192 = vector.load %arg3[%c1, %c0_56, %c0_57] : memref<9x128x128xbf16, #tpu.memory_space<vmem>>, vector<1x128x128xbf16>
    %193 = vector.shape_cast %192 : vector<1x128x128xbf16> to vector<128x128xbf16>
    %cst_58 = arith.constant dense<0.000000e+00> : vector<128x128xf32>
    %194 = tpu.matmul %191, %193, %cst_58 {dimension_numbers = #tpu.dot_dimension_numbers<[1], [0], [0], [1], [0, 0, 1, 1], [], []>} : vector<128x128xbf16>, vector<128x128xbf16>, vector<128x128xf32> -> vector<128x128xf32>
    %195 = vector.extract_strided_slice %137 {offsets = [1, 0], sizes = [1, 128], strides = [1, 1]} : vector<8x128xf32> to vector<1x128xf32>
    %196 = vector.broadcast %195 : vector<1x128xf32> to vector<128x128xf32>
    %197 = arith.addf %194, %196 : vector<128x128xf32>
    %198 = arith.addf %197, %28 : vector<128x128xf32>
    %199 = vector.extract_strided_slice %137 {offsets = [2, 0], sizes = [1, 128], strides = [1, 1]} : vector<8x128xf32> to vector<1x128xf32>
    %200 = vector.extract_strided_slice %137 {offsets = [3, 0], sizes = [1, 128], strides = [1, 1]} : vector<8x128xf32> to vector<1x128xf32>
    %cst_59 = arith.constant dense<0.000000e+00> : vector<128xf32>
    %201 = vector.multi_reduction <add>, %198, %cst_59 [1] : vector<128x128xf32> to vector<128xf32>
    %202 = vector.shape_cast %201 : vector<128xf32> to vector<128x1xf32>
    %cst_60 = arith.constant 3.125000e-02 : f32
    %203 = vector.broadcast %cst_60 : f32 to vector<128x1xf32>
    %204 = arith.mulf %202, %203 : vector<128x1xf32>
    %205 = vector.broadcast %204 : vector<128x1xf32> to vector<128x128xf32>
    %206 = arith.subf %198, %205 : vector<128x128xf32>
    %cst_61 = arith.constant 0.000000e+00 : f32
    %207 = vector.broadcast %cst_61 : f32 to vector<128x128xf32>
    %208 = arith.select %2, %206, %207 : vector<128x128xi1>, vector<128x128xf32>
    %209 = arith.mulf %208, %208 : vector<128x128xf32>
    %cst_62 = arith.constant dense<0.000000e+00> : vector<128xf32>
    %210 = vector.multi_reduction <add>, %209, %cst_62 [1] : vector<128x128xf32> to vector<128xf32>
    %211 = vector.shape_cast %210 : vector<128xf32> to vector<128x1xf32>
    %cst_63 = arith.constant 3.125000e-02 : f32
    %212 = vector.broadcast %cst_63 : f32 to vector<128x1xf32>
    %213 = arith.mulf %211, %212 : vector<128x1xf32>
    %cst_64 = arith.constant 9.99999996E-13 : f32
    %214 = vector.broadcast %cst_64 : f32 to vector<128x1xf32>
    %215 = arith.addf %213, %214 : vector<128x1xf32>
    %216 = math.rsqrt %215 : vector<128x1xf32>
    %217 = vector.broadcast %216 : vector<128x1xf32> to vector<128x128xf32>
    %218 = arith.mulf %208, %217 : vector<128x128xf32>
    %219 = vector.broadcast %199 : vector<1x128xf32> to vector<128x128xf32>
    %220 = arith.mulf %218, %219 : vector<128x128xf32>
    %221 = vector.broadcast %200 : vector<1x128xf32> to vector<128x128xf32>
    %222 = arith.addf %220, %221 : vector<128x128xf32>
    %223 = arith.truncf %222 : vector<128x128xf32> to vector<128x128xbf16>
    %c2 = arith.constant 2 : index
    %c0_65 = arith.constant 0 : index
    %c0_66 = arith.constant 0 : index
    %224 = vector.load %arg3[%c2, %c0_65, %c0_66] : memref<9x128x128xbf16, #tpu.memory_space<vmem>>, vector<1x128x128xbf16>
    %225 = vector.shape_cast %224 : vector<1x128x128xbf16> to vector<128x128xbf16>
    %cst_67 = arith.constant dense<0.000000e+00> : vector<128x128xf32>
    %226 = tpu.matmul %223, %225, %cst_67 {dimension_numbers = #tpu.dot_dimension_numbers<[1], [0], [0], [1], [0, 0, 1, 1], [], []>} : vector<128x128xbf16>, vector<128x128xbf16>, vector<128x128xf32> -> vector<128x128xf32>
    %227 = vector.extract_strided_slice %137 {offsets = [4, 0], sizes = [1, 128], strides = [1, 1]} : vector<8x128xf32> to vector<1x128xf32>
    %228 = vector.broadcast %227 : vector<1x128xf32> to vector<128x128xf32>
    %229 = arith.addf %226, %228 : vector<128x128xf32>
    %cst_68 = arith.constant 0.707106769 : f32
    %230 = vector.broadcast %cst_68 : f32 to vector<128x128xf32>
    %231 = arith.mulf %229, %230 : vector<128x128xf32>
    %cst_69 = arith.constant -3.8325069 : f32
    %cst_70 = arith.constant 3.8325069 : f32
    %232 = vector.broadcast %cst_69 : f32 to vector<128x128xf32>
    %233 = arith.maximumf %232, %231 : vector<128x128xf32>
    %234 = vector.broadcast %cst_70 : f32 to vector<128x128xf32>
    %235 = arith.minimumf %234, %233 : vector<128x128xf32>
    %236 = arith.mulf %235, %235 : vector<128x128xf32>
    %cst_71 = arith.constant 2.29050653E-4 : f32
    %237 = vector.broadcast %cst_71 : f32 to vector<128x128xf32>
    %238 = arith.mulf %237, %236 : vector<128x128xf32>
    %cst_72 = arith.constant 0.00340829091 : f32
    %239 = vector.broadcast %cst_72 : f32 to vector<128x128xf32>
    %240 = arith.addf %238, %239 : vector<128x128xf32>
    %241 = arith.mulf %240, %236 : vector<128x128xf32>
    %cst_73 = arith.constant 0.0509556942 : f32
    %242 = vector.broadcast %cst_73 : f32 to vector<128x128xf32>
    %243 = arith.addf %241, %242 : vector<128x128xf32>
    %244 = arith.mulf %243, %236 : vector<128x128xf32>
    %cst_74 = arith.constant 0.185208321 : f32
    %245 = vector.broadcast %cst_74 : f32 to vector<128x128xf32>
    %246 = arith.addf %244, %245 : vector<128x128xf32>
    %247 = arith.mulf %246, %236 : vector<128x128xf32>
    %cst_75 = arith.constant 1.12837911 : f32
    %248 = vector.broadcast %cst_75 : f32 to vector<128x128xf32>
    %249 = arith.addf %247, %248 : vector<128x128xf32>
    %cst_76 = arith.constant -1.17916031E-7 : f32
    %250 = vector.broadcast %cst_76 : f32 to vector<128x128xf32>
    %251 = arith.mulf %250, %236 : vector<128x128xf32>
    %cst_77 = arith.constant 2.35479656E-5 : f32
    %252 = vector.broadcast %cst_77 : f32 to vector<128x128xf32>
    %253 = arith.addf %251, %252 : vector<128x128xf32>
    %254 = arith.mulf %253, %236 : vector<128x128xf32>
    %cst_78 = arith.constant 0.00101796258 : f32
    %255 = vector.broadcast %cst_78 : f32 to vector<128x128xf32>
    %256 = arith.addf %254, %255 : vector<128x128xf32>
    %257 = arith.mulf %256, %236 : vector<128x128xf32>
    %cst_79 = arith.constant 0.0140704699 : f32
    %258 = vector.broadcast %cst_79 : f32 to vector<128x128xf32>
    %259 = arith.addf %257, %258 : vector<128x128xf32>
    %260 = arith.mulf %259, %236 : vector<128x128xf32>
    %cst_80 = arith.constant 0.110985048 : f32
    %261 = vector.broadcast %cst_80 : f32 to vector<128x128xf32>
    %262 = arith.addf %260, %261 : vector<128x128xf32>
    %263 = arith.mulf %262, %236 : vector<128x128xf32>
    %cst_81 = arith.constant 0.497469246 : f32
    %264 = vector.broadcast %cst_81 : f32 to vector<128x128xf32>
    %265 = arith.addf %263, %264 : vector<128x128xf32>
    %266 = arith.mulf %265, %236 : vector<128x128xf32>
    %cst_82 = arith.constant 1.000000e+00 : f32
    %267 = vector.broadcast %cst_82 : f32 to vector<128x128xf32>
    %268 = arith.addf %266, %267 : vector<128x128xf32>
    %269 = arith.mulf %235, %249 : vector<128x128xf32>
    %270 = arith.divf %269, %268 : vector<128x128xf32>
    %cst_83 = arith.constant 5.000000e-01 : f32
    %271 = vector.broadcast %cst_83 : f32 to vector<128x128xf32>
    %272 = arith.mulf %271, %229 : vector<128x128xf32>
    %cst_84 = arith.constant 1.000000e+00 : f32
    %273 = vector.broadcast %cst_84 : f32 to vector<128x128xf32>
    %274 = arith.addf %273, %270 : vector<128x128xf32>
    %275 = arith.mulf %272, %274 : vector<128x128xf32>
    %276 = arith.truncf %275 : vector<128x128xf32> to vector<128x128xbf16>
    %c3 = arith.constant 3 : index
    %c0_85 = arith.constant 0 : index
    %c0_86 = arith.constant 0 : index
    %277 = vector.load %arg3[%c3, %c0_85, %c0_86] : memref<9x128x128xbf16, #tpu.memory_space<vmem>>, vector<1x128x128xbf16>
    %278 = vector.shape_cast %277 : vector<1x128x128xbf16> to vector<128x128xbf16>
    %cst_87 = arith.constant dense<0.000000e+00> : vector<128x128xf32>
    %279 = tpu.matmul %276, %278, %cst_87 {dimension_numbers = #tpu.dot_dimension_numbers<[1], [0], [0], [1], [0, 0, 1, 1], [], []>} : vector<128x128xbf16>, vector<128x128xbf16>, vector<128x128xf32> -> vector<128x128xf32>
    %280 = vector.extract_strided_slice %137 {offsets = [5, 0], sizes = [1, 128], strides = [1, 1]} : vector<8x128xf32> to vector<1x128xf32>
    %281 = vector.broadcast %280 : vector<1x128xf32> to vector<128x128xf32>
    %282 = arith.addf %279, %281 : vector<128x128xf32>
    %283 = arith.addf %282, %222 : vector<128x128xf32>
    %284 = vector.extract_strided_slice %137 {offsets = [6, 0], sizes = [1, 128], strides = [1, 1]} : vector<8x128xf32> to vector<1x128xf32>
    %285 = vector.extract_strided_slice %137 {offsets = [7, 0], sizes = [1, 128], strides = [1, 1]} : vector<8x128xf32> to vector<1x128xf32>
    %cst_88 = arith.constant dense<0.000000e+00> : vector<128xf32>
    %286 = vector.multi_reduction <add>, %283, %cst_88 [1] : vector<128x128xf32> to vector<128xf32>
    %287 = vector.shape_cast %286 : vector<128xf32> to vector<128x1xf32>
    %cst_89 = arith.constant 3.125000e-02 : f32
    %288 = vector.broadcast %cst_89 : f32 to vector<128x1xf32>
    %289 = arith.mulf %287, %288 : vector<128x1xf32>
    %290 = vector.broadcast %289 : vector<128x1xf32> to vector<128x128xf32>
    %291 = arith.subf %283, %290 : vector<128x128xf32>
    %cst_90 = arith.constant 0.000000e+00 : f32
    %292 = vector.broadcast %cst_90 : f32 to vector<128x128xf32>
    %293 = arith.select %2, %291, %292 : vector<128x128xi1>, vector<128x128xf32>
    %294 = arith.mulf %293, %293 : vector<128x128xf32>
    %cst_91 = arith.constant dense<0.000000e+00> : vector<128xf32>
    %295 = vector.multi_reduction <add>, %294, %cst_91 [1] : vector<128x128xf32> to vector<128xf32>
    %296 = vector.shape_cast %295 : vector<128xf32> to vector<128x1xf32>
    %cst_92 = arith.constant 3.125000e-02 : f32
    %297 = vector.broadcast %cst_92 : f32 to vector<128x1xf32>
    %298 = arith.mulf %296, %297 : vector<128x1xf32>
    %cst_93 = arith.constant 9.99999996E-13 : f32
    %299 = vector.broadcast %cst_93 : f32 to vector<128x1xf32>
    %300 = arith.addf %298, %299 : vector<128x1xf32>
    %301 = math.rsqrt %300 : vector<128x1xf32>
    %302 = vector.broadcast %301 : vector<128x1xf32> to vector<128x128xf32>
    %303 = arith.mulf %293, %302 : vector<128x128xf32>
    %304 = vector.broadcast %284 : vector<1x128xf32> to vector<128x128xf32>
    %305 = arith.mulf %303, %304 : vector<128x128xf32>
    %306 = vector.broadcast %285 : vector<1x128xf32> to vector<128x128xf32>
    %307 = arith.addf %305, %306 : vector<128x128xf32>
    %c1_94 = arith.constant 1 : index
    %c0_95 = arith.constant 0 : index
    %c0_96 = arith.constant 0 : index
    %308 = vector.load %arg4[%c1_94, %c0_95, %c0_96] : memref<2x8x128xf32, #tpu.memory_space<vmem>>, vector<1x8x128xf32>
    %309 = vector.shape_cast %308 : vector<1x8x128xf32> to vector<8x128xf32>
    %310 = arith.truncf %307 : vector<128x128xf32> to vector<128x128xbf16>
    %c4 = arith.constant 4 : index
    %c0_97 = arith.constant 0 : index
    %c0_98 = arith.constant 0 : index
    %311 = vector.load %arg3[%c4, %c0_97, %c0_98] : memref<9x128x128xbf16, #tpu.memory_space<vmem>>, vector<1x128x128xbf16>
    %312 = vector.shape_cast %311 : vector<1x128x128xbf16> to vector<128x128xbf16>
    %cst_99 = arith.constant dense<0.000000e+00> : vector<128x128xf32>
    %313 = tpu.matmul %310, %312, %cst_99 {dimension_numbers = #tpu.dot_dimension_numbers<[1], [0], [0], [1], [0, 0, 1, 1], [], []>} : vector<128x128xbf16>, vector<128x128xbf16>, vector<128x128xf32> -> vector<128x128xf32>
    %314 = vector.extract_strided_slice %309 {offsets = [0, 0], sizes = [1, 128], strides = [1, 1]} : vector<8x128xf32> to vector<1x128xf32>
    %315 = vector.broadcast %314 : vector<1x128xf32> to vector<128x128xf32>
    %316 = arith.addf %313, %315 : vector<128x128xf32>
    %317 = vector.extract_strided_slice %316 {offsets = [0, 0], sizes = [128, 16], strides = [1, 1]} : vector<128x128xf32> to vector<128x16xf32>
    %318 = arith.truncf %317 : vector<128x16xf32> to vector<128x16xbf16>
    %319 = vector.extract_strided_slice %316 {offsets = [0, 32], sizes = [128, 16], strides = [1, 1]} : vector<128x128xf32> to vector<128x16xf32>
    %320 = arith.truncf %319 : vector<128x16xf32> to vector<128x16xbf16>
    %321 = vector.extract_strided_slice %316 {offsets = [0, 64], sizes = [128, 16], strides = [1, 1]} : vector<128x128xf32> to vector<128x16xf32>
    %322 = arith.truncf %321 : vector<128x16xf32> to vector<128x16xbf16>
    %cst_100 = arith.constant dense<0.000000e+00> : vector<128x128xf32>
    %323 = tpu.matmul %318, %320, %cst_100 {dimension_numbers = #tpu.dot_dimension_numbers<[1], [1], [0], [0], [0, 0, 1, 0], [], []>} : vector<128x16xbf16>, vector<128x16xbf16>, vector<128x128xf32> -> vector<128x128xf32>
    %cst_101 = arith.constant 2.500000e-01 : f32
    %324 = vector.broadcast %cst_101 : f32 to vector<128x128xf32>
    %325 = arith.mulf %323, %324 : vector<128x128xf32>
    %326 = arith.addf %325, %135 : vector<128x128xf32>
    %cst_102 = arith.constant dense<0xFF800000> : vector<128xf32>
    %327 = vector.multi_reduction <maximumf>, %326, %cst_102 [1] : vector<128x128xf32> to vector<128xf32>
    %328 = vector.shape_cast %327 : vector<128xf32> to vector<128x1xf32>
    %329 = vector.broadcast %328 : vector<128x1xf32> to vector<128x128xf32>
    %330 = arith.subf %326, %329 : vector<128x128xf32>
    %331 = math.exp %330 : vector<128x128xf32>
    %cst_103 = arith.constant dense<0.000000e+00> : vector<128xf32>
    %332 = vector.multi_reduction <add>, %331, %cst_103 [1] : vector<128x128xf32> to vector<128xf32>
    %333 = vector.shape_cast %332 : vector<128xf32> to vector<128x1xf32>
    %334 = tpu.reciprocal %333 {approx = true} : vector<128x1xf32> -> vector<128x1xf32>
    %335 = vector.broadcast %334 : vector<128x1xf32> to vector<128x128xf32>
    %336 = arith.mulf %331, %335 : vector<128x128xf32>
    %337 = arith.truncf %336 : vector<128x128xf32> to vector<128x128xbf16>
    %cst_104 = arith.constant dense<0.000000e+00> : vector<128x16xf32>
    %338 = tpu.matmul %337, %322, %cst_104 {dimension_numbers = #tpu.dot_dimension_numbers<[1], [0], [0], [1], [0, 0, 1, 1], [], []>} : vector<128x128xbf16>, vector<128x16xbf16>, vector<128x16xf32> -> vector<128x16xf32>
    %339 = vector.extract_strided_slice %316 {offsets = [0, 16], sizes = [128, 16], strides = [1, 1]} : vector<128x128xf32> to vector<128x16xf32>
    %340 = arith.truncf %339 : vector<128x16xf32> to vector<128x16xbf16>
    %341 = vector.extract_strided_slice %316 {offsets = [0, 48], sizes = [128, 16], strides = [1, 1]} : vector<128x128xf32> to vector<128x16xf32>
    %342 = arith.truncf %341 : vector<128x16xf32> to vector<128x16xbf16>
    %343 = vector.extract_strided_slice %316 {offsets = [0, 80], sizes = [128, 16], strides = [1, 1]} : vector<128x128xf32> to vector<128x16xf32>
    %344 = arith.truncf %343 : vector<128x16xf32> to vector<128x16xbf16>
    %cst_105 = arith.constant dense<0.000000e+00> : vector<128x128xf32>
    %345 = tpu.matmul %340, %342, %cst_105 {dimension_numbers = #tpu.dot_dimension_numbers<[1], [1], [0], [0], [0, 0, 1, 0], [], []>} : vector<128x16xbf16>, vector<128x16xbf16>, vector<128x128xf32> -> vector<128x128xf32>
    %cst_106 = arith.constant 2.500000e-01 : f32
    %346 = vector.broadcast %cst_106 : f32 to vector<128x128xf32>
    %347 = arith.mulf %345, %346 : vector<128x128xf32>
    %348 = arith.addf %347, %135 : vector<128x128xf32>
    %cst_107 = arith.constant dense<0xFF800000> : vector<128xf32>
    %349 = vector.multi_reduction <maximumf>, %348, %cst_107 [1] : vector<128x128xf32> to vector<128xf32>
    %350 = vector.shape_cast %349 : vector<128xf32> to vector<128x1xf32>
    %351 = vector.broadcast %350 : vector<128x1xf32> to vector<128x128xf32>
    %352 = arith.subf %348, %351 : vector<128x128xf32>
    %353 = math.exp %352 : vector<128x128xf32>
    %cst_108 = arith.constant dense<0.000000e+00> : vector<128xf32>
    %354 = vector.multi_reduction <add>, %353, %cst_108 [1] : vector<128x128xf32> to vector<128xf32>
    %355 = vector.shape_cast %354 : vector<128xf32> to vector<128x1xf32>
    %356 = tpu.reciprocal %355 {approx = true} : vector<128x1xf32> -> vector<128x1xf32>
    %357 = vector.broadcast %356 : vector<128x1xf32> to vector<128x128xf32>
    %358 = arith.mulf %353, %357 : vector<128x128xf32>
    %359 = arith.truncf %358 : vector<128x128xf32> to vector<128x128xbf16>
    %cst_109 = arith.constant dense<0.000000e+00> : vector<128x16xf32>
    %360 = tpu.matmul %359, %344, %cst_109 {dimension_numbers = #tpu.dot_dimension_numbers<[1], [0], [0], [1], [0, 0, 1, 1], [], []>} : vector<128x128xbf16>, vector<128x16xbf16>, vector<128x16xf32> -> vector<128x16xf32>
    %cst_110 = arith.constant 0.000000e+00 : f32
    %361 = vector.broadcast %cst_110 : f32 to vector<128x96xf32>
    %362 = tpu.concatenate %338, %360, %361 in 1 : vector<128x16xf32>, vector<128x16xf32>, vector<128x96xf32> -> vector<128x128xf32>
    %363 = arith.truncf %362 : vector<128x128xf32> to vector<128x128xbf16>
    %c5 = arith.constant 5 : index
    %c0_111 = arith.constant 0 : index
    %c0_112 = arith.constant 0 : index
    %364 = vector.load %arg3[%c5, %c0_111, %c0_112] : memref<9x128x128xbf16, #tpu.memory_space<vmem>>, vector<1x128x128xbf16>
    %365 = vector.shape_cast %364 : vector<1x128x128xbf16> to vector<128x128xbf16>
    %cst_113 = arith.constant dense<0.000000e+00> : vector<128x128xf32>
    %366 = tpu.matmul %363, %365, %cst_113 {dimension_numbers = #tpu.dot_dimension_numbers<[1], [0], [0], [1], [0, 0, 1, 1], [], []>} : vector<128x128xbf16>, vector<128x128xbf16>, vector<128x128xf32> -> vector<128x128xf32>
    %367 = vector.extract_strided_slice %309 {offsets = [1, 0], sizes = [1, 128], strides = [1, 1]} : vector<8x128xf32> to vector<1x128xf32>
    %368 = vector.broadcast %367 : vector<1x128xf32> to vector<128x128xf32>
    %369 = arith.addf %366, %368 : vector<128x128xf32>
    %370 = arith.addf %369, %307 : vector<128x128xf32>
    %371 = vector.extract_strided_slice %309 {offsets = [2, 0], sizes = [1, 128], strides = [1, 1]} : vector<8x128xf32> to vector<1x128xf32>
    %372 = vector.extract_strided_slice %309 {offsets = [3, 0], sizes = [1, 128], strides = [1, 1]} : vector<8x128xf32> to vector<1x128xf32>
    %cst_114 = arith.constant dense<0.000000e+00> : vector<128xf32>
    %373 = vector.multi_reduction <add>, %370, %cst_114 [1] : vector<128x128xf32> to vector<128xf32>
    %374 = vector.shape_cast %373 : vector<128xf32> to vector<128x1xf32>
    %cst_115 = arith.constant 3.125000e-02 : f32
    %375 = vector.broadcast %cst_115 : f32 to vector<128x1xf32>
    %376 = arith.mulf %374, %375 : vector<128x1xf32>
    %377 = vector.broadcast %376 : vector<128x1xf32> to vector<128x128xf32>
    %378 = arith.subf %370, %377 : vector<128x128xf32>
    %cst_116 = arith.constant 0.000000e+00 : f32
    %379 = vector.broadcast %cst_116 : f32 to vector<128x128xf32>
    %380 = arith.select %2, %378, %379 : vector<128x128xi1>, vector<128x128xf32>
    %381 = arith.mulf %380, %380 : vector<128x128xf32>
    %cst_117 = arith.constant dense<0.000000e+00> : vector<128xf32>
    %382 = vector.multi_reduction <add>, %381, %cst_117 [1] : vector<128x128xf32> to vector<128xf32>
    %383 = vector.shape_cast %382 : vector<128xf32> to vector<128x1xf32>
    %cst_118 = arith.constant 3.125000e-02 : f32
    %384 = vector.broadcast %cst_118 : f32 to vector<128x1xf32>
    %385 = arith.mulf %383, %384 : vector<128x1xf32>
    %cst_119 = arith.constant 9.99999996E-13 : f32
    %386 = vector.broadcast %cst_119 : f32 to vector<128x1xf32>
    %387 = arith.addf %385, %386 : vector<128x1xf32>
    %388 = math.rsqrt %387 : vector<128x1xf32>
    %389 = vector.broadcast %388 : vector<128x1xf32> to vector<128x128xf32>
    %390 = arith.mulf %380, %389 : vector<128x128xf32>
    %391 = vector.broadcast %371 : vector<1x128xf32> to vector<128x128xf32>
    %392 = arith.mulf %390, %391 : vector<128x128xf32>
    %393 = vector.broadcast %372 : vector<1x128xf32> to vector<128x128xf32>
    %394 = arith.addf %392, %393 : vector<128x128xf32>
    %395 = arith.truncf %394 : vector<128x128xf32> to vector<128x128xbf16>
    %c6 = arith.constant 6 : index
    %c0_120 = arith.constant 0 : index
    %c0_121 = arith.constant 0 : index
    %396 = vector.load %arg3[%c6, %c0_120, %c0_121] : memref<9x128x128xbf16, #tpu.memory_space<vmem>>, vector<1x128x128xbf16>
    %397 = vector.shape_cast %396 : vector<1x128x128xbf16> to vector<128x128xbf16>
    %cst_122 = arith.constant dense<0.000000e+00> : vector<128x128xf32>
    %398 = tpu.matmul %395, %397, %cst_122 {dimension_numbers = #tpu.dot_dimension_numbers<[1], [0], [0], [1], [0, 0, 1, 1], [], []>} : vector<128x128xbf16>, vector<128x128xbf16>, vector<128x128xf32> -> vector<128x128xf32>
    %399 = vector.extract_strided_slice %309 {offsets = [4, 0], sizes = [1, 128], strides = [1, 1]} : vector<8x128xf32> to vector<1x128xf32>
    %400 = vector.broadcast %399 : vector<1x128xf32> to vector<128x128xf32>
    %401 = arith.addf %398, %400 : vector<128x128xf32>
    %cst_123 = arith.constant 0.707106769 : f32
    %402 = vector.broadcast %cst_123 : f32 to vector<128x128xf32>
    %403 = arith.mulf %401, %402 : vector<128x128xf32>
    %cst_124 = arith.constant -3.8325069 : f32
    %cst_125 = arith.constant 3.8325069 : f32
    %404 = vector.broadcast %cst_124 : f32 to vector<128x128xf32>
    %405 = arith.maximumf %404, %403 : vector<128x128xf32>
    %406 = vector.broadcast %cst_125 : f32 to vector<128x128xf32>
    %407 = arith.minimumf %406, %405 : vector<128x128xf32>
    %408 = arith.mulf %407, %407 : vector<128x128xf32>
    %cst_126 = arith.constant 2.29050653E-4 : f32
    %409 = vector.broadcast %cst_126 : f32 to vector<128x128xf32>
    %410 = arith.mulf %409, %408 : vector<128x128xf32>
    %cst_127 = arith.constant 0.00340829091 : f32
    %411 = vector.broadcast %cst_127 : f32 to vector<128x128xf32>
    %412 = arith.addf %410, %411 : vector<128x128xf32>
    %413 = arith.mulf %412, %408 : vector<128x128xf32>
    %cst_128 = arith.constant 0.0509556942 : f32
    %414 = vector.broadcast %cst_128 : f32 to vector<128x128xf32>
    %415 = arith.addf %413, %414 : vector<128x128xf32>
    %416 = arith.mulf %415, %408 : vector<128x128xf32>
    %cst_129 = arith.constant 0.185208321 : f32
    %417 = vector.broadcast %cst_129 : f32 to vector<128x128xf32>
    %418 = arith.addf %416, %417 : vector<128x128xf32>
    %419 = arith.mulf %418, %408 : vector<128x128xf32>
    %cst_130 = arith.constant 1.12837911 : f32
    %420 = vector.broadcast %cst_130 : f32 to vector<128x128xf32>
    %421 = arith.addf %419, %420 : vector<128x128xf32>
    %cst_131 = arith.constant -1.17916031E-7 : f32
    %422 = vector.broadcast %cst_131 : f32 to vector<128x128xf32>
    %423 = arith.mulf %422, %408 : vector<128x128xf32>
    %cst_132 = arith.constant 2.35479656E-5 : f32
    %424 = vector.broadcast %cst_132 : f32 to vector<128x128xf32>
    %425 = arith.addf %423, %424 : vector<128x128xf32>
    %426 = arith.mulf %425, %408 : vector<128x128xf32>
    %cst_133 = arith.constant 0.00101796258 : f32
    %427 = vector.broadcast %cst_133 : f32 to vector<128x128xf32>
    %428 = arith.addf %426, %427 : vector<128x128xf32>
    %429 = arith.mulf %428, %408 : vector<128x128xf32>
    %cst_134 = arith.constant 0.0140704699 : f32
    %430 = vector.broadcast %cst_134 : f32 to vector<128x128xf32>
    %431 = arith.addf %429, %430 : vector<128x128xf32>
    %432 = arith.mulf %431, %408 : vector<128x128xf32>
    %cst_135 = arith.constant 0.110985048 : f32
    %433 = vector.broadcast %cst_135 : f32 to vector<128x128xf32>
    %434 = arith.addf %432, %433 : vector<128x128xf32>
    %435 = arith.mulf %434, %408 : vector<128x128xf32>
    %cst_136 = arith.constant 0.497469246 : f32
    %436 = vector.broadcast %cst_136 : f32 to vector<128x128xf32>
    %437 = arith.addf %435, %436 : vector<128x128xf32>
    %438 = arith.mulf %437, %408 : vector<128x128xf32>
    %cst_137 = arith.constant 1.000000e+00 : f32
    %439 = vector.broadcast %cst_137 : f32 to vector<128x128xf32>
    %440 = arith.addf %438, %439 : vector<128x128xf32>
    %441 = arith.mulf %407, %421 : vector<128x128xf32>
    %442 = arith.divf %441, %440 : vector<128x128xf32>
    %cst_138 = arith.constant 5.000000e-01 : f32
    %443 = vector.broadcast %cst_138 : f32 to vector<128x128xf32>
    %444 = arith.mulf %443, %401 : vector<128x128xf32>
    %cst_139 = arith.constant 1.000000e+00 : f32
    %445 = vector.broadcast %cst_139 : f32 to vector<128x128xf32>
    %446 = arith.addf %445, %442 : vector<128x128xf32>
    %447 = arith.mulf %444, %446 : vector<128x128xf32>
    %448 = arith.truncf %447 : vector<128x128xf32> to vector<128x128xbf16>
    %c7 = arith.constant 7 : index
    %c0_140 = arith.constant 0 : index
    %c0_141 = arith.constant 0 : index
    %449 = vector.load %arg3[%c7, %c0_140, %c0_141] : memref<9x128x128xbf16, #tpu.memory_space<vmem>>, vector<1x128x128xbf16>
    %450 = vector.shape_cast %449 : vector<1x128x128xbf16> to vector<128x128xbf16>
    %cst_142 = arith.constant dense<0.000000e+00> : vector<128x128xf32>
    %451 = tpu.matmul %448, %450, %cst_142 {dimension_numbers = #tpu.dot_dimension_numbers<[1], [0], [0], [1], [0, 0, 1, 1], [], []>} : vector<128x128xbf16>, vector<128x128xbf16>, vector<128x128xf32> -> vector<128x128xf32>
    %452 = vector.extract_strided_slice %309 {offsets = [5, 0], sizes = [1, 128], strides = [1, 1]} : vector<8x128xf32> to vector<1x128xf32>
    %453 = vector.broadcast %452 : vector<1x128xf32> to vector<128x128xf32>
    %454 = arith.addf %451, %453 : vector<128x128xf32>
    %455 = arith.addf %454, %394 : vector<128x128xf32>
    %456 = vector.extract_strided_slice %309 {offsets = [6, 0], sizes = [1, 128], strides = [1, 1]} : vector<8x128xf32> to vector<1x128xf32>
    %457 = vector.extract_strided_slice %309 {offsets = [7, 0], sizes = [1, 128], strides = [1, 1]} : vector<8x128xf32> to vector<1x128xf32>
    %cst_143 = arith.constant dense<0.000000e+00> : vector<128xf32>
    %458 = vector.multi_reduction <add>, %455, %cst_143 [1] : vector<128x128xf32> to vector<128xf32>
    %459 = vector.shape_cast %458 : vector<128xf32> to vector<128x1xf32>
    %cst_144 = arith.constant 3.125000e-02 : f32
    %460 = vector.broadcast %cst_144 : f32 to vector<128x1xf32>
    %461 = arith.mulf %459, %460 : vector<128x1xf32>
    %462 = vector.broadcast %461 : vector<128x1xf32> to vector<128x128xf32>
    %463 = arith.subf %455, %462 : vector<128x128xf32>
    %cst_145 = arith.constant 0.000000e+00 : f32
    %464 = vector.broadcast %cst_145 : f32 to vector<128x128xf32>
    %465 = arith.select %2, %463, %464 : vector<128x128xi1>, vector<128x128xf32>
    %466 = arith.mulf %465, %465 : vector<128x128xf32>
    %cst_146 = arith.constant dense<0.000000e+00> : vector<128xf32>
    %467 = vector.multi_reduction <add>, %466, %cst_146 [1] : vector<128x128xf32> to vector<128xf32>
    %468 = vector.shape_cast %467 : vector<128xf32> to vector<128x1xf32>
    %cst_147 = arith.constant 3.125000e-02 : f32
    %469 = vector.broadcast %cst_147 : f32 to vector<128x1xf32>
    %470 = arith.mulf %468, %469 : vector<128x1xf32>
    %cst_148 = arith.constant 9.99999996E-13 : f32
    %471 = vector.broadcast %cst_148 : f32 to vector<128x1xf32>
    %472 = arith.addf %470, %471 : vector<128x1xf32>
    %473 = math.rsqrt %472 : vector<128x1xf32>
    %474 = vector.broadcast %473 : vector<128x1xf32> to vector<128x128xf32>
    %475 = arith.mulf %465, %474 : vector<128x128xf32>
    %476 = vector.broadcast %456 : vector<1x128xf32> to vector<128x128xf32>
    %477 = arith.mulf %475, %476 : vector<128x128xf32>
    %478 = vector.broadcast %457 : vector<1x128xf32> to vector<128x128xf32>
    %479 = arith.addf %477, %478 : vector<128x128xf32>
    %480 = tpu.iota {dimensions = array<i32: 0>} : vector<8x128xi32>
    %481 = tpu.iota {dimensions = array<i32: 1>} : vector<8x128xi32>
    %c16_i32_149 = arith.constant 16 : i32
    %482 = vector.broadcast %c16_i32_149 : i32 to vector<8x128xi32>
    %483 = arith.muli %480, %482 : vector<8x128xi32>
    %484 = arith.cmpi eq, %481, %483 : vector<8x128xi32>
    %c8_i32 = arith.constant 8 : i32
    %485 = vector.broadcast %c8_i32 : i32 to vector<8x128xi32>
    %486 = arith.cmpi slt, %480, %485 : vector<8x128xi32>
    %487 = arith.andi %484, %486 : vector<8x128xi1>
    %488 = arith.extui %487 : vector<8x128xi1> to vector<8x128xi32>
    %489 = arith.sitofp %488 : vector<8x128xi32> to vector<8x128xf32>
    %490 = arith.truncf %489 : vector<8x128xf32> to vector<8x128xbf16>
    %491 = arith.truncf %479 : vector<128x128xf32> to vector<128x128xbf16>
    %cst_150 = arith.constant dense<0.000000e+00> : vector<8x128xf32>
    %492 = tpu.matmul %490, %491, %cst_150 {dimension_numbers = #tpu.dot_dimension_numbers<[1], [0], [0], [1], [0, 0, 1, 1], [], []>} : vector<8x128xbf16>, vector<128x128xbf16>, vector<8x128xf32> -> vector<8x128xf32>
    %493 = arith.truncf %492 : vector<8x128xf32> to vector<8x128xbf16>
    %c8 = arith.constant 8 : index
    %c0_151 = arith.constant 0 : index
    %c0_152 = arith.constant 0 : index
    %494 = vector.load %arg3[%c8, %c0_151, %c0_152] : memref<9x128x128xbf16, #tpu.memory_space<vmem>>, vector<1x128x128xbf16>
    %495 = vector.shape_cast %494 : vector<1x128x128xbf16> to vector<128x128xbf16>
    %cst_153 = arith.constant dense<0.000000e+00> : vector<8x128xf32>
    %496 = tpu.matmul %493, %495, %cst_153 {dimension_numbers = #tpu.dot_dimension_numbers<[1], [0], [0], [1], [0, 0, 1, 1], [], []>} : vector<8x128xbf16>, vector<128x128xbf16>, vector<8x128xf32> -> vector<8x128xf32>
    %497 = vector.extract_strided_slice %3 {offsets = [2, 0], sizes = [1, 128], strides = [1, 1]} : vector<8x128xf32> to vector<1x128xf32>
    %498 = vector.broadcast %497 : vector<1x128xf32> to vector<8x128xf32>
    %499 = arith.addf %496, %498 : vector<8x128xf32>
    %c0_154 = arith.constant 0 : index
    %c0_155 = arith.constant 0 : index
    %500 = vector.load %arg5[%c0_154, %c0_155] : memref<8x128xf32, #tpu.memory_space<vmem>>, vector<8x128xf32>
    tpu.vector_store %arg5[%c0_154, %c0_155], %499 {strides = array<i32>} : memref<8x128xf32, #tpu.memory_space<vmem>>, vector<8x128xf32>,
    return
  }
}

</mosaic_0001>

<llo_original>
// kernel: bert_fc_forward.1
$region0: #{bert_fc_forward.1}
  #allocation0 [shape = 'u32[]', space=smem, size = 0x4, offset = 0x4, fixed_abs, tag = 'smem constant byte address 0x4 - core index']
  #allocation1 [shape = 'u32[144,128]{1,0:T(1,128)}', space=vmem, size = 0x12000, scoped, tag = 'internal scratch']
  %s0 = inlined_call_operand.vmem [shape: f32[128,128], index: 0, kind: input, shape index: {}]
  %s1 = inlined_call_operand.vmem [shape: f32[1,128], index: 1, kind: input, shape index: {}]
  %s2 = inlined_call_operand.vmem [shape: f32[8,128], index: 2, kind: input, shape index: {}]
  %s3 = inlined_call_operand.vmem [shape: bf16[9,128,128], index: 3, kind: input, shape index: {}]
  %s4 = inlined_call_operand.vmem [shape: f32[2,8,128], index: 4, kind: input, shape index: {}]
  %s5 = inlined_call_operand.vmem [shape: f32[8,128], index: 5, kind: output, shape index: {}]
  %s6 = sld [smem:[#allocation0]]
  $region30: #{bert_fc_forward.1} parent=0
    _
  %s8 = ssub.s32 1, %s6
  %s9 = scalar_select 0, %s8, %s6
  // Predicated region
  $region2: #{bert_fc_forward.1} parent=0 // pred_check
    _
  $region3: #{bert_fc_forward.1} parent=0 // pred_check_branch
    %11 = sbr.rel (0) target = $region5
  $region4: #{bert_fc_forward.1} parent=0 // pred_region
    _
  $region5: #{bert_fc_forward.1} parent=0 // pred_fallthru
    _
  // Predicated region
  $region6: #{bert_fc_forward.1} parent=0 // pred_check
    _
  $region7: #{bert_fc_forward.1} parent=0 // pred_check_branch
    %13 = sbr.rel (0) target = $region9
  $region8: #{bert_fc_forward.1} parent=0 // pred_region
    _
  $region9: #{bert_fc_forward.1} parent=0 // pred_fallthru
    _
  // Predicated region
  $region10: #{bert_fc_forward.1} parent=0 // pred_check
    _
  $region11: #{bert_fc_forward.1} parent=0 // pred_check_branch
    %15 = sbr.rel (0) target = $region13
  $region12: #{bert_fc_forward.1} parent=0 // pred_region
    _
  $region13: #{bert_fc_forward.1} parent=0 // pred_fallthru
    _
  // Predicated region
  $region14: #{bert_fc_forward.1} parent=0 // pred_check
    _
  $region15: #{bert_fc_forward.1} parent=0 // pred_check_branch
    %17 = sbr.rel (0) target = $region17
  $region16: #{bert_fc_forward.1} parent=0 // pred_region
    _
  $region17: #{bert_fc_forward.1} parent=0 // pred_fallthru
    _
  // Predicated region
  $region18: #{bert_fc_forward.1} parent=0 // pred_check
    _
  $region19: #{bert_fc_forward.1} parent=0 // pred_check_branch
    %19 = sbr.rel (0) target = $region21
  $region20: #{bert_fc_forward.1} parent=0 // pred_region
    _
  $region21: #{bert_fc_forward.1} parent=0 // pred_fallthru
    _
  %v21 = vlaneseq
  %v22 = vand.u32 %v21, 127
  %vm23 = vcmp.lt.s32.totalorder %v22, 32
  %v24 = vld [vmem:[%s2] sm:$0xff]
  %v25 = vld [vmem:[%s0] sm:$0xff]
  %v26 = vld [vmem:[%s0 + $0x8] sm:$0xff]
  %v27 = vld [vmem:[%s0 + $0x10] sm:$0xff]
  %v28 = vld [vmem:[%s0 + $0x18] sm:$0xff]
  %v29 = vld [vmem:[%s0 + $0x20] sm:$0xff]
  %v30 = vld [vmem:[%s0 + $0x28] sm:$0xff]
  %v31 = vld [vmem:[%s0 + $0x30] sm:$0xff]
  %v32 = vld [vmem:[%s0 + $0x38] sm:$0xff]
  %v33 = vld [vmem:[%s0 + $0x40] sm:$0xff]
  %v34 = vld [vmem:[%s0 + $0x48] sm:$0xff]
  %v35 = vld [vmem:[%s0 + $0x50] sm:$0xff]
  %v36 = vld [vmem:[%s0 + $0x58] sm:$0xff]
  %v37 = vld [vmem:[%s0 + $0x60] sm:$0xff]
  %v38 = vld [vmem:[%s0 + $0x68] sm:$0xff]
  %v39 = vld [vmem:[%s0 + $0x70] sm:$0xff]
  %v40 = vld [vmem:[%s0 + $0x78] sm:$0xff]
  %41 = vadd.xlane.f32.xlu0 %v25
  %v42 = vpop.xlane.xlu0 %41
  %43 = vadd.xlane.f32.xlu0 %v26
  %v44 = vpop.xlane.xlu0 %43
  %45 = vadd.xlane.f32.xlu0 %v27
  %v46 = vpop.xlane.xlu0 %45
  %47 = vadd.xlane.f32.xlu0 %v28
  %v48 = vpop.xlane.xlu0 %47
  %49 = vadd.xlane.f32.xlu0 %v29
  %v50 = vpop.xlane.xlu0 %49
  %51 = vadd.xlane.f32.xlu0 %v30
  %v52 = vpop.xlane.xlu0 %51
  %53 = vadd.xlane.f32.xlu0 %v31
  %v54 = vpop.xlane.xlu0 %53
  %55 = vadd.xlane.f32.xlu0 %v32
  %v56 = vpop.xlane.xlu0 %55
  %57 = vadd.xlane.f32.xlu0 %v33
  %v58 = vpop.xlane.xlu0 %57
  %59 = vadd.xlane.f32.xlu0 %v34
  %v60 = vpop.xlane.xlu0 %59
  %61 = vadd.xlane.f32.xlu0 %v35
  %v62 = vpop.xlane.xlu0 %61
  %63 = vadd.xlane.f32.xlu0 %v36
  %v64 = vpop.xlane.xlu0 %63
  %65 = vadd.xlane.f32.xlu0 %v37
  %v66 = vpop.xlane.xlu0 %65
  %67 = vadd.xlane.f32.xlu0 %v38
  %v68 = vpop.xlane.xlu0 %67
  %69 = vadd.xlane.f32.xlu0 %v39
  %v70 = vpop.xlane.xlu0 %69
  %71 = vadd.xlane.f32.xlu0 %v40
  %v72 = vpop.xlane.xlu0 %71
  %v73 = vmul.f32 %v42, 0.03125
  %v74 = vmul.f32 %v44, 0.03125
  %v75 = vmul.f32 %v46, 0.03125
  %v76 = vmul.f32 %v48, 0.03125
  %v77 = vmul.f32 %v50, 0.03125
  %v78 = vmul.f32 %v52, 0.03125
  %v79 = vmul.f32 %v54, 0.03125
  %v80 = vmul.f32 %v56, 0.03125
  %v81 = vmul.f32 %v58, 0.03125
  %v82 = vmul.f32 %v60, 0.03125
  %v83 = vmul.f32 %v62, 0.03125
  %v84 = vmul.f32 %v64, 0.03125
  %v85 = vmul.f32 %v66, 0.03125
  %v86 = vmul.f32 %v68, 0.03125
  %v87 = vmul.f32 %v70, 0.03125
  %v88 = vmul.f32 %v72, 0.03125
  %v89 = vsub.f32 %v25, %v73
  %v90 = vsub.f32 %v26, %v74
  %v91 = vsub.f32 %v27, %v75
  %v92 = vsub.f32 %v28, %v76
  %v93 = vsub.f32 %v29, %v77
  %v94 = vsub.f32 %v30, %v78
  %v95 = vsub.f32 %v31, %v79
  %v96 = vsub.f32 %v32, %v80
  %v97 = vsub.f32 %v33, %v81
  %v98 = vsub.f32 %v34, %v82
  %v99 = vsub.f32 %v35, %v83
  %v100 = vsub.f32 %v36, %v84
  %v101 = vsub.f32 %v37, %v85
  %v102 = vsub.f32 %v38, %v86
  %v103 = vsub.f32 %v39, %v87
  %v104 = vsub.f32 %v40, %v88
  %v105 = vsel %vm23, %v89, 0.0
  %v106 = vsel %vm23, %v90, 0.0
  %v107 = vsel %vm23, %v91, 0.0
  %v108 = vsel %vm23, %v92, 0.0
  %v109 = vsel %vm23, %v93, 0.0
  %v110 = vsel %vm23, %v94, 0.0
  %v111 = vsel %vm23, %v95, 0.0
  %v112 = vsel %vm23, %v96, 0.0
  %v113 = vsel %vm23, %v97, 0.0
  %v114 = vsel %vm23, %v98, 0.0
  %v115 = vsel %vm23, %v99, 0.0
  %v116 = vsel %vm23, %v100, 0.0
  %v117 = vsel %vm23, %v101, 0.0
  %v118 = vsel %vm23, %v102, 0.0
  %v119 = vsel %vm23, %v103, 0.0
  %v120 = vsel %vm23, %v104, 0.0
  %v121 = vmul.f32 %v105, %v105
  %v122 = vmul.f32 %v106, %v106
  %v123 = vmul.f32 %v107, %v107
  %v124 = vmul.f32 %v108, %v108
  %v125 = vmul.f32 %v109, %v109
  %v126 = vmul.f32 %v110, %v110
  %v127 = vmul.f32 %v111, %v111
  %v128 = vmul.f32 %v112, %v112
  %v129 = vmul.f32 %v113, %v113
  %v130 = vmul.f32 %v114, %v114
  %v131 = vmul.f32 %v115, %v115
  %v132 = vmul.f32 %v116, %v116
  %v133 = vmul.f32 %v117, %v117
  %v134 = vmul.f32 %v118, %v118
  %v135 = vmul.f32 %v119, %v119
  %v136 = vmul.f32 %v120, %v120
  %137 = vadd.xlane.f32.xlu0 %v121
  %v138 = vpop.xlane.xlu0 %137
  %139 = vadd.xlane.f32.xlu0 %v122
  %v140 = vpop.xlane.xlu0 %139
  %141 = vadd.xlane.f32.xlu0 %v123
  %v142 = vpop.xlane.xlu0 %141
  %143 = vadd.xlane.f32.xlu0 %v124
  %v144 = vpop.xlane.xlu0 %143
  %145 = vadd.xlane.f32.xlu0 %v125
  %v146 = vpop.xlane.xlu0 %145
  %147 = vadd.xlane.f32.xlu0 %v126
  %v148 = vpop.xlane.xlu0 %147
  %149 = vadd.xlane.f32.xlu0 %v127
  %v150 = vpop.xlane.xlu0 %149
  %151 = vadd.xlane.f32.xlu0 %v128
  %v152 = vpop.xlane.xlu0 %151
  %153 = vadd.xlane.f32.xlu0 %v129
  %v154 = vpop.xlane.xlu0 %153
  %155 = vadd.xlane.f32.xlu0 %v130
  %v156 = vpop.xlane.xlu0 %155
  %157 = vadd.xlane.f32.xlu0 %v131
  %v158 = vpop.xlane.xlu0 %157
  %159 = vadd.xlane.f32.xlu0 %v132
  %v160 = vpop.xlane.xlu0 %159
  %161 = vadd.xlane.f32.xlu0 %v133
  %v162 = vpop.xlane.xlu0 %161
  %163 = vadd.xlane.f32.xlu0 %v134
  %v164 = vpop.xlane.xlu0 %163
  %165 = vadd.xlane.f32.xlu0 %v135
  %v166 = vpop.xlane.xlu0 %165
  %167 = vadd.xlane.f32.xlu0 %v136
  %v168 = vpop.xlane.xlu0 %167
  %v169 = vmul.f32 %v138, 0.03125
  %v170 = vmul.f32 %v140, 0.03125
  %v171 = vmul.f32 %v142, 0.03125
  %v172 = vmul.f32 %v144, 0.03125
  %v173 = vmul.f32 %v146, 0.03125
  %v174 = vmul.f32 %v148, 0.03125
  %v175 = vmul.f32 %v150, 0.03125
  %v176 = vmul.f32 %v152, 0.03125
  %v177 = vmul.f32 %v154, 0.03125
  %v178 = vmul.f32 %v156, 0.03125
  %v179 = vmul.f32 %v158, 0.03125
  %v180 = vmul.f32 %v160, 0.03125
  %v181 = vmul.f32 %v162, 0.03125
  %v182 = vmul.f32 %v164, 0.03125
  %v183 = vmul.f32 %v166, 0.03125
  %v184 = vmul.f32 %v168, 0.03125
  %v185 = vadd.f32 %v169, 1e-12
  %v186 = vadd.f32 %v170, 1e-12
  %v187 = vadd.f32 %v171, 1e-12
  %v188 = vadd.f32 %v172, 1e-12
  %v189 = vadd.f32 %v173, 1e-12
  %v190 = vadd.f32 %v174, 1e-12
  %v191 = vadd.f32 %v175, 1e-12
  %v192 = vadd.f32 %v176, 1e-12
  %v193 = vadd.f32 %v177, 1e-12
  %v194 = vadd.f32 %v178, 1e-12
  %v195 = vadd.f32 %v179, 1e-12
  %v196 = vadd.f32 %v180, 1e-12
  %v197 = vadd.f32 %v181, 1e-12
  %v198 = vadd.f32 %v182, 1e-12
  %v199 = vadd.f32 %v183, 1e-12
  %v200 = vadd.f32 %v184, 1e-12
  %v201 = vrsqrt.pop %v185
  %v202 = vrsqrt.pop %v186
  %v203 = vrsqrt.pop %v187
  %v204 = vrsqrt.pop %v188
  %v205 = vrsqrt.pop %v189
  %v206 = vrsqrt.pop %v190
  %v207 = vrsqrt.pop %v191
  %v208 = vrsqrt.pop %v192
  %v209 = vrsqrt.pop %v193
  %v210 = vrsqrt.pop %v194
  %v211 = vrsqrt.pop %v195
  %v212 = vrsqrt.pop %v196
  %v213 = vrsqrt.pop %v197
  %v214 = vrsqrt.pop %v198
  %v215 = vrsqrt.pop %v199
  %v216 = vrsqrt.pop %v200
  %v217 = vmul.f32 %v105, %v201
  %v218 = vmul.f32 %v106, %v202
  %v219 = vmul.f32 %v107, %v203
  %v220 = vmul.f32 %v108, %v204
  %v221 = vmul.f32 %v109, %v205
  %v222 = vmul.f32 %v110, %v206
  %v223 = vmul.f32 %v111, %v207
  %v224 = vmul.f32 %v112, %v208
  %v225 = vmul.f32 %v113, %v209
  %v226 = vmul.f32 %v114, %v210
  %v227 = vmul.f32 %v115, %v211
  %v228 = vmul.f32 %v116, %v212
  %v229 = vmul.f32 %v117, %v213
  %v230 = vmul.f32 %v118, %v214
  %v231 = vmul.f32 %v119, %v215
  %v232 = vmul.f32 %v120, %v216
  %v233 = vlaneseq
  %v234 = vshrl.u32 %v233, 7
  %v235 = vsub.s32 0, %v234
  %v236 = vrot.slane %v24, %v235
  %v237 = vmul.f32 %v217, %v236
  %v238 = vmul.f32 %v218, %v236
  %v239 = vmul.f32 %v219, %v236
  %v240 = vmul.f32 %v220, %v236
  %v241 = vmul.f32 %v221, %v236
  %v242 = vmul.f32 %v222, %v236
  %v243 = vmul.f32 %v223, %v236
  %v244 = vmul.f32 %v224, %v236
  %v245 = vmul.f32 %v225, %v236
  %v246 = vmul.f32 %v226, %v236
  %v247 = vmul.f32 %v227, %v236
  %v248 = vmul.f32 %v228, %v236
  %v249 = vmul.f32 %v229, %v236
  %v250 = vmul.f32 %v230, %v236
  %v251 = vmul.f32 %v231, %v236
  %v252 = vmul.f32 %v232, %v236
  %v253 = vlaneseq
  %v254 = vshrl.u32 %v253, 7
  %v255 = vsub.s32 1, %v254
  %v256 = vrot.slane %v24, %v255
  %v257 = vadd.f32 %v237, %v256
  %v258 = vadd.f32 %v238, %v256
  %v259 = vadd.f32 %v239, %v256
  %v260 = vadd.f32 %v240, %v256
  %v261 = vadd.f32 %v241, %v256
  %v262 = vadd.f32 %v242, %v256
  %v263 = vadd.f32 %v243, %v256
  %v264 = vadd.f32 %v244, %v256
  %v265 = vadd.f32 %v245, %v256
  %v266 = vadd.f32 %v246, %v256
  %v267 = vadd.f32 %v247, %v256
  %v268 = vadd.f32 %v248, %v256
  %v269 = vadd.f32 %v249, %v256
  %v270 = vadd.f32 %v250, %v256
  %v271 = vadd.f32 %v251, %v256
  %v272 = vadd.f32 %v252, %v256
  %v273 = vlaneseq
  %v274 = vshrl.u32 %v273, 7
  %v275 = vadd.s32 %v274, 8
  %v276 = vadd.s32 %v274, 16
  %v277 = vadd.s32 %v274, 24
  %v278 = vadd.s32 %v274, 32
  %v279 = vadd.s32 %v274, 40
  %v280 = vadd.s32 %v274, 48
  %v281 = vadd.s32 %v274, 56
  %v282 = vadd.s32 %v274, 64
  %v283 = vadd.s32 %v274, 72
  %v284 = vadd.s32 %v274, 80
  %v285 = vadd.s32 %v274, 88
  %v286 = vadd.s32 %v274, 96
  %v287 = vadd.s32 %v274, 104
  %v288 = vadd.s32 %v274, 112
  %v289 = vadd.s32 %v274, 120
  %vm290 = vcmp.ge.s32.totalorder %v274, 0
  %vm291 = vcmp.ge.s32.totalorder %v275, 0
  %vm292 = vcmp.ge.s32.totalorder %v276, 0
  %vm293 = vcmp.ge.s32.totalorder %v277, 0
  %vm294 = vcmp.ge.s32.totalorder %v278, 0
  %vm295 = vcmp.ge.s32.totalorder %v279, 0
  %vm296 = vcmp.ge.s32.totalorder %v280, 0
  %vm297 = vcmp.ge.s32.totalorder %v281, 0
  %vm298 = vcmp.ge.s32.totalorder %v282, 0
  %vm299 = vcmp.ge.s32.totalorder %v283, 0
  %vm300 = vcmp.ge.s32.totalorder %v284, 0
  %vm301 = vcmp.ge.s32.totalorder %v285, 0
  %vm302 = vcmp.ge.s32.totalorder %v286, 0
  %vm303 = vcmp.ge.s32.totalorder %v287, 0
  %vm304 = vcmp.ge.s32.totalorder %v288, 0
  %vm305 = vcmp.ge.s32.totalorder %v289, 0
  %vm306 = vcmp.lt.s32.totalorder %v274, 16
  %vm307 = vcmp.lt.s32.totalorder %v275, 16
  %vm308 = vcmp.lt.s32.totalorder %v276, 16
  %vm309 = vcmp.lt.s32.totalorder %v277, 16
  %vm310 = vcmp.lt.s32.totalorder %v278, 16
  %vm311 = vcmp.lt.s32.totalorder %v279, 16
  %vm312 = vcmp.lt.s32.totalorder %v280, 16
  %vm313 = vcmp.lt.s32.totalorder %v281, 16
  %vm314 = vcmp.lt.s32.totalorder %v282, 16
  %vm315 = vcmp.lt.s32.totalorder %v283, 16
  %vm316 = vcmp.lt.s32.totalorder %v284, 16
  %vm317 = vcmp.lt.s32.totalorder %v285, 16
  %vm318 = vcmp.lt.s32.totalorder %v286, 16
  %vm319 = vcmp.lt.s32.totalorder %v287, 16
  %vm320 = vcmp.lt.s32.totalorder %v288, 16
  %vm321 = vcmp.lt.s32.totalorder %v289, 16
  %vm322 = vmand %vm290, %vm306
  %vm323 = vmand %vm291, %vm307
  %vm324 = vmand %vm292, %vm308
  %vm325 = vmand %vm293, %vm309
  %vm326 = vmand %vm294, %vm310
  %vm327 = vmand %vm295, %vm311
  %vm328 = vmand %vm296, %vm312
  %vm329 = vmand %vm297, %vm313
  %vm330 = vmand %vm298, %vm314
  %vm331 = vmand %vm299, %vm315
  %vm332 = vmand %vm300, %vm316
  %vm333 = vmand %vm301, %vm317
  %vm334 = vmand %vm302, %vm318
  %vm335 = vmand %vm303, %vm319
  %vm336 = vmand %vm304, %vm320
  %vm337 = vmand %vm305, %vm321
  %vm338 = vcmp.ge.s32.totalorder %v22, 0
  %vm339 = vcmp.lt.s32.totalorder %v22, 16
  %vm340 = vmand %vm338, %vm339
  %vm341 = vmand %vm322, %vm340
  %vm342 = vmand %vm323, %vm340
  %vm343 = vmand %vm324, %vm340
  %vm344 = vmand %vm325, %vm340
  %vm345 = vmand %vm326, %vm340
  %vm346 = vmand %vm327, %vm340
  %vm347 = vmand %vm328, %vm340
  %vm348 = vmand %vm329, %vm340
  %vm349 = vmand %vm330, %vm340
  %vm350 = vmand %vm331, %vm340
  %vm351 = vmand %vm332, %vm340
  %vm352 = vmand %vm333, %vm340
  %vm353 = vmand %vm334, %vm340
  %vm354 = vmand %vm335, %vm340
  %vm355 = vmand %vm336, %vm340
  %vm356 = vmand %vm337, %vm340
  %vm357 = vcmp.ge.s32.totalorder %v274, 16
  %vm358 = vcmp.ge.s32.totalorder %v275, 16
  %vm359 = vcmp.ge.s32.totalorder %v276, 16
  %vm360 = vcmp.ge.s32.totalorder %v277, 16
  %vm361 = vcmp.ge.s32.totalorder %v278, 16
  %vm362 = vcmp.ge.s32.totalorder %v279, 16
  %vm363 = vcmp.ge.s32.totalorder %v280, 16
  %vm364 = vcmp.ge.s32.totalorder %v281, 16
  %vm365 = vcmp.ge.s32.totalorder %v282, 16
  %vm366 = vcmp.ge.s32.totalorder %v283, 16
  %vm367 = vcmp.ge.s32.totalorder %v284, 16
  %vm368 = vcmp.ge.s32.totalorder %v285, 16
  %vm369 = vcmp.ge.s32.totalorder %v286, 16
  %vm370 = vcmp.ge.s32.totalorder %v287, 16
  %vm371 = vcmp.ge.s32.totalorder %v288, 16
  %vm372 = vcmp.ge.s32.totalorder %v289, 16
  %vm373 = vcmp.lt.s32.totalorder %v274, 32
  %vm374 = vcmp.lt.s32.totalorder %v275, 32
  %vm375 = vcmp.lt.s32.totalorder %v276, 32
  %vm376 = vcmp.lt.s32.totalorder %v277, 32
  %vm377 = vcmp.lt.s32.totalorder %v278, 32
  %vm378 = vcmp.lt.s32.totalorder %v279, 32
  %vm379 = vcmp.lt.s32.totalorder %v280, 32
  %vm380 = vcmp.lt.s32.totalorder %v281, 32
  %vm381 = vcmp.lt.s32.totalorder %v282, 32
  %vm382 = vcmp.lt.s32.totalorder %v283, 32
  %vm383 = vcmp.lt.s32.totalorder %v284, 32
  %vm384 = vcmp.lt.s32.totalorder %v285, 32
  %vm385 = vcmp.lt.s32.totalorder %v286, 32
  %vm386 = vcmp.lt.s32.totalorder %v287, 32
  %vm387 = vcmp.lt.s32.totalorder %v288, 32
  %vm388 = vcmp.lt.s32.totalorder %v289, 32
  %vm389 = vmand %vm357, %vm373
  %vm390 = vmand %vm358, %vm374
  %vm391 = vmand %vm359, %vm375
  %vm392 = vmand %vm360, %vm376
  %vm393 = vmand %vm361, %vm377
  %vm394 = vmand %vm362, %vm378
  %vm395 = vmand %vm363, %vm379
  %vm396 = vmand %vm364, %vm380
  %vm397 = vmand %vm365, %vm381
  %vm398 = vmand %vm366, %vm382
  %vm399 = vmand %vm367, %vm383
  %vm400 = vmand %vm368, %vm384
  %vm401 = vmand %vm369, %vm385
  %vm402 = vmand %vm370, %vm386
  %vm403 = vmand %vm371, %vm387
  %vm404 = vmand %vm372, %vm388
  %vm405 = vcmp.ge.s32.totalorder %v22, 16
  %vm406 = vmand %vm405, %vm23
  %vm407 = vmand %vm389, %vm406
  %vm408 = vmand %vm390, %vm406
  %vm409 = vmand %vm391, %vm406
  %vm410 = vmand %vm392, %vm406
  %vm411 = vmand %vm393, %vm406
  %vm412 = vmand %vm394, %vm406
  %vm413 = vmand %vm395, %vm406
  %vm414 = vmand %vm396, %vm406
  %vm415 = vmand %vm397, %vm406
  %vm416 = vmand %vm398, %vm406
  %vm417 = vmand %vm399, %vm406
  %vm418 = vmand %vm400, %vm406
  %vm419 = vmand %vm401, %vm406
  %vm420 = vmand %vm402, %vm406
  %vm421 = vmand %vm403, %vm406
  %vm422 = vmand %vm404, %vm406
  %vm423 = vcmp.ge.s32.totalorder %v274, 32
  %vm424 = vcmp.ge.s32.totalorder %v275, 32
  %vm425 = vcmp.ge.s32.totalorder %v276, 32
  %vm426 = vcmp.ge.s32.totalorder %v277, 32
  %vm427 = vcmp.ge.s32.totalorder %v278, 32
  %vm428 = vcmp.ge.s32.totalorder %v279, 32
  %vm429 = vcmp.ge.s32.totalorder %v280, 32
  %vm430 = vcmp.ge.s32.totalorder %v281, 32
  %vm431 = vcmp.ge.s32.totalorder %v282, 32
  %vm432 = vcmp.ge.s32.totalorder %v283, 32
  %vm433 = vcmp.ge.s32.totalorder %v284, 32
  %vm434 = vcmp.ge.s32.totalorder %v285, 32
  %vm435 = vcmp.ge.s32.totalorder %v286, 32
  %vm436 = vcmp.ge.s32.totalorder %v287, 32
  %vm437 = vcmp.ge.s32.totalorder %v288, 32
  %vm438 = vcmp.ge.s32.totalorder %v289, 32
  %vm439 = vcmp.lt.s32.totalorder %v274, 48
  %vm440 = vcmp.lt.s32.totalorder %v275, 48
  %vm441 = vcmp.lt.s32.totalorder %v276, 48
  %vm442 = vcmp.lt.s32.totalorder %v277, 48
  %vm443 = vcmp.lt.s32.totalorder %v278, 48
  %vm444 = vcmp.lt.s32.totalorder %v279, 48
  %vm445 = vcmp.lt.s32.totalorder %v280, 48
  %vm446 = vcmp.lt.s32.totalorder %v281, 48
  %vm447 = vcmp.lt.s32.totalorder %v282, 48
  %vm448 = vcmp.lt.s32.totalorder %v283, 48
  %vm449 = vcmp.lt.s32.totalorder %v284, 48
  %vm450 = vcmp.lt.s32.totalorder %v285, 48
  %vm451 = vcmp.lt.s32.totalorder %v286, 48
  %vm452 = vcmp.lt.s32.totalorder %v287, 48
  %vm453 = vcmp.lt.s32.totalorder %v288, 48
  %vm454 = vcmp.lt.s32.totalorder %v289, 48
  %vm455 = vmand %vm423, %vm439
  %vm456 = vmand %vm424, %vm440
  %vm457 = vmand %vm425, %vm441
  %vm458 = vmand %vm426, %vm442
  %vm459 = vmand %vm427, %vm443
  %vm460 = vmand %vm428, %vm444
  %vm461 = vmand %vm429, %vm445
  %vm462 = vmand %vm430, %vm446
  %vm463 = vmand %vm431, %vm447
  %vm464 = vmand %vm432, %vm448
  %vm465 = vmand %vm433, %vm449
  %vm466 = vmand %vm434, %vm450
  %vm467 = vmand %vm435, %vm451
  %vm468 = vmand %vm436, %vm452
  %vm469 = vmand %vm437, %vm453
  %vm470 = vmand %vm438, %vm454
  %vm471 = vcmp.ge.s32.totalorder %v22, 32
  %vm472 = vcmp.lt.s32.totalorder %v22, 48
  %vm473 = vmand %vm471, %vm472
  %vm474 = vmand %vm455, %vm473
  %vm475 = vmand %vm456, %vm473
  %vm476 = vmand %vm457, %vm473
  %vm477 = vmand %vm458, %vm473
  %vm478 = vmand %vm459, %vm473
  %vm479 = vmand %vm460, %vm473
  %vm480 = vmand %vm461, %vm473
  %vm481 = vmand %vm462, %vm473
  %vm482 = vmand %vm463, %vm473
  %vm483 = vmand %vm464, %vm473
  %vm484 = vmand %vm465, %vm473
  %vm485 = vmand %vm466, %vm473
  %vm486 = vmand %vm467, %vm473
  %vm487 = vmand %vm468, %vm473
  %vm488 = vmand %vm469, %vm473
  %vm489 = vmand %vm470, %vm473
  %vm490 = vcmp.ge.s32.totalorder %v274, 48
  %vm491 = vcmp.ge.s32.totalorder %v275, 48
  %vm492 = vcmp.ge.s32.totalorder %v276, 48
  %vm493 = vcmp.ge.s32.totalorder %v277, 48
  %vm494 = vcmp.ge.s32.totalorder %v278, 48
  %vm495 = vcmp.ge.s32.totalorder %v279, 48
  %vm496 = vcmp.ge.s32.totalorder %v280, 48
  %vm497 = vcmp.ge.s32.totalorder %v281, 48
  %vm498 = vcmp.ge.s32.totalorder %v282, 48
  %vm499 = vcmp.ge.s32.totalorder %v283, 48
  %vm500 = vcmp.ge.s32.totalorder %v284, 48
  %vm501 = vcmp.ge.s32.totalorder %v285, 48
  %vm502 = vcmp.ge.s32.totalorder %v286, 48
  %vm503 = vcmp.ge.s32.totalorder %v287, 48
  %vm504 = vcmp.ge.s32.totalorder %v288, 48
  %vm505 = vcmp.ge.s32.totalorder %v289, 48
  %vm506 = vcmp.lt.s32.totalorder %v274, 64
  %vm507 = vcmp.lt.s32.totalorder %v275, 64
  %vm508 = vcmp.lt.s32.totalorder %v276, 64
  %vm509 = vcmp.lt.s32.totalorder %v277, 64
  %vm510 = vcmp.lt.s32.totalorder %v278, 64
  %vm511 = vcmp.lt.s32.totalorder %v279, 64
  %vm512 = vcmp.lt.s32.totalorder %v280, 64
  %vm513 = vcmp.lt.s32.totalorder %v281, 64
  %vm514 = vcmp.lt.s32.totalorder %v282, 64
  %vm515 = vcmp.lt.s32.totalorder %v283, 64
  %vm516 = vcmp.lt.s32.totalorder %v284, 64
  %vm517 = vcmp.lt.s32.totalorder %v285, 64
  %vm518 = vcmp.lt.s32.totalorder %v286, 64
  %vm519 = vcmp.lt.s32.totalorder %v287, 64
  %vm520 = vcmp.lt.s32.totalorder %v288, 64
  %vm521 = vcmp.lt.s32.totalorder %v289, 64
  %vm522 = vmand %vm490, %vm506
  %vm523 = vmand %vm491, %vm507
  %vm524 = vmand %vm492, %vm508
  %vm525 = vmand %vm493, %vm509
  %vm526 = vmand %vm494, %vm510
  %vm527 = vmand %vm495, %vm511
  %vm528 = vmand %vm496, %vm512
  %vm529 = vmand %vm497, %vm513
  %vm530 = vmand %vm498, %vm514
  %vm531 = vmand %vm499, %vm515
  %vm532 = vmand %vm500, %vm516
  %vm533 = vmand %vm501, %vm517
  %vm534 = vmand %vm502, %vm518
  %vm535 = vmand %vm503, %vm519
  %vm536 = vmand %vm504, %vm520
  %vm537 = vmand %vm505, %vm521
  %vm538 = vcmp.ge.s32.totalorder %v22, 48
  %vm539 = vcmp.lt.s32.totalorder %v22, 64
  %vm540 = vmand %vm538, %vm539
  %vm541 = vmand %vm522, %vm540
  %vm542 = vmand %vm523, %vm540
  %vm543 = vmand %vm524, %vm540
  %vm544 = vmand %vm525, %vm540
  %vm545 = vmand %vm526, %vm540
  %vm546 = vmand %vm527, %vm540
  %vm547 = vmand %vm528, %vm540
  %vm548 = vmand %vm529, %vm540
  %vm549 = vmand %vm530, %vm540
  %vm550 = vmand %vm531, %vm540
  %vm551 = vmand %vm532, %vm540
  %vm552 = vmand %vm533, %vm540
  %vm553 = vmand %vm534, %vm540
  %vm554 = vmand %vm535, %vm540
  %vm555 = vmand %vm536, %vm540
  %vm556 = vmand %vm537, %vm540
  %vm557 = vcmp.ge.s32.totalorder %v274, 64
  %vm558 = vcmp.ge.s32.totalorder %v275, 64
  %vm559 = vcmp.ge.s32.totalorder %v276, 64
  %vm560 = vcmp.ge.s32.totalorder %v277, 64
  %vm561 = vcmp.ge.s32.totalorder %v278, 64
  %vm562 = vcmp.ge.s32.totalorder %v279, 64
  %vm563 = vcmp.ge.s32.totalorder %v280, 64
  %vm564 = vcmp.ge.s32.totalorder %v281, 64
  %vm565 = vcmp.ge.s32.totalorder %v282, 64
  %vm566 = vcmp.ge.s32.totalorder %v283, 64
  %vm567 = vcmp.ge.s32.totalorder %v284, 64
  %vm568 = vcmp.ge.s32.totalorder %v285, 64
  %vm569 = vcmp.ge.s32.totalorder %v286, 64
  %vm570 = vcmp.ge.s32.totalorder %v287, 64
  %vm571 = vcmp.ge.s32.totalorder %v288, 64
  %vm572 = vcmp.ge.s32.totalorder %v289, 64
  %vm573 = vcmp.lt.s32.totalorder %v274, 80
  %vm574 = vcmp.lt.s32.totalorder %v275, 80
  %vm575 = vcmp.lt.s32.totalorder %v276, 80
  %vm576 = vcmp.lt.s32.totalorder %v277, 80
  %vm577 = vcmp.lt.s32.totalorder %v278, 80
  %vm578 = vcmp.lt.s32.totalorder %v279, 80
  %vm579 = vcmp.lt.s32.totalorder %v280, 80
  %vm580 = vcmp.lt.s32.totalorder %v281, 80
  %vm581 = vcmp.lt.s32.totalorder %v282, 80
  %vm582 = vcmp.lt.s32.totalorder %v283, 80
  %vm583 = vcmp.lt.s32.totalorder %v284, 80
  %vm584 = vcmp.lt.s32.totalorder %v285, 80
  %vm585 = vcmp.lt.s32.totalorder %v286, 80
  %vm586 = vcmp.lt.s32.totalorder %v287, 80
  %vm587 = vcmp.lt.s32.totalorder %v288, 80
  %vm588 = vcmp.lt.s32.totalorder %v289, 80
  %vm589 = vmand %vm557, %vm573
  %vm590 = vmand %vm558, %vm574
  %vm591 = vmand %vm559, %vm575
  %vm592 = vmand %vm560, %vm576
  %vm593 = vmand %vm561, %vm577
  %vm594 = vmand %vm562, %vm578
  %vm595 = vmand %vm563, %vm579
  %vm596 = vmand %vm564, %vm580
  %vm597 = vmand %vm565, %vm581
  %vm598 = vmand %vm566, %vm582
  %vm599 = vmand %vm567, %vm583
  %vm600 = vmand %vm568, %vm584
  %vm601 = vmand %vm569, %vm585
  %vm602 = vmand %vm570, %vm586
  %vm603 = vmand %vm571, %vm587
  %vm604 = vmand %vm572, %vm588
  %vm605 = vcmp.ge.s32.totalorder %v22, 64
  %vm606 = vcmp.lt.s32.totalorder %v22, 80
  %vm607 = vmand %vm605, %vm606
  %vm608 = vmand %vm589, %vm607
  %vm609 = vmand %vm590, %vm607
  %vm610 = vmand %vm591, %vm607
  %vm611 = vmand %vm592, %vm607
  %vm612 = vmand %vm593, %vm607
  %vm613 = vmand %vm594, %vm607
  %vm614 = vmand %vm595, %vm607
  %vm615 = vmand %vm596, %vm607
  %vm616 = vmand %vm597, %vm607
  %vm617 = vmand %vm598, %vm607
  %vm618 = vmand %vm599, %vm607
  %vm619 = vmand %vm600, %vm607
  %vm620 = vmand %vm601, %vm607
  %vm621 = vmand %vm602, %vm607
  %vm622 = vmand %vm603, %vm607
  %vm623 = vmand %vm604, %vm607
  %vm624 = vcmp.ge.s32.totalorder %v274, 80
  %vm625 = vcmp.ge.s32.totalorder %v275, 80
  %vm626 = vcmp.ge.s32.totalorder %v276, 80
  %vm627 = vcmp.ge.s32.totalorder %v277, 80
  %vm628 = vcmp.ge.s32.totalorder %v278, 80
  %vm629 = vcmp.ge.s32.totalorder %v279, 80
  %vm630 = vcmp.ge.s32.totalorder %v280, 80
  %vm631 = vcmp.ge.s32.totalorder %v281, 80
  %vm632 = vcmp.ge.s32.totalorder %v282, 80
  %vm633 = vcmp.ge.s32.totalorder %v283, 80
  %vm634 = vcmp.ge.s32.totalorder %v284, 80
  %vm635 = vcmp.ge.s32.totalorder %v285, 80
  %vm636 = vcmp.ge.s32.totalorder %v286, 80
  %vm637 = vcmp.ge.s32.totalorder %v287, 80
  %vm638 = vcmp.ge.s32.totalorder %v288, 80
  %vm639 = vcmp.ge.s32.totalorder %v289, 80
  %vm640 = vcmp.lt.s32.totalorder %v274, 96
  %vm641 = vcmp.lt.s32.totalorder %v275, 96
  %vm642 = vcmp.lt.s32.totalorder %v276, 96
  %vm643 = vcmp.lt.s32.totalorder %v277, 96
  %vm644 = vcmp.lt.s32.totalorder %v278, 96
  %vm645 = vcmp.lt.s32.totalorder %v279, 96
  %vm646 = vcmp.lt.s32.totalorder %v280, 96
  %vm647 = vcmp.lt.s32.totalorder %v281, 96
  %vm648 = vcmp.lt.s32.totalorder %v282, 96
  %vm649 = vcmp.lt.s32.totalorder %v283, 96
  %vm650 = vcmp.lt.s32.totalorder %v284, 96
  %vm651 = vcmp.lt.s32.totalorder %v285, 96
  %vm652 = vcmp.lt.s32.totalorder %v286, 96
  %vm653 = vcmp.lt.s32.totalorder %v287, 96
  %vm654 = vcmp.lt.s32.totalorder %v288, 96
  %vm655 = vcmp.lt.s32.totalorder %v289, 96
  %vm656 = vmand %vm624, %vm640
  %vm657 = vmand %vm625, %vm641
  %vm658 = vmand %vm626, %vm642
  %vm659 = vmand %vm627, %vm643
  %vm660 = vmand %vm628, %vm644
  %vm661 = vmand %vm629, %vm645
  %vm662 = vmand %vm630, %vm646
  %vm663 = vmand %vm631, %vm647
  %vm664 = vmand %vm632, %vm648
  %vm665 = vmand %vm633, %vm649
  %vm666 = vmand %vm634, %vm650
  %vm667 = vmand %vm635, %vm651
  %vm668 = vmand %vm636, %vm652
  %vm669 = vmand %vm637, %vm653
  %vm670 = vmand %vm638, %vm654
  %vm671 = vmand %vm639, %vm655
  %vm672 = vcmp.ge.s32.totalorder %v22, 80
  %vm673 = vcmp.lt.s32.totalorder %v22, 96
  %vm674 = vmand %vm672, %vm673
  %vm675 = vmand %vm656, %vm674
  %vm676 = vmand %vm657, %vm674
  %vm677 = vmand %vm658, %vm674
  %vm678 = vmand %vm659, %vm674
  %vm679 = vmand %vm660, %vm674
  %vm680 = vmand %vm661, %vm674
  %vm681 = vmand %vm662, %vm674
  %vm682 = vmand %vm663, %vm674
  %vm683 = vmand %vm664, %vm674
  %vm684 = vmand %vm665, %vm674
  %vm685 = vmand %vm666, %vm674
  %vm686 = vmand %vm667, %vm674
  %vm687 = vmand %vm668, %vm674
  %vm688 = vmand %vm669, %vm674
  %vm689 = vmand %vm670, %vm674
  %vm690 = vmand %vm671, %vm674
  %vm691 = vcmp.ge.s32.totalorder %v274, 96
  %vm692 = vcmp.ge.s32.totalorder %v275, 96
  %vm693 = vcmp.ge.s32.totalorder %v276, 96
  %vm694 = vcmp.ge.s32.totalorder %v277, 96
  %vm695 = vcmp.ge.s32.totalorder %v278, 96
  %vm696 = vcmp.ge.s32.totalorder %v279, 96
  %vm697 = vcmp.ge.s32.totalorder %v280, 96
  %vm698 = vcmp.ge.s32.totalorder %v281, 96
  %vm699 = vcmp.ge.s32.totalorder %v282, 96
  %vm700 = vcmp.ge.s32.totalorder %v283, 96
  %vm701 = vcmp.ge.s32.totalorder %v284, 96
  %vm702 = vcmp.ge.s32.totalorder %v285, 96
  %vm703 = vcmp.ge.s32.totalorder %v286, 96
  %vm704 = vcmp.ge.s32.totalorder %v287, 96
  %vm705 = vcmp.ge.s32.totalorder %v288, 96
  %vm706 = vcmp.ge.s32.totalorder %v289, 96
  %vm707 = vcmp.lt.s32.totalorder %v274, 112
  %vm708 = vcmp.lt.s32.totalorder %v275, 112
  %vm709 = vcmp.lt.s32.totalorder %v276, 112
  %vm710 = vcmp.lt.s32.totalorder %v277, 112
  %vm711 = vcmp.lt.s32.totalorder %v278, 112
  %vm712 = vcmp.lt.s32.totalorder %v279, 112
  %vm713 = vcmp.lt.s32.totalorder %v280, 112
  %vm714 = vcmp.lt.s32.totalorder %v281, 112
  %vm715 = vcmp.lt.s32.totalorder %v282, 112
  %vm716 = vcmp.lt.s32.totalorder %v283, 112
  %vm717 = vcmp.lt.s32.totalorder %v284, 112
  %vm718 = vcmp.lt.s32.totalorder %v285, 112
  %vm719 = vcmp.lt.s32.totalorder %v286, 112
  %vm720 = vcmp.lt.s32.totalorder %v287, 112
  %vm721 = vcmp.lt.s32.totalorder %v288, 112
  %vm722 = vcmp.lt.s32.totalorder %v289, 112
  %vm723 = vmand %vm691, %vm707
  %vm724 = vmand %vm692, %vm708
  %vm725 = vmand %vm693, %vm709
  %vm726 = vmand %vm694, %vm710
  %vm727 = vmand %vm695, %vm711
  %vm728 = vmand %vm696, %vm712
  %vm729 = vmand %vm697, %vm713
  %vm730 = vmand %vm698, %vm714
  %vm731 = vmand %vm699, %vm715
  %vm732 = vmand %vm700, %vm716
  %vm733 = vmand %vm701, %vm717
  %vm734 = vmand %vm702, %vm718
  %vm735 = vmand %vm703, %vm719
  %vm736 = vmand %vm704, %vm720
  %vm737 = vmand %vm705, %vm721
  %vm738 = vmand %vm706, %vm722
  %vm739 = vcmp.ge.s32.totalorder %v22, 96
  %vm740 = vcmp.lt.s32.totalorder %v22, 112
  %vm741 = vmand %vm739, %vm740
  %vm742 = vmand %vm723, %vm741
  %vm743 = vmand %vm724, %vm741
  %vm744 = vmand %vm725, %vm741
  %vm745 = vmand %vm726, %vm741
  %vm746 = vmand %vm727, %vm741
  %vm747 = vmand %vm728, %vm741
  %vm748 = vmand %vm729, %vm741
  %vm749 = vmand %vm730, %vm741
  %vm750 = vmand %vm731, %vm741
  %vm751 = vmand %vm732, %vm741
  %vm752 = vmand %vm733, %vm741
  %vm753 = vmand %vm734, %vm741
  %vm754 = vmand %vm735, %vm741
  %vm755 = vmand %vm736, %vm741
  %vm756 = vmand %vm737, %vm741
  %vm757 = vmand %vm738, %vm741
  %vm758 = vcmp.ge.s32.totalorder %v274, 112
  %vm759 = vcmp.ge.s32.totalorder %v275, 112
  %vm760 = vcmp.ge.s32.totalorder %v276, 112
  %vm761 = vcmp.ge.s32.totalorder %v277, 112
  %vm762 = vcmp.ge.s32.totalorder %v278, 112
  %vm763 = vcmp.ge.s32.totalorder %v279, 112
  %vm764 = vcmp.ge.s32.totalorder %v280, 112
  %vm765 = vcmp.ge.s32.totalorder %v281, 112
  %vm766 = vcmp.ge.s32.totalorder %v282, 112
  %vm767 = vcmp.ge.s32.totalorder %v283, 112
  %vm768 = vcmp.ge.s32.totalorder %v284, 112
  %vm769 = vcmp.ge.s32.totalorder %v285, 112
  %vm770 = vcmp.ge.s32.totalorder %v286, 112
  %vm771 = vcmp.ge.s32.totalorder %v287, 112
  %vm772 = vcmp.ge.s32.totalorder %v288, 112
  %vm773 = vcmp.ge.s32.totalorder %v289, 112
  %vm774 = vcmp.lt.s32.totalorder %v274, 128
  %vm775 = vcmp.lt.s32.totalorder %v275, 128
  %vm776 = vcmp.lt.s32.totalorder %v276, 128
  %vm777 = vcmp.lt.s32.totalorder %v277, 128
  %vm778 = vcmp.lt.s32.totalorder %v278, 128
  %vm779 = vcmp.lt.s32.totalorder %v279, 128
  %vm780 = vcmp.lt.s32.totalorder %v280, 128
  %vm781 = vcmp.lt.s32.totalorder %v281, 128
  %vm782 = vcmp.lt.s32.totalorder %v282, 128
  %vm783 = vcmp.lt.s32.totalorder %v283, 128
  %vm784 = vcmp.lt.s32.totalorder %v284, 128
  %vm785 = vcmp.lt.s32.totalorder %v285, 128
  %vm786 = vcmp.lt.s32.totalorder %v286, 128
  %vm787 = vcmp.lt.s32.totalorder %v287, 128
  %vm788 = vcmp.lt.s32.totalorder %v288, 128
  %vm789 = vcmp.lt.s32.totalorder %v289, 128
  %vm790 = vmand %vm758, %vm774
  %vm791 = vmand %vm759, %vm775
  %vm792 = vmand %vm760, %vm776
  %vm793 = vmand %vm761, %vm777
  %vm794 = vmand %vm762, %vm778
  %vm795 = vmand %vm763, %vm779
  %vm796 = vmand %vm764, %vm780
  %vm797 = vmand %vm765, %vm781
  %vm798 = vmand %vm766, %vm782
  %vm799 = vmand %vm767, %vm783
  %vm800 = vmand %vm768, %vm784
  %vm801 = vmand %vm769, %vm785
  %vm802 = vmand %vm770, %vm786
  %vm803 = vmand %vm771, %vm787
  %vm804 = vmand %vm772, %vm788
  %vm805 = vmand %vm773, %vm789
  %vm806 = vcmp.ge.s32.totalorder %v22, 112
  %vm807 = vcmp.lt.s32.totalorder %v22, 128
  %vm808 = vmand %vm806, %vm807
  %vm809 = vmand %vm790, %vm808
  %vm810 = vmand %vm791, %vm808
  %vm811 = vmand %vm792, %vm808
  %vm812 = vmand %vm793, %vm808
  %vm813 = vmand %vm794, %vm808
  %vm814 = vmand %vm795, %vm808
  %vm815 = vmand %vm796, %vm808
  %vm816 = vmand %vm797, %vm808
  %vm817 = vmand %vm798, %vm808
  %vm818 = vmand %vm799, %vm808
  %vm819 = vmand %vm800, %vm808
  %vm820 = vmand %vm801, %vm808
  %vm821 = vmand %vm802, %vm808
  %vm822 = vmand %vm803, %vm808
  %vm823 = vmand %vm804, %vm808
  %vm824 = vmand %vm805, %vm808
  %vm825 = vmor %vm341, %vm407
  %vm826 = vmor %vm342, %vm408
  %vm827 = vmor %vm343, %vm409
  %vm828 = vmor %vm344, %vm410
  %vm829 = vmor %vm345, %vm411
  %vm830 = vmor %vm346, %vm412
  %vm831 = vmor %vm347, %vm413
  %vm832 = vmor %vm348, %vm414
  %vm833 = vmor %vm349, %vm415
  %vm834 = vmor %vm350, %vm416
  %vm835 = vmor %vm351, %vm417
  %vm836 = vmor %vm352, %vm418
  %vm837 = vmor %vm353, %vm419
  %vm838 = vmor %vm354, %vm420
  %vm839 = vmor %vm355, %vm421
  %vm840 = vmor %vm356, %vm422
  %vm841 = vmor %vm825, %vm474
  %vm842 = vmor %vm826, %vm475
  %vm843 = vmor %vm827, %vm476
  %vm844 = vmor %vm828, %vm477
  %vm845 = vmor %vm829, %vm478
  %vm846 = vmor %vm830, %vm479
  %vm847 = vmor %vm831, %vm480
  %vm848 = vmor %vm832, %vm481
  %vm849 = vmor %vm833, %vm482
  %vm850 = vmor %vm834, %vm483
  %vm851 = vmor %vm835, %vm484
  %vm852 = vmor %vm836, %vm485
  %vm853 = vmor %vm837, %vm486
  %vm854 = vmor %vm838, %vm487
  %vm855 = vmor %vm839, %vm488
  %vm856 = vmor %vm840, %vm489
  %vm857 = vmor %vm841, %vm541
  %vm858 = vmor %vm842, %vm542
  %vm859 = vmor %vm843, %vm543
  %vm860 = vmor %vm844, %vm544
  %vm861 = vmor %vm845, %vm545
  %vm862 = vmor %vm846, %vm546
  %vm863 = vmor %vm847, %vm547
  %vm864 = vmor %vm848, %vm548
  %vm865 = vmor %vm849, %vm549
  %vm866 = vmor %vm850, %vm550
  %vm867 = vmor %vm851, %vm551
  %vm868 = vmor %vm852, %vm552
  %vm869 = vmor %vm853, %vm553
  %vm870 = vmor %vm854, %vm554
  %vm871 = vmor %vm855, %vm555
  %vm872 = vmor %vm856, %vm556
  %vm873 = vmor %vm857, %vm608
  %vm874 = vmor %vm858, %vm609
  %vm875 = vmor %vm859, %vm610
  %vm876 = vmor %vm860, %vm611
  %vm877 = vmor %vm861, %vm612
  %vm878 = vmor %vm862, %vm613
  %vm879 = vmor %vm863, %vm614
  %vm880 = vmor %vm864, %vm615
  %vm881 = vmor %vm865, %vm616
  %vm882 = vmor %vm866, %vm617
  %vm883 = vmor %vm867, %vm618
  %vm884 = vmor %vm868, %vm619
  %vm885 = vmor %vm869, %vm620
  %vm886 = vmor %vm870, %vm621
  %vm887 = vmor %vm871, %vm622
  %vm888 = vmor %vm872, %vm623
  %vm889 = vmor %vm873, %vm675
  %vm890 = vmor %vm874, %vm676
  %vm891 = vmor %vm875, %vm677
  %vm892 = vmor %vm876, %vm678
  %vm893 = vmor %vm877, %vm679
  %vm894 = vmor %vm878, %vm680
  %vm895 = vmor %vm879, %vm681
  %vm896 = vmor %vm880, %vm682
  %vm897 = vmor %vm881, %vm683
  %vm898 = vmor %vm882, %vm684
  %vm899 = vmor %vm883, %vm685
  %vm900 = vmor %vm884, %vm686
  %vm901 = vmor %vm885, %vm687
  %vm902 = vmor %vm886, %vm688
  %vm903 = vmor %vm887, %vm689
  %vm904 = vmor %vm888, %vm690
  %vm905 = vmor %vm889, %vm742
  %vm906 = vmor %vm890, %vm743
  %vm907 = vmor %vm891, %vm744
  %vm908 = vmor %vm892, %vm745
  %vm909 = vmor %vm893, %vm746
  %vm910 = vmor %vm894, %vm747
  %vm911 = vmor %vm895, %vm748
  %vm912 = vmor %vm896, %vm749
  %vm913 = vmor %vm897, %vm750
  %vm914 = vmor %vm898, %vm751
  %vm915 = vmor %vm899, %vm752
  %vm916 = vmor %vm900, %vm753
  %vm917 = vmor %vm901, %vm754
  %vm918 = vmor %vm902, %vm755
  %vm919 = vmor %vm903, %vm756
  %vm920 = vmor %vm904, %vm757
  %vm921 = vmor %vm905, %vm809
  %vm922 = vmor %vm906, %vm810
  %vm923 = vmor %vm907, %vm811
  %vm924 = vmor %vm908, %vm812
  %vm925 = vmor %vm909, %vm813
  %vm926 = vmor %vm910, %vm814
  %vm927 = vmor %vm911, %vm815
  %vm928 = vmor %vm912, %vm816
  %vm929 = vmor %vm913, %vm817
  %vm930 = vmor %vm914, %vm818
  %vm931 = vmor %vm915, %vm819
  %vm932 = vmor %vm916, %vm820
  %vm933 = vmor %vm917, %vm821
  %vm934 = vmor %vm918, %vm822
  %vm935 = vmor %vm919, %vm823
  %vm936 = vmor %vm920, %vm824
  %v937 = vld [vmem:[%s1] sm:$0x1]
  %vm938 = vcmp.gt.f32.partialorder %v937, 0.5
  %v939 = vsel %vm938, 0.0, -10000.0
  %v941 = vlaneseq
  %v942 = vshrl.u32 %v941, 7
  %v943 = vsub.s32 0, %v942
  %v944 = vrot.slane %v939, %v943
  %v946 = vsel %vm921, %v944, -1e+09
  %v947 = vsel %vm922, %v944, -1e+09
  %v948 = vsel %vm923, %v944, -1e+09
  %v949 = vsel %vm924, %v944, -1e+09
  %v950 = vsel %vm925, %v944, -1e+09
  %v951 = vsel %vm926, %v944, -1e+09
  %v952 = vsel %vm927, %v944, -1e+09
  %v953 = vsel %vm928, %v944, -1e+09
  %v954 = vsel %vm929, %v944, -1e+09
  %v955 = vsel %vm930, %v944, -1e+09
  %v956 = vsel %vm931, %v944, -1e+09
  %v957 = vsel %vm932, %v944, -1e+09
  %v958 = vsel %vm933, %v944, -1e+09
  %v959 = vsel %vm934, %v944, -1e+09
  %v960 = vsel %vm935, %v944, -1e+09
  %v961 = vsel %vm936, %v944, -1e+09
  %v962 = vld [vmem:[%s4] sm:$0xff]
  %v963 = vpack.c.bf16 %v258, %v257
  %v964 = vpack.c.bf16 %v260, %v259
  %v965 = vpack.c.bf16 %v262, %v261
  %v966 = vpack.c.bf16 %v264, %v263
  %v967 = vpack.c.bf16 %v266, %v265
  %v968 = vpack.c.bf16 %v268, %v267
  %v969 = vpack.c.bf16 %v270, %v269
  %v970 = vpack.c.bf16 %v272, %v271
  %v971 = vld [vmem:[%s3] sm:$0xf]
  %v972 = vld [vmem:[%s3 + $0x4] sm:$0xf]
  %v973 = vld [vmem:[%s3 + $0x8] sm:$0xf]
  %v974 = vld [vmem:[%s3 + $0xc] sm:$0xf]
  %v975 = vld [vmem:[%s3 + $0x10] sm:$0xf]
  %v976 = vld [vmem:[%s3 + $0x14] sm:$0xf]
  %v977 = vld [vmem:[%s3 + $0x18] sm:$0xf]
  %v978 = vld [vmem:[%s3 + $0x1c] sm:$0xf]
  %v979 = vld [vmem:[%s3 + $0x20] sm:$0xf]
  %v980 = vld [vmem:[%s3 + $0x24] sm:$0xf]
  %v981 = vld [vmem:[%s3 + $0x28] sm:$0xf]
  %v982 = vld [vmem:[%s3 + $0x2c] sm:$0xf]
  %v983 = vld [vmem:[%s3 + $0x30] sm:$0xf]
  %v984 = vld [vmem:[%s3 + $0x34] sm:$0xf]
  %v985 = vld [vmem:[%s3 + $0x38] sm:$0xf]
  %v986 = vld [vmem:[%s3 + $0x3c] sm:$0xf]
  %v987 = vlaneseq
  %v988 = vshrl.u32 %v987, 7
  %v989 = vsub.s32 0, %v988
  %v990 = vrot.slane %v962, %v989
  %v1007 = vunpack.c.l.b16 %v971
  %v1008 = vunpack.c.l.b16 %v972
  %v1009 = vunpack.c.l.b16 %v973
  %v1010 = vunpack.c.l.b16 %v974
  %v1011 = vunpack.c.l.b16 %v975
  %v1012 = vunpack.c.l.b16 %v976
  %v1013 = vunpack.c.l.b16 %v977
  %v1014 = vunpack.c.l.b16 %v978
  %v1015 = vunpack.c.l.b16 %v979
  %v1016 = vunpack.c.l.b16 %v980
  %v1017 = vunpack.c.l.b16 %v981
  %v1018 = vunpack.c.l.b16 %v982
  %v1019 = vunpack.c.l.b16 %v983
  %v1020 = vunpack.c.l.b16 %v984
  %v1021 = vunpack.c.l.b16 %v985
  %v1022 = vunpack.c.l.b16 %v986
  %v1023 = vpack.c.b16 %v1008, %v1007
  %v1024 = vpack.c.b16 %v1010, %v1009
  %v1025 = vpack.c.b16 %v1012, %v1011
  %v1026 = vpack.c.b16 %v1014, %v1013
  %v1027 = vpack.c.b16 %v1016, %v1015
  %v1028 = vpack.c.b16 %v1018, %v1017
  %v1029 = vpack.c.b16 %v1020, %v1019
  %v1030 = vpack.c.b16 %v1022, %v1021
  %1039 = vmatprep.subr.bf16.mxu0 0
  %1040 = vmatpush1.bf16.msra.mxu0 %v1030
  %1041 = vmatprep.subr.bf16.mxu0 0
  %1042 = vmatpush1.bf16.msra.mxu0 %v1029
  %1043 = vmatprep.subr.bf16.mxu0 0
  %1044 = vmatpush1.bf16.msra.mxu0 %v1028
  %1045 = vmatprep.subr.bf16.mxu0 0
  %1046 = vmatpush1.bf16.msra.mxu0 %v1027
  %1047 = vmatprep.subr.bf16.mxu0 0
  %1048 = vmatpush1.bf16.msra.mxu0 %v1026
  %1049 = vmatprep.subr.bf16.mxu0 0
  %1050 = vmatpush1.bf16.msra.mxu0 %v1025
  %1051 = vmatprep.subr.bf16.mxu0 0
  %1052 = vmatpush1.bf16.msra.mxu0 %v1024
  %1053 = vmatprep.subr.bf16.mxu0 0
  %1054 = vmatpush1.bf16.msra.mxu0 %v1023
  %1055 = vmatprep.subr.bf16.mxu0 0
  %1056 = vmatpush2.bf16.msra.mxu0 0
  %1057 = vmatprep.subr.bf16.mxu0 0
  %1058 = vmatpush2.bf16.msra.mxu0 0
  %1059 = vmatprep.subr.bf16.mxu0 0
  %1060 = vmatpush2.bf16.msra.mxu0 0
  %1061 = vmatprep.subr.bf16.mxu0 0
  %1062 = vmatpush2.bf16.msra.mxu0 0
  %1063 = vmatprep.subr.bf16.mxu0 0
  %1064 = vmatpush2.bf16.msra.mxu0 0
  %1065 = vmatprep.subr.bf16.mxu0 0
  %1066 = vmatpush2.bf16.msra.mxu0 0
  %1067 = vmatprep.subr.bf16.mxu0 0
  %1068 = vmatpush2.bf16.msra.mxu0 0
  %1069 = vmatprep.subr.bf16.mxu0 0
  %1070 = vmatpush2.bf16.msra.mxu0 0
  %1071 = vmatprep.mubr.bf16.mxu0 0
  %1072 = vmatmul.mubr.bf16.gmra.mxu0 %v963
  %v1073 = vpop.f32.mrf.mxu0
  %v1074 = vadd.f32 %v990, %v1073
  %v1075 = vpop.f32.mrf.mxu0
  %v1076 = vpop.f32.mrf.mxu0
  %v1077 = vadd.f32 %v990, %v1076
  %v1078 = vpop.f32.mrf.mxu0
  %1079 = vmatprep.mubr.bf16.mxu0 0
  %1080 = vmatmul.mubr.bf16.gmra.mxu0 %v964
  %v1081 = vpop.f32.mrf.mxu0
  %v1082 = vadd.f32 %v990, %v1081
  %v1083 = vpop.f32.mrf.mxu0
  %v1084 = vpop.f32.mrf.mxu0
  %v1085 = vadd.f32 %v990, %v1084
  %v1086 = vpop.f32.mrf.mxu0
  %1087 = vmatprep.mubr.bf16.mxu0 0
  %1088 = vmatmul.mubr.bf16.gmra.mxu0 %v965
  %v1089 = vpop.f32.mrf.mxu0
  %v1090 = vadd.f32 %v990, %v1089
  %v1091 = vpop.f32.mrf.mxu0
  %v1092 = vpop.f32.mrf.mxu0
  %v1093 = vadd.f32 %v990, %v1092
  %v1094 = vpop.f32.mrf.mxu0
  %1095 = vmatprep.mubr.bf16.mxu0 0
  %1096 = vmatmul.mubr.bf16.gmra.mxu0 %v966
  %v1097 = vpop.f32.mrf.mxu0
  %v1098 = vadd.f32 %v990, %v1097
  %v1099 = vpop.f32.mrf.mxu0
  %v1100 = vpop.f32.mrf.mxu0
  %v1101 = vadd.f32 %v990, %v1100
  %v1102 = vpop.f32.mrf.mxu0
  %1103 = vmatprep.mubr.bf16.mxu0 0
  %1104 = vmatmul.mubr.bf16.gmra.mxu0 %v967
  %v1105 = vpop.f32.mrf.mxu0
  %v1106 = vadd.f32 %v990, %v1105
  %v1107 = vpop.f32.mrf.mxu0
  %v1108 = vpop.f32.mrf.mxu0
  %v1109 = vadd.f32 %v990, %v1108
  %v1110 = vpop.f32.mrf.mxu0
  %1111 = vmatprep.mubr.bf16.mxu0 0
  %1112 = vmatmul.mubr.bf16.gmra.mxu0 %v968
  %v1113 = vpop.f32.mrf.mxu0
  %v1114 = vadd.f32 %v990, %v1113
  %v1115 = vpop.f32.mrf.mxu0
  %v1116 = vpop.f32.mrf.mxu0
  %v1117 = vadd.f32 %v990, %v1116
  %v1118 = vpop.f32.mrf.mxu0
  %1119 = vmatprep.mubr.bf16.mxu0 0
  %1120 = vmatmul.mubr.bf16.gmra.mxu0 %v969
  %v1121 = vpop.f32.mrf.mxu0
  %v1122 = vadd.f32 %v990, %v1121
  %v1123 = vpop.f32.mrf.mxu0
  %v1124 = vpop.f32.mrf.mxu0
  %v1125 = vadd.f32 %v990, %v1124
  %v1126 = vpop.f32.mrf.mxu0
  %1127 = vmatprep.mubr.bf16.mxu0 0
  %1128 = vmatmul.mubr.bf16.gmra.mxu0 %v970
  %v1129 = vpop.f32.mrf.mxu0
  %v1130 = vadd.f32 %v990, %v1129
  %v1131 = vpop.f32.mrf.mxu0
  %v1132 = vpop.f32.mrf.mxu0
  %v1133 = vadd.f32 %v990, %v1132
  %v1134 = vpop.f32.mrf.mxu0
  %1135 = vdwg.mxu0
  %v1136 = vpack.c.bf16 %v1077, %v1074
  %v1137 = vpack.c.bf16 %v1085, %v1082
  %v1138 = vpack.c.bf16 %v1093, %v1090
  %v1139 = vpack.c.bf16 %v1101, %v1098
  %v1140 = vpack.c.bf16 %v1109, %v1106
  %v1141 = vpack.c.bf16 %v1117, %v1114
  %v1142 = vpack.c.bf16 %v1125, %v1122
  %v1143 = vpack.c.bf16 %v1133, %v1130
  %1152 = vrot.lane.b32.xlu0 %v1136, 96
  %v1153 = vpop.permute.xlu0 %1152
  %1154 = vrot.lane.b32.xlu0 %v1137, 96
  %v1155 = vpop.permute.xlu0 %1154
  %1156 = vrot.lane.b32.xlu0 %v1138, 96
  %v1157 = vpop.permute.xlu0 %1156
  %1158 = vrot.lane.b32.xlu0 %v1139, 96
  %v1159 = vpop.permute.xlu0 %1158
  %1160 = vrot.lane.b32.xlu0 %v1140, 96
  %v1161 = vpop.permute.xlu0 %1160
  %1162 = vrot.lane.b32.xlu0 %v1141, 96
  %v1163 = vpop.permute.xlu0 %1162
  %1164 = vrot.lane.b32.xlu0 %v1142, 96
  %v1165 = vpop.permute.xlu0 %1164
  %1166 = vrot.lane.b32.xlu0 %v1143, 96
  %v1167 = vpop.permute.xlu0 %1166
  %vm1168 = vcmask 130048
  %v1170 = vsel %vm1168, %v1136, 0
  %v1173 = vsel %vm1168, %v1137, 0
  %v1176 = vsel %vm1168, %v1138, 0
  %v1179 = vsel %vm1168, %v1139, 0
  %v1182 = vsel %vm1168, %v1140, 0
  %v1185 = vsel %vm1168, %v1141, 0
  %v1188 = vsel %vm1168, %v1142, 0
  %v1191 = vsel %vm1168, %v1143, 0
  %v1194 = vsel %vm1168, %v1153, 0
  %v1197 = vsel %vm1168, %v1155, 0
  %v1200 = vsel %vm1168, %v1157, 0
  %v1203 = vsel %vm1168, %v1159, 0
  %v1206 = vsel %vm1168, %v1161, 0
  %v1209 = vsel %vm1168, %v1163, 0
  %v1212 = vsel %vm1168, %v1165, 0
  %v1215 = vsel %vm1168, %v1167, 0
  %1217 = vmatprep.subr.bf16.mxu0 0
  %1218 = vmatpush1.bf16.xpose.msra.mxu0 %v1215
  %1219 = vmatprep.subr.bf16.mxu0 0
  %1220 = vmatpush1.bf16.xpose.msra.mxu0 %v1212
  %1221 = vmatprep.subr.bf16.mxu0 0
  %1222 = vmatpush1.bf16.xpose.msra.mxu0 %v1209
  %1223 = vmatprep.subr.bf16.mxu0 0
  %1224 = vmatpush1.bf16.xpose.msra.mxu0 %v1206
  %1225 = vmatprep.subr.bf16.mxu0 0
  %1226 = vmatpush1.bf16.xpose.msra.mxu0 %v1203
  %1227 = vmatprep.subr.bf16.mxu0 0
  %1228 = vmatpush1.bf16.xpose.msra.mxu0 %v1200
  %1229 = vmatprep.subr.bf16.mxu0 0
  %1230 = vmatpush1.bf16.xpose.msra.mxu0 %v1197
  %1231 = vmatprep.subr.bf16.mxu0 0
  %1232 = vmatpush1.bf16.xpose.msra.mxu0 %v1194
  %1233 = vmatprep.subr.bf16.mxu0 0
  %1234 = vmatpush2.bf16.xpose.msra.mxu0 0
  %1235 = vmatprep.subr.bf16.mxu0 0
  %1236 = vmatpush2.bf16.xpose.msra.mxu0 0
  %1237 = vmatprep.subr.bf16.mxu0 0
  %1238 = vmatpush2.bf16.xpose.msra.mxu0 0
  %1239 = vmatprep.subr.bf16.mxu0 0
  %1240 = vmatpush2.bf16.xpose.msra.mxu0 0
  %1241 = vmatprep.subr.bf16.mxu0 0
  %1242 = vmatpush2.bf16.xpose.msra.mxu0 0
  %1243 = vmatprep.subr.bf16.mxu0 0
  %1244 = vmatpush2.bf16.xpose.msra.mxu0 0
  %1245 = vmatprep.subr.bf16.mxu0 0
  %1246 = vmatpush2.bf16.xpose.msra.mxu0 0
  %1247 = vmatprep.subr.bf16.mxu0 0
  %1248 = vmatpush2.bf16.xpose.msra.mxu0 0
  %1249 = vmatprep.mubr.bf16.mxu0 0
  %1250 = vmatmul.mubr.bf16.gmra.mxu0 %v1170
  %v1251 = vpop.f32.mrf.mxu0
  %v1252 = vadd.f32 0.0, %v1251
  %v1253 = vpop.f32.mrf.mxu0
  %v1254 = vpop.f32.mrf.mxu0
  %v1255 = vadd.f32 0.0, %v1254
  %v1256 = vpop.f32.mrf.mxu0
  %1257 = vmatprep.mubr.bf16.mxu0 0
  %1258 = vmatmul.mubr.bf16.gmra.mxu0 %v1173
  %v1259 = vpop.f32.mrf.mxu0
  %v1260 = vadd.f32 0.0, %v1259
  %v1261 = vpop.f32.mrf.mxu0
  %v1262 = vpop.f32.mrf.mxu0
  %v1263 = vadd.f32 0.0, %v1262
  %v1264 = vpop.f32.mrf.mxu0
  %1265 = vmatprep.mubr.bf16.mxu0 0
  %1266 = vmatmul.mubr.bf16.gmra.mxu0 %v1176
  %v1267 = vpop.f32.mrf.mxu0
  %v1268 = vadd.f32 0.0, %v1267
  %v1269 = vpop.f32.mrf.mxu0
  %v1270 = vpop.f32.mrf.mxu0
  %v1271 = vadd.f32 0.0, %v1270
  %v1272 = vpop.f32.mrf.mxu0
  %1273 = vmatprep.mubr.bf16.mxu0 0
  %1274 = vmatmul.mubr.bf16.gmra.mxu0 %v1179
  %v1275 = vpop.f32.mrf.mxu0
  %v1276 = vadd.f32 0.0, %v1275
  %v1277 = vpop.f32.mrf.mxu0
  %v1278 = vpop.f32.mrf.mxu0
  %v1279 = vadd.f32 0.0, %v1278
  %v1280 = vpop.f32.mrf.mxu0
  %1281 = vmatprep.mubr.bf16.mxu0 0
  %1282 = vmatmul.mubr.bf16.gmra.mxu0 %v1182
  %v1283 = vpop.f32.mrf.mxu0
  %v1284 = vadd.f32 0.0, %v1283
  %v1285 = vpop.f32.mrf.mxu0
  %v1286 = vpop.f32.mrf.mxu0
  %v1287 = vadd.f32 0.0, %v1286
  %v1288 = vpop.f32.mrf.mxu0
  %1289 = vmatprep.mubr.bf16.mxu0 0
  %1290 = vmatmul.mubr.bf16.gmra.mxu0 %v1185
  %v1291 = vpop.f32.mrf.mxu0
  %v1292 = vadd.f32 0.0, %v1291
  %v1293 = vpop.f32.mrf.mxu0
  %v1294 = vpop.f32.mrf.mxu0
  %v1295 = vadd.f32 0.0, %v1294
  %v1296 = vpop.f32.mrf.mxu0
  %1297 = vmatprep.mubr.bf16.mxu0 0
  %1298 = vmatmul.mubr.bf16.gmra.mxu0 %v1188
  %v1299 = vpop.f32.mrf.mxu0
  %v1300 = vadd.f32 0.0, %v1299
  %v1301 = vpop.f32.mrf.mxu0
  %v1302 = vpop.f32.mrf.mxu0
  %v1303 = vadd.f32 0.0, %v1302
  %v1304 = vpop.f32.mrf.mxu0
  %1305 = vmatprep.mubr.bf16.mxu0 0
  %1306 = vmatmul.mubr.bf16.gmra.mxu0 %v1191
  %v1307 = vpop.f32.mrf.mxu0
  %v1308 = vadd.f32 0.0, %v1307
  %v1309 = vpop.f32.mrf.mxu0
  %v1310 = vpop.f32.mrf.mxu0
  %v1311 = vadd.f32 0.0, %v1310
  %v1312 = vpop.f32.mrf.mxu0
  %1313 = vdwg.mxu0
  %v1314 = vmul.f32 %v1252, 0.25
  %v1315 = vmul.f32 %v1255, 0.25
  %v1316 = vmul.f32 %v1260, 0.25
  %v1317 = vmul.f32 %v1263, 0.25
  %v1318 = vmul.f32 %v1268, 0.25
  %v1319 = vmul.f32 %v1271, 0.25
  %v1320 = vmul.f32 %v1276, 0.25
  %v1321 = vmul.f32 %v1279, 0.25
  %v1322 = vmul.f32 %v1284, 0.25
  %v1323 = vmul.f32 %v1287, 0.25
  %v1324 = vmul.f32 %v1292, 0.25
  %v1325 = vmul.f32 %v1295, 0.25
  %v1326 = vmul.f32 %v1300, 0.25
  %v1327 = vmul.f32 %v1303, 0.25
  %v1328 = vmul.f32 %v1308, 0.25
  %v1329 = vmul.f32 %v1311, 0.25
  %v1330 = vadd.f32 %v1314, %v946
  %v1331 = vadd.f32 %v1315, %v947
  %v1332 = vadd.f32 %v1316, %v948
  %v1333 = vadd.f32 %v1317, %v949
  %v1334 = vadd.f32 %v1318, %v950
  %v1335 = vadd.f32 %v1319, %v951
  %v1336 = vadd.f32 %v1320, %v952
  %v1337 = vadd.f32 %v1321, %v953
  %v1338 = vadd.f32 %v1322, %v954
  %v1339 = vadd.f32 %v1323, %v955
  %v1340 = vadd.f32 %v1324, %v956
  %v1341 = vadd.f32 %v1325, %v957
  %v1342 = vadd.f32 %v1326, %v958
  %v1343 = vadd.f32 %v1327, %v959
  %v1344 = vadd.f32 %v1328, %v960
  %v1345 = vadd.f32 %v1329, %v961
  %1346 = vmax.xlane.f32.xlu0 %v1330
  %v1347 = vpop.xlane.xlu0 %1346
  %1348 = vmax.xlane.f32.xlu0 %v1331
  %v1349 = vpop.xlane.xlu0 %1348
  %1350 = vmax.xlane.f32.xlu0 %v1332
  %v1351 = vpop.xlane.xlu0 %1350
  %1352 = vmax.xlane.f32.xlu0 %v1333
  %v1353 = vpop.xlane.xlu0 %1352
  %1354 = vmax.xlane.f32.xlu0 %v1334
  %v1355 = vpop.xlane.xlu0 %1354
  %1356 = vmax.xlane.f32.xlu0 %v1335
  %v1357 = vpop.xlane.xlu0 %1356
  %1358 = vmax.xlane.f32.xlu0 %v1336
  %v1359 = vpop.xlane.xlu0 %1358
  %1360 = vmax.xlane.f32.xlu0 %v1337
  %v1361 = vpop.xlane.xlu0 %1360
  %1362 = vmax.xlane.f32.xlu0 %v1338
  %v1363 = vpop.xlane.xlu0 %1362
  %1364 = vmax.xlane.f32.xlu0 %v1339
  %v1365 = vpop.xlane.xlu0 %1364
  %1366 = vmax.xlane.f32.xlu0 %v1340
  %v1367 = vpop.xlane.xlu0 %1366
  %1368 = vmax.xlane.f32.xlu0 %v1341
  %v1369 = vpop.xlane.xlu0 %1368
  %1370 = vmax.xlane.f32.xlu0 %v1342
  %v1371 = vpop.xlane.xlu0 %1370
  %1372 = vmax.xlane.f32.xlu0 %v1343
  %v1373 = vpop.xlane.xlu0 %1372
  %1374 = vmax.xlane.f32.xlu0 %v1344
  %v1375 = vpop.xlane.xlu0 %1374
  %1376 = vmax.xlane.f32.xlu0 %v1345
  %v1377 = vpop.xlane.xlu0 %1376
  %v1378 = vsub.f32 %v1330, %v1347
  %v1379 = vsub.f32 %v1331, %v1349
  %v1380 = vsub.f32 %v1332, %v1351
  %v1381 = vsub.f32 %v1333, %v1353
  %v1382 = vsub.f32 %v1334, %v1355
  %v1383 = vsub.f32 %v1335, %v1357
  %v1384 = vsub.f32 %v1336, %v1359
  %v1385 = vsub.f32 %v1337, %v1361
  %v1386 = vsub.f32 %v1338, %v1363
  %v1387 = vsub.f32 %v1339, %v1365
  %v1388 = vsub.f32 %v1340, %v1367
  %v1389 = vsub.f32 %v1341, %v1369
  %v1390 = vsub.f32 %v1342, %v1371
  %v1391 = vsub.f32 %v1343, %v1373
  %v1392 = vsub.f32 %v1344, %v1375
  %v1393 = vsub.f32 %v1345, %v1377
  %v1394 = vmul.f32 %v1378, 1.442695
  %v1395 = vpow.pop %v1394
  %v1396 = vmul.f32 %v1379, 1.442695
  %v1397 = vpow.pop %v1396
  %v1398 = vmul.f32 %v1380, 1.442695
  %v1399 = vpow.pop %v1398
  %v1400 = vmul.f32 %v1381, 1.442695
  %v1401 = vpow.pop %v1400
  %v1402 = vmul.f32 %v1382, 1.442695
  %v1403 = vpow.pop %v1402
  %v1404 = vmul.f32 %v1383, 1.442695
  %v1405 = vpow.pop %v1404
  %v1406 = vmul.f32 %v1384, 1.442695
  %v1407 = vpow.pop %v1406
  %v1408 = vmul.f32 %v1385, 1.442695
  %v1409 = vpow.pop %v1408
  %v1410 = vmul.f32 %v1386, 1.442695
  %v1411 = vpow.pop %v1410
  %v1412 = vmul.f32 %v1387, 1.442695
  %v1413 = vpow.pop %v1412
  %v1414 = vmul.f32 %v1388, 1.442695
  %v1415 = vpow.pop %v1414
  %v1416 = vmul.f32 %v1389, 1.442695
  %v1417 = vpow.pop %v1416
  %v1418 = vmul.f32 %v1390, 1.442695
  %v1419 = vpow.pop %v1418
  %v1420 = vmul.f32 %v1391, 1.442695
  %v1421 = vpow.pop %v1420
  %v1422 = vmul.f32 %v1392, 1.442695
  %v1423 = vpow.pop %v1422
  %v1424 = vmul.f32 %v1393, 1.442695
  %v1425 = vpow.pop %v1424
  %1426 = vadd.xlane.f32.xlu0 %v1395
  %v1427 = vpop.xlane.xlu0 %1426
  %1428 = vadd.xlane.f32.xlu0 %v1397
  %v1429 = vpop.xlane.xlu0 %1428
  %1430 = vadd.xlane.f32.xlu0 %v1399
  %v1431 = vpop.xlane.xlu0 %1430
  %1432 = vadd.xlane.f32.xlu0 %v1401
  %v1433 = vpop.xlane.xlu0 %1432
  %1434 = vadd.xlane.f32.xlu0 %v1403
  %v1435 = vpop.xlane.xlu0 %1434
  %1436 = vadd.xlane.f32.xlu0 %v1405
  %v1437 = vpop.xlane.xlu0 %1436
  %1438 = vadd.xlane.f32.xlu0 %v1407
  %v1439 = vpop.xlane.xlu0 %1438
  %1440 = vadd.xlane.f32.xlu0 %v1409
  %v1441 = vpop.xlane.xlu0 %1440
  %1442 = vadd.xlane.f32.xlu0 %v1411
  %v1443 = vpop.xlane.xlu0 %1442
  %1444 = vadd.xlane.f32.xlu0 %v1413
  %v1445 = vpop.xlane.xlu0 %1444
  %1446 = vadd.xlane.f32.xlu0 %v1415
  %v1447 = vpop.xlane.xlu0 %1446
  %1448 = vadd.xlane.f32.xlu0 %v1417
  %v1449 = vpop.xlane.xlu0 %1448
  %1450 = vadd.xlane.f32.xlu0 %v1419
  %v1451 = vpop.xlane.xlu0 %1450
  %1452 = vadd.xlane.f32.xlu0 %v1421
  %v1453 = vpop.xlane.xlu0 %1452
  %1454 = vadd.xlane.f32.xlu0 %v1423
  %v1455 = vpop.xlane.xlu0 %1454
  %1456 = vadd.xlane.f32.xlu0 %v1425
  %v1457 = vpop.xlane.xlu0 %1456
  %v1458 = vrcp.pop %v1427
  %v1459 = vrcp.pop %v1429
  %v1460 = vrcp.pop %v1431
  %v1461 = vrcp.pop %v1433
  %v1462 = vrcp.pop %v1435
  %v1463 = vrcp.pop %v1437
  %v1464 = vrcp.pop %v1439
  %v1465 = vrcp.pop %v1441
  %v1466 = vrcp.pop %v1443
  %v1467 = vrcp.pop %v1445
  %v1468 = vrcp.pop %v1447
  %v1469 = vrcp.pop %v1449
  %v1470 = vrcp.pop %v1451
  %v1471 = vrcp.pop %v1453
  %v1472 = vrcp.pop %v1455
  %v1473 = vrcp.pop %v1457
  %v1474 = vmul.f32 %v1395, %v1458
  %v1475 = vmul.f32 %v1397, %v1459
  %v1476 = vmul.f32 %v1399, %v1460
  %v1477 = vmul.f32 %v1401, %v1461
  %v1478 = vmul.f32 %v1403, %v1462
  %v1479 = vmul.f32 %v1405, %v1463
  %v1480 = vmul.f32 %v1407, %v1464
  %v1481 = vmul.f32 %v1409, %v1465
  %v1482 = vmul.f32 %v1411, %v1466
  %v1483 = vmul.f32 %v1413, %v1467
  %v1484 = vmul.f32 %v1415, %v1468
  %v1485 = vmul.f32 %v1417, %v1469
  %v1486 = vmul.f32 %v1419, %v1470
  %v1487 = vmul.f32 %v1421, %v1471
  %v1488 = vmul.f32 %v1423, %v1472
  %v1489 = vmul.f32 %v1425, %v1473
  %v1490 = vpack.c.bf16 %v1475, %v1474
  %v1491 = vpack.c.bf16 %v1477, %v1476
  %v1492 = vpack.c.bf16 %v1479, %v1478
  %v1493 = vpack.c.bf16 %v1481, %v1480
  %v1494 = vpack.c.bf16 %v1483, %v1482
  %v1495 = vpack.c.bf16 %v1485, %v1484
  %v1496 = vpack.c.bf16 %v1487, %v1486
  %v1497 = vpack.c.bf16 %v1489, %v1488
  %1498 = vrot.lane.b32.xlu0 %v1136, 64
  %v1499 = vpop.permute.xlu0 %1498
  %1500 = vrot.lane.b32.xlu0 %v1137, 64
  %v1501 = vpop.permute.xlu0 %1500
  %1502 = vrot.lane.b32.xlu0 %v1138, 64
  %v1503 = vpop.permute.xlu0 %1502
  %1504 = vrot.lane.b32.xlu0 %v1139, 64
  %v1505 = vpop.permute.xlu0 %1504
  %1506 = vrot.lane.b32.xlu0 %v1140, 64
  %v1507 = vpop.permute.xlu0 %1506
  %1508 = vrot.lane.b32.xlu0 %v1141, 64
  %v1509 = vpop.permute.xlu0 %1508
  %1510 = vrot.lane.b32.xlu0 %v1142, 64
  %v1511 = vpop.permute.xlu0 %1510
  %1512 = vrot.lane.b32.xlu0 %v1143, 64
  %v1513 = vpop.permute.xlu0 %1512
  %1522 = vmatprep.subr.bf16.mxu0 0
  %1523 = vmatpush1.bf16.msra.mxu0 %v1513
  %1524 = vmatprep.subr.bf16.mxu0 0
  %1525 = vmatpush1.bf16.msra.mxu0 %v1511
  %1526 = vmatprep.subr.bf16.mxu0 0
  %1527 = vmatpush1.bf16.msra.mxu0 %v1509
  %1528 = vmatprep.subr.bf16.mxu0 0
  %1529 = vmatpush1.bf16.msra.mxu0 %v1507
  %1530 = vmatprep.subr.bf16.mxu0 0
  %1531 = vmatpush1.bf16.msra.mxu0 %v1505
  %1532 = vmatprep.subr.bf16.mxu0 0
  %1533 = vmatpush1.bf16.msra.mxu0 %v1503
  %1534 = vmatprep.subr.bf16.mxu0 0
  %1535 = vmatpush1.bf16.msra.mxu0 %v1501
  %1536 = vmatprep.subr.bf16.mxu0 0
  %1537 = vmatpush1.bf16.msra.mxu0 %v1499
  %1538 = vmatprep.subr.bf16.mxu0 0
  %1539 = vmatpush2.bf16.msra.mxu0 0
  %1540 = vmatprep.subr.bf16.mxu0 0
  %1541 = vmatpush2.bf16.msra.mxu0 0
  %1542 = vmatprep.subr.bf16.mxu0 0
  %1543 = vmatpush2.bf16.msra.mxu0 0
  %1544 = vmatprep.subr.bf16.mxu0 0
  %1545 = vmatpush2.bf16.msra.mxu0 0
  %1546 = vmatprep.subr.bf16.mxu0 0
  %1547 = vmatpush2.bf16.msra.mxu0 0
  %1548 = vmatprep.subr.bf16.mxu0 0
  %1549 = vmatpush2.bf16.msra.mxu0 0
  %1550 = vmatprep.subr.bf16.mxu0 0
  %1551 = vmatpush2.bf16.msra.mxu0 0
  %1552 = vmatprep.subr.bf16.mxu0 0
  %1553 = vmatpush2.bf16.msra.mxu0 0
  %1554 = vmatprep.mubr.bf16.mxu0 0
  %1555 = vmatmul.mubr.bf16.gmra.mxu0 %v1490
  %v1556 = vpop.f32.mrf.mxu0
  %v1557 = vadd.f32 0.0, %v1556
  %v1558 = vpop.f32.mrf.mxu0
  %v1559 = vpop.f32.mrf.mxu0
  %v1560 = vadd.f32 0.0, %v1559
  %v1561 = vpop.f32.mrf.mxu0
  %1562 = vmatprep.mubr.bf16.mxu0 0
  %1563 = vmatmul.mubr.bf16.gmra.mxu0 %v1491
  %v1564 = vpop.f32.mrf.mxu0
  %v1565 = vadd.f32 0.0, %v1564
  %v1566 = vpop.f32.mrf.mxu0
  %v1567 = vpop.f32.mrf.mxu0
  %v1568 = vadd.f32 0.0, %v1567
  %v1569 = vpop.f32.mrf.mxu0
  %1570 = vmatprep.mubr.bf16.mxu0 0
  %1571 = vmatmul.mubr.bf16.gmra.mxu0 %v1492
  %v1572 = vpop.f32.mrf.mxu0
  %v1573 = vadd.f32 0.0, %v1572
  %v1574 = vpop.f32.mrf.mxu0
  %v1575 = vpop.f32.mrf.mxu0
  %v1576 = vadd.f32 0.0, %v1575
  %v1577 = vpop.f32.mrf.mxu0
  %1578 = vmatprep.mubr.bf16.mxu0 0
  %1579 = vmatmul.mubr.bf16.gmra.mxu0 %v1493
  %v1580 = vpop.f32.mrf.mxu0
  %v1581 = vadd.f32 0.0, %v1580
  %v1582 = vpop.f32.mrf.mxu0
  %v1583 = vpop.f32.mrf.mxu0
  %v1584 = vadd.f32 0.0, %v1583
  %v1585 = vpop.f32.mrf.mxu0
  %1586 = vmatprep.mubr.bf16.mxu0 0
  %1587 = vmatmul.mubr.bf16.gmra.mxu0 %v1494
  %v1588 = vpop.f32.mrf.mxu0
  %v1589 = vadd.f32 0.0, %v1588
  %v1590 = vpop.f32.mrf.mxu0
  %v1591 = vpop.f32.mrf.mxu0
  %v1592 = vadd.f32 0.0, %v1591
  %v1593 = vpop.f32.mrf.mxu0
  %1594 = vmatprep.mubr.bf16.mxu0 0
  %1595 = vmatmul.mubr.bf16.gmra.mxu0 %v1495
  %v1596 = vpop.f32.mrf.mxu0
  %v1597 = vadd.f32 0.0, %v1596
  %v1598 = vpop.f32.mrf.mxu0
  %v1599 = vpop.f32.mrf.mxu0
  %v1600 = vadd.f32 0.0, %v1599
  %v1601 = vpop.f32.mrf.mxu0
  %1602 = vmatprep.mubr.bf16.mxu0 0
  %1603 = vmatmul.mubr.bf16.gmra.mxu0 %v1496
  %v1604 = vpop.f32.mrf.mxu0
  %v1605 = vadd.f32 0.0, %v1604
  %v1606 = vpop.f32.mrf.mxu0
  %v1607 = vpop.f32.mrf.mxu0
  %v1608 = vadd.f32 0.0, %v1607
  %v1609 = vpop.f32.mrf.mxu0
  %1610 = vmatprep.mubr.bf16.mxu0 0
  %1611 = vmatmul.mubr.bf16.gmra.mxu0 %v1497
  %v1612 = vpop.f32.mrf.mxu0
  %v1613 = vadd.f32 0.0, %v1612
  %v1614 = vpop.f32.mrf.mxu0
  %v1615 = vpop.f32.mrf.mxu0
  %v1616 = vadd.f32 0.0, %v1615
  %v1617 = vpop.f32.mrf.mxu0
  %1618 = vdwg.mxu0
  %1619 = vrot.lane.b32.xlu0 %v1136, 112
  %v1620 = vpop.permute.xlu0 %1619
  %1621 = vrot.lane.b32.xlu0 %v1137, 112
  %v1622 = vpop.permute.xlu0 %1621
  %1623 = vrot.lane.b32.xlu0 %v1138, 112
  %v1624 = vpop.permute.xlu0 %1623
  %1625 = vrot.lane.b32.xlu0 %v1139, 112
  %v1626 = vpop.permute.xlu0 %1625
  %1627 = vrot.lane.b32.xlu0 %v1140, 112
  %v1628 = vpop.permute.xlu0 %1627
  %1629 = vrot.lane.b32.xlu0 %v1141, 112
  %v1630 = vpop.permute.xlu0 %1629
  %1631 = vrot.lane.b32.xlu0 %v1142, 112
  %v1632 = vpop.permute.xlu0 %1631
  %1633 = vrot.lane.b32.xlu0 %v1143, 112
  %v1634 = vpop.permute.xlu0 %1633
  %1635 = vrot.lane.b32.xlu0 %v1136, 80
  %v1636 = vpop.permute.xlu0 %1635
  %1637 = vrot.lane.b32.xlu0 %v1137, 80
  %v1638 = vpop.permute.xlu0 %1637
  %1639 = vrot.lane.b32.xlu0 %v1138, 80
  %v1640 = vpop.permute.xlu0 %1639
  %1641 = vrot.lane.b32.xlu0 %v1139, 80
  %v1642 = vpop.permute.xlu0 %1641
  %1643 = vrot.lane.b32.xlu0 %v1140, 80
  %v1644 = vpop.permute.xlu0 %1643
  %1645 = vrot.lane.b32.xlu0 %v1141, 80
  %v1646 = vpop.permute.xlu0 %1645
  %1647 = vrot.lane.b32.xlu0 %v1142, 80
  %v1648 = vpop.permute.xlu0 %1647
  %1649 = vrot.lane.b32.xlu0 %v1143, 80
  %v1650 = vpop.permute.xlu0 %1649
  %v1652 = vsel %vm1168, %v1620, 0
  %v1655 = vsel %vm1168, %v1622, 0
  %v1658 = vsel %vm1168, %v1624, 0
  %v1661 = vsel %vm1168, %v1626, 0
  %v1664 = vsel %vm1168, %v1628, 0
  %v1667 = vsel %vm1168, %v1630, 0
  %v1670 = vsel %vm1168, %v1632, 0
  %v1673 = vsel %vm1168, %v1634, 0
  %v1676 = vsel %vm1168, %v1636, 0
  %v1679 = vsel %vm1168, %v1638, 0
  %v1682 = vsel %vm1168, %v1640, 0
  %v1685 = vsel %vm1168, %v1642, 0
  %v1688 = vsel %vm1168, %v1644, 0
  %v1691 = vsel %vm1168, %v1646, 0
  %v1694 = vsel %vm1168, %v1648, 0
  %v1697 = vsel %vm1168, %v1650, 0
  %1699 = vmatprep.subr.bf16.mxu0 0
  %1700 = vmatpush1.bf16.xpose.msra.mxu0 %v1697
  %1701 = vmatprep.subr.bf16.mxu0 0
  %1702 = vmatpush1.bf16.xpose.msra.mxu0 %v1694
  %1703 = vmatprep.subr.bf16.mxu0 0
  %1704 = vmatpush1.bf16.xpose.msra.mxu0 %v1691
  %1705 = vmatprep.subr.bf16.mxu0 0
  %1706 = vmatpush1.bf16.xpose.msra.mxu0 %v1688
  %1707 = vmatprep.subr.bf16.mxu0 0
  %1708 = vmatpush1.bf16.xpose.msra.mxu0 %v1685
  %1709 = vmatprep.subr.bf16.mxu0 0
  %1710 = vmatpush1.bf16.xpose.msra.mxu0 %v1682
  %1711 = vmatprep.subr.bf16.mxu0 0
  %1712 = vmatpush1.bf16.xpose.msra.mxu0 %v1679
  %1713 = vmatprep.subr.bf16.mxu0 0
  %1714 = vmatpush1.bf16.xpose.msra.mxu0 %v1676
  %1715 = vmatprep.subr.bf16.mxu0 0
  %1716 = vmatpush2.bf16.xpose.msra.mxu0 0
  %1717 = vmatprep.subr.bf16.mxu0 0
  %1718 = vmatpush2.bf16.xpose.msra.mxu0 0
  %1719 = vmatprep.subr.bf16.mxu0 0
  %1720 = vmatpush2.bf16.xpose.msra.mxu0 0
  %1721 = vmatprep.subr.bf16.mxu0 0
  %1722 = vmatpush2.bf16.xpose.msra.mxu0 0
  %1723 = vmatprep.subr.bf16.mxu0 0
  %1724 = vmatpush2.bf16.xpose.msra.mxu0 0
  %1725 = vmatprep.subr.bf16.mxu0 0
  %1726 = vmatpush2.bf16.xpose.msra.mxu0 0
  %1727 = vmatprep.subr.bf16.mxu0 0
  %1728 = vmatpush2.bf16.xpose.msra.mxu0 0
  %1729 = vmatprep.subr.bf16.mxu0 0
  %1730 = vmatpush2.bf16.xpose.msra.mxu0 0
  %1731 = vmatprep.mubr.bf16.mxu0 0
  %1732 = vmatmul.mubr.bf16.gmra.mxu0 %v1652
  %v1733 = vpop.f32.mrf.mxu0
  %v1734 = vadd.f32 0.0, %v1733
  %v1735 = vpop.f32.mrf.mxu0
  %v1736 = vpop.f32.mrf.mxu0
  %v1737 = vadd.f32 0.0, %v1736
  %v1738 = vpop.f32.mrf.mxu0
  %1739 = vmatprep.mubr.bf16.mxu0 0
  %1740 = vmatmul.mubr.bf16.gmra.mxu0 %v1655
  %v1741 = vpop.f32.mrf.mxu0
  %v1742 = vadd.f32 0.0, %v1741
  %v1743 = vpop.f32.mrf.mxu0
  %v1744 = vpop.f32.mrf.mxu0
  %v1745 = vadd.f32 0.0, %v1744
  %v1746 = vpop.f32.mrf.mxu0
  %1747 = vmatprep.mubr.bf16.mxu0 0
  %1748 = vmatmul.mubr.bf16.gmra.mxu0 %v1658
  %v1749 = vpop.f32.mrf.mxu0
  %v1750 = vadd.f32 0.0, %v1749
  %v1751 = vpop.f32.mrf.mxu0
  %v1752 = vpop.f32.mrf.mxu0
  %v1753 = vadd.f32 0.0, %v1752
  %v1754 = vpop.f32.mrf.mxu0
  %1755 = vmatprep.mubr.bf16.mxu0 0
  %1756 = vmatmul.mubr.bf16.gmra.mxu0 %v1661
  %v1757 = vpop.f32.mrf.mxu0
  %v1758 = vadd.f32 0.0, %v1757
  %v1759 = vpop.f32.mrf.mxu0
  %v1760 = vpop.f32.mrf.mxu0
  %v1761 = vadd.f32 0.0, %v1760
  %v1762 = vpop.f32.mrf.mxu0
  %1763 = vmatprep.mubr.bf16.mxu0 0
  %1764 = vmatmul.mubr.bf16.gmra.mxu0 %v1664
  %v1765 = vpop.f32.mrf.mxu0
  %v1766 = vadd.f32 0.0, %v1765
  %v1767 = vpop.f32.mrf.mxu0
  %v1768 = vpop.f32.mrf.mxu0
  %v1769 = vadd.f32 0.0, %v1768
  %v1770 = vpop.f32.mrf.mxu0
  %1771 = vmatprep.mubr.bf16.mxu0 0
  %1772 = vmatmul.mubr.bf16.gmra.mxu0 %v1667
  %v1773 = vpop.f32.mrf.mxu0
  %v1774 = vadd.f32 0.0, %v1773
  %v1775 = vpop.f32.mrf.mxu0
  %v1776 = vpop.f32.mrf.mxu0
  %v1777 = vadd.f32 0.0, %v1776
  %v1778 = vpop.f32.mrf.mxu0
  %1779 = vmatprep.mubr.bf16.mxu0 0
  %1780 = vmatmul.mubr.bf16.gmra.mxu0 %v1670
  %v1781 = vpop.f32.mrf.mxu0
  %v1782 = vadd.f32 0.0, %v1781
  %v1783 = vpop.f32.mrf.mxu0
  %v1784 = vpop.f32.mrf.mxu0
  %v1785 = vadd.f32 0.0, %v1784
  %v1786 = vpop.f32.mrf.mxu0
  %1787 = vmatprep.mubr.bf16.mxu0 0
  %1788 = vmatmul.mubr.bf16.gmra.mxu0 %v1673
  %v1789 = vpop.f32.mrf.mxu0
  %v1790 = vadd.f32 0.0, %v1789
  %v1791 = vpop.f32.mrf.mxu0
  %v1792 = vpop.f32.mrf.mxu0
  %v1793 = vadd.f32 0.0, %v1792
  %v1794 = vpop.f32.mrf.mxu0
  %1795 = vdwg.mxu0
  %v1796 = vmul.f32 %v1734, 0.25
  %v1797 = vmul.f32 %v1737, 0.25
  %v1798 = vmul.f32 %v1742, 0.25
  %v1799 = vmul.f32 %v1745, 0.25
  %v1800 = vmul.f32 %v1750, 0.25
  %v1801 = vmul.f32 %v1753, 0.25
  %v1802 = vmul.f32 %v1758, 0.25
  %v1803 = vmul.f32 %v1761, 0.25
  %v1804 = vmul.f32 %v1766, 0.25
  %v1805 = vmul.f32 %v1769, 0.25
  %v1806 = vmul.f32 %v1774, 0.25
  %v1807 = vmul.f32 %v1777, 0.25
  %v1808 = vmul.f32 %v1782, 0.25
  %v1809 = vmul.f32 %v1785, 0.25
  %v1810 = vmul.f32 %v1790, 0.25
  %v1811 = vmul.f32 %v1793, 0.25
  %v1812 = vadd.f32 %v1796, %v946
  %v1813 = vadd.f32 %v1797, %v947
  %v1814 = vadd.f32 %v1798, %v948
  %v1815 = vadd.f32 %v1799, %v949
  %v1816 = vadd.f32 %v1800, %v950
  %v1817 = vadd.f32 %v1801, %v951
  %v1818 = vadd.f32 %v1802, %v952
  %v1819 = vadd.f32 %v1803, %v953
  %v1820 = vadd.f32 %v1804, %v954
  %v1821 = vadd.f32 %v1805, %v955
  %v1822 = vadd.f32 %v1806, %v956
  %v1823 = vadd.f32 %v1807, %v957
  %v1824 = vadd.f32 %v1808, %v958
  %v1825 = vadd.f32 %v1809, %v959
  %v1826 = vadd.f32 %v1810, %v960
  %v1827 = vadd.f32 %v1811, %v961
  %1828 = vmax.xlane.f32.xlu0 %v1812
  %v1829 = vpop.xlane.xlu0 %1828
  %1830 = vmax.xlane.f32.xlu0 %v1813
  %v1831 = vpop.xlane.xlu0 %1830
  %1832 = vmax.xlane.f32.xlu0 %v1814
  %v1833 = vpop.xlane.xlu0 %1832
  %1834 = vmax.xlane.f32.xlu0 %v1815
  %v1835 = vpop.xlane.xlu0 %1834
  %1836 = vmax.xlane.f32.xlu0 %v1816
  %v1837 = vpop.xlane.xlu0 %1836
  %1838 = vmax.xlane.f32.xlu0 %v1817
  %v1839 = vpop.xlane.xlu0 %1838
  %1840 = vmax.xlane.f32.xlu0 %v1818
  %v1841 = vpop.xlane.xlu0 %1840
  %1842 = vmax.xlane.f32.xlu0 %v1819
  %v1843 = vpop.xlane.xlu0 %1842
  %1844 = vmax.xlane.f32.xlu0 %v1820
  %v1845 = vpop.xlane.xlu0 %1844
  %1846 = vmax.xlane.f32.xlu0 %v1821
  %v1847 = vpop.xlane.xlu0 %1846
  %1848 = vmax.xlane.f32.xlu0 %v1822
  %v1849 = vpop.xlane.xlu0 %1848
  %1850 = vmax.xlane.f32.xlu0 %v1823
  %v1851 = vpop.xlane.xlu0 %1850
  %1852 = vmax.xlane.f32.xlu0 %v1824
  %v1853 = vpop.xlane.xlu0 %1852
  %1854 = vmax.xlane.f32.xlu0 %v1825
  %v1855 = vpop.xlane.xlu0 %1854
  %1856 = vmax.xlane.f32.xlu0 %v1826
  %v1857 = vpop.xlane.xlu0 %1856
  %1858 = vmax.xlane.f32.xlu0 %v1827
  %v1859 = vpop.xlane.xlu0 %1858
  %v1860 = vsub.f32 %v1812, %v1829
  %v1861 = vsub.f32 %v1813, %v1831
  %v1862 = vsub.f32 %v1814, %v1833
  %v1863 = vsub.f32 %v1815, %v1835
  %v1864 = vsub.f32 %v1816, %v1837
  %v1865 = vsub.f32 %v1817, %v1839
  %v1866 = vsub.f32 %v1818, %v1841
  %v1867 = vsub.f32 %v1819, %v1843
  %v1868 = vsub.f32 %v1820, %v1845
  %v1869 = vsub.f32 %v1821, %v1847
  %v1870 = vsub.f32 %v1822, %v1849
  %v1871 = vsub.f32 %v1823, %v1851
  %v1872 = vsub.f32 %v1824, %v1853
  %v1873 = vsub.f32 %v1825, %v1855
  %v1874 = vsub.f32 %v1826, %v1857
  %v1875 = vsub.f32 %v1827, %v1859
  %v1876 = vmul.f32 %v1860, 1.442695
  %v1877 = vpow.pop %v1876
  %v1878 = vmul.f32 %v1861, 1.442695
  %v1879 = vpow.pop %v1878
  %v1880 = vmul.f32 %v1862, 1.442695
  %v1881 = vpow.pop %v1880
  %v1882 = vmul.f32 %v1863, 1.442695
  %v1883 = vpow.pop %v1882
  %v1884 = vmul.f32 %v1864, 1.442695
  %v1885 = vpow.pop %v1884
  %v1886 = vmul.f32 %v1865, 1.442695
  %v1887 = vpow.pop %v1886
  %v1888 = vmul.f32 %v1866, 1.442695
  %v1889 = vpow.pop %v1888
  %v1890 = vmul.f32 %v1867, 1.442695
  %v1891 = vpow.pop %v1890
  %v1892 = vmul.f32 %v1868, 1.442695
  %v1893 = vpow.pop %v1892
  %v1894 = vmul.f32 %v1869, 1.442695
  %v1895 = vpow.pop %v1894
  %v1896 = vmul.f32 %v1870, 1.442695
  %v1897 = vpow.pop %v1896
  %v1898 = vmul.f32 %v1871, 1.442695
  %v1899 = vpow.pop %v1898
  %v1900 = vmul.f32 %v1872, 1.442695
  %v1901 = vpow.pop %v1900
  %v1902 = vmul.f32 %v1873, 1.442695
  %v1903 = vpow.pop %v1902
  %v1904 = vmul.f32 %v1874, 1.442695
  %v1905 = vpow.pop %v1904
  %v1906 = vmul.f32 %v1875, 1.442695
  %v1907 = vpow.pop %v1906
  %1908 = vadd.xlane.f32.xlu0 %v1877
  %v1909 = vpop.xlane.xlu0 %1908
  %1910 = vadd.xlane.f32.xlu0 %v1879
  %v1911 = vpop.xlane.xlu0 %1910
  %1912 = vadd.xlane.f32.xlu0 %v1881
  %v1913 = vpop.xlane.xlu0 %1912
  %1914 = vadd.xlane.f32.xlu0 %v1883
  %v1915 = vpop.xlane.xlu0 %1914
  %1916 = vadd.xlane.f32.xlu0 %v1885
  %v1917 = vpop.xlane.xlu0 %1916
  %1918 = vadd.xlane.f32.xlu0 %v1887
  %v1919 = vpop.xlane.xlu0 %1918
  %1920 = vadd.xlane.f32.xlu0 %v1889
  %v1921 = vpop.xlane.xlu0 %1920
  %1922 = vadd.xlane.f32.xlu0 %v1891
  %v1923 = vpop.xlane.xlu0 %1922
  %1924 = vadd.xlane.f32.xlu0 %v1893
  %v1925 = vpop.xlane.xlu0 %1924
  %1926 = vadd.xlane.f32.xlu0 %v1895
  %v1927 = vpop.xlane.xlu0 %1926
  %1928 = vadd.xlane.f32.xlu0 %v1897
  %v1929 = vpop.xlane.xlu0 %1928
  %1930 = vadd.xlane.f32.xlu0 %v1899
  %v1931 = vpop.xlane.xlu0 %1930
  %1932 = vadd.xlane.f32.xlu0 %v1901
  %v1933 = vpop.xlane.xlu0 %1932
  %1934 = vadd.xlane.f32.xlu0 %v1903
  %v1935 = vpop.xlane.xlu0 %1934
  %1936 = vadd.xlane.f32.xlu0 %v1905
  %v1937 = vpop.xlane.xlu0 %1936
  %1938 = vadd.xlane.f32.xlu0 %v1907
  %v1939 = vpop.xlane.xlu0 %1938
  %v1940 = vrcp.pop %v1909
  %v1941 = vrcp.pop %v1911
  %v1942 = vrcp.pop %v1913
  %v1943 = vrcp.pop %v1915
  %v1944 = vrcp.pop %v1917
  %v1945 = vrcp.pop %v1919
  %v1946 = vrcp.pop %v1921
  %v1947 = vrcp.pop %v1923
  %v1948 = vrcp.pop %v1925
  %v1949 = vrcp.pop %v1927
  %v1950 = vrcp.pop %v1929
  %v1951 = vrcp.pop %v1931
  %v1952 = vrcp.pop %v1933
  %v1953 = vrcp.pop %v1935
  %v1954 = vrcp.pop %v1937
  %v1955 = vrcp.pop %v1939
  %v1956 = vmul.f32 %v1877, %v1940
  %v1957 = vmul.f32 %v1879, %v1941
  %v1958 = vmul.f32 %v1881, %v1942
  %v1959 = vmul.f32 %v1883, %v1943
  %v1960 = vmul.f32 %v1885, %v1944
  %v1961 = vmul.f32 %v1887, %v1945
  %v1962 = vmul.f32 %v1889, %v1946
  %v1963 = vmul.f32 %v1891, %v1947
  %v1964 = vmul.f32 %v1893, %v1948
  %v1965 = vmul.f32 %v1895, %v1949
  %v1966 = vmul.f32 %v1897, %v1950
  %v1967 = vmul.f32 %v1899, %v1951
  %v1968 = vmul.f32 %v1901, %v1952
  %v1969 = vmul.f32 %v1903, %v1953
  %v1970 = vmul.f32 %v1905, %v1954
  %v1971 = vmul.f32 %v1907, %v1955
  %v1972 = vpack.c.bf16 %v1957, %v1956
  %v1973 = vpack.c.bf16 %v1959, %v1958
  %v1974 = vpack.c.bf16 %v1961, %v1960
  %v1975 = vpack.c.bf16 %v1963, %v1962
  %v1976 = vpack.c.bf16 %v1965, %v1964
  %v1977 = vpack.c.bf16 %v1967, %v1966
  %v1978 = vpack.c.bf16 %v1969, %v1968
  %v1979 = vpack.c.bf16 %v1971, %v1970
  %1980 = vrot.lane.b32.xlu0 %v1136, 48
  %v1981 = vpop.permute.xlu0 %1980
  %1982 = vrot.lane.b32.xlu0 %v1137, 48
  %v1983 = vpop.permute.xlu0 %1982
  %1984 = vrot.lane.b32.xlu0 %v1138, 48
  %v1985 = vpop.permute.xlu0 %1984
  %1986 = vrot.lane.b32.xlu0 %v1139, 48
  %v1987 = vpop.permute.xlu0 %1986
  %1988 = vrot.lane.b32.xlu0 %v1140, 48
  %v1989 = vpop.permute.xlu0 %1988
  %1990 = vrot.lane.b32.xlu0 %v1141, 48
  %v1991 = vpop.permute.xlu0 %1990
  %1992 = vrot.lane.b32.xlu0 %v1142, 48
  %v1993 = vpop.permute.xlu0 %1992
  %1994 = vrot.lane.b32.xlu0 %v1143, 48
  %v1995 = vpop.permute.xlu0 %1994
  %2004 = vmatprep.subr.bf16.mxu0 0
  %2005 = vmatpush1.bf16.msra.mxu0 %v1995
  %2006 = vmatprep.subr.bf16.mxu0 0
  %2007 = vmatpush1.bf16.msra.mxu0 %v1993
  %2008 = vmatprep.subr.bf16.mxu0 0
  %2009 = vmatpush1.bf16.msra.mxu0 %v1991
  %2010 = vmatprep.subr.bf16.mxu0 0
  %2011 = vmatpush1.bf16.msra.mxu0 %v1989
  %2012 = vmatprep.subr.bf16.mxu0 0
  %2013 = vmatpush1.bf16.msra.mxu0 %v1987
  %2014 = vmatprep.subr.bf16.mxu0 0
  %2015 = vmatpush1.bf16.msra.mxu0 %v1985
  %2016 = vmatprep.subr.bf16.mxu0 0
  %2017 = vmatpush1.bf16.msra.mxu0 %v1983
  %2018 = vmatprep.subr.bf16.mxu0 0
  %2019 = vmatpush1.bf16.msra.mxu0 %v1981
  %2020 = vmatprep.subr.bf16.mxu0 0
  %2021 = vmatpush2.bf16.msra.mxu0 0
  %2022 = vmatprep.subr.bf16.mxu0 0
  %2023 = vmatpush2.bf16.msra.mxu0 0
  %2024 = vmatprep.subr.bf16.mxu0 0
  %2025 = vmatpush2.bf16.msra.mxu0 0
  %2026 = vmatprep.subr.bf16.mxu0 0
  %2027 = vmatpush2.bf16.msra.mxu0 0
  %2028 = vmatprep.subr.bf16.mxu0 0
  %2029 = vmatpush2.bf16.msra.mxu0 0
  %2030 = vmatprep.subr.bf16.mxu0 0
  %2031 = vmatpush2.bf16.msra.mxu0 0
  %2032 = vmatprep.subr.bf16.mxu0 0
  %2033 = vmatpush2.bf16.msra.mxu0 0
  %2034 = vmatprep.subr.bf16.mxu0 0
  %2035 = vmatpush2.bf16.msra.mxu0 0
  %2036 = vmatprep.mubr.bf16.mxu0 0
  %2037 = vmatmul.mubr.bf16.gmra.mxu0 %v1972
  %v2038 = vpop.f32.mrf.mxu0
  %v2039 = vadd.f32 0.0, %v2038
  %v2040 = vpop.f32.mrf.mxu0
  %v2041 = vpop.f32.mrf.mxu0
  %v2042 = vadd.f32 0.0, %v2041
  %v2043 = vpop.f32.mrf.mxu0
  %2044 = vmatprep.mubr.bf16.mxu0 0
  %2045 = vmatmul.mubr.bf16.gmra.mxu0 %v1973
  %v2046 = vpop.f32.mrf.mxu0
  %v2047 = vadd.f32 0.0, %v2046
  %v2048 = vpop.f32.mrf.mxu0
  %v2049 = vpop.f32.mrf.mxu0
  %v2050 = vadd.f32 0.0, %v2049
  %v2051 = vpop.f32.mrf.mxu0
  %2052 = vmatprep.mubr.bf16.mxu0 0
  %2053 = vmatmul.mubr.bf16.gmra.mxu0 %v1974
  %v2054 = vpop.f32.mrf.mxu0
  %v2055 = vadd.f32 0.0, %v2054
  %v2056 = vpop.f32.mrf.mxu0
  %v2057 = vpop.f32.mrf.mxu0
  %v2058 = vadd.f32 0.0, %v2057
  %v2059 = vpop.f32.mrf.mxu0
  %2060 = vmatprep.mubr.bf16.mxu0 0
  %2061 = vmatmul.mubr.bf16.gmra.mxu0 %v1975
  %v2062 = vpop.f32.mrf.mxu0
  %v2063 = vadd.f32 0.0, %v2062
  %v2064 = vpop.f32.mrf.mxu0
  %v2065 = vpop.f32.mrf.mxu0
  %v2066 = vadd.f32 0.0, %v2065
  %v2067 = vpop.f32.mrf.mxu0
  %2068 = vmatprep.mubr.bf16.mxu0 0
  %2069 = vmatmul.mubr.bf16.gmra.mxu0 %v1976
  %v2070 = vpop.f32.mrf.mxu0
  %v2071 = vadd.f32 0.0, %v2070
  %v2072 = vpop.f32.mrf.mxu0
  %v2073 = vpop.f32.mrf.mxu0
  %v2074 = vadd.f32 0.0, %v2073
  %v2075 = vpop.f32.mrf.mxu0
  %2076 = vmatprep.mubr.bf16.mxu0 0
  %2077 = vmatmul.mubr.bf16.gmra.mxu0 %v1977
  %v2078 = vpop.f32.mrf.mxu0
  %v2079 = vadd.f32 0.0, %v2078
  %v2080 = vpop.f32.mrf.mxu0
  %v2081 = vpop.f32.mrf.mxu0
  %v2082 = vadd.f32 0.0, %v2081
  %v2083 = vpop.f32.mrf.mxu0
  %2084 = vmatprep.mubr.bf16.mxu0 0
  %2085 = vmatmul.mubr.bf16.gmra.mxu0 %v1978
  %v2086 = vpop.f32.mrf.mxu0
  %v2087 = vadd.f32 0.0, %v2086
  %v2088 = vpop.f32.mrf.mxu0
  %v2089 = vpop.f32.mrf.mxu0
  %v2090 = vadd.f32 0.0, %v2089
  %v2091 = vpop.f32.mrf.mxu0
  %2092 = vmatprep.mubr.bf16.mxu0 0
  %2093 = vmatmul.mubr.bf16.gmra.mxu0 %v1979
  %v2094 = vpop.f32.mrf.mxu0
  %v2095 = vadd.f32 0.0, %v2094
  %v2096 = vpop.f32.mrf.mxu0
  %v2097 = vpop.f32.mrf.mxu0
  %v2098 = vadd.f32 0.0, %v2097
  %v2099 = vpop.f32.mrf.mxu0
  %2100 = vdwg.mxu0
  %2117 = vrot.lane.b32.xlu0 %v2039, 16
  %v2118 = vpop.permute.xlu0 %2117
  %2119 = vrot.lane.b32.xlu0 %v2042, 16
  %v2120 = vpop.permute.xlu0 %2119
  %2121 = vrot.lane.b32.xlu0 %v2047, 16
  %v2122 = vpop.permute.xlu0 %2121
  %2123 = vrot.lane.b32.xlu0 %v2050, 16
  %v2124 = vpop.permute.xlu0 %2123
  %2125 = vrot.lane.b32.xlu0 %v2055, 16
  %v2126 = vpop.permute.xlu0 %2125
  %2127 = vrot.lane.b32.xlu0 %v2058, 16
  %v2128 = vpop.permute.xlu0 %2127
  %2129 = vrot.lane.b32.xlu0 %v2063, 16
  %v2130 = vpop.permute.xlu0 %2129
  %2131 = vrot.lane.b32.xlu0 %v2066, 16
  %v2132 = vpop.permute.xlu0 %2131
  %2133 = vrot.lane.b32.xlu0 %v2071, 16
  %v2134 = vpop.permute.xlu0 %2133
  %2135 = vrot.lane.b32.xlu0 %v2074, 16
  %v2136 = vpop.permute.xlu0 %2135
  %2137 = vrot.lane.b32.xlu0 %v2079, 16
  %v2138 = vpop.permute.xlu0 %2137
  %2139 = vrot.lane.b32.xlu0 %v2082, 16
  %v2140 = vpop.permute.xlu0 %2139
  %2141 = vrot.lane.b32.xlu0 %v2087, 16
  %v2142 = vpop.permute.xlu0 %2141
  %2143 = vrot.lane.b32.xlu0 %v2090, 16
  %v2144 = vpop.permute.xlu0 %2143
  %2145 = vrot.lane.b32.xlu0 %v2095, 16
  %v2146 = vpop.permute.xlu0 %2145
  %2147 = vrot.lane.b32.xlu0 %v2098, 16
  %v2148 = vpop.permute.xlu0 %2147
  %v2165 = vsel %vm1168, %v1557, %v2118
  %v2166 = vsel %vm1168, %v1560, %v2120
  %v2167 = vsel %vm1168, %v1565, %v2122
  %v2168 = vsel %vm1168, %v1568, %v2124
  %v2169 = vsel %vm1168, %v1573, %v2126
  %v2170 = vsel %vm1168, %v1576, %v2128
  %v2171 = vsel %vm1168, %v1581, %v2130
  %v2172 = vsel %vm1168, %v1584, %v2132
  %v2173 = vsel %vm1168, %v1589, %v2134
  %v2174 = vsel %vm1168, %v1592, %v2136
  %v2175 = vsel %vm1168, %v1597, %v2138
  %v2176 = vsel %vm1168, %v1600, %v2140
  %v2177 = vsel %vm1168, %v1605, %v2142
  %v2178 = vsel %vm1168, %v1608, %v2144
  %v2179 = vsel %vm1168, %v1613, %v2146
  %v2180 = vsel %vm1168, %v1616, %v2148
  %vm2181 = vcmask 261120
  %v2182 = vsel %vm2181, %v2165, 0.0
  %v2183 = vsel %vm2181, %v2166, 0.0
  %v2184 = vsel %vm2181, %v2167, 0.0
  %v2185 = vsel %vm2181, %v2168, 0.0
  %v2186 = vsel %vm2181, %v2169, 0.0
  %v2187 = vsel %vm2181, %v2170, 0.0
  %v2188 = vsel %vm2181, %v2171, 0.0
  %v2189 = vsel %vm2181, %v2172, 0.0
  %v2190 = vsel %vm2181, %v2173, 0.0
  %v2191 = vsel %vm2181, %v2174, 0.0
  %v2192 = vsel %vm2181, %v2175, 0.0
  %v2193 = vsel %vm2181, %v2176, 0.0
  %v2194 = vsel %vm2181, %v2177, 0.0
  %v2195 = vsel %vm2181, %v2178, 0.0
  %v2196 = vsel %vm2181, %v2179, 0.0
  %v2197 = vsel %vm2181, %v2180, 0.0
  %v2198 = vpack.c.bf16 %v2183, %v2182
  %v2199 = vpack.c.bf16 %v2185, %v2184
  %v2200 = vpack.c.bf16 %v2187, %v2186
  %v2201 = vpack.c.bf16 %v2189, %v2188
  %v2202 = vpack.c.bf16 %v2191, %v2190
  %v2203 = vpack.c.bf16 %v2193, %v2192
  %v2204 = vpack.c.bf16 %v2195, %v2194
  %v2205 = vpack.c.bf16 %v2197, %v2196
  %s2206 = scalar_lea.vmem %s3, 64
  %v2207 = vld [vmem:[%s2206] sm:$0xf]
  %v2208 = vld [vmem:[%s2206 + $0x4] sm:$0xf]
  %v2209 = vld [vmem:[%s2206 + $0x8] sm:$0xf]
  %v2210 = vld [vmem:[%s2206 + $0xc] sm:$0xf]
  %v2211 = vld [vmem:[%s2206 + $0x10] sm:$0xf]
  %v2212 = vld [vmem:[%s2206 + $0x14] sm:$0xf]
  %v2213 = vld [vmem:[%s2206 + $0x18] sm:$0xf]
  %v2214 = vld [vmem:[%s2206 + $0x1c] sm:$0xf]
  %v2215 = vld [vmem:[%s2206 + $0x20] sm:$0xf]
  %v2216 = vld [vmem:[%s2206 + $0x24] sm:$0xf]
  %v2217 = vld [vmem:[%s2206 + $0x28] sm:$0xf]
  %v2218 = vld [vmem:[%s2206 + $0x2c] sm:$0xf]
  %v2219 = vld [vmem:[%s2206 + $0x30] sm:$0xf]
  %v2220 = vld [vmem:[%s2206 + $0x34] sm:$0xf]
  %v2221 = vld [vmem:[%s2206 + $0x38] sm:$0xf]
  %v2222 = vld [vmem:[%s2206 + $0x3c] sm:$0xf]
  %v2223 = vlaneseq
  %v2224 = vshrl.u32 %v2223, 7
  %v2225 = vsub.s32 1, %v2224
  %v2226 = vrot.slane %v962, %v2225
  %v2243 = vunpack.c.l.b16 %v2207
  %v2244 = vunpack.c.l.b16 %v2208
  %v2245 = vunpack.c.l.b16 %v2209
  %v2246 = vunpack.c.l.b16 %v2210
  %v2247 = vunpack.c.l.b16 %v2211
  %v2248 = vunpack.c.l.b16 %v2212
  %v2249 = vunpack.c.l.b16 %v2213
  %v2250 = vunpack.c.l.b16 %v2214
  %v2251 = vunpack.c.l.b16 %v2215
  %v2252 = vunpack.c.l.b16 %v2216
  %v2253 = vunpack.c.l.b16 %v2217
  %v2254 = vunpack.c.l.b16 %v2218
  %v2255 = vunpack.c.l.b16 %v2219
  %v2256 = vunpack.c.l.b16 %v2220
  %v2257 = vunpack.c.l.b16 %v2221
  %v2258 = vunpack.c.l.b16 %v2222
  %v2259 = vpack.c.b16 %v2244, %v2243
  %v2260 = vpack.c.b16 %v2246, %v2245
  %v2261 = vpack.c.b16 %v2248, %v2247
  %v2262 = vpack.c.b16 %v2250, %v2249
  %v2263 = vpack.c.b16 %v2252, %v2251
  %v2264 = vpack.c.b16 %v2254, %v2253
  %v2265 = vpack.c.b16 %v2256, %v2255
  %v2266 = vpack.c.b16 %v2258, %v2257
  %2275 = vmatprep.subr.bf16.mxu0 0
  %2276 = vmatpush1.bf16.msra.mxu0 %v2266
  %2277 = vmatprep.subr.bf16.mxu0 0
  %2278 = vmatpush1.bf16.msra.mxu0 %v2265
  %2279 = vmatprep.subr.bf16.mxu0 0
  %2280 = vmatpush1.bf16.msra.mxu0 %v2264
  %2281 = vmatprep.subr.bf16.mxu0 0
  %2282 = vmatpush1.bf16.msra.mxu0 %v2263
  %2283 = vmatprep.subr.bf16.mxu0 0
  %2284 = vmatpush1.bf16.msra.mxu0 %v2262
  %2285 = vmatprep.subr.bf16.mxu0 0
  %2286 = vmatpush1.bf16.msra.mxu0 %v2261
  %2287 = vmatprep.subr.bf16.mxu0 0
  %2288 = vmatpush1.bf16.msra.mxu0 %v2260
  %2289 = vmatprep.subr.bf16.mxu0 0
  %2290 = vmatpush1.bf16.msra.mxu0 %v2259
  %2291 = vmatprep.subr.bf16.mxu0 0
  %2292 = vmatpush2.bf16.msra.mxu0 0
  %2293 = vmatprep.subr.bf16.mxu0 0
  %2294 = vmatpush2.bf16.msra.mxu0 0
  %2295 = vmatprep.subr.bf16.mxu0 0
  %2296 = vmatpush2.bf16.msra.mxu0 0
  %2297 = vmatprep.subr.bf16.mxu0 0
  %2298 = vmatpush2.bf16.msra.mxu0 0
  %2299 = vmatprep.subr.bf16.mxu0 0
  %2300 = vmatpush2.bf16.msra.mxu0 0
  %2301 = vmatprep.subr.bf16.mxu0 0
  %2302 = vmatpush2.bf16.msra.mxu0 0
  %2303 = vmatprep.subr.bf16.mxu0 0
  %2304 = vmatpush2.bf16.msra.mxu0 0
  %2305 = vmatprep.subr.bf16.mxu0 0
  %2306 = vmatpush2.bf16.msra.mxu0 0
  %2307 = vmatprep.mubr.bf16.mxu0 0
  %2308 = vmatmul.mubr.bf16.gmra.mxu0 %v2198
  %v2309 = vpop.f32.mrf.mxu0
  %v2310 = vadd.f32 %v2226, %v2309
  %v2311 = vpop.f32.mrf.mxu0
  %v2312 = vpop.f32.mrf.mxu0
  %v2313 = vadd.f32 %v2226, %v2312
  %v2314 = vpop.f32.mrf.mxu0
  %2315 = vmatprep.mubr.bf16.mxu0 0
  %2316 = vmatmul.mubr.bf16.gmra.mxu0 %v2199
  %v2317 = vpop.f32.mrf.mxu0
  %v2318 = vadd.f32 %v2226, %v2317
  %v2319 = vpop.f32.mrf.mxu0
  %v2320 = vpop.f32.mrf.mxu0
  %v2321 = vadd.f32 %v2226, %v2320
  %v2322 = vpop.f32.mrf.mxu0
  %2323 = vmatprep.mubr.bf16.mxu0 0
  %2324 = vmatmul.mubr.bf16.gmra.mxu0 %v2200
  %v2325 = vpop.f32.mrf.mxu0
  %v2326 = vadd.f32 %v2226, %v2325
  %v2327 = vpop.f32.mrf.mxu0
  %v2328 = vpop.f32.mrf.mxu0
  %v2329 = vadd.f32 %v2226, %v2328
  %v2330 = vpop.f32.mrf.mxu0
  %2331 = vmatprep.mubr.bf16.mxu0 0
  %2332 = vmatmul.mubr.bf16.gmra.mxu0 %v2201
  %v2333 = vpop.f32.mrf.mxu0
  %v2334 = vadd.f32 %v2226, %v2333
  %v2335 = vpop.f32.mrf.mxu0
  %v2336 = vpop.f32.mrf.mxu0
  %v2337 = vadd.f32 %v2226, %v2336
  %v2338 = vpop.f32.mrf.mxu0
  %2339 = vmatprep.mubr.bf16.mxu0 0
  %2340 = vmatmul.mubr.bf16.gmra.mxu0 %v2202
  %v2341 = vpop.f32.mrf.mxu0
  %v2342 = vadd.f32 %v2226, %v2341
  %v2343 = vpop.f32.mrf.mxu0
  %v2344 = vpop.f32.mrf.mxu0
  %v2345 = vadd.f32 %v2226, %v2344
  %v2346 = vpop.f32.mrf.mxu0
  %2347 = vmatprep.mubr.bf16.mxu0 0
  %2348 = vmatmul.mubr.bf16.gmra.mxu0 %v2203
  %v2349 = vpop.f32.mrf.mxu0
  %v2350 = vadd.f32 %v2226, %v2349
  %v2351 = vpop.f32.mrf.mxu0
  %v2352 = vpop.f32.mrf.mxu0
  %v2353 = vadd.f32 %v2226, %v2352
  %v2354 = vpop.f32.mrf.mxu0
  %2355 = vmatprep.mubr.bf16.mxu0 0
  %2356 = vmatmul.mubr.bf16.gmra.mxu0 %v2204
  %v2357 = vpop.f32.mrf.mxu0
  %v2358 = vadd.f32 %v2226, %v2357
  %v2359 = vpop.f32.mrf.mxu0
  %v2360 = vpop.f32.mrf.mxu0
  %v2361 = vadd.f32 %v2226, %v2360
  %v2362 = vpop.f32.mrf.mxu0
  %2363 = vmatprep.mubr.bf16.mxu0 0
  %2364 = vmatmul.mubr.bf16.gmra.mxu0 %v2205
  %v2365 = vpop.f32.mrf.mxu0
  %v2366 = vadd.f32 %v2226, %v2365
  %v2367 = vpop.f32.mrf.mxu0
  %v2368 = vpop.f32.mrf.mxu0
  %v2369 = vadd.f32 %v2226, %v2368
  %v2370 = vpop.f32.mrf.mxu0
  %2371 = vdwg.mxu0
  %v2372 = vadd.f32 %v2310, %v257
  %v2373 = vadd.f32 %v2313, %v258
  %v2374 = vadd.f32 %v2318, %v259
  %v2375 = vadd.f32 %v2321, %v260
  %v2376 = vadd.f32 %v2326, %v261
  %v2377 = vadd.f32 %v2329, %v262
  %v2378 = vadd.f32 %v2334, %v263
  %v2379 = vadd.f32 %v2337, %v264
  %v2380 = vadd.f32 %v2342, %v265
  %v2381 = vadd.f32 %v2345, %v266
  %v2382 = vadd.f32 %v2350, %v267
  %v2383 = vadd.f32 %v2353, %v268
  %v2384 = vadd.f32 %v2358, %v269
  %v2385 = vadd.f32 %v2361, %v270
  %v2386 = vadd.f32 %v2366, %v271
  %v2387 = vadd.f32 %v2369, %v272
  %2388 = vadd.xlane.f32.xlu0 %v2372
  %v2389 = vpop.xlane.xlu0 %2388
  %2390 = vadd.xlane.f32.xlu0 %v2373
  %v2391 = vpop.xlane.xlu0 %2390
  %2392 = vadd.xlane.f32.xlu0 %v2374
  %v2393 = vpop.xlane.xlu0 %2392
  %2394 = vadd.xlane.f32.xlu0 %v2375
  %v2395 = vpop.xlane.xlu0 %2394
  %2396 = vadd.xlane.f32.xlu0 %v2376
  %v2397 = vpop.xlane.xlu0 %2396
  %2398 = vadd.xlane.f32.xlu0 %v2377
  %v2399 = vpop.xlane.xlu0 %2398
  %2400 = vadd.xlane.f32.xlu0 %v2378
  %v2401 = vpop.xlane.xlu0 %2400
  %2402 = vadd.xlane.f32.xlu0 %v2379
  %v2403 = vpop.xlane.xlu0 %2402
  %2404 = vadd.xlane.f32.xlu0 %v2380
  %v2405 = vpop.xlane.xlu0 %2404
  %2406 = vadd.xlane.f32.xlu0 %v2381
  %v2407 = vpop.xlane.xlu0 %2406
  %2408 = vadd.xlane.f32.xlu0 %v2382
  %v2409 = vpop.xlane.xlu0 %2408
  %2410 = vadd.xlane.f32.xlu0 %v2383
  %v2411 = vpop.xlane.xlu0 %2410
  %2412 = vadd.xlane.f32.xlu0 %v2384
  %v2413 = vpop.xlane.xlu0 %2412
  %2414 = vadd.xlane.f32.xlu0 %v2385
  %v2415 = vpop.xlane.xlu0 %2414
  %2416 = vadd.xlane.f32.xlu0 %v2386
  %v2417 = vpop.xlane.xlu0 %2416
  %2418 = vadd.xlane.f32.xlu0 %v2387
  %v2419 = vpop.xlane.xlu0 %2418
  %v2420 = vmul.f32 %v2389, 0.03125
  %v2421 = vmul.f32 %v2391, 0.03125
  %v2422 = vmul.f32 %v2393, 0.03125
  %v2423 = vmul.f32 %v2395, 0.03125
  %v2424 = vmul.f32 %v2397, 0.03125
  %v2425 = vmul.f32 %v2399, 0.03125
  %v2426 = vmul.f32 %v2401, 0.03125
  %v2427 = vmul.f32 %v2403, 0.03125
  %v2428 = vmul.f32 %v2405, 0.03125
  %v2429 = vmul.f32 %v2407, 0.03125
  %v2430 = vmul.f32 %v2409, 0.03125
  %v2431 = vmul.f32 %v2411, 0.03125
  %v2432 = vmul.f32 %v2413, 0.03125
  %v2433 = vmul.f32 %v2415, 0.03125
  %v2434 = vmul.f32 %v2417, 0.03125
  %v2435 = vmul.f32 %v2419, 0.03125
  %v2436 = vsub.f32 %v2372, %v2420
  %v2437 = vsub.f32 %v2373, %v2421
  %v2438 = vsub.f32 %v2374, %v2422
  %v2439 = vsub.f32 %v2375, %v2423
  %v2440 = vsub.f32 %v2376, %v2424
  %v2441 = vsub.f32 %v2377, %v2425
  %v2442 = vsub.f32 %v2378, %v2426
  %v2443 = vsub.f32 %v2379, %v2427
  %v2444 = vsub.f32 %v2380, %v2428
  %v2445 = vsub.f32 %v2381, %v2429
  %v2446 = vsub.f32 %v2382, %v2430
  %v2447 = vsub.f32 %v2383, %v2431
  %v2448 = vsub.f32 %v2384, %v2432
  %v2449 = vsub.f32 %v2385, %v2433
  %v2450 = vsub.f32 %v2386, %v2434
  %v2451 = vsub.f32 %v2387, %v2435
  %v2452 = vsel %vm23, %v2436, 0.0
  %v2453 = vsel %vm23, %v2437, 0.0
  %v2454 = vsel %vm23, %v2438, 0.0
  %v2455 = vsel %vm23, %v2439, 0.0
  %v2456 = vsel %vm23, %v2440, 0.0
  %v2457 = vsel %vm23, %v2441, 0.0
  %v2458 = vsel %vm23, %v2442, 0.0
  %v2459 = vsel %vm23, %v2443, 0.0
  %v2460 = vsel %vm23, %v2444, 0.0
  %v2461 = vsel %vm23, %v2445, 0.0
  %v2462 = vsel %vm23, %v2446, 0.0
  %v2463 = vsel %vm23, %v2447, 0.0
  %v2464 = vsel %vm23, %v2448, 0.0
  %v2465 = vsel %vm23, %v2449, 0.0
  %v2466 = vsel %vm23, %v2450, 0.0
  %v2467 = vsel %vm23, %v2451, 0.0
  %v2468 = vmul.f32 %v2452, %v2452
  %v2469 = vmul.f32 %v2453, %v2453
  %v2470 = vmul.f32 %v2454, %v2454
  %v2471 = vmul.f32 %v2455, %v2455
  %v2472 = vmul.f32 %v2456, %v2456
  %v2473 = vmul.f32 %v2457, %v2457
  %v2474 = vmul.f32 %v2458, %v2458
  %v2475 = vmul.f32 %v2459, %v2459
  %v2476 = vmul.f32 %v2460, %v2460
  %v2477 = vmul.f32 %v2461, %v2461
  %v2478 = vmul.f32 %v2462, %v2462
  %v2479 = vmul.f32 %v2463, %v2463
  %v2480 = vmul.f32 %v2464, %v2464
  %v2481 = vmul.f32 %v2465, %v2465
  %v2482 = vmul.f32 %v2466, %v2466
  %v2483 = vmul.f32 %v2467, %v2467
  %2484 = vadd.xlane.f32.xlu0 %v2468
  %v2485 = vpop.xlane.xlu0 %2484
  %2486 = vadd.xlane.f32.xlu0 %v2469
  %v2487 = vpop.xlane.xlu0 %2486
  %2488 = vadd.xlane.f32.xlu0 %v2470
  %v2489 = vpop.xlane.xlu0 %2488
  %2490 = vadd.xlane.f32.xlu0 %v2471
  %v2491 = vpop.xlane.xlu0 %2490
  %2492 = vadd.xlane.f32.xlu0 %v2472
  %v2493 = vpop.xlane.xlu0 %2492
  %2494 = vadd.xlane.f32.xlu0 %v2473
  %v2495 = vpop.xlane.xlu0 %2494
  %2496 = vadd.xlane.f32.xlu0 %v2474
  %v2497 = vpop.xlane.xlu0 %2496
  %2498 = vadd.xlane.f32.xlu0 %v2475
  %v2499 = vpop.xlane.xlu0 %2498
  %2500 = vadd.xlane.f32.xlu0 %v2476
  %v2501 = vpop.xlane.xlu0 %2500
  %2502 = vadd.xlane.f32.xlu0 %v2477
  %v2503 = vpop.xlane.xlu0 %2502
  %2504 = vadd.xlane.f32.xlu0 %v2478
  %v2505 = vpop.xlane.xlu0 %2504
  %2506 = vadd.xlane.f32.xlu0 %v2479
  %v2507 = vpop.xlane.xlu0 %2506
  %2508 = vadd.xlane.f32.xlu0 %v2480
  %v2509 = vpop.xlane.xlu0 %2508
  %2510 = vadd.xlane.f32.xlu0 %v2481
  %v2511 = vpop.xlane.xlu0 %2510
  %2512 = vadd.xlane.f32.xlu0 %v2482
  %v2513 = vpop.xlane.xlu0 %2512
  %2514 = vadd.xlane.f32.xlu0 %v2483
  %v2515 = vpop.xlane.xlu0 %2514
  %v2516 = vmul.f32 %v2485, 0.03125
  %v2517 = vmul.f32 %v2487, 0.03125
  %v2518 = vmul.f32 %v2489, 0.03125
  %v2519 = vmul.f32 %v2491, 0.03125
  %v2520 = vmul.f32 %v2493, 0.03125
  %v2521 = vmul.f32 %v2495, 0.03125
  %v2522 = vmul.f32 %v2497, 0.03125
  %v2523 = vmul.f32 %v2499, 0.03125
  %v2524 = vmul.f32 %v2501, 0.03125
  %v2525 = vmul.f32 %v2503, 0.03125
  %v2526 = vmul.f32 %v2505, 0.03125
  %v2527 = vmul.f32 %v2507, 0.03125
  %v2528 = vmul.f32 %v2509, 0.03125
  %v2529 = vmul.f32 %v2511, 0.03125
  %v2530 = vmul.f32 %v2513, 0.03125
  %v2531 = vmul.f32 %v2515, 0.03125
  %v2532 = vadd.f32 %v2516, 1e-12
  %v2533 = vadd.f32 %v2517, 1e-12
  %v2534 = vadd.f32 %v2518, 1e-12
  %v2535 = vadd.f32 %v2519, 1e-12
  %v2536 = vadd.f32 %v2520, 1e-12
  %v2537 = vadd.f32 %v2521, 1e-12
  %v2538 = vadd.f32 %v2522, 1e-12
  %v2539 = vadd.f32 %v2523, 1e-12
  %v2540 = vadd.f32 %v2524, 1e-12
  %v2541 = vadd.f32 %v2525, 1e-12
  %v2542 = vadd.f32 %v2526, 1e-12
  %v2543 = vadd.f32 %v2527, 1e-12
  %v2544 = vadd.f32 %v2528, 1e-12
  %v2545 = vadd.f32 %v2529, 1e-12
  %v2546 = vadd.f32 %v2530, 1e-12
  %v2547 = vadd.f32 %v2531, 1e-12
  %v2548 = vrsqrt.pop %v2532
  %v2549 = vrsqrt.pop %v2533
  %v2550 = vrsqrt.pop %v2534
  %v2551 = vrsqrt.pop %v2535
  %v2552 = vrsqrt.pop %v2536
  %v2553 = vrsqrt.pop %v2537
  %v2554 = vrsqrt.pop %v2538
  %v2555 = vrsqrt.pop %v2539
  %v2556 = vrsqrt.pop %v2540
  %v2557 = vrsqrt.pop %v2541
  %v2558 = vrsqrt.pop %v2542
  %v2559 = vrsqrt.pop %v2543
  %v2560 = vrsqrt.pop %v2544
  %v2561 = vrsqrt.pop %v2545
  %v2562 = vrsqrt.pop %v2546
  %v2563 = vrsqrt.pop %v2547
  %v2564 = vmul.f32 %v2452, %v2548
  %v2565 = vmul.f32 %v2453, %v2549
  %v2566 = vmul.f32 %v2454, %v2550
  %v2567 = vmul.f32 %v2455, %v2551
  %v2568 = vmul.f32 %v2456, %v2552
  %v2569 = vmul.f32 %v2457, %v2553
  %v2570 = vmul.f32 %v2458, %v2554
  %v2571 = vmul.f32 %v2459, %v2555
  %v2572 = vmul.f32 %v2460, %v2556
  %v2573 = vmul.f32 %v2461, %v2557
  %v2574 = vmul.f32 %v2462, %v2558
  %v2575 = vmul.f32 %v2463, %v2559
  %v2576 = vmul.f32 %v2464, %v2560
  %v2577 = vmul.f32 %v2465, %v2561
  %v2578 = vmul.f32 %v2466, %v2562
  %v2579 = vmul.f32 %v2467, %v2563
  %v2580 = vlaneseq
  %v2581 = vshrl.u32 %v2580, 7
  %v2582 = vsub.s32 2, %v2581
  %v2583 = vrot.slane %v962, %v2582
  %v2584 = vmul.f32 %v2564, %v2583
  %v2585 = vmul.f32 %v2565, %v2583
  %v2586 = vmul.f32 %v2566, %v2583
  %v2587 = vmul.f32 %v2567, %v2583
  %v2588 = vmul.f32 %v2568, %v2583
  %v2589 = vmul.f32 %v2569, %v2583
  %v2590 = vmul.f32 %v2570, %v2583
  %v2591 = vmul.f32 %v2571, %v2583
  %v2592 = vmul.f32 %v2572, %v2583
  %v2593 = vmul.f32 %v2573, %v2583
  %v2594 = vmul.f32 %v2574, %v2583
  %v2595 = vmul.f32 %v2575, %v2583
  %v2596 = vmul.f32 %v2576, %v2583
  %v2597 = vmul.f32 %v2577, %v2583
  %v2598 = vmul.f32 %v2578, %v2583
  %v2599 = vmul.f32 %v2579, %v2583
  %v2600 = vlaneseq
  %v2601 = vshrl.u32 %v2600, 7
  %v2602 = vsub.s32 3, %v2601
  %v2603 = vrot.slane %v962, %v2602
  %v2604 = vadd.f32 %v2584, %v2603
  %v2605 = vadd.f32 %v2585, %v2603
  %v2606 = vadd.f32 %v2586, %v2603
  %v2607 = vadd.f32 %v2587, %v2603
  %v2608 = vadd.f32 %v2588, %v2603
  %v2609 = vadd.f32 %v2589, %v2603
  %v2610 = vadd.f32 %v2590, %v2603
  %v2611 = vadd.f32 %v2591, %v2603
  %v2612 = vadd.f32 %v2592, %v2603
  %v2613 = vadd.f32 %v2593, %v2603
  %v2614 = vadd.f32 %v2594, %v2603
  %v2615 = vadd.f32 %v2595, %v2603
  %v2616 = vadd.f32 %v2596, %v2603
  %v2617 = vadd.f32 %v2597, %v2603
  %v2618 = vadd.f32 %v2598, %v2603
  %v2619 = vadd.f32 %v2599, %v2603
  %v2620 = vpack.c.bf16 %v2605, %v2604
  %v2621 = vpack.c.bf16 %v2607, %v2606
  %v2622 = vpack.c.bf16 %v2609, %v2608
  %v2623 = vpack.c.bf16 %v2611, %v2610
  %v2624 = vpack.c.bf16 %v2613, %v2612
  %v2625 = vpack.c.bf16 %v2615, %v2614
  %v2626 = vpack.c.bf16 %v2617, %v2616
  %v2627 = vpack.c.bf16 %v2619, %v2618
  %s2628 = scalar_lea.vmem %s3, 128
  %v2629 = vld [vmem:[%s2628] sm:$0xf]
  %v2630 = vld [vmem:[%s2628 + $0x4] sm:$0xf]
  %v2631 = vld [vmem:[%s2628 + $0x8] sm:$0xf]
  %v2632 = vld [vmem:[%s2628 + $0xc] sm:$0xf]
  %v2633 = vld [vmem:[%s2628 + $0x10] sm:$0xf]
  %v2634 = vld [vmem:[%s2628 + $0x14] sm:$0xf]
  %v2635 = vld [vmem:[%s2628 + $0x18] sm:$0xf]
  %v2636 = vld [vmem:[%s2628 + $0x1c] sm:$0xf]
  %v2637 = vld [vmem:[%s2628 + $0x20] sm:$0xf]
  %v2638 = vld [vmem:[%s2628 + $0x24] sm:$0xf]
  %v2639 = vld [vmem:[%s2628 + $0x28] sm:$0xf]
  %v2640 = vld [vmem:[%s2628 + $0x2c] sm:$0xf]
  %v2641 = vld [vmem:[%s2628 + $0x30] sm:$0xf]
  %v2642 = vld [vmem:[%s2628 + $0x34] sm:$0xf]
  %v2643 = vld [vmem:[%s2628 + $0x38] sm:$0xf]
  %v2644 = vld [vmem:[%s2628 + $0x3c] sm:$0xf]
  %v2645 = vlaneseq
  %v2646 = vshrl.u32 %v2645, 7
  %v2647 = vsub.s32 4, %v2646
  %v2648 = vrot.slane %v962, %v2647
  %v2665 = vunpack.c.l.b16 %v2629
  %v2666 = vunpack.c.l.b16 %v2630
  %v2667 = vunpack.c.l.b16 %v2631
  %v2668 = vunpack.c.l.b16 %v2632
  %v2669 = vunpack.c.l.b16 %v2633
  %v2670 = vunpack.c.l.b16 %v2634
  %v2671 = vunpack.c.l.b16 %v2635
  %v2672 = vunpack.c.l.b16 %v2636
  %v2673 = vunpack.c.l.b16 %v2637
  %v2674 = vunpack.c.l.b16 %v2638
  %v2675 = vunpack.c.l.b16 %v2639
  %v2676 = vunpack.c.l.b16 %v2640
  %v2677 = vunpack.c.l.b16 %v2641
  %v2678 = vunpack.c.l.b16 %v2642
  %v2679 = vunpack.c.l.b16 %v2643
  %v2680 = vunpack.c.l.b16 %v2644
  %v2681 = vpack.c.b16 %v2666, %v2665
  %v2682 = vpack.c.b16 %v2668, %v2667
  %v2683 = vpack.c.b16 %v2670, %v2669
  %v2684 = vpack.c.b16 %v2672, %v2671
  %v2685 = vpack.c.b16 %v2674, %v2673
  %v2686 = vpack.c.b16 %v2676, %v2675
  %v2687 = vpack.c.b16 %v2678, %v2677
  %v2688 = vpack.c.b16 %v2680, %v2679
  %2697 = vmatprep.subr.bf16.mxu0 0
  %2698 = vmatpush1.bf16.msra.mxu0 %v2688
  %2699 = vmatprep.subr.bf16.mxu0 0
  %2700 = vmatpush1.bf16.msra.mxu0 %v2687
  %2701 = vmatprep.subr.bf16.mxu0 0
  %2702 = vmatpush1.bf16.msra.mxu0 %v2686
  %2703 = vmatprep.subr.bf16.mxu0 0
  %2704 = vmatpush1.bf16.msra.mxu0 %v2685
  %2705 = vmatprep.subr.bf16.mxu0 0
  %2706 = vmatpush1.bf16.msra.mxu0 %v2684
  %2707 = vmatprep.subr.bf16.mxu0 0
  %2708 = vmatpush1.bf16.msra.mxu0 %v2683
  %2709 = vmatprep.subr.bf16.mxu0 0
  %2710 = vmatpush1.bf16.msra.mxu0 %v2682
  %2711 = vmatprep.subr.bf16.mxu0 0
  %2712 = vmatpush1.bf16.msra.mxu0 %v2681
  %2713 = vmatprep.subr.bf16.mxu0 0
  %2714 = vmatpush2.bf16.msra.mxu0 0
  %2715 = vmatprep.subr.bf16.mxu0 0
  %2716 = vmatpush2.bf16.msra.mxu0 0
  %2717 = vmatprep.subr.bf16.mxu0 0
  %2718 = vmatpush2.bf16.msra.mxu0 0
  %2719 = vmatprep.subr.bf16.mxu0 0
  %2720 = vmatpush2.bf16.msra.mxu0 0
  %2721 = vmatprep.subr.bf16.mxu0 0
  %2722 = vmatpush2.bf16.msra.mxu0 0
  %2723 = vmatprep.subr.bf16.mxu0 0
  %2724 = vmatpush2.bf16.msra.mxu0 0
  %2725 = vmatprep.subr.bf16.mxu0 0
  %2726 = vmatpush2.bf16.msra.mxu0 0
  %2727 = vmatprep.subr.bf16.mxu0 0
  %2728 = vmatpush2.bf16.msra.mxu0 0
  %2729 = vmatprep.mubr.bf16.mxu0 0
  %2730 = vmatmul.mubr.bf16.gmra.mxu0 %v2620
  %v2731 = vpop.f32.mrf.mxu0
  %v2732 = vadd.f32 %v2648, %v2731
  %v2733 = vpop.f32.mrf.mxu0
  %v2734 = vpop.f32.mrf.mxu0
  %v2735 = vadd.f32 %v2648, %v2734
  %v2736 = vpop.f32.mrf.mxu0
  %2737 = vmatprep.mubr.bf16.mxu0 0
  %2738 = vmatmul.mubr.bf16.gmra.mxu0 %v2621
  %v2739 = vpop.f32.mrf.mxu0
  %v2740 = vadd.f32 %v2648, %v2739
  %v2741 = vpop.f32.mrf.mxu0
  %v2742 = vpop.f32.mrf.mxu0
  %v2743 = vadd.f32 %v2648, %v2742
  %v2744 = vpop.f32.mrf.mxu0
  %2745 = vmatprep.mubr.bf16.mxu0 0
  %2746 = vmatmul.mubr.bf16.gmra.mxu0 %v2622
  %v2747 = vpop.f32.mrf.mxu0
  %v2748 = vadd.f32 %v2648, %v2747
  %v2749 = vpop.f32.mrf.mxu0
  %v2750 = vpop.f32.mrf.mxu0
  %v2751 = vadd.f32 %v2648, %v2750
  %v2752 = vpop.f32.mrf.mxu0
  %2753 = vmatprep.mubr.bf16.mxu0 0
  %2754 = vmatmul.mubr.bf16.gmra.mxu0 %v2623
  %v2755 = vpop.f32.mrf.mxu0
  %v2756 = vadd.f32 %v2648, %v2755
  %v2757 = vpop.f32.mrf.mxu0
  %v2758 = vpop.f32.mrf.mxu0
  %v2759 = vadd.f32 %v2648, %v2758
  %v2760 = vpop.f32.mrf.mxu0
  %2761 = vmatprep.mubr.bf16.mxu0 0
  %2762 = vmatmul.mubr.bf16.gmra.mxu0 %v2624
  %v2763 = vpop.f32.mrf.mxu0
  %v2764 = vadd.f32 %v2648, %v2763
  %v2765 = vpop.f32.mrf.mxu0
  %v2766 = vpop.f32.mrf.mxu0
  %v2767 = vadd.f32 %v2648, %v2766
  %v2768 = vpop.f32.mrf.mxu0
  %2769 = vmatprep.mubr.bf16.mxu0 0
  %2770 = vmatmul.mubr.bf16.gmra.mxu0 %v2625
  %v2771 = vpop.f32.mrf.mxu0
  %v2772 = vadd.f32 %v2648, %v2771
  %v2773 = vpop.f32.mrf.mxu0
  %v2774 = vpop.f32.mrf.mxu0
  %v2775 = vadd.f32 %v2648, %v2774
  %v2776 = vpop.f32.mrf.mxu0
  %2777 = vmatprep.mubr.bf16.mxu0 0
  %2778 = vmatmul.mubr.bf16.gmra.mxu0 %v2626
  %v2779 = vpop.f32.mrf.mxu0
  %v2780 = vadd.f32 %v2648, %v2779
  %v2781 = vpop.f32.mrf.mxu0
  %v2782 = vpop.f32.mrf.mxu0
  %v2783 = vadd.f32 %v2648, %v2782
  %v2784 = vpop.f32.mrf.mxu0
  %2785 = vmatprep.mubr.bf16.mxu0 0
  %2786 = vmatmul.mubr.bf16.gmra.mxu0 %v2627
  %v2787 = vpop.f32.mrf.mxu0
  %v2788 = vadd.f32 %v2648, %v2787
  %v2789 = vpop.f32.mrf.mxu0
  %v2790 = vpop.f32.mrf.mxu0
  %v2791 = vadd.f32 %v2648, %v2790
  %v2792 = vpop.f32.mrf.mxu0
  %2793 = vdwg.mxu0
  %v2794 = vmul.f32 %v2732, 0.70710677
  %v2795 = vmul.f32 %v2735, 0.70710677
  %v2796 = vmul.f32 %v2740, 0.70710677
  %v2797 = vmul.f32 %v2743, 0.70710677
  %v2798 = vmul.f32 %v2748, 0.70710677
  %v2799 = vmul.f32 %v2751, 0.70710677
  %v2800 = vmul.f32 %v2756, 0.70710677
  %v2801 = vmul.f32 %v2759, 0.70710677
  %v2802 = vmul.f32 %v2764, 0.70710677
  %v2803 = vmul.f32 %v2767, 0.70710677
  %v2804 = vmul.f32 %v2772, 0.70710677
  %v2805 = vmul.f32 %v2775, 0.70710677
  %v2806 = vmul.f32 %v2780, 0.70710677
  %v2807 = vmul.f32 %v2783, 0.70710677
  %v2808 = vmul.f32 %v2788, 0.70710677
  %v2809 = vmul.f32 %v2791, 0.70710677
  %v2810 = vmax.f32 %v2794, -3.832507
  %v2811 = vmax.f32 %v2795, -3.832507
  %v2812 = vmax.f32 %v2796, -3.832507
  %v2813 = vmax.f32 %v2797, -3.832507
  %v2814 = vmax.f32 %v2798, -3.832507
  %v2815 = vmax.f32 %v2799, -3.832507
  %v2816 = vmax.f32 %v2800, -3.832507
  %v2817 = vmax.f32 %v2801, -3.832507
  %v2818 = vmax.f32 %v2802, -3.832507
  %v2819 = vmax.f32 %v2803, -3.832507
  %v2820 = vmax.f32 %v2804, -3.832507
  %v2821 = vmax.f32 %v2805, -3.832507
  %v2822 = vmax.f32 %v2806, -3.832507
  %v2823 = vmax.f32 %v2807, -3.832507
  %v2824 = vmax.f32 %v2808, -3.832507
  %v2825 = vmax.f32 %v2809, -3.832507
  %v2826 = vmin.f32 %v2810, 3.832507
  %v2827 = vmin.f32 %v2811, 3.832507
  %v2828 = vmin.f32 %v2812, 3.832507
  %v2829 = vmin.f32 %v2813, 3.832507
  %v2830 = vmin.f32 %v2814, 3.832507
  %v2831 = vmin.f32 %v2815, 3.832507
  %v2832 = vmin.f32 %v2816, 3.832507
  %v2833 = vmin.f32 %v2817, 3.832507
  %v2834 = vmin.f32 %v2818, 3.832507
  %v2835 = vmin.f32 %v2819, 3.832507
  %v2836 = vmin.f32 %v2820, 3.832507
  %v2837 = vmin.f32 %v2821, 3.832507
  %v2838 = vmin.f32 %v2822, 3.832507
  %v2839 = vmin.f32 %v2823, 3.832507
  %v2840 = vmin.f32 %v2824, 3.832507
  %v2841 = vmin.f32 %v2825, 3.832507
  %v2842 = vmul.f32 %v2826, %v2826
  %v2843 = vmul.f32 %v2827, %v2827
  %v2844 = vmul.f32 %v2828, %v2828
  %v2845 = vmul.f32 %v2829, %v2829
  %v2846 = vmul.f32 %v2830, %v2830
  %v2847 = vmul.f32 %v2831, %v2831
  %v2848 = vmul.f32 %v2832, %v2832
  %v2849 = vmul.f32 %v2833, %v2833
  %v2850 = vmul.f32 %v2834, %v2834
  %v2851 = vmul.f32 %v2835, %v2835
  %v2852 = vmul.f32 %v2836, %v2836
  %v2853 = vmul.f32 %v2837, %v2837
  %v2854 = vmul.f32 %v2838, %v2838
  %v2855 = vmul.f32 %v2839, %v2839
  %v2856 = vmul.f32 %v2840, %v2840
  %v2857 = vmul.f32 %v2841, %v2841
  %v2858 = vmul.f32 %v2842, 0.00022905065
  %v2859 = vmul.f32 %v2843, 0.00022905065
  %v2860 = vmul.f32 %v2844, 0.00022905065
  %v2861 = vmul.f32 %v2845, 0.00022905065
  %v2862 = vmul.f32 %v2846, 0.00022905065
  %v2863 = vmul.f32 %v2847, 0.00022905065
  %v2864 = vmul.f32 %v2848, 0.00022905065
  %v2865 = vmul.f32 %v2849, 0.00022905065
  %v2866 = vmul.f32 %v2850, 0.00022905065
  %v2867 = vmul.f32 %v2851, 0.00022905065
  %v2868 = vmul.f32 %v2852, 0.00022905065
  %v2869 = vmul.f32 %v2853, 0.00022905065
  %v2870 = vmul.f32 %v2854, 0.00022905065
  %v2871 = vmul.f32 %v2855, 0.00022905065
  %v2872 = vmul.f32 %v2856, 0.00022905065
  %v2873 = vmul.f32 %v2857, 0.00022905065
  %v2874 = vadd.f32 %v2858, 0.003408291
  %v2875 = vadd.f32 %v2859, 0.003408291
  %v2876 = vadd.f32 %v2860, 0.003408291
  %v2877 = vadd.f32 %v2861, 0.003408291
  %v2878 = vadd.f32 %v2862, 0.003408291
  %v2879 = vadd.f32 %v2863, 0.003408291
  %v2880 = vadd.f32 %v2864, 0.003408291
  %v2881 = vadd.f32 %v2865, 0.003408291
  %v2882 = vadd.f32 %v2866, 0.003408291
  %v2883 = vadd.f32 %v2867, 0.003408291
  %v2884 = vadd.f32 %v2868, 0.003408291
  %v2885 = vadd.f32 %v2869, 0.003408291
  %v2886 = vadd.f32 %v2870, 0.003408291
  %v2887 = vadd.f32 %v2871, 0.003408291
  %v2888 = vadd.f32 %v2872, 0.003408291
  %v2889 = vadd.f32 %v2873, 0.003408291
  %v2890 = vmul.f32 %v2874, %v2842
  %v2891 = vmul.f32 %v2875, %v2843
  %v2892 = vmul.f32 %v2876, %v2844
  %v2893 = vmul.f32 %v2877, %v2845
  %v2894 = vmul.f32 %v2878, %v2846
  %v2895 = vmul.f32 %v2879, %v2847
  %v2896 = vmul.f32 %v2880, %v2848
  %v2897 = vmul.f32 %v2881, %v2849
  %v2898 = vmul.f32 %v2882, %v2850
  %v2899 = vmul.f32 %v2883, %v2851
  %v2900 = vmul.f32 %v2884, %v2852
  %v2901 = vmul.f32 %v2885, %v2853
  %v2902 = vmul.f32 %v2886, %v2854
  %v2903 = vmul.f32 %v2887, %v2855
  %v2904 = vmul.f32 %v2888, %v2856
  %v2905 = vmul.f32 %v2889, %v2857
  %v2906 = vadd.f32 %v2890, 0.050955694
  %v2907 = vadd.f32 %v2891, 0.050955694
  %v2908 = vadd.f32 %v2892, 0.050955694
  %v2909 = vadd.f32 %v2893, 0.050955694
  %v2910 = vadd.f32 %v2894, 0.050955694
  %v2911 = vadd.f32 %v2895, 0.050955694
  %v2912 = vadd.f32 %v2896, 0.050955694
  %v2913 = vadd.f32 %v2897, 0.050955694
  %v2914 = vadd.f32 %v2898, 0.050955694
  %v2915 = vadd.f32 %v2899, 0.050955694
  %v2916 = vadd.f32 %v2900, 0.050955694
  %v2917 = vadd.f32 %v2901, 0.050955694
  %v2918 = vadd.f32 %v2902, 0.050955694
  %v2919 = vadd.f32 %v2903, 0.050955694
  %v2920 = vadd.f32 %v2904, 0.050955694
  %v2921 = vadd.f32 %v2905, 0.050955694
  %v2922 = vmul.f32 %v2906, %v2842
  %v2923 = vmul.f32 %v2907, %v2843
  %v2924 = vmul.f32 %v2908, %v2844
  %v2925 = vmul.f32 %v2909, %v2845
  %v2926 = vmul.f32 %v2910, %v2846
  %v2927 = vmul.f32 %v2911, %v2847
  %v2928 = vmul.f32 %v2912, %v2848
  %v2929 = vmul.f32 %v2913, %v2849
  %v2930 = vmul.f32 %v2914, %v2850
  %v2931 = vmul.f32 %v2915, %v2851
  %v2932 = vmul.f32 %v2916, %v2852
  %v2933 = vmul.f32 %v2917, %v2853
  %v2934 = vmul.f32 %v2918, %v2854
  %v2935 = vmul.f32 %v2919, %v2855
  %v2936 = vmul.f32 %v2920, %v2856
  %v2937 = vmul.f32 %v2921, %v2857
  %v2938 = vadd.f32 %v2922, 0.18520832
  %v2939 = vadd.f32 %v2923, 0.18520832
  %v2940 = vadd.f32 %v2924, 0.18520832
  %v2941 = vadd.f32 %v2925, 0.18520832
  %v2942 = vadd.f32 %v2926, 0.18520832
  %v2943 = vadd.f32 %v2927, 0.18520832
  %v2944 = vadd.f32 %v2928, 0.18520832
  %v2945 = vadd.f32 %v2929, 0.18520832
  %v2946 = vadd.f32 %v2930, 0.18520832
  %v2947 = vadd.f32 %v2931, 0.18520832
  %v2948 = vadd.f32 %v2932, 0.18520832
  %v2949 = vadd.f32 %v2933, 0.18520832
  %v2950 = vadd.f32 %v2934, 0.18520832
  %v2951 = vadd.f32 %v2935, 0.18520832
  %v2952 = vadd.f32 %v2936, 0.18520832
  %v2953 = vadd.f32 %v2937, 0.18520832
  %v2954 = vmul.f32 %v2938, %v2842
  %v2955 = vmul.f32 %v2939, %v2843
  %v2956 = vmul.f32 %v2940, %v2844
  %v2957 = vmul.f32 %v2941, %v2845
  %v2958 = vmul.f32 %v2942, %v2846
  %v2959 = vmul.f32 %v2943, %v2847
  %v2960 = vmul.f32 %v2944, %v2848
  %v2961 = vmul.f32 %v2945, %v2849
  %v2962 = vmul.f32 %v2946, %v2850
  %v2963 = vmul.f32 %v2947, %v2851
  %v2964 = vmul.f32 %v2948, %v2852
  %v2965 = vmul.f32 %v2949, %v2853
  %v2966 = vmul.f32 %v2950, %v2854
  %v2967 = vmul.f32 %v2951, %v2855
  %v2968 = vmul.f32 %v2952, %v2856
  %v2969 = vmul.f32 %v2953, %v2857
  %v2970 = vadd.f32 %v2954, 1.1283791
  %v2971 = vadd.f32 %v2955, 1.1283791
  %v2972 = vadd.f32 %v2956, 1.1283791
  %v2973 = vadd.f32 %v2957, 1.1283791
  %v2974 = vadd.f32 %v2958, 1.1283791
  %v2975 = vadd.f32 %v2959, 1.1283791
  %v2976 = vadd.f32 %v2960, 1.1283791
  %v2977 = vadd.f32 %v2961, 1.1283791
  %v2978 = vadd.f32 %v2962, 1.1283791
  %v2979 = vadd.f32 %v2963, 1.1283791
  %v2980 = vadd.f32 %v2964, 1.1283791
  %v2981 = vadd.f32 %v2965, 1.1283791
  %v2982 = vadd.f32 %v2966, 1.1283791
  %v2983 = vadd.f32 %v2967, 1.1283791
  %v2984 = vadd.f32 %v2968, 1.1283791
  %v2985 = vadd.f32 %v2969, 1.1283791
  %v2986 = vmul.f32 %v2842, -1.1791603e-07
  %v2987 = vmul.f32 %v2843, -1.1791603e-07
  %v2988 = vmul.f32 %v2844, -1.1791603e-07
  %v2989 = vmul.f32 %v2845, -1.1791603e-07
  %v2990 = vmul.f32 %v2846, -1.1791603e-07
  %v2991 = vmul.f32 %v2847, -1.1791603e-07
  %v2992 = vmul.f32 %v2848, -1.1791603e-07
  %v2993 = vmul.f32 %v2849, -1.1791603e-07
  %v2994 = vmul.f32 %v2850, -1.1791603e-07
  %v2995 = vmul.f32 %v2851, -1.1791603e-07
  %v2996 = vmul.f32 %v2852, -1.1791603e-07
  %v2997 = vmul.f32 %v2853, -1.1791603e-07
  %v2998 = vmul.f32 %v2854, -1.1791603e-07
  %v2999 = vmul.f32 %v2855, -1.1791603e-07
  %v3000 = vmul.f32 %v2856, -1.1791603e-07
  %v3001 = vmul.f32 %v2857, -1.1791603e-07
  %v3002 = vadd.f32 %v2986, 2.3547966e-05
  %v3003 = vadd.f32 %v2987, 2.3547966e-05
  %v3004 = vadd.f32 %v2988, 2.3547966e-05
  %v3005 = vadd.f32 %v2989, 2.3547966e-05
  %v3006 = vadd.f32 %v2990, 2.3547966e-05
  %v3007 = vadd.f32 %v2991, 2.3547966e-05
  %v3008 = vadd.f32 %v2992, 2.3547966e-05
  %v3009 = vadd.f32 %v2993, 2.3547966e-05
  %v3010 = vadd.f32 %v2994, 2.3547966e-05
  %v3011 = vadd.f32 %v2995, 2.3547966e-05
  %v3012 = vadd.f32 %v2996, 2.3547966e-05
  %v3013 = vadd.f32 %v2997, 2.3547966e-05
  %v3014 = vadd.f32 %v2998, 2.3547966e-05
  %v3015 = vadd.f32 %v2999, 2.3547966e-05
  %v3016 = vadd.f32 %v3000, 2.3547966e-05
  %v3017 = vadd.f32 %v3001, 2.3547966e-05
  %v3018 = vmul.f32 %v3002, %v2842
  %v3019 = vmul.f32 %v3003, %v2843
  %v3020 = vmul.f32 %v3004, %v2844
  %v3021 = vmul.f32 %v3005, %v2845
  %v3022 = vmul.f32 %v3006, %v2846
  %v3023 = vmul.f32 %v3007, %v2847
  %v3024 = vmul.f32 %v3008, %v2848
  %v3025 = vmul.f32 %v3009, %v2849
  %v3026 = vmul.f32 %v3010, %v2850
  %v3027 = vmul.f32 %v3011, %v2851
  %v3028 = vmul.f32 %v3012, %v2852
  %v3029 = vmul.f32 %v3013, %v2853
  %v3030 = vmul.f32 %v3014, %v2854
  %v3031 = vmul.f32 %v3015, %v2855
  %v3032 = vmul.f32 %v3016, %v2856
  %v3033 = vmul.f32 %v3017, %v2857
  %v3034 = vadd.f32 %v3018, 0.0010179626
  %v3035 = vadd.f32 %v3019, 0.0010179626
  %v3036 = vadd.f32 %v3020, 0.0010179626
  %v3037 = vadd.f32 %v3021, 0.0010179626
  %v3038 = vadd.f32 %v3022, 0.0010179626
  %v3039 = vadd.f32 %v3023, 0.0010179626
  %v3040 = vadd.f32 %v3024, 0.0010179626
  %v3041 = vadd.f32 %v3025, 0.0010179626
  %v3042 = vadd.f32 %v3026, 0.0010179626
  %v3043 = vadd.f32 %v3027, 0.0010179626
  %v3044 = vadd.f32 %v3028, 0.0010179626
  %v3045 = vadd.f32 %v3029, 0.0010179626
  %v3046 = vadd.f32 %v3030, 0.0010179626
  %v3047 = vadd.f32 %v3031, 0.0010179626
  %v3048 = vadd.f32 %v3032, 0.0010179626
  %v3049 = vadd.f32 %v3033, 0.0010179626
  %v3050 = vmul.f32 %v3034, %v2842
  %v3051 = vmul.f32 %v3035, %v2843
  %v3052 = vmul.f32 %v3036, %v2844
  %v3053 = vmul.f32 %v3037, %v2845
  %v3054 = vmul.f32 %v3038, %v2846
  %v3055 = vmul.f32 %v3039, %v2847
  %v3056 = vmul.f32 %v3040, %v2848
  %v3057 = vmul.f32 %v3041, %v2849
  %v3058 = vmul.f32 %v3042, %v2850
  %v3059 = vmul.f32 %v3043, %v2851
  %v3060 = vmul.f32 %v3044, %v2852
  %v3061 = vmul.f32 %v3045, %v2853
  %v3062 = vmul.f32 %v3046, %v2854
  %v3063 = vmul.f32 %v3047, %v2855
  %v3064 = vmul.f32 %v3048, %v2856
  %v3065 = vmul.f32 %v3049, %v2857
  %v3066 = vadd.f32 %v3050, 0.01407047
  %v3067 = vadd.f32 %v3051, 0.01407047
  %v3068 = vadd.f32 %v3052, 0.01407047
  %v3069 = vadd.f32 %v3053, 0.01407047
  %v3070 = vadd.f32 %v3054, 0.01407047
  %v3071 = vadd.f32 %v3055, 0.01407047
  %v3072 = vadd.f32 %v3056, 0.01407047
  %v3073 = vadd.f32 %v3057, 0.01407047
  %v3074 = vadd.f32 %v3058, 0.01407047
  %v3075 = vadd.f32 %v3059, 0.01407047
  %v3076 = vadd.f32 %v3060, 0.01407047
  %v3077 = vadd.f32 %v3061, 0.01407047
  %v3078 = vadd.f32 %v3062, 0.01407047
  %v3079 = vadd.f32 %v3063, 0.01407047
  %v3080 = vadd.f32 %v3064, 0.01407047
  %v3081 = vadd.f32 %v3065, 0.01407047
  %v3082 = vmul.f32 %v3066, %v2842
  %v3083 = vmul.f32 %v3067, %v2843
  %v3084 = vmul.f32 %v3068, %v2844
  %v3085 = vmul.f32 %v3069, %v2845
  %v3086 = vmul.f32 %v3070, %v2846
  %v3087 = vmul.f32 %v3071, %v2847
  %v3088 = vmul.f32 %v3072, %v2848
  %v3089 = vmul.f32 %v3073, %v2849
  %v3090 = vmul.f32 %v3074, %v2850
  %v3091 = vmul.f32 %v3075, %v2851
  %v3092 = vmul.f32 %v3076, %v2852
  %v3093 = vmul.f32 %v3077, %v2853
  %v3094 = vmul.f32 %v3078, %v2854
  %v3095 = vmul.f32 %v3079, %v2855
  %v3096 = vmul.f32 %v3080, %v2856
  %v3097 = vmul.f32 %v3081, %v2857
  %v3098 = vadd.f32 %v3082, 0.11098505
  %v3099 = vadd.f32 %v3083, 0.11098505
  %v3100 = vadd.f32 %v3084, 0.11098505
  %v3101 = vadd.f32 %v3085, 0.11098505
  %v3102 = vadd.f32 %v3086, 0.11098505
  %v3103 = vadd.f32 %v3087, 0.11098505
  %v3104 = vadd.f32 %v3088, 0.11098505
  %v3105 = vadd.f32 %v3089, 0.11098505
  %v3106 = vadd.f32 %v3090, 0.11098505
  %v3107 = vadd.f32 %v3091, 0.11098505
  %v3108 = vadd.f32 %v3092, 0.11098505
  %v3109 = vadd.f32 %v3093, 0.11098505
  %v3110 = vadd.f32 %v3094, 0.11098505
  %v3111 = vadd.f32 %v3095, 0.11098505
  %v3112 = vadd.f32 %v3096, 0.11098505
  %v3113 = vadd.f32 %v3097, 0.11098505
  %v3114 = vmul.f32 %v3098, %v2842
  %v3115 = vmul.f32 %v3099, %v2843
  %v3116 = vmul.f32 %v3100, %v2844
  %v3117 = vmul.f32 %v3101, %v2845
  %v3118 = vmul.f32 %v3102, %v2846
  %v3119 = vmul.f32 %v3103, %v2847
  %v3120 = vmul.f32 %v3104, %v2848
  %v3121 = vmul.f32 %v3105, %v2849
  %v3122 = vmul.f32 %v3106, %v2850
  %v3123 = vmul.f32 %v3107, %v2851
  %v3124 = vmul.f32 %v3108, %v2852
  %v3125 = vmul.f32 %v3109, %v2853
  %v3126 = vmul.f32 %v3110, %v2854
  %v3127 = vmul.f32 %v3111, %v2855
  %v3128 = vmul.f32 %v3112, %v2856
  %v3129 = vmul.f32 %v3113, %v2857
  %v3130 = vadd.f32 %v3114, 0.49746925
  %v3131 = vadd.f32 %v3115, 0.49746925
  %v3132 = vadd.f32 %v3116, 0.49746925
  %v3133 = vadd.f32 %v3117, 0.49746925
  %v3134 = vadd.f32 %v3118, 0.49746925
  %v3135 = vadd.f32 %v3119, 0.49746925
  %v3136 = vadd.f32 %v3120, 0.49746925
  %v3137 = vadd.f32 %v3121, 0.49746925
  %v3138 = vadd.f32 %v3122, 0.49746925
  %v3139 = vadd.f32 %v3123, 0.49746925
  %v3140 = vadd.f32 %v3124, 0.49746925
  %v3141 = vadd.f32 %v3125, 0.49746925
  %v3142 = vadd.f32 %v3126, 0.49746925
  %v3143 = vadd.f32 %v3127, 0.49746925
  %v3144 = vadd.f32 %v3128, 0.49746925
  %v3145 = vadd.f32 %v3129, 0.49746925
  %v3146 = vmul.f32 %v3130, %v2842
  %v3147 = vmul.f32 %v3131, %v2843
  %v3148 = vmul.f32 %v3132, %v2844
  %v3149 = vmul.f32 %v3133, %v2845
  %v3150 = vmul.f32 %v3134, %v2846
  %v3151 = vmul.f32 %v3135, %v2847
  %v3152 = vmul.f32 %v3136, %v2848
  %v3153 = vmul.f32 %v3137, %v2849
  %v3154 = vmul.f32 %v3138, %v2850
  %v3155 = vmul.f32 %v3139, %v2851
  %v3156 = vmul.f32 %v3140, %v2852
  %v3157 = vmul.f32 %v3141, %v2853
  %v3158 = vmul.f32 %v3142, %v2854
  %v3159 = vmul.f32 %v3143, %v2855
  %v3160 = vmul.f32 %v3144, %v2856
  %v3161 = vmul.f32 %v3145, %v2857
  %v3162 = vadd.f32 %v3146, 1.0
  %v3163 = vadd.f32 %v3147, 1.0
  %v3164 = vadd.f32 %v3148, 1.0
  %v3165 = vadd.f32 %v3149, 1.0
  %v3166 = vadd.f32 %v3150, 1.0
  %v3167 = vadd.f32 %v3151, 1.0
  %v3168 = vadd.f32 %v3152, 1.0
  %v3169 = vadd.f32 %v3153, 1.0
  %v3170 = vadd.f32 %v3154, 1.0
  %v3171 = vadd.f32 %v3155, 1.0
  %v3172 = vadd.f32 %v3156, 1.0
  %v3173 = vadd.f32 %v3157, 1.0
  %v3174 = vadd.f32 %v3158, 1.0
  %v3175 = vadd.f32 %v3159, 1.0
  %v3176 = vadd.f32 %v3160, 1.0
  %v3177 = vadd.f32 %v3161, 1.0
  %v3178 = vmul.f32 %v2826, %v2970
  %v3179 = vmul.f32 %v2827, %v2971
  %v3180 = vmul.f32 %v2828, %v2972
  %v3181 = vmul.f32 %v2829, %v2973
  %v3182 = vmul.f32 %v2830, %v2974
  %v3183 = vmul.f32 %v2831, %v2975
  %v3184 = vmul.f32 %v2832, %v2976
  %v3185 = vmul.f32 %v2833, %v2977
  %v3186 = vmul.f32 %v2834, %v2978
  %v3187 = vmul.f32 %v2835, %v2979
  %v3188 = vmul.f32 %v2836, %v2980
  %v3189 = vmul.f32 %v2837, %v2981
  %v3190 = vmul.f32 %v2838, %v2982
  %v3191 = vmul.f32 %v2839, %v2983
  %v3192 = vmul.f32 %v2840, %v2984
  %v3193 = vmul.f32 %v2841, %v2985
  %v3194 = vrcp.pop %v3162
  %v3195 = vmul.f32 %v3178, %v3194
  %v3196 = vrcp.pop %v3163
  %v3197 = vmul.f32 %v3179, %v3196
  %v3198 = vrcp.pop %v3164
  %v3199 = vmul.f32 %v3180, %v3198
  %v3200 = vrcp.pop %v3165
  %v3201 = vmul.f32 %v3181, %v3200
  %v3202 = vrcp.pop %v3166
  %v3203 = vmul.f32 %v3182, %v3202
  %v3204 = vrcp.pop %v3167
  %v3205 = vmul.f32 %v3183, %v3204
  %v3206 = vrcp.pop %v3168
  %v3207 = vmul.f32 %v3184, %v3206
  %v3208 = vrcp.pop %v3169
  %v3209 = vmul.f32 %v3185, %v3208
  %v3210 = vrcp.pop %v3170
  %v3211 = vmul.f32 %v3186, %v3210
  %v3212 = vrcp.pop %v3171
  %v3213 = vmul.f32 %v3187, %v3212
  %v3214 = vrcp.pop %v3172
  %v3215 = vmul.f32 %v3188, %v3214
  %v3216 = vrcp.pop %v3173
  %v3217 = vmul.f32 %v3189, %v3216
  %v3218 = vrcp.pop %v3174
  %v3219 = vmul.f32 %v3190, %v3218
  %v3220 = vrcp.pop %v3175
  %v3221 = vmul.f32 %v3191, %v3220
  %v3222 = vrcp.pop %v3176
  %v3223 = vmul.f32 %v3192, %v3222
  %v3224 = vrcp.pop %v3177
  %v3225 = vmul.f32 %v3193, %v3224
  %v3226 = vmul.f32 %v2732, 0.5
  %v3227 = vmul.f32 %v2735, 0.5
  %v3228 = vmul.f32 %v2740, 0.5
  %v3229 = vmul.f32 %v2743, 0.5
  %v3230 = vmul.f32 %v2748, 0.5
  %v3231 = vmul.f32 %v2751, 0.5
  %v3232 = vmul.f32 %v2756, 0.5
  %v3233 = vmul.f32 %v2759, 0.5
  %v3234 = vmul.f32 %v2764, 0.5
  %v3235 = vmul.f32 %v2767, 0.5
  %v3236 = vmul.f32 %v2772, 0.5
  %v3237 = vmul.f32 %v2775, 0.5
  %v3238 = vmul.f32 %v2780, 0.5
  %v3239 = vmul.f32 %v2783, 0.5
  %v3240 = vmul.f32 %v2788, 0.5
  %v3241 = vmul.f32 %v2791, 0.5
  %v3242 = vadd.f32 %v3195, 1.0
  %v3243 = vadd.f32 %v3197, 1.0
  %v3244 = vadd.f32 %v3199, 1.0
  %v3245 = vadd.f32 %v3201, 1.0
  %v3246 = vadd.f32 %v3203, 1.0
  %v3247 = vadd.f32 %v3205, 1.0
  %v3248 = vadd.f32 %v3207, 1.0
  %v3249 = vadd.f32 %v3209, 1.0
  %v3250 = vadd.f32 %v3211, 1.0
  %v3251 = vadd.f32 %v3213, 1.0
  %v3252 = vadd.f32 %v3215, 1.0
  %v3253 = vadd.f32 %v3217, 1.0
  %v3254 = vadd.f32 %v3219, 1.0
  %v3255 = vadd.f32 %v3221, 1.0
  %v3256 = vadd.f32 %v3223, 1.0
  %v3257 = vadd.f32 %v3225, 1.0
  %v3258 = vmul.f32 %v3226, %v3242
  %v3259 = vmul.f32 %v3227, %v3243
  %v3260 = vmul.f32 %v3228, %v3244
  %v3261 = vmul.f32 %v3229, %v3245
  %v3262 = vmul.f32 %v3230, %v3246
  %v3263 = vmul.f32 %v3231, %v3247
  %v3264 = vmul.f32 %v3232, %v3248
  %v3265 = vmul.f32 %v3233, %v3249
  %v3266 = vmul.f32 %v3234, %v3250
  %v3267 = vmul.f32 %v3235, %v3251
  %v3268 = vmul.f32 %v3236, %v3252
  %v3269 = vmul.f32 %v3237, %v3253
  %v3270 = vmul.f32 %v3238, %v3254
  %v3271 = vmul.f32 %v3239, %v3255
  %v3272 = vmul.f32 %v3240, %v3256
  %v3273 = vmul.f32 %v3241, %v3257
  %v3274 = vpack.c.bf16 %v3259, %v3258
  %v3275 = vpack.c.bf16 %v3261, %v3260
  %v3276 = vpack.c.bf16 %v3263, %v3262
  %v3277 = vpack.c.bf16 %v3265, %v3264
  %v3278 = vpack.c.bf16 %v3267, %v3266
  %v3279 = vpack.c.bf16 %v3269, %v3268
  %v3280 = vpack.c.bf16 %v3271, %v3270
  %v3281 = vpack.c.bf16 %v3273, %v3272
  %s3282 = scalar_lea.vmem %s3, 192
  %v3283 = vld [vmem:[%s3282] sm:$0xf]
  %v3284 = vld [vmem:[%s3282 + $0x4] sm:$0xf]
  %v3285 = vld [vmem:[%s3282 + $0x8] sm:$0xf]
  %v3286 = vld [vmem:[%s3282 + $0xc] sm:$0xf]
  %v3287 = vld [vmem:[%s3282 + $0x10] sm:$0xf]
  %v3288 = vld [vmem:[%s3282 + $0x14] sm:$0xf]
  %v3289 = vld [vmem:[%s3282 + $0x18] sm:$0xf]
  %v3290 = vld [vmem:[%s3282 + $0x1c] sm:$0xf]
  %v3291 = vld [vmem:[%s3282 + $0x20] sm:$0xf]
  %v3292 = vld [vmem:[%s3282 + $0x24] sm:$0xf]
  %v3293 = vld [vmem:[%s3282 + $0x28] sm:$0xf]
  %v3294 = vld [vmem:[%s3282 + $0x2c] sm:$0xf]
  %v3295 = vld [vmem:[%s3282 + $0x30] sm:$0xf]
  %v3296 = vld [vmem:[%s3282 + $0x34] sm:$0xf]
  %v3297 = vld [vmem:[%s3282 + $0x38] sm:$0xf]
  %v3298 = vld [vmem:[%s3282 + $0x3c] sm:$0xf]
  %v3299 = vlaneseq
  %v3300 = vshrl.u32 %v3299, 7
  %v3301 = vsub.s32 5, %v3300
  %v3302 = vrot.slane %v962, %v3301
  %v3319 = vunpack.c.l.b16 %v3283
  %v3320 = vunpack.c.l.b16 %v3284
  %v3321 = vunpack.c.l.b16 %v3285
  %v3322 = vunpack.c.l.b16 %v3286
  %v3323 = vunpack.c.l.b16 %v3287
  %v3324 = vunpack.c.l.b16 %v3288
  %v3325 = vunpack.c.l.b16 %v3289
  %v3326 = vunpack.c.l.b16 %v3290
  %v3327 = vunpack.c.l.b16 %v3291
  %v3328 = vunpack.c.l.b16 %v3292
  %v3329 = vunpack.c.l.b16 %v3293
  %v3330 = vunpack.c.l.b16 %v3294
  %v3331 = vunpack.c.l.b16 %v3295
  %v3332 = vunpack.c.l.b16 %v3296
  %v3333 = vunpack.c.l.b16 %v3297
  %v3334 = vunpack.c.l.b16 %v3298
  %v3335 = vpack.c.b16 %v3320, %v3319
  %v3336 = vpack.c.b16 %v3322, %v3321
  %v3337 = vpack.c.b16 %v3324, %v3323
  %v3338 = vpack.c.b16 %v3326, %v3325
  %v3339 = vpack.c.b16 %v3328, %v3327
  %v3340 = vpack.c.b16 %v3330, %v3329
  %v3341 = vpack.c.b16 %v3332, %v3331
  %v3342 = vpack.c.b16 %v3334, %v3333
  %3351 = vmatprep.subr.bf16.mxu0 0
  %3352 = vmatpush1.bf16.msra.mxu0 %v3342
  %3353 = vmatprep.subr.bf16.mxu0 0
  %3354 = vmatpush1.bf16.msra.mxu0 %v3341
  %3355 = vmatprep.subr.bf16.mxu0 0
  %3356 = vmatpush1.bf16.msra.mxu0 %v3340
  %3357 = vmatprep.subr.bf16.mxu0 0
  %3358 = vmatpush1.bf16.msra.mxu0 %v3339
  %3359 = vmatprep.subr.bf16.mxu0 0
  %3360 = vmatpush1.bf16.msra.mxu0 %v3338
  %3361 = vmatprep.subr.bf16.mxu0 0
  %3362 = vmatpush1.bf16.msra.mxu0 %v3337
  %3363 = vmatprep.subr.bf16.mxu0 0
  %3364 = vmatpush1.bf16.msra.mxu0 %v3336
  %3365 = vmatprep.subr.bf16.mxu0 0
  %3366 = vmatpush1.bf16.msra.mxu0 %v3335
  %3367 = vmatprep.subr.bf16.mxu0 0
  %3368 = vmatpush2.bf16.msra.mxu0 0
  %3369 = vmatprep.subr.bf16.mxu0 0
  %3370 = vmatpush2.bf16.msra.mxu0 0
  %3371 = vmatprep.subr.bf16.mxu0 0
  %3372 = vmatpush2.bf16.msra.mxu0 0
  %3373 = vmatprep.subr.bf16.mxu0 0
  %3374 = vmatpush2.bf16.msra.mxu0 0
  %3375 = vmatprep.subr.bf16.mxu0 0
  %3376 = vmatpush2.bf16.msra.mxu0 0
  %3377 = vmatprep.subr.bf16.mxu0 0
  %3378 = vmatpush2.bf16.msra.mxu0 0
  %3379 = vmatprep.subr.bf16.mxu0 0
  %3380 = vmatpush2.bf16.msra.mxu0 0
  %3381 = vmatprep.subr.bf16.mxu0 0
  %3382 = vmatpush2.bf16.msra.mxu0 0
  %3383 = vmatprep.mubr.bf16.mxu0 0
  %3384 = vmatmul.mubr.bf16.gmra.mxu0 %v3274
  %v3385 = vpop.f32.mrf.mxu0
  %v3386 = vadd.f32 %v3302, %v3385
  %v3387 = vpop.f32.mrf.mxu0
  %v3388 = vpop.f32.mrf.mxu0
  %v3389 = vadd.f32 %v3302, %v3388
  %v3390 = vpop.f32.mrf.mxu0
  %3391 = vmatprep.mubr.bf16.mxu0 0
  %3392 = vmatmul.mubr.bf16.gmra.mxu0 %v3275
  %v3393 = vpop.f32.mrf.mxu0
  %v3394 = vadd.f32 %v3302, %v3393
  %v3395 = vpop.f32.mrf.mxu0
  %v3396 = vpop.f32.mrf.mxu0
  %v3397 = vadd.f32 %v3302, %v3396
  %v3398 = vpop.f32.mrf.mxu0
  %3399 = vmatprep.mubr.bf16.mxu0 0
  %3400 = vmatmul.mubr.bf16.gmra.mxu0 %v3276
  %v3401 = vpop.f32.mrf.mxu0
  %v3402 = vadd.f32 %v3302, %v3401
  %v3403 = vpop.f32.mrf.mxu0
  %v3404 = vpop.f32.mrf.mxu0
  %v3405 = vadd.f32 %v3302, %v3404
  %v3406 = vpop.f32.mrf.mxu0
  %3407 = vmatprep.mubr.bf16.mxu0 0
  %3408 = vmatmul.mubr.bf16.gmra.mxu0 %v3277
  %v3409 = vpop.f32.mrf.mxu0
  %v3410 = vadd.f32 %v3302, %v3409
  %v3411 = vpop.f32.mrf.mxu0
  %v3412 = vpop.f32.mrf.mxu0
  %v3413 = vadd.f32 %v3302, %v3412
  %v3414 = vpop.f32.mrf.mxu0
  %3415 = vmatprep.mubr.bf16.mxu0 0
  %3416 = vmatmul.mubr.bf16.gmra.mxu0 %v3278
  %v3417 = vpop.f32.mrf.mxu0
  %v3418 = vadd.f32 %v3302, %v3417
  %v3419 = vpop.f32.mrf.mxu0
  %v3420 = vpop.f32.mrf.mxu0
  %v3421 = vadd.f32 %v3302, %v3420
  %v3422 = vpop.f32.mrf.mxu0
  %3423 = vmatprep.mubr.bf16.mxu0 0
  %3424 = vmatmul.mubr.bf16.gmra.mxu0 %v3279
  %v3425 = vpop.f32.mrf.mxu0
  %v3426 = vadd.f32 %v3302, %v3425
  %v3427 = vpop.f32.mrf.mxu0
  %v3428 = vpop.f32.mrf.mxu0
  %v3429 = vadd.f32 %v3302, %v3428
  %v3430 = vpop.f32.mrf.mxu0
  %3431 = vmatprep.mubr.bf16.mxu0 0
  %3432 = vmatmul.mubr.bf16.gmra.mxu0 %v3280
  %v3433 = vpop.f32.mrf.mxu0
  %v3434 = vadd.f32 %v3302, %v3433
  %v3435 = vpop.f32.mrf.mxu0
  %v3436 = vpop.f32.mrf.mxu0
  %v3437 = vadd.f32 %v3302, %v3436
  %v3438 = vpop.f32.mrf.mxu0
  %3439 = vmatprep.mubr.bf16.mxu0 0
  %3440 = vmatmul.mubr.bf16.gmra.mxu0 %v3281
  %v3441 = vpop.f32.mrf.mxu0
  %v3442 = vadd.f32 %v3302, %v3441
  %v3443 = vpop.f32.mrf.mxu0
  %v3444 = vpop.f32.mrf.mxu0
  %v3445 = vadd.f32 %v3302, %v3444
  %v3446 = vpop.f32.mrf.mxu0
  %3447 = vdwg.mxu0
  %v3448 = vadd.f32 %v3386, %v2604
  %v3449 = vadd.f32 %v3389, %v2605
  %v3450 = vadd.f32 %v3394, %v2606
  %v3451 = vadd.f32 %v3397, %v2607
  %v3452 = vadd.f32 %v3402, %v2608
  %v3453 = vadd.f32 %v3405, %v2609
  %v3454 = vadd.f32 %v3410, %v2610
  %v3455 = vadd.f32 %v3413, %v2611
  %v3456 = vadd.f32 %v3418, %v2612
  %v3457 = vadd.f32 %v3421, %v2613
  %v3458 = vadd.f32 %v3426, %v2614
  %v3459 = vadd.f32 %v3429, %v2615
  %v3460 = vadd.f32 %v3434, %v2616
  %v3461 = vadd.f32 %v3437, %v2617
  %v3462 = vadd.f32 %v3442, %v2618
  %v3463 = vadd.f32 %v3445, %v2619
  %3464 = vadd.xlane.f32.xlu0 %v3448
  %v3465 = vpop.xlane.xlu0 %3464
  %3466 = vadd.xlane.f32.xlu0 %v3449
  %v3467 = vpop.xlane.xlu0 %3466
  %3468 = vadd.xlane.f32.xlu0 %v3450
  %v3469 = vpop.xlane.xlu0 %3468
  %3470 = vadd.xlane.f32.xlu0 %v3451
  %v3471 = vpop.xlane.xlu0 %3470
  %3472 = vadd.xlane.f32.xlu0 %v3452
  %v3473 = vpop.xlane.xlu0 %3472
  %3474 = vadd.xlane.f32.xlu0 %v3453
  %v3475 = vpop.xlane.xlu0 %3474
  %3476 = vadd.xlane.f32.xlu0 %v3454
  %v3477 = vpop.xlane.xlu0 %3476
  %3478 = vadd.xlane.f32.xlu0 %v3455
  %v3479 = vpop.xlane.xlu0 %3478
  %3480 = vadd.xlane.f32.xlu0 %v3456
  %v3481 = vpop.xlane.xlu0 %3480
  %3482 = vadd.xlane.f32.xlu0 %v3457
  %v3483 = vpop.xlane.xlu0 %3482
  %3484 = vadd.xlane.f32.xlu0 %v3458
  %v3485 = vpop.xlane.xlu0 %3484
  %3486 = vadd.xlane.f32.xlu0 %v3459
  %v3487 = vpop.xlane.xlu0 %3486
  %3488 = vadd.xlane.f32.xlu0 %v3460
  %v3489 = vpop.xlane.xlu0 %3488
  %3490 = vadd.xlane.f32.xlu0 %v3461
  %v3491 = vpop.xlane.xlu0 %3490
  %3492 = vadd.xlane.f32.xlu0 %v3462
  %v3493 = vpop.xlane.xlu0 %3492
  %3494 = vadd.xlane.f32.xlu0 %v3463
  %v3495 = vpop.xlane.xlu0 %3494
  %v3496 = vmul.f32 %v3465, 0.03125
  %v3497 = vmul.f32 %v3467, 0.03125
  %v3498 = vmul.f32 %v3469, 0.03125
  %v3499 = vmul.f32 %v3471, 0.03125
  %v3500 = vmul.f32 %v3473, 0.03125
  %v3501 = vmul.f32 %v3475, 0.03125
  %v3502 = vmul.f32 %v3477, 0.03125
  %v3503 = vmul.f32 %v3479, 0.03125
  %v3504 = vmul.f32 %v3481, 0.03125
  %v3505 = vmul.f32 %v3483, 0.03125
  %v3506 = vmul.f32 %v3485, 0.03125
  %v3507 = vmul.f32 %v3487, 0.03125
  %v3508 = vmul.f32 %v3489, 0.03125
  %v3509 = vmul.f32 %v3491, 0.03125
  %v3510 = vmul.f32 %v3493, 0.03125
  %v3511 = vmul.f32 %v3495, 0.03125
  %v3512 = vsub.f32 %v3448, %v3496
  %v3513 = vsub.f32 %v3449, %v3497
  %v3514 = vsub.f32 %v3450, %v3498
  %v3515 = vsub.f32 %v3451, %v3499
  %v3516 = vsub.f32 %v3452, %v3500
  %v3517 = vsub.f32 %v3453, %v3501
  %v3518 = vsub.f32 %v3454, %v3502
  %v3519 = vsub.f32 %v3455, %v3503
  %v3520 = vsub.f32 %v3456, %v3504
  %v3521 = vsub.f32 %v3457, %v3505
  %v3522 = vsub.f32 %v3458, %v3506
  %v3523 = vsub.f32 %v3459, %v3507
  %v3524 = vsub.f32 %v3460, %v3508
  %v3525 = vsub.f32 %v3461, %v3509
  %v3526 = vsub.f32 %v3462, %v3510
  %v3527 = vsub.f32 %v3463, %v3511
  %v3528 = vsel %vm23, %v3512, 0.0
  %v3529 = vsel %vm23, %v3513, 0.0
  %v3530 = vsel %vm23, %v3514, 0.0
  %v3531 = vsel %vm23, %v3515, 0.0
  %v3532 = vsel %vm23, %v3516, 0.0
  %v3533 = vsel %vm23, %v3517, 0.0
  %v3534 = vsel %vm23, %v3518, 0.0
  %v3535 = vsel %vm23, %v3519, 0.0
  %v3536 = vsel %vm23, %v3520, 0.0
  %v3537 = vsel %vm23, %v3521, 0.0
  %v3538 = vsel %vm23, %v3522, 0.0
  %v3539 = vsel %vm23, %v3523, 0.0
  %v3540 = vsel %vm23, %v3524, 0.0
  %v3541 = vsel %vm23, %v3525, 0.0
  %v3542 = vsel %vm23, %v3526, 0.0
  %v3543 = vsel %vm23, %v3527, 0.0
  %v3544 = vmul.f32 %v3528, %v3528
  %v3545 = vmul.f32 %v3529, %v3529
  %v3546 = vmul.f32 %v3530, %v3530
  %v3547 = vmul.f32 %v3531, %v3531
  %v3548 = vmul.f32 %v3532, %v3532
  %v3549 = vmul.f32 %v3533, %v3533
  %v3550 = vmul.f32 %v3534, %v3534
  %v3551 = vmul.f32 %v3535, %v3535
  %v3552 = vmul.f32 %v3536, %v3536
  %v3553 = vmul.f32 %v3537, %v3537
  %v3554 = vmul.f32 %v3538, %v3538
  %v3555 = vmul.f32 %v3539, %v3539
  %v3556 = vmul.f32 %v3540, %v3540
  %v3557 = vmul.f32 %v3541, %v3541
  %v3558 = vmul.f32 %v3542, %v3542
  %v3559 = vmul.f32 %v3543, %v3543
  %3560 = vadd.xlane.f32.xlu0 %v3544
  %v3561 = vpop.xlane.xlu0 %3560
  %3562 = vadd.xlane.f32.xlu0 %v3545
  %v3563 = vpop.xlane.xlu0 %3562
  %3564 = vadd.xlane.f32.xlu0 %v3546
  %v3565 = vpop.xlane.xlu0 %3564
  %3566 = vadd.xlane.f32.xlu0 %v3547
  %v3567 = vpop.xlane.xlu0 %3566
  %3568 = vadd.xlane.f32.xlu0 %v3548
  %v3569 = vpop.xlane.xlu0 %3568
  %3570 = vadd.xlane.f32.xlu0 %v3549
  %v3571 = vpop.xlane.xlu0 %3570
  %3572 = vadd.xlane.f32.xlu0 %v3550
  %v3573 = vpop.xlane.xlu0 %3572
  %3574 = vadd.xlane.f32.xlu0 %v3551
  %v3575 = vpop.xlane.xlu0 %3574
  %3576 = vadd.xlane.f32.xlu0 %v3552
  %v3577 = vpop.xlane.xlu0 %3576
  %3578 = vadd.xlane.f32.xlu0 %v3553
  %v3579 = vpop.xlane.xlu0 %3578
  %3580 = vadd.xlane.f32.xlu0 %v3554
  %v3581 = vpop.xlane.xlu0 %3580
  %3582 = vadd.xlane.f32.xlu0 %v3555
  %v3583 = vpop.xlane.xlu0 %3582
  %3584 = vadd.xlane.f32.xlu0 %v3556
  %v3585 = vpop.xlane.xlu0 %3584
  %3586 = vadd.xlane.f32.xlu0 %v3557
  %v3587 = vpop.xlane.xlu0 %3586
  %3588 = vadd.xlane.f32.xlu0 %v3558
  %v3589 = vpop.xlane.xlu0 %3588
  %3590 = vadd.xlane.f32.xlu0 %v3559
  %v3591 = vpop.xlane.xlu0 %3590
  %v3592 = vmul.f32 %v3561, 0.03125
  %v3593 = vmul.f32 %v3563, 0.03125
  %v3594 = vmul.f32 %v3565, 0.03125
  %v3595 = vmul.f32 %v3567, 0.03125
  %v3596 = vmul.f32 %v3569, 0.03125
  %v3597 = vmul.f32 %v3571, 0.03125
  %v3598 = vmul.f32 %v3573, 0.03125
  %v3599 = vmul.f32 %v3575, 0.03125
  %v3600 = vmul.f32 %v3577, 0.03125
  %v3601 = vmul.f32 %v3579, 0.03125
  %v3602 = vmul.f32 %v3581, 0.03125
  %v3603 = vmul.f32 %v3583, 0.03125
  %v3604 = vmul.f32 %v3585, 0.03125
  %v3605 = vmul.f32 %v3587, 0.03125
  %v3606 = vmul.f32 %v3589, 0.03125
  %v3607 = vmul.f32 %v3591, 0.03125
  %v3608 = vadd.f32 %v3592, 1e-12
  %v3609 = vadd.f32 %v3593, 1e-12
  %v3610 = vadd.f32 %v3594, 1e-12
  %v3611 = vadd.f32 %v3595, 1e-12
  %v3612 = vadd.f32 %v3596, 1e-12
  %v3613 = vadd.f32 %v3597, 1e-12
  %v3614 = vadd.f32 %v3598, 1e-12
  %v3615 = vadd.f32 %v3599, 1e-12
  %v3616 = vadd.f32 %v3600, 1e-12
  %v3617 = vadd.f32 %v3601, 1e-12
  %v3618 = vadd.f32 %v3602, 1e-12
  %v3619 = vadd.f32 %v3603, 1e-12
  %v3620 = vadd.f32 %v3604, 1e-12
  %v3621 = vadd.f32 %v3605, 1e-12
  %v3622 = vadd.f32 %v3606, 1e-12
  %v3623 = vadd.f32 %v3607, 1e-12
  %v3624 = vrsqrt.pop %v3608
  %v3625 = vrsqrt.pop %v3609
  %v3626 = vrsqrt.pop %v3610
  %v3627 = vrsqrt.pop %v3611
  %v3628 = vrsqrt.pop %v3612
  %v3629 = vrsqrt.pop %v3613
  %v3630 = vrsqrt.pop %v3614
  %v3631 = vrsqrt.pop %v3615
  %v3632 = vrsqrt.pop %v3616
  %v3633 = vrsqrt.pop %v3617
  %v3634 = vrsqrt.pop %v3618
  %v3635 = vrsqrt.pop %v3619
  %v3636 = vrsqrt.pop %v3620
  %v3637 = vrsqrt.pop %v3621
  %v3638 = vrsqrt.pop %v3622
  %v3639 = vrsqrt.pop %v3623
  %v3640 = vmul.f32 %v3528, %v3624
  %v3641 = vmul.f32 %v3529, %v3625
  %v3642 = vmul.f32 %v3530, %v3626
  %v3643 = vmul.f32 %v3531, %v3627
  %v3644 = vmul.f32 %v3532, %v3628
  %v3645 = vmul.f32 %v3533, %v3629
  %v3646 = vmul.f32 %v3534, %v3630
  %v3647 = vmul.f32 %v3535, %v3631
  %v3648 = vmul.f32 %v3536, %v3632
  %v3649 = vmul.f32 %v3537, %v3633
  %v3650 = vmul.f32 %v3538, %v3634
  %v3651 = vmul.f32 %v3539, %v3635
  %v3652 = vmul.f32 %v3540, %v3636
  %v3653 = vmul.f32 %v3541, %v3637
  %v3654 = vmul.f32 %v3542, %v3638
  %v3655 = vmul.f32 %v3543, %v3639
  %v3656 = vlaneseq
  %v3657 = vshrl.u32 %v3656, 7
  %v3658 = vsub.s32 6, %v3657
  %v3659 = vrot.slane %v962, %v3658
  %v3660 = vmul.f32 %v3640, %v3659
  %v3661 = vmul.f32 %v3641, %v3659
  %v3662 = vmul.f32 %v3642, %v3659
  %v3663 = vmul.f32 %v3643, %v3659
  %v3664 = vmul.f32 %v3644, %v3659
  %v3665 = vmul.f32 %v3645, %v3659
  %v3666 = vmul.f32 %v3646, %v3659
  %v3667 = vmul.f32 %v3647, %v3659
  %v3668 = vmul.f32 %v3648, %v3659
  %v3669 = vmul.f32 %v3649, %v3659
  %v3670 = vmul.f32 %v3650, %v3659
  %v3671 = vmul.f32 %v3651, %v3659
  %v3672 = vmul.f32 %v3652, %v3659
  %v3673 = vmul.f32 %v3653, %v3659
  %v3674 = vmul.f32 %v3654, %v3659
  %v3675 = vmul.f32 %v3655, %v3659
  %v3676 = vlaneseq
  %v3677 = vshrl.u32 %v3676, 7
  %v3678 = vsub.s32 7, %v3677
  %v3679 = vrot.slane %v962, %v3678
  %v3680 = vadd.f32 %v3660, %v3679
  %v3681 = vadd.f32 %v3661, %v3679
  %v3682 = vadd.f32 %v3662, %v3679
  %v3683 = vadd.f32 %v3663, %v3679
  %v3684 = vadd.f32 %v3664, %v3679
  %v3685 = vadd.f32 %v3665, %v3679
  %v3686 = vadd.f32 %v3666, %v3679
  %v3687 = vadd.f32 %v3667, %v3679
  %v3688 = vadd.f32 %v3668, %v3679
  %v3689 = vadd.f32 %v3669, %v3679
  %v3690 = vadd.f32 %v3670, %v3679
  %v3691 = vadd.f32 %v3671, %v3679
  %v3692 = vadd.f32 %v3672, %v3679
  %v3693 = vadd.f32 %v3673, %v3679
  %v3694 = vadd.f32 %v3674, %v3679
  %v3695 = vadd.f32 %v3675, %v3679
  %s3696 = scalar_lea.vmem %s4, 8
  %v3697 = vld [vmem:[%s3696] sm:$0xff]
  %v3698 = vpack.c.bf16 %v3681, %v3680
  %v3699 = vpack.c.bf16 %v3683, %v3682
  %v3700 = vpack.c.bf16 %v3685, %v3684
  %v3701 = vpack.c.bf16 %v3687, %v3686
  %v3702 = vpack.c.bf16 %v3689, %v3688
  %v3703 = vpack.c.bf16 %v3691, %v3690
  %v3704 = vpack.c.bf16 %v3693, %v3692
  %v3705 = vpack.c.bf16 %v3695, %v3694
  %s3706 = scalar_lea.vmem %s3, 256
  %v3707 = vld [vmem:[%s3706] sm:$0xf]
  %v3708 = vld [vmem:[%s3706 + $0x4] sm:$0xf]
  %v3709 = vld [vmem:[%s3706 + $0x8] sm:$0xf]
  %v3710 = vld [vmem:[%s3706 + $0xc] sm:$0xf]
  %v3711 = vld [vmem:[%s3706 + $0x10] sm:$0xf]
  %v3712 = vld [vmem:[%s3706 + $0x14] sm:$0xf]
  %v3713 = vld [vmem:[%s3706 + $0x18] sm:$0xf]
  %v3714 = vld [vmem:[%s3706 + $0x1c] sm:$0xf]
  %v3715 = vld [vmem:[%s3706 + $0x20] sm:$0xf]
  %v3716 = vld [vmem:[%s3706 + $0x24] sm:$0xf]
  %v3717 = vld [vmem:[%s3706 + $0x28] sm:$0xf]
  %v3718 = vld [vmem:[%s3706 + $0x2c] sm:$0xf]
  %v3719 = vld [vmem:[%s3706 + $0x30] sm:$0xf]
  %v3720 = vld [vmem:[%s3706 + $0x34] sm:$0xf]
  %v3721 = vld [vmem:[%s3706 + $0x38] sm:$0xf]
  %v3722 = vld [vmem:[%s3706 + $0x3c] sm:$0xf]
  %v3723 = vlaneseq
  %v3724 = vshrl.u32 %v3723, 7
  %v3725 = vsub.s32 0, %v3724
  %v3726 = vrot.slane %v3697, %v3725
  %v3743 = vunpack.c.l.b16 %v3707
  %v3744 = vunpack.c.l.b16 %v3708
  %v3745 = vunpack.c.l.b16 %v3709
  %v3746 = vunpack.c.l.b16 %v3710
  %v3747 = vunpack.c.l.b16 %v3711
  %v3748 = vunpack.c.l.b16 %v3712
  %v3749 = vunpack.c.l.b16 %v3713
  %v3750 = vunpack.c.l.b16 %v3714
  %v3751 = vunpack.c.l.b16 %v3715
  %v3752 = vunpack.c.l.b16 %v3716
  %v3753 = vunpack.c.l.b16 %v3717
  %v3754 = vunpack.c.l.b16 %v3718
  %v3755 = vunpack.c.l.b16 %v3719
  %v3756 = vunpack.c.l.b16 %v3720
  %v3757 = vunpack.c.l.b16 %v3721
  %v3758 = vunpack.c.l.b16 %v3722
  %v3759 = vpack.c.b16 %v3744, %v3743
  %v3760 = vpack.c.b16 %v3746, %v3745
  %v3761 = vpack.c.b16 %v3748, %v3747
  %v3762 = vpack.c.b16 %v3750, %v3749
  %v3763 = vpack.c.b16 %v3752, %v3751
  %v3764 = vpack.c.b16 %v3754, %v3753
  %v3765 = vpack.c.b16 %v3756, %v3755
  %v3766 = vpack.c.b16 %v3758, %v3757
  %3775 = vmatprep.subr.bf16.mxu0 0
  %3776 = vmatpush1.bf16.msra.mxu0 %v3766
  %3777 = vmatprep.subr.bf16.mxu0 0
  %3778 = vmatpush1.bf16.msra.mxu0 %v3765
  %3779 = vmatprep.subr.bf16.mxu0 0
  %3780 = vmatpush1.bf16.msra.mxu0 %v3764
  %3781 = vmatprep.subr.bf16.mxu0 0
  %3782 = vmatpush1.bf16.msra.mxu0 %v3763
  %3783 = vmatprep.subr.bf16.mxu0 0
  %3784 = vmatpush1.bf16.msra.mxu0 %v3762
  %3785 = vmatprep.subr.bf16.mxu0 0
  %3786 = vmatpush1.bf16.msra.mxu0 %v3761
  %3787 = vmatprep.subr.bf16.mxu0 0
  %3788 = vmatpush1.bf16.msra.mxu0 %v3760
  %3789 = vmatprep.subr.bf16.mxu0 0
  %3790 = vmatpush1.bf16.msra.mxu0 %v3759
  %3791 = vmatprep.subr.bf16.mxu0 0
  %3792 = vmatpush2.bf16.msra.mxu0 0
  %3793 = vmatprep.subr.bf16.mxu0 0
  %3794 = vmatpush2.bf16.msra.mxu0 0
  %3795 = vmatprep.subr.bf16.mxu0 0
  %3796 = vmatpush2.bf16.msra.mxu0 0
  %3797 = vmatprep.subr.bf16.mxu0 0
  %3798 = vmatpush2.bf16.msra.mxu0 0
  %3799 = vmatprep.subr.bf16.mxu0 0
  %3800 = vmatpush2.bf16.msra.mxu0 0
  %3801 = vmatprep.subr.bf16.mxu0 0
  %3802 = vmatpush2.bf16.msra.mxu0 0
  %3803 = vmatprep.subr.bf16.mxu0 0
  %3804 = vmatpush2.bf16.msra.mxu0 0
  %3805 = vmatprep.subr.bf16.mxu0 0
  %3806 = vmatpush2.bf16.msra.mxu0 0
  %3807 = vmatprep.mubr.bf16.mxu0 0
  %3808 = vmatmul.mubr.bf16.gmra.mxu0 %v3698
  %v3809 = vpop.f32.mrf.mxu0
  %v3810 = vadd.f32 %v3726, %v3809
  %v3811 = vpop.f32.mrf.mxu0
  %v3812 = vpop.f32.mrf.mxu0
  %v3813 = vadd.f32 %v3726, %v3812
  %v3814 = vpop.f32.mrf.mxu0
  %3815 = vmatprep.mubr.bf16.mxu0 0
  %3816 = vmatmul.mubr.bf16.gmra.mxu0 %v3699
  %v3817 = vpop.f32.mrf.mxu0
  %v3818 = vadd.f32 %v3726, %v3817
  %v3819 = vpop.f32.mrf.mxu0
  %v3820 = vpop.f32.mrf.mxu0
  %v3821 = vadd.f32 %v3726, %v3820
  %v3822 = vpop.f32.mrf.mxu0
  %3823 = vmatprep.mubr.bf16.mxu0 0
  %3824 = vmatmul.mubr.bf16.gmra.mxu0 %v3700
  %v3825 = vpop.f32.mrf.mxu0
  %v3826 = vadd.f32 %v3726, %v3825
  %v3827 = vpop.f32.mrf.mxu0
  %v3828 = vpop.f32.mrf.mxu0
  %v3829 = vadd.f32 %v3726, %v3828
  %v3830 = vpop.f32.mrf.mxu0
  %3831 = vmatprep.mubr.bf16.mxu0 0
  %3832 = vmatmul.mubr.bf16.gmra.mxu0 %v3701
  %v3833 = vpop.f32.mrf.mxu0
  %v3834 = vadd.f32 %v3726, %v3833
  %v3835 = vpop.f32.mrf.mxu0
  %v3836 = vpop.f32.mrf.mxu0
  %v3837 = vadd.f32 %v3726, %v3836
  %v3838 = vpop.f32.mrf.mxu0
  %3839 = vmatprep.mubr.bf16.mxu0 0
  %3840 = vmatmul.mubr.bf16.gmra.mxu0 %v3702
  %v3841 = vpop.f32.mrf.mxu0
  %v3842 = vadd.f32 %v3726, %v3841
  %v3843 = vpop.f32.mrf.mxu0
  %v3844 = vpop.f32.mrf.mxu0
  %v3845 = vadd.f32 %v3726, %v3844
  %v3846 = vpop.f32.mrf.mxu0
  %3847 = vmatprep.mubr.bf16.mxu0 0
  %3848 = vmatmul.mubr.bf16.gmra.mxu0 %v3703
  %v3849 = vpop.f32.mrf.mxu0
  %v3850 = vadd.f32 %v3726, %v3849
  %v3851 = vpop.f32.mrf.mxu0
  %v3852 = vpop.f32.mrf.mxu0
  %v3853 = vadd.f32 %v3726, %v3852
  %v3854 = vpop.f32.mrf.mxu0
  %3855 = vmatprep.mubr.bf16.mxu0 0
  %3856 = vmatmul.mubr.bf16.gmra.mxu0 %v3704
  %v3857 = vpop.f32.mrf.mxu0
  %v3858 = vadd.f32 %v3726, %v3857
  %v3859 = vpop.f32.mrf.mxu0
  %v3860 = vpop.f32.mrf.mxu0
  %v3861 = vadd.f32 %v3726, %v3860
  %v3862 = vpop.f32.mrf.mxu0
  %3863 = vmatprep.mubr.bf16.mxu0 0
  %3864 = vmatmul.mubr.bf16.gmra.mxu0 %v3705
  %v3865 = vpop.f32.mrf.mxu0
  %v3866 = vadd.f32 %v3726, %v3865
  %v3867 = vpop.f32.mrf.mxu0
  %v3868 = vpop.f32.mrf.mxu0
  %v3869 = vadd.f32 %v3726, %v3868
  %v3870 = vpop.f32.mrf.mxu0
  %3871 = vdwg.mxu0
  %v3872 = vpack.c.bf16 %v3813, %v3810
  %v3873 = vpack.c.bf16 %v3821, %v3818
  %v3874 = vpack.c.bf16 %v3829, %v3826
  %v3875 = vpack.c.bf16 %v3837, %v3834
  %v3876 = vpack.c.bf16 %v3845, %v3842
  %v3877 = vpack.c.bf16 %v3853, %v3850
  %v3878 = vpack.c.bf16 %v3861, %v3858
  %v3879 = vpack.c.bf16 %v3869, %v3866
  %3888 = vrot.lane.b32.xlu0 %v3872, 96
  %v3889 = vpop.permute.xlu0 %3888
  %3890 = vrot.lane.b32.xlu0 %v3873, 96
  %v3891 = vpop.permute.xlu0 %3890
  %3892 = vrot.lane.b32.xlu0 %v3874, 96
  %v3893 = vpop.permute.xlu0 %3892
  %3894 = vrot.lane.b32.xlu0 %v3875, 96
  %v3895 = vpop.permute.xlu0 %3894
  %3896 = vrot.lane.b32.xlu0 %v3876, 96
  %v3897 = vpop.permute.xlu0 %3896
  %3898 = vrot.lane.b32.xlu0 %v3877, 96
  %v3899 = vpop.permute.xlu0 %3898
  %3900 = vrot.lane.b32.xlu0 %v3878, 96
  %v3901 = vpop.permute.xlu0 %3900
  %3902 = vrot.lane.b32.xlu0 %v3879, 96
  %v3903 = vpop.permute.xlu0 %3902
  %v3905 = vsel %vm1168, %v3872, 0
  %v3908 = vsel %vm1168, %v3873, 0
  %v3911 = vsel %vm1168, %v3874, 0
  %v3914 = vsel %vm1168, %v3875, 0
  %v3917 = vsel %vm1168, %v3876, 0
  %v3920 = vsel %vm1168, %v3877, 0
  %v3923 = vsel %vm1168, %v3878, 0
  %v3926 = vsel %vm1168, %v3879, 0
  %v3929 = vsel %vm1168, %v3889, 0
  %v3932 = vsel %vm1168, %v3891, 0
  %v3935 = vsel %vm1168, %v3893, 0
  %v3938 = vsel %vm1168, %v3895, 0
  %v3941 = vsel %vm1168, %v3897, 0
  %v3944 = vsel %vm1168, %v3899, 0
  %v3947 = vsel %vm1168, %v3901, 0
  %v3950 = vsel %vm1168, %v3903, 0
  %3952 = vmatprep.subr.bf16.mxu0 0
  %3953 = vmatpush1.bf16.xpose.msra.mxu0 %v3950
  %3954 = vmatprep.subr.bf16.mxu0 0
  %3955 = vmatpush1.bf16.xpose.msra.mxu0 %v3947
  %3956 = vmatprep.subr.bf16.mxu0 0
  %3957 = vmatpush1.bf16.xpose.msra.mxu0 %v3944
  %3958 = vmatprep.subr.bf16.mxu0 0
  %3959 = vmatpush1.bf16.xpose.msra.mxu0 %v3941
  %3960 = vmatprep.subr.bf16.mxu0 0
  %3961 = vmatpush1.bf16.xpose.msra.mxu0 %v3938
  %3962 = vmatprep.subr.bf16.mxu0 0
  %3963 = vmatpush1.bf16.xpose.msra.mxu0 %v3935
  %3964 = vmatprep.subr.bf16.mxu0 0
  %3965 = vmatpush1.bf16.xpose.msra.mxu0 %v3932
  %3966 = vmatprep.subr.bf16.mxu0 0
  %3967 = vmatpush1.bf16.xpose.msra.mxu0 %v3929
  %3968 = vmatprep.subr.bf16.mxu0 0
  %3969 = vmatpush2.bf16.xpose.msra.mxu0 0
  %3970 = vmatprep.subr.bf16.mxu0 0
  %3971 = vmatpush2.bf16.xpose.msra.mxu0 0
  %3972 = vmatprep.subr.bf16.mxu0 0
  %3973 = vmatpush2.bf16.xpose.msra.mxu0 0
  %3974 = vmatprep.subr.bf16.mxu0 0
  %3975 = vmatpush2.bf16.xpose.msra.mxu0 0
  %3976 = vmatprep.subr.bf16.mxu0 0
  %3977 = vmatpush2.bf16.xpose.msra.mxu0 0
  %3978 = vmatprep.subr.bf16.mxu0 0
  %3979 = vmatpush2.bf16.xpose.msra.mxu0 0
  %3980 = vmatprep.subr.bf16.mxu0 0
  %3981 = vmatpush2.bf16.xpose.msra.mxu0 0
  %3982 = vmatprep.subr.bf16.mxu0 0
  %3983 = vmatpush2.bf16.xpose.msra.mxu0 0
  %3984 = vmatprep.mubr.bf16.mxu0 0
  %3985 = vmatmul.mubr.bf16.gmra.mxu0 %v3905
  %v3986 = vpop.f32.mrf.mxu0
  %v3987 = vadd.f32 0.0, %v3986
  %v3988 = vpop.f32.mrf.mxu0
  %v3989 = vpop.f32.mrf.mxu0
  %v3990 = vadd.f32 0.0, %v3989
  %v3991 = vpop.f32.mrf.mxu0
  %3992 = vmatprep.mubr.bf16.mxu0 0
  %3993 = vmatmul.mubr.bf16.gmra.mxu0 %v3908
  %v3994 = vpop.f32.mrf.mxu0
  %v3995 = vadd.f32 0.0, %v3994
  %v3996 = vpop.f32.mrf.mxu0
  %v3997 = vpop.f32.mrf.mxu0
  %v3998 = vadd.f32 0.0, %v3997
  %v3999 = vpop.f32.mrf.mxu0
  %4000 = vmatprep.mubr.bf16.mxu0 0
  %4001 = vmatmul.mubr.bf16.gmra.mxu0 %v3911
  %v4002 = vpop.f32.mrf.mxu0
  %v4003 = vadd.f32 0.0, %v4002
  %v4004 = vpop.f32.mrf.mxu0
  %v4005 = vpop.f32.mrf.mxu0
  %v4006 = vadd.f32 0.0, %v4005
  %v4007 = vpop.f32.mrf.mxu0
  %4008 = vmatprep.mubr.bf16.mxu0 0
  %4009 = vmatmul.mubr.bf16.gmra.mxu0 %v3914
  %v4010 = vpop.f32.mrf.mxu0
  %v4011 = vadd.f32 0.0, %v4010
  %v4012 = vpop.f32.mrf.mxu0
  %v4013 = vpop.f32.mrf.mxu0
  %v4014 = vadd.f32 0.0, %v4013
  %v4015 = vpop.f32.mrf.mxu0
  %4016 = vmatprep.mubr.bf16.mxu0 0
  %4017 = vmatmul.mubr.bf16.gmra.mxu0 %v3917
  %v4018 = vpop.f32.mrf.mxu0
  %v4019 = vadd.f32 0.0, %v4018
  %v4020 = vpop.f32.mrf.mxu0
  %v4021 = vpop.f32.mrf.mxu0
  %v4022 = vadd.f32 0.0, %v4021
  %v4023 = vpop.f32.mrf.mxu0
  %4024 = vmatprep.mubr.bf16.mxu0 0
  %4025 = vmatmul.mubr.bf16.gmra.mxu0 %v3920
  %v4026 = vpop.f32.mrf.mxu0
  %v4027 = vadd.f32 0.0, %v4026
  %v4028 = vpop.f32.mrf.mxu0
  %v4029 = vpop.f32.mrf.mxu0
  %v4030 = vadd.f32 0.0, %v4029
  %v4031 = vpop.f32.mrf.mxu0
  %4032 = vmatprep.mubr.bf16.mxu0 0
  %4033 = vmatmul.mubr.bf16.gmra.mxu0 %v3923
  %v4034 = vpop.f32.mrf.mxu0
  %v4035 = vadd.f32 0.0, %v4034
  %v4036 = vpop.f32.mrf.mxu0
  %v4037 = vpop.f32.mrf.mxu0
  %v4038 = vadd.f32 0.0, %v4037
  %v4039 = vpop.f32.mrf.mxu0
  %4040 = vmatprep.mubr.bf16.mxu0 0
  %4041 = vmatmul.mubr.bf16.gmra.mxu0 %v3926
  %v4042 = vpop.f32.mrf.mxu0
  %v4043 = vadd.f32 0.0, %v4042
  %v4044 = vpop.f32.mrf.mxu0
  %v4045 = vpop.f32.mrf.mxu0
  %v4046 = vadd.f32 0.0, %v4045
  %v4047 = vpop.f32.mrf.mxu0
  %4048 = vdwg.mxu0
  %v4049 = vmul.f32 %v3987, 0.25
  %v4050 = vmul.f32 %v3990, 0.25
  %v4051 = vmul.f32 %v3995, 0.25
  %v4052 = vmul.f32 %v3998, 0.25
  %v4053 = vmul.f32 %v4003, 0.25
  %v4054 = vmul.f32 %v4006, 0.25
  %v4055 = vmul.f32 %v4011, 0.25
  %v4056 = vmul.f32 %v4014, 0.25
  %v4057 = vmul.f32 %v4019, 0.25
  %v4058 = vmul.f32 %v4022, 0.25
  %v4059 = vmul.f32 %v4027, 0.25
  %v4060 = vmul.f32 %v4030, 0.25
  %v4061 = vmul.f32 %v4035, 0.25
  %v4062 = vmul.f32 %v4038, 0.25
  %v4063 = vmul.f32 %v4043, 0.25
  %v4064 = vmul.f32 %v4046, 0.25
  %v4065 = vadd.f32 %v4049, %v946
  %v4066 = vadd.f32 %v4050, %v947
  %v4067 = vadd.f32 %v4051, %v948
  %v4068 = vadd.f32 %v4052, %v949
  %v4069 = vadd.f32 %v4053, %v950
  %v4070 = vadd.f32 %v4054, %v951
  %v4071 = vadd.f32 %v4055, %v952
  %v4072 = vadd.f32 %v4056, %v953
  %v4073 = vadd.f32 %v4057, %v954
  %v4074 = vadd.f32 %v4058, %v955
  %v4075 = vadd.f32 %v4059, %v956
  %v4076 = vadd.f32 %v4060, %v957
  %v4077 = vadd.f32 %v4061, %v958
  %v4078 = vadd.f32 %v4062, %v959
  %v4079 = vadd.f32 %v4063, %v960
  %v4080 = vadd.f32 %v4064, %v961
  %4081 = vmax.xlane.f32.xlu0 %v4065
  %v4082 = vpop.xlane.xlu0 %4081
  %4083 = vmax.xlane.f32.xlu0 %v4066
  %v4084 = vpop.xlane.xlu0 %4083
  %4085 = vmax.xlane.f32.xlu0 %v4067
  %v4086 = vpop.xlane.xlu0 %4085
  %4087 = vmax.xlane.f32.xlu0 %v4068
  %v4088 = vpop.xlane.xlu0 %4087
  %4089 = vmax.xlane.f32.xlu0 %v4069
  %v4090 = vpop.xlane.xlu0 %4089
  %4091 = vmax.xlane.f32.xlu0 %v4070
  %v4092 = vpop.xlane.xlu0 %4091
  %4093 = vmax.xlane.f32.xlu0 %v4071
  %v4094 = vpop.xlane.xlu0 %4093
  %4095 = vmax.xlane.f32.xlu0 %v4072
  %v4096 = vpop.xlane.xlu0 %4095
  %4097 = vmax.xlane.f32.xlu0 %v4073
  %v4098 = vpop.xlane.xlu0 %4097
  %4099 = vmax.xlane.f32.xlu0 %v4074
  %v4100 = vpop.xlane.xlu0 %4099
  %4101 = vmax.xlane.f32.xlu0 %v4075
  %v4102 = vpop.xlane.xlu0 %4101
  %4103 = vmax.xlane.f32.xlu0 %v4076
  %v4104 = vpop.xlane.xlu0 %4103
  %4105 = vmax.xlane.f32.xlu0 %v4077
  %v4106 = vpop.xlane.xlu0 %4105
  %4107 = vmax.xlane.f32.xlu0 %v4078
  %v4108 = vpop.xlane.xlu0 %4107
  %4109 = vmax.xlane.f32.xlu0 %v4079
  %v4110 = vpop.xlane.xlu0 %4109
  %4111 = vmax.xlane.f32.xlu0 %v4080
  %v4112 = vpop.xlane.xlu0 %4111
  %v4113 = vsub.f32 %v4065, %v4082
  %v4114 = vsub.f32 %v4066, %v4084
  %v4115 = vsub.f32 %v4067, %v4086
  %v4116 = vsub.f32 %v4068, %v4088
  %v4117 = vsub.f32 %v4069, %v4090
  %v4118 = vsub.f32 %v4070, %v4092
  %v4119 = vsub.f32 %v4071, %v4094
  %v4120 = vsub.f32 %v4072, %v4096
  %v4121 = vsub.f32 %v4073, %v4098
  %v4122 = vsub.f32 %v4074, %v4100
  %v4123 = vsub.f32 %v4075, %v4102
  %v4124 = vsub.f32 %v4076, %v4104
  %v4125 = vsub.f32 %v4077, %v4106
  %v4126 = vsub.f32 %v4078, %v4108
  %v4127 = vsub.f32 %v4079, %v4110
  %v4128 = vsub.f32 %v4080, %v4112
  %v4129 = vmul.f32 %v4113, 1.442695
  %v4130 = vpow.pop %v4129
  %v4131 = vmul.f32 %v4114, 1.442695
  %v4132 = vpow.pop %v4131
  %v4133 = vmul.f32 %v4115, 1.442695
  %v4134 = vpow.pop %v4133
  %v4135 = vmul.f32 %v4116, 1.442695
  %v4136 = vpow.pop %v4135
  %v4137 = vmul.f32 %v4117, 1.442695
  %v4138 = vpow.pop %v4137
  %v4139 = vmul.f32 %v4118, 1.442695
  %v4140 = vpow.pop %v4139
  %v4141 = vmul.f32 %v4119, 1.442695
  %v4142 = vpow.pop %v4141
  %v4143 = vmul.f32 %v4120, 1.442695
  %v4144 = vpow.pop %v4143
  %v4145 = vmul.f32 %v4121, 1.442695
  %v4146 = vpow.pop %v4145
  %v4147 = vmul.f32 %v4122, 1.442695
  %v4148 = vpow.pop %v4147
  %v4149 = vmul.f32 %v4123, 1.442695
  %v4150 = vpow.pop %v4149
  %v4151 = vmul.f32 %v4124, 1.442695
  %v4152 = vpow.pop %v4151
  %v4153 = vmul.f32 %v4125, 1.442695
  %v4154 = vpow.pop %v4153
  %v4155 = vmul.f32 %v4126, 1.442695
  %v4156 = vpow.pop %v4155
  %v4157 = vmul.f32 %v4127, 1.442695
  %v4158 = vpow.pop %v4157
  %v4159 = vmul.f32 %v4128, 1.442695
  %v4160 = vpow.pop %v4159
  %4161 = vadd.xlane.f32.xlu0 %v4130
  %v4162 = vpop.xlane.xlu0 %4161
  %4163 = vadd.xlane.f32.xlu0 %v4132
  %v4164 = vpop.xlane.xlu0 %4163
  %4165 = vadd.xlane.f32.xlu0 %v4134
  %v4166 = vpop.xlane.xlu0 %4165
  %4167 = vadd.xlane.f32.xlu0 %v4136
  %v4168 = vpop.xlane.xlu0 %4167
  %4169 = vadd.xlane.f32.xlu0 %v4138
  %v4170 = vpop.xlane.xlu0 %4169
  %4171 = vadd.xlane.f32.xlu0 %v4140
  %v4172 = vpop.xlane.xlu0 %4171
  %4173 = vadd.xlane.f32.xlu0 %v4142
  %v4174 = vpop.xlane.xlu0 %4173
  %4175 = vadd.xlane.f32.xlu0 %v4144
  %v4176 = vpop.xlane.xlu0 %4175
  %4177 = vadd.xlane.f32.xlu0 %v4146
  %v4178 = vpop.xlane.xlu0 %4177
  %4179 = vadd.xlane.f32.xlu0 %v4148
  %v4180 = vpop.xlane.xlu0 %4179
  %4181 = vadd.xlane.f32.xlu0 %v4150
  %v4182 = vpop.xlane.xlu0 %4181
  %4183 = vadd.xlane.f32.xlu0 %v4152
  %v4184 = vpop.xlane.xlu0 %4183
  %4185 = vadd.xlane.f32.xlu0 %v4154
  %v4186 = vpop.xlane.xlu0 %4185
  %4187 = vadd.xlane.f32.xlu0 %v4156
  %v4188 = vpop.xlane.xlu0 %4187
  %4189 = vadd.xlane.f32.xlu0 %v4158
  %v4190 = vpop.xlane.xlu0 %4189
  %4191 = vadd.xlane.f32.xlu0 %v4160
  %v4192 = vpop.xlane.xlu0 %4191
  %v4193 = vrcp.pop %v4162
  %v4194 = vrcp.pop %v4164
  %v4195 = vrcp.pop %v4166
  %v4196 = vrcp.pop %v4168
  %v4197 = vrcp.pop %v4170
  %v4198 = vrcp.pop %v4172
  %v4199 = vrcp.pop %v4174
  %v4200 = vrcp.pop %v4176
  %v4201 = vrcp.pop %v4178
  %v4202 = vrcp.pop %v4180
  %v4203 = vrcp.pop %v4182
  %v4204 = vrcp.pop %v4184
  %v4205 = vrcp.pop %v4186
  %v4206 = vrcp.pop %v4188
  %v4207 = vrcp.pop %v4190
  %v4208 = vrcp.pop %v4192
  %v4209 = vmul.f32 %v4130, %v4193
  %v4210 = vmul.f32 %v4132, %v4194
  %v4211 = vmul.f32 %v4134, %v4195
  %v4212 = vmul.f32 %v4136, %v4196
  %v4213 = vmul.f32 %v4138, %v4197
  %v4214 = vmul.f32 %v4140, %v4198
  %v4215 = vmul.f32 %v4142, %v4199
  %v4216 = vmul.f32 %v4144, %v4200
  %v4217 = vmul.f32 %v4146, %v4201
  %v4218 = vmul.f32 %v4148, %v4202
  %v4219 = vmul.f32 %v4150, %v4203
  %v4220 = vmul.f32 %v4152, %v4204
  %v4221 = vmul.f32 %v4154, %v4205
  %v4222 = vmul.f32 %v4156, %v4206
  %v4223 = vmul.f32 %v4158, %v4207
  %v4224 = vmul.f32 %v4160, %v4208
  %v4225 = vpack.c.bf16 %v4210, %v4209
  %v4226 = vpack.c.bf16 %v4212, %v4211
  %v4227 = vpack.c.bf16 %v4214, %v4213
  %v4228 = vpack.c.bf16 %v4216, %v4215
  %v4229 = vpack.c.bf16 %v4218, %v4217
  %v4230 = vpack.c.bf16 %v4220, %v4219
  %v4231 = vpack.c.bf16 %v4222, %v4221
  %v4232 = vpack.c.bf16 %v4224, %v4223
  %4233 = vrot.lane.b32.xlu0 %v3872, 64
  %v4234 = vpop.permute.xlu0 %4233
  %4235 = vrot.lane.b32.xlu0 %v3873, 64
  %v4236 = vpop.permute.xlu0 %4235
  %4237 = vrot.lane.b32.xlu0 %v3874, 64
  %v4238 = vpop.permute.xlu0 %4237
  %4239 = vrot.lane.b32.xlu0 %v3875, 64
  %v4240 = vpop.permute.xlu0 %4239
  %4241 = vrot.lane.b32.xlu0 %v3876, 64
  %v4242 = vpop.permute.xlu0 %4241
  %4243 = vrot.lane.b32.xlu0 %v3877, 64
  %v4244 = vpop.permute.xlu0 %4243
  %4245 = vrot.lane.b32.xlu0 %v3878, 64
  %v4246 = vpop.permute.xlu0 %4245
  %4247 = vrot.lane.b32.xlu0 %v3879, 64
  %v4248 = vpop.permute.xlu0 %4247
  %4257 = vmatprep.subr.bf16.mxu0 0
  %4258 = vmatpush1.bf16.msra.mxu0 %v4248
  %4259 = vmatprep.subr.bf16.mxu0 0
  %4260 = vmatpush1.bf16.msra.mxu0 %v4246
  %4261 = vmatprep.subr.bf16.mxu0 0
  %4262 = vmatpush1.bf16.msra.mxu0 %v4244
  %4263 = vmatprep.subr.bf16.mxu0 0
  %4264 = vmatpush1.bf16.msra.mxu0 %v4242
  %4265 = vmatprep.subr.bf16.mxu0 0
  %4266 = vmatpush1.bf16.msra.mxu0 %v4240
  %4267 = vmatprep.subr.bf16.mxu0 0
  %4268 = vmatpush1.bf16.msra.mxu0 %v4238
  %4269 = vmatprep.subr.bf16.mxu0 0
  %4270 = vmatpush1.bf16.msra.mxu0 %v4236
  %4271 = vmatprep.subr.bf16.mxu0 0
  %4272 = vmatpush1.bf16.msra.mxu0 %v4234
  %4273 = vmatprep.subr.bf16.mxu0 0
  %4274 = vmatpush2.bf16.msra.mxu0 0
  %4275 = vmatprep.subr.bf16.mxu0 0
  %4276 = vmatpush2.bf16.msra.mxu0 0
  %4277 = vmatprep.subr.bf16.mxu0 0
  %4278 = vmatpush2.bf16.msra.mxu0 0
  %4279 = vmatprep.subr.bf16.mxu0 0
  %4280 = vmatpush2.bf16.msra.mxu0 0
  %4281 = vmatprep.subr.bf16.mxu0 0
  %4282 = vmatpush2.bf16.msra.mxu0 0
  %4283 = vmatprep.subr.bf16.mxu0 0
  %4284 = vmatpush2.bf16.msra.mxu0 0
  %4285 = vmatprep.subr.bf16.mxu0 0
  %4286 = vmatpush2.bf16.msra.mxu0 0
  %4287 = vmatprep.subr.bf16.mxu0 0
  %4288 = vmatpush2.bf16.msra.mxu0 0
  %4289 = vmatprep.mubr.bf16.mxu0 0
  %4290 = vmatmul.mubr.bf16.gmra.mxu0 %v4225
  %v4291 = vpop.f32.mrf.mxu0
  %v4292 = vadd.f32 0.0, %v4291
  %v4293 = vpop.f32.mrf.mxu0
  %v4294 = vpop.f32.mrf.mxu0
  %v4295 = vadd.f32 0.0, %v4294
  %v4296 = vpop.f32.mrf.mxu0
  %4297 = vmatprep.mubr.bf16.mxu0 0
  %4298 = vmatmul.mubr.bf16.gmra.mxu0 %v4226
  %v4299 = vpop.f32.mrf.mxu0
  %v4300 = vadd.f32 0.0, %v4299
  %v4301 = vpop.f32.mrf.mxu0
  %v4302 = vpop.f32.mrf.mxu0
  %v4303 = vadd.f32 0.0, %v4302
  %v4304 = vpop.f32.mrf.mxu0
  %4305 = vmatprep.mubr.bf16.mxu0 0
  %4306 = vmatmul.mubr.bf16.gmra.mxu0 %v4227
  %v4307 = vpop.f32.mrf.mxu0
  %v4308 = vadd.f32 0.0, %v4307
  %v4309 = vpop.f32.mrf.mxu0
  %v4310 = vpop.f32.mrf.mxu0
  %v4311 = vadd.f32 0.0, %v4310
  %v4312 = vpop.f32.mrf.mxu0
  %4313 = vmatprep.mubr.bf16.mxu0 0
  %4314 = vmatmul.mubr.bf16.gmra.mxu0 %v4228
  %v4315 = vpop.f32.mrf.mxu0
  %v4316 = vadd.f32 0.0, %v4315
  %v4317 = vpop.f32.mrf.mxu0
  %v4318 = vpop.f32.mrf.mxu0
  %v4319 = vadd.f32 0.0, %v4318
  %v4320 = vpop.f32.mrf.mxu0
  %4321 = vmatprep.mubr.bf16.mxu0 0
  %4322 = vmatmul.mubr.bf16.gmra.mxu0 %v4229
  %v4323 = vpop.f32.mrf.mxu0
  %v4324 = vadd.f32 0.0, %v4323
  %v4325 = vpop.f32.mrf.mxu0
  %v4326 = vpop.f32.mrf.mxu0
  %v4327 = vadd.f32 0.0, %v4326
  %v4328 = vpop.f32.mrf.mxu0
  %4329 = vmatprep.mubr.bf16.mxu0 0
  %4330 = vmatmul.mubr.bf16.gmra.mxu0 %v4230
  %v4331 = vpop.f32.mrf.mxu0
  %v4332 = vadd.f32 0.0, %v4331
  %v4333 = vpop.f32.mrf.mxu0
  %v4334 = vpop.f32.mrf.mxu0
  %v4335 = vadd.f32 0.0, %v4334
  %v4336 = vpop.f32.mrf.mxu0
  %4337 = vmatprep.mubr.bf16.mxu0 0
  %4338 = vmatmul.mubr.bf16.gmra.mxu0 %v4231
  %v4339 = vpop.f32.mrf.mxu0
  %v4340 = vadd.f32 0.0, %v4339
  %v4341 = vpop.f32.mrf.mxu0
  %v4342 = vpop.f32.mrf.mxu0
  %v4343 = vadd.f32 0.0, %v4342
  %v4344 = vpop.f32.mrf.mxu0
  %4345 = vmatprep.mubr.bf16.mxu0 0
  %4346 = vmatmul.mubr.bf16.gmra.mxu0 %v4232
  %v4347 = vpop.f32.mrf.mxu0
  %v4348 = vadd.f32 0.0, %v4347
  %v4349 = vpop.f32.mrf.mxu0
  %v4350 = vpop.f32.mrf.mxu0
  %v4351 = vadd.f32 0.0, %v4350
  %v4352 = vpop.f32.mrf.mxu0
  %4353 = vdwg.mxu0
  %4354 = vrot.lane.b32.xlu0 %v3872, 112
  %v4355 = vpop.permute.xlu0 %4354
  %4356 = vrot.lane.b32.xlu0 %v3873, 112
  %v4357 = vpop.permute.xlu0 %4356
  %4358 = vrot.lane.b32.xlu0 %v3874, 112
  %v4359 = vpop.permute.xlu0 %4358
  %4360 = vrot.lane.b32.xlu0 %v3875, 112
  %v4361 = vpop.permute.xlu0 %4360
  %4362 = vrot.lane.b32.xlu0 %v3876, 112
  %v4363 = vpop.permute.xlu0 %4362
  %4364 = vrot.lane.b32.xlu0 %v3877, 112
  %v4365 = vpop.permute.xlu0 %4364
  %4366 = vrot.lane.b32.xlu0 %v3878, 112
  %v4367 = vpop.permute.xlu0 %4366
  %4368 = vrot.lane.b32.xlu0 %v3879, 112
  %v4369 = vpop.permute.xlu0 %4368
  %4370 = vrot.lane.b32.xlu0 %v3872, 80
  %v4371 = vpop.permute.xlu0 %4370
  %4372 = vrot.lane.b32.xlu0 %v3873, 80
  %v4373 = vpop.permute.xlu0 %4372
  %4374 = vrot.lane.b32.xlu0 %v3874, 80
  %v4375 = vpop.permute.xlu0 %4374
  %4376 = vrot.lane.b32.xlu0 %v3875, 80
  %v4377 = vpop.permute.xlu0 %4376
  %4378 = vrot.lane.b32.xlu0 %v3876, 80
  %v4379 = vpop.permute.xlu0 %4378
  %4380 = vrot.lane.b32.xlu0 %v3877, 80
  %v4381 = vpop.permute.xlu0 %4380
  %4382 = vrot.lane.b32.xlu0 %v3878, 80
  %v4383 = vpop.permute.xlu0 %4382
  %4384 = vrot.lane.b32.xlu0 %v3879, 80
  %v4385 = vpop.permute.xlu0 %4384
  %v4387 = vsel %vm1168, %v4355, 0
  %v4390 = vsel %vm1168, %v4357, 0
  %v4393 = vsel %vm1168, %v4359, 0
  %v4396 = vsel %vm1168, %v4361, 0
  %v4399 = vsel %vm1168, %v4363, 0
  %v4402 = vsel %vm1168, %v4365, 0
  %v4405 = vsel %vm1168, %v4367, 0
  %v4408 = vsel %vm1168, %v4369, 0
  %v4411 = vsel %vm1168, %v4371, 0
  %v4414 = vsel %vm1168, %v4373, 0
  %v4417 = vsel %vm1168, %v4375, 0
  %v4420 = vsel %vm1168, %v4377, 0
  %v4423 = vsel %vm1168, %v4379, 0
  %v4426 = vsel %vm1168, %v4381, 0
  %v4429 = vsel %vm1168, %v4383, 0
  %v4432 = vsel %vm1168, %v4385, 0
  %4434 = vmatprep.subr.bf16.mxu0 0
  %4435 = vmatpush1.bf16.xpose.msra.mxu0 %v4432
  %4436 = vmatprep.subr.bf16.mxu0 0
  %4437 = vmatpush1.bf16.xpose.msra.mxu0 %v4429
  %4438 = vmatprep.subr.bf16.mxu0 0
  %4439 = vmatpush1.bf16.xpose.msra.mxu0 %v4426
  %4440 = vmatprep.subr.bf16.mxu0 0
  %4441 = vmatpush1.bf16.xpose.msra.mxu0 %v4423
  %4442 = vmatprep.subr.bf16.mxu0 0
  %4443 = vmatpush1.bf16.xpose.msra.mxu0 %v4420
  %4444 = vmatprep.subr.bf16.mxu0 0
  %4445 = vmatpush1.bf16.xpose.msra.mxu0 %v4417
  %4446 = vmatprep.subr.bf16.mxu0 0
  %4447 = vmatpush1.bf16.xpose.msra.mxu0 %v4414
  %4448 = vmatprep.subr.bf16.mxu0 0
  %4449 = vmatpush1.bf16.xpose.msra.mxu0 %v4411
  %4450 = vmatprep.subr.bf16.mxu0 0
  %4451 = vmatpush2.bf16.xpose.msra.mxu0 0
  %4452 = vmatprep.subr.bf16.mxu0 0
  %4453 = vmatpush2.bf16.xpose.msra.mxu0 0
  %4454 = vmatprep.subr.bf16.mxu0 0
  %4455 = vmatpush2.bf16.xpose.msra.mxu0 0
  %4456 = vmatprep.subr.bf16.mxu0 0
  %4457 = vmatpush2.bf16.xpose.msra.mxu0 0
  %4458 = vmatprep.subr.bf16.mxu0 0
  %4459 = vmatpush2.bf16.xpose.msra.mxu0 0
  %4460 = vmatprep.subr.bf16.mxu0 0
  %4461 = vmatpush2.bf16.xpose.msra.mxu0 0
  %4462 = vmatprep.subr.bf16.mxu0 0
  %4463 = vmatpush2.bf16.xpose.msra.mxu0 0
  %4464 = vmatprep.subr.bf16.mxu0 0
  %4465 = vmatpush2.bf16.xpose.msra.mxu0 0
  %4466 = vmatprep.mubr.bf16.mxu0 0
  %4467 = vmatmul.mubr.bf16.gmra.mxu0 %v4387
  %v4468 = vpop.f32.mrf.mxu0
  %v4469 = vadd.f32 0.0, %v4468
  %v4470 = vpop.f32.mrf.mxu0
  %v4471 = vpop.f32.mrf.mxu0
  %v4472 = vadd.f32 0.0, %v4471
  %v4473 = vpop.f32.mrf.mxu0
  %4474 = vmatprep.mubr.bf16.mxu0 0
  %4475 = vmatmul.mubr.bf16.gmra.mxu0 %v4390
  %v4476 = vpop.f32.mrf.mxu0
  %v4477 = vadd.f32 0.0, %v4476
  %v4478 = vpop.f32.mrf.mxu0
  %v4479 = vpop.f32.mrf.mxu0
  %v4480 = vadd.f32 0.0, %v4479
  %v4481 = vpop.f32.mrf.mxu0
  %4482 = vmatprep.mubr.bf16.mxu0 0
  %4483 = vmatmul.mubr.bf16.gmra.mxu0 %v4393
  %v4484 = vpop.f32.mrf.mxu0
  %v4485 = vadd.f32 0.0, %v4484
  %v4486 = vpop.f32.mrf.mxu0
  %v4487 = vpop.f32.mrf.mxu0
  %v4488 = vadd.f32 0.0, %v4487
  %v4489 = vpop.f32.mrf.mxu0
  %4490 = vmatprep.mubr.bf16.mxu0 0
  %4491 = vmatmul.mubr.bf16.gmra.mxu0 %v4396
  %v4492 = vpop.f32.mrf.mxu0
  %v4493 = vadd.f32 0.0, %v4492
  %v4494 = vpop.f32.mrf.mxu0
  %v4495 = vpop.f32.mrf.mxu0
  %v4496 = vadd.f32 0.0, %v4495
  %v4497 = vpop.f32.mrf.mxu0
  %4498 = vmatprep.mubr.bf16.mxu0 0
  %4499 = vmatmul.mubr.bf16.gmra.mxu0 %v4399
  %v4500 = vpop.f32.mrf.mxu0
  %v4501 = vadd.f32 0.0, %v4500
  %v4502 = vpop.f32.mrf.mxu0
  %v4503 = vpop.f32.mrf.mxu0
  %v4504 = vadd.f32 0.0, %v4503
  %v4505 = vpop.f32.mrf.mxu0
  %4506 = vmatprep.mubr.bf16.mxu0 0
  %4507 = vmatmul.mubr.bf16.gmra.mxu0 %v4402
  %v4508 = vpop.f32.mrf.mxu0
  %v4509 = vadd.f32 0.0, %v4508
  %v4510 = vpop.f32.mrf.mxu0
  %v4511 = vpop.f32.mrf.mxu0
  %v4512 = vadd.f32 0.0, %v4511
  %v4513 = vpop.f32.mrf.mxu0
  %4514 = vmatprep.mubr.bf16.mxu0 0
  %4515 = vmatmul.mubr.bf16.gmra.mxu0 %v4405
  %v4516 = vpop.f32.mrf.mxu0
  %v4517 = vadd.f32 0.0, %v4516
  %v4518 = vpop.f32.mrf.mxu0
  %v4519 = vpop.f32.mrf.mxu0
  %v4520 = vadd.f32 0.0, %v4519
  %v4521 = vpop.f32.mrf.mxu0
  %4522 = vmatprep.mubr.bf16.mxu0 0
  %4523 = vmatmul.mubr.bf16.gmra.mxu0 %v4408
  %v4524 = vpop.f32.mrf.mxu0
  %v4525 = vadd.f32 0.0, %v4524
  %v4526 = vpop.f32.mrf.mxu0
  %v4527 = vpop.f32.mrf.mxu0
  %v4528 = vadd.f32 0.0, %v4527
  %v4529 = vpop.f32.mrf.mxu0
  %4530 = vdwg.mxu0
  %v4531 = vmul.f32 %v4469, 0.25
  %v4532 = vmul.f32 %v4472, 0.25
  %v4533 = vmul.f32 %v4477, 0.25
  %v4534 = vmul.f32 %v4480, 0.25
  %v4535 = vmul.f32 %v4485, 0.25
  %v4536 = vmul.f32 %v4488, 0.25
  %v4537 = vmul.f32 %v4493, 0.25
  %v4538 = vmul.f32 %v4496, 0.25
  %v4539 = vmul.f32 %v4501, 0.25
  %v4540 = vmul.f32 %v4504, 0.25
  %v4541 = vmul.f32 %v4509, 0.25
  %v4542 = vmul.f32 %v4512, 0.25
  %v4543 = vmul.f32 %v4517, 0.25
  %v4544 = vmul.f32 %v4520, 0.25
  %v4545 = vmul.f32 %v4525, 0.25
  %v4546 = vmul.f32 %v4528, 0.25
  %v4547 = vadd.f32 %v4531, %v946
  %v4548 = vadd.f32 %v4532, %v947
  %v4549 = vadd.f32 %v4533, %v948
  %v4550 = vadd.f32 %v4534, %v949
  %v4551 = vadd.f32 %v4535, %v950
  %v4552 = vadd.f32 %v4536, %v951
  %v4553 = vadd.f32 %v4537, %v952
  %v4554 = vadd.f32 %v4538, %v953
  %v4555 = vadd.f32 %v4539, %v954
  %v4556 = vadd.f32 %v4540, %v955
  %v4557 = vadd.f32 %v4541, %v956
  %v4558 = vadd.f32 %v4542, %v957
  %v4559 = vadd.f32 %v4543, %v958
  %v4560 = vadd.f32 %v4544, %v959
  %v4561 = vadd.f32 %v4545, %v960
  %v4562 = vadd.f32 %v4546, %v961
  %4563 = vmax.xlane.f32.xlu0 %v4547
  %v4564 = vpop.xlane.xlu0 %4563
  %4565 = vmax.xlane.f32.xlu0 %v4548
  %v4566 = vpop.xlane.xlu0 %4565
  %4567 = vmax.xlane.f32.xlu0 %v4549
  %v4568 = vpop.xlane.xlu0 %4567
  %4569 = vmax.xlane.f32.xlu0 %v4550
  %v4570 = vpop.xlane.xlu0 %4569
  %4571 = vmax.xlane.f32.xlu0 %v4551
  %v4572 = vpop.xlane.xlu0 %4571
  %4573 = vmax.xlane.f32.xlu0 %v4552
  %v4574 = vpop.xlane.xlu0 %4573
  %4575 = vmax.xlane.f32.xlu0 %v4553
  %v4576 = vpop.xlane.xlu0 %4575
  %4577 = vmax.xlane.f32.xlu0 %v4554
  %v4578 = vpop.xlane.xlu0 %4577
  %4579 = vmax.xlane.f32.xlu0 %v4555
  %v4580 = vpop.xlane.xlu0 %4579
  %4581 = vmax.xlane.f32.xlu0 %v4556
  %v4582 = vpop.xlane.xlu0 %4581
  %4583 = vmax.xlane.f32.xlu0 %v4557
  %v4584 = vpop.xlane.xlu0 %4583
  %4585 = vmax.xlane.f32.xlu0 %v4558
  %v4586 = vpop.xlane.xlu0 %4585
  %4587 = vmax.xlane.f32.xlu0 %v4559
  %v4588 = vpop.xlane.xlu0 %4587
  %4589 = vmax.xlane.f32.xlu0 %v4560
  %v4590 = vpop.xlane.xlu0 %4589
  %4591 = vmax.xlane.f32.xlu0 %v4561
  %v4592 = vpop.xlane.xlu0 %4591
  %4593 = vmax.xlane.f32.xlu0 %v4562
  %v4594 = vpop.xlane.xlu0 %4593
  %v4595 = vsub.f32 %v4547, %v4564
  %v4596 = vsub.f32 %v4548, %v4566
  %v4597 = vsub.f32 %v4549, %v4568
  %v4598 = vsub.f32 %v4550, %v4570
  %v4599 = vsub.f32 %v4551, %v4572
  %v4600 = vsub.f32 %v4552, %v4574
  %v4601 = vsub.f32 %v4553, %v4576
  %v4602 = vsub.f32 %v4554, %v4578
  %v4603 = vsub.f32 %v4555, %v4580
  %v4604 = vsub.f32 %v4556, %v4582
  %v4605 = vsub.f32 %v4557, %v4584
  %v4606 = vsub.f32 %v4558, %v4586
  %v4607 = vsub.f32 %v4559, %v4588
  %v4608 = vsub.f32 %v4560, %v4590
  %v4609 = vsub.f32 %v4561, %v4592
  %v4610 = vsub.f32 %v4562, %v4594
  %v4611 = vmul.f32 %v4595, 1.442695
  %v4612 = vpow.pop %v4611
  %v4613 = vmul.f32 %v4596, 1.442695
  %v4614 = vpow.pop %v4613
  %v4615 = vmul.f32 %v4597, 1.442695
  %v4616 = vpow.pop %v4615
  %v4617 = vmul.f32 %v4598, 1.442695
  %v4618 = vpow.pop %v4617
  %v4619 = vmul.f32 %v4599, 1.442695
  %v4620 = vpow.pop %v4619
  %v4621 = vmul.f32 %v4600, 1.442695
  %v4622 = vpow.pop %v4621
  %v4623 = vmul.f32 %v4601, 1.442695
  %v4624 = vpow.pop %v4623
  %v4625 = vmul.f32 %v4602, 1.442695
  %v4626 = vpow.pop %v4625
  %v4627 = vmul.f32 %v4603, 1.442695
  %v4628 = vpow.pop %v4627
  %v4629 = vmul.f32 %v4604, 1.442695
  %v4630 = vpow.pop %v4629
  %v4631 = vmul.f32 %v4605, 1.442695
  %v4632 = vpow.pop %v4631
  %v4633 = vmul.f32 %v4606, 1.442695
  %v4634 = vpow.pop %v4633
  %v4635 = vmul.f32 %v4607, 1.442695
  %v4636 = vpow.pop %v4635
  %v4637 = vmul.f32 %v4608, 1.442695
  %v4638 = vpow.pop %v4637
  %v4639 = vmul.f32 %v4609, 1.442695
  %v4640 = vpow.pop %v4639
  %v4641 = vmul.f32 %v4610, 1.442695
  %v4642 = vpow.pop %v4641
  %4643 = vadd.xlane.f32.xlu0 %v4612
  %v4644 = vpop.xlane.xlu0 %4643
  %4645 = vadd.xlane.f32.xlu0 %v4614
  %v4646 = vpop.xlane.xlu0 %4645
  %4647 = vadd.xlane.f32.xlu0 %v4616
  %v4648 = vpop.xlane.xlu0 %4647
  %4649 = vadd.xlane.f32.xlu0 %v4618
  %v4650 = vpop.xlane.xlu0 %4649
  %4651 = vadd.xlane.f32.xlu0 %v4620
  %v4652 = vpop.xlane.xlu0 %4651
  %4653 = vadd.xlane.f32.xlu0 %v4622
  %v4654 = vpop.xlane.xlu0 %4653
  %4655 = vadd.xlane.f32.xlu0 %v4624
  %v4656 = vpop.xlane.xlu0 %4655
  %4657 = vadd.xlane.f32.xlu0 %v4626
  %v4658 = vpop.xlane.xlu0 %4657
  %4659 = vadd.xlane.f32.xlu0 %v4628
  %v4660 = vpop.xlane.xlu0 %4659
  %4661 = vadd.xlane.f32.xlu0 %v4630
  %v4662 = vpop.xlane.xlu0 %4661
  %4663 = vadd.xlane.f32.xlu0 %v4632
  %v4664 = vpop.xlane.xlu0 %4663
  %4665 = vadd.xlane.f32.xlu0 %v4634
  %v4666 = vpop.xlane.xlu0 %4665
  %4667 = vadd.xlane.f32.xlu0 %v4636
  %v4668 = vpop.xlane.xlu0 %4667
  %4669 = vadd.xlane.f32.xlu0 %v4638
  %v4670 = vpop.xlane.xlu0 %4669
  %4671 = vadd.xlane.f32.xlu0 %v4640
  %v4672 = vpop.xlane.xlu0 %4671
  %4673 = vadd.xlane.f32.xlu0 %v4642
  %v4674 = vpop.xlane.xlu0 %4673
  %v4675 = vrcp.pop %v4644
  %v4676 = vrcp.pop %v4646
  %v4677 = vrcp.pop %v4648
  %v4678 = vrcp.pop %v4650
  %v4679 = vrcp.pop %v4652
  %v4680 = vrcp.pop %v4654
  %v4681 = vrcp.pop %v4656
  %v4682 = vrcp.pop %v4658
  %v4683 = vrcp.pop %v4660
  %v4684 = vrcp.pop %v4662
  %v4685 = vrcp.pop %v4664
  %v4686 = vrcp.pop %v4666
  %v4687 = vrcp.pop %v4668
  %v4688 = vrcp.pop %v4670
  %v4689 = vrcp.pop %v4672
  %v4690 = vrcp.pop %v4674
  %v4691 = vmul.f32 %v4612, %v4675
  %v4692 = vmul.f32 %v4614, %v4676
  %v4693 = vmul.f32 %v4616, %v4677
  %v4694 = vmul.f32 %v4618, %v4678
  %v4695 = vmul.f32 %v4620, %v4679
  %v4696 = vmul.f32 %v4622, %v4680
  %v4697 = vmul.f32 %v4624, %v4681
  %v4698 = vmul.f32 %v4626, %v4682
  %v4699 = vmul.f32 %v4628, %v4683
  %v4700 = vmul.f32 %v4630, %v4684
  %v4701 = vmul.f32 %v4632, %v4685
  %v4702 = vmul.f32 %v4634, %v4686
  %v4703 = vmul.f32 %v4636, %v4687
  %v4704 = vmul.f32 %v4638, %v4688
  %v4705 = vmul.f32 %v4640, %v4689
  %v4706 = vmul.f32 %v4642, %v4690
  %v4707 = vpack.c.bf16 %v4692, %v4691
  %v4708 = vpack.c.bf16 %v4694, %v4693
  %v4709 = vpack.c.bf16 %v4696, %v4695
  %v4710 = vpack.c.bf16 %v4698, %v4697
  %v4711 = vpack.c.bf16 %v4700, %v4699
  %v4712 = vpack.c.bf16 %v4702, %v4701
  %v4713 = vpack.c.bf16 %v4704, %v4703
  %v4714 = vpack.c.bf16 %v4706, %v4705
  %4715 = vrot.lane.b32.xlu0 %v3872, 48
  %v4716 = vpop.permute.xlu0 %4715
  %4717 = vrot.lane.b32.xlu0 %v3873, 48
  %v4718 = vpop.permute.xlu0 %4717
  %4719 = vrot.lane.b32.xlu0 %v3874, 48
  %v4720 = vpop.permute.xlu0 %4719
  %4721 = vrot.lane.b32.xlu0 %v3875, 48
  %v4722 = vpop.permute.xlu0 %4721
  %4723 = vrot.lane.b32.xlu0 %v3876, 48
  %v4724 = vpop.permute.xlu0 %4723
  %4725 = vrot.lane.b32.xlu0 %v3877, 48
  %v4726 = vpop.permute.xlu0 %4725
  %4727 = vrot.lane.b32.xlu0 %v3878, 48
  %v4728 = vpop.permute.xlu0 %4727
  %4729 = vrot.lane.b32.xlu0 %v3879, 48
  %v4730 = vpop.permute.xlu0 %4729
  %4739 = vmatprep.subr.bf16.mxu0 0
  %4740 = vmatpush1.bf16.msra.mxu0 %v4730
  %4741 = vmatprep.subr.bf16.mxu0 0
  %4742 = vmatpush1.bf16.msra.mxu0 %v4728
  %4743 = vmatprep.subr.bf16.mxu0 0
  %4744 = vmatpush1.bf16.msra.mxu0 %v4726
  %4745 = vmatprep.subr.bf16.mxu0 0
  %4746 = vmatpush1.bf16.msra.mxu0 %v4724
  %4747 = vmatprep.subr.bf16.mxu0 0
  %4748 = vmatpush1.bf16.msra.mxu0 %v4722
  %4749 = vmatprep.subr.bf16.mxu0 0
  %4750 = vmatpush1.bf16.msra.mxu0 %v4720
  %4751 = vmatprep.subr.bf16.mxu0 0
  %4752 = vmatpush1.bf16.msra.mxu0 %v4718
  %4753 = vmatprep.subr.bf16.mxu0 0
  %4754 = vmatpush1.bf16.msra.mxu0 %v4716
  %4755 = vmatprep.subr.bf16.mxu0 0
  %4756 = vmatpush2.bf16.msra.mxu0 0
  %4757 = vmatprep.subr.bf16.mxu0 0
  %4758 = vmatpush2.bf16.msra.mxu0 0
  %4759 = vmatprep.subr.bf16.mxu0 0
  %4760 = vmatpush2.bf16.msra.mxu0 0
  %4761 = vmatprep.subr.bf16.mxu0 0
  %4762 = vmatpush2.bf16.msra.mxu0 0
  %4763 = vmatprep.subr.bf16.mxu0 0
  %4764 = vmatpush2.bf16.msra.mxu0 0
  %4765 = vmatprep.subr.bf16.mxu0 0
  %4766 = vmatpush2.bf16.msra.mxu0 0
  %4767 = vmatprep.subr.bf16.mxu0 0
  %4768 = vmatpush2.bf16.msra.mxu0 0
  %4769 = vmatprep.subr.bf16.mxu0 0
  %4770 = vmatpush2.bf16.msra.mxu0 0
  %4771 = vmatprep.mubr.bf16.mxu0 0
  %4772 = vmatmul.mubr.bf16.gmra.mxu0 %v4707
  %v4773 = vpop.f32.mrf.mxu0
  %v4774 = vadd.f32 0.0, %v4773
  %v4775 = vpop.f32.mrf.mxu0
  %v4776 = vpop.f32.mrf.mxu0
  %v4777 = vadd.f32 0.0, %v4776
  %v4778 = vpop.f32.mrf.mxu0
  %4779 = vmatprep.mubr.bf16.mxu0 0
  %4780 = vmatmul.mubr.bf16.gmra.mxu0 %v4708
  %v4781 = vpop.f32.mrf.mxu0
  %v4782 = vadd.f32 0.0, %v4781
  %v4783 = vpop.f32.mrf.mxu0
  %v4784 = vpop.f32.mrf.mxu0
  %v4785 = vadd.f32 0.0, %v4784
  %v4786 = vpop.f32.mrf.mxu0
  %4787 = vmatprep.mubr.bf16.mxu0 0
  %4788 = vmatmul.mubr.bf16.gmra.mxu0 %v4709
  %v4789 = vpop.f32.mrf.mxu0
  %v4790 = vadd.f32 0.0, %v4789
  %v4791 = vpop.f32.mrf.mxu0
  %v4792 = vpop.f32.mrf.mxu0
  %v4793 = vadd.f32 0.0, %v4792
  %v4794 = vpop.f32.mrf.mxu0
  %4795 = vmatprep.mubr.bf16.mxu0 0
  %4796 = vmatmul.mubr.bf16.gmra.mxu0 %v4710
  %v4797 = vpop.f32.mrf.mxu0
  %v4798 = vadd.f32 0.0, %v4797
  %v4799 = vpop.f32.mrf.mxu0
  %v4800 = vpop.f32.mrf.mxu0
  %v4801 = vadd.f32 0.0, %v4800
  %v4802 = vpop.f32.mrf.mxu0
  %4803 = vmatprep.mubr.bf16.mxu0 0
  %4804 = vmatmul.mubr.bf16.gmra.mxu0 %v4711
  %v4805 = vpop.f32.mrf.mxu0
  %v4806 = vadd.f32 0.0, %v4805
  %v4807 = vpop.f32.mrf.mxu0
  %v4808 = vpop.f32.mrf.mxu0
  %v4809 = vadd.f32 0.0, %v4808
  %v4810 = vpop.f32.mrf.mxu0
  %4811 = vmatprep.mubr.bf16.mxu0 0
  %4812 = vmatmul.mubr.bf16.gmra.mxu0 %v4712
  %v4813 = vpop.f32.mrf.mxu0
  %v4814 = vadd.f32 0.0, %v4813
  %v4815 = vpop.f32.mrf.mxu0
  %v4816 = vpop.f32.mrf.mxu0
  %v4817 = vadd.f32 0.0, %v4816
  %v4818 = vpop.f32.mrf.mxu0
  %4819 = vmatprep.mubr.bf16.mxu0 0
  %4820 = vmatmul.mubr.bf16.gmra.mxu0 %v4713
  %v4821 = vpop.f32.mrf.mxu0
  %v4822 = vadd.f32 0.0, %v4821
  %v4823 = vpop.f32.mrf.mxu0
  %v4824 = vpop.f32.mrf.mxu0
  %v4825 = vadd.f32 0.0, %v4824
  %v4826 = vpop.f32.mrf.mxu0
  %4827 = vmatprep.mubr.bf16.mxu0 0
  %4828 = vmatmul.mubr.bf16.gmra.mxu0 %v4714
  %v4829 = vpop.f32.mrf.mxu0
  %v4830 = vadd.f32 0.0, %v4829
  %v4831 = vpop.f32.mrf.mxu0
  %v4832 = vpop.f32.mrf.mxu0
  %v4833 = vadd.f32 0.0, %v4832
  %v4834 = vpop.f32.mrf.mxu0
  %4835 = vdwg.mxu0
  %4852 = vrot.lane.b32.xlu0 %v4774, 16
  %v4853 = vpop.permute.xlu0 %4852
  %4854 = vrot.lane.b32.xlu0 %v4777, 16
  %v4855 = vpop.permute.xlu0 %4854
  %4856 = vrot.lane.b32.xlu0 %v4782, 16
  %v4857 = vpop.permute.xlu0 %4856
  %4858 = vrot.lane.b32.xlu0 %v4785, 16
  %v4859 = vpop.permute.xlu0 %4858
  %4860 = vrot.lane.b32.xlu0 %v4790, 16
  %v4861 = vpop.permute.xlu0 %4860
  %4862 = vrot.lane.b32.xlu0 %v4793, 16
  %v4863 = vpop.permute.xlu0 %4862
  %4864 = vrot.lane.b32.xlu0 %v4798, 16
  %v4865 = vpop.permute.xlu0 %4864
  %4866 = vrot.lane.b32.xlu0 %v4801, 16
  %v4867 = vpop.permute.xlu0 %4866
  %4868 = vrot.lane.b32.xlu0 %v4806, 16
  %v4869 = vpop.permute.xlu0 %4868
  %4870 = vrot.lane.b32.xlu0 %v4809, 16
  %v4871 = vpop.permute.xlu0 %4870
  %4872 = vrot.lane.b32.xlu0 %v4814, 16
  %v4873 = vpop.permute.xlu0 %4872
  %4874 = vrot.lane.b32.xlu0 %v4817, 16
  %v4875 = vpop.permute.xlu0 %4874
  %4876 = vrot.lane.b32.xlu0 %v4822, 16
  %v4877 = vpop.permute.xlu0 %4876
  %4878 = vrot.lane.b32.xlu0 %v4825, 16
  %v4879 = vpop.permute.xlu0 %4878
  %4880 = vrot.lane.b32.xlu0 %v4830, 16
  %v4881 = vpop.permute.xlu0 %4880
  %4882 = vrot.lane.b32.xlu0 %v4833, 16
  %v4883 = vpop.permute.xlu0 %4882
  %v4900 = vsel %vm1168, %v4292, %v4853
  %v4901 = vsel %vm1168, %v4295, %v4855
  %v4902 = vsel %vm1168, %v4300, %v4857
  %v4903 = vsel %vm1168, %v4303, %v4859
  %v4904 = vsel %vm1168, %v4308, %v4861
  %v4905 = vsel %vm1168, %v4311, %v4863
  %v4906 = vsel %vm1168, %v4316, %v4865
  %v4907 = vsel %vm1168, %v4319, %v4867
  %v4908 = vsel %vm1168, %v4324, %v4869
  %v4909 = vsel %vm1168, %v4327, %v4871
  %v4910 = vsel %vm1168, %v4332, %v4873
  %v4911 = vsel %vm1168, %v4335, %v4875
  %v4912 = vsel %vm1168, %v4340, %v4877
  %v4913 = vsel %vm1168, %v4343, %v4879
  %v4914 = vsel %vm1168, %v4348, %v4881
  %v4915 = vsel %vm1168, %v4351, %v4883
  %v4916 = vsel %vm2181, %v4900, 0.0
  %v4917 = vsel %vm2181, %v4901, 0.0
  %v4918 = vsel %vm2181, %v4902, 0.0
  %v4919 = vsel %vm2181, %v4903, 0.0
  %v4920 = vsel %vm2181, %v4904, 0.0
  %v4921 = vsel %vm2181, %v4905, 0.0
  %v4922 = vsel %vm2181, %v4906, 0.0
  %v4923 = vsel %vm2181, %v4907, 0.0
  %v4924 = vsel %vm2181, %v4908, 0.0
  %v4925 = vsel %vm2181, %v4909, 0.0
  %v4926 = vsel %vm2181, %v4910, 0.0
  %v4927 = vsel %vm2181, %v4911, 0.0
  %v4928 = vsel %vm2181, %v4912, 0.0
  %v4929 = vsel %vm2181, %v4913, 0.0
  %v4930 = vsel %vm2181, %v4914, 0.0
  %v4931 = vsel %vm2181, %v4915, 0.0
  %v4932 = vpack.c.bf16 %v4917, %v4916
  %v4933 = vpack.c.bf16 %v4919, %v4918
  %v4934 = vpack.c.bf16 %v4921, %v4920
  %v4935 = vpack.c.bf16 %v4923, %v4922
  %v4936 = vpack.c.bf16 %v4925, %v4924
  %v4937 = vpack.c.bf16 %v4927, %v4926
  %v4938 = vpack.c.bf16 %v4929, %v4928
  %v4939 = vpack.c.bf16 %v4931, %v4930
  %s4940 = scalar_lea.vmem %s3, 320
  %v4941 = vld [vmem:[%s4940] sm:$0xf]
  %v4942 = vld [vmem:[%s4940 + $0x4] sm:$0xf]
  %v4943 = vld [vmem:[%s4940 + $0x8] sm:$0xf]
  %v4944 = vld [vmem:[%s4940 + $0xc] sm:$0xf]
  %v4945 = vld [vmem:[%s4940 + $0x10] sm:$0xf]
  %v4946 = vld [vmem:[%s4940 + $0x14] sm:$0xf]
  %v4947 = vld [vmem:[%s4940 + $0x18] sm:$0xf]
  %v4948 = vld [vmem:[%s4940 + $0x1c] sm:$0xf]
  %v4949 = vld [vmem:[%s4940 + $0x20] sm:$0xf]
  %v4950 = vld [vmem:[%s4940 + $0x24] sm:$0xf]
  %v4951 = vld [vmem:[%s4940 + $0x28] sm:$0xf]
  %v4952 = vld [vmem:[%s4940 + $0x2c] sm:$0xf]
  %v4953 = vld [vmem:[%s4940 + $0x30] sm:$0xf]
  %v4954 = vld [vmem:[%s4940 + $0x34] sm:$0xf]
  %v4955 = vld [vmem:[%s4940 + $0x38] sm:$0xf]
  %v4956 = vld [vmem:[%s4940 + $0x3c] sm:$0xf]
  %v4957 = vlaneseq
  %v4958 = vshrl.u32 %v4957, 7
  %v4959 = vsub.s32 1, %v4958
  %v4960 = vrot.slane %v3697, %v4959
  %v4977 = vunpack.c.l.b16 %v4941
  %v4978 = vunpack.c.l.b16 %v4942
  %v4979 = vunpack.c.l.b16 %v4943
  %v4980 = vunpack.c.l.b16 %v4944
  %v4981 = vunpack.c.l.b16 %v4945
  %v4982 = vunpack.c.l.b16 %v4946
  %v4983 = vunpack.c.l.b16 %v4947
  %v4984 = vunpack.c.l.b16 %v4948
  %v4985 = vunpack.c.l.b16 %v4949
  %v4986 = vunpack.c.l.b16 %v4950
  %v4987 = vunpack.c.l.b16 %v4951
  %v4988 = vunpack.c.l.b16 %v4952
  %v4989 = vunpack.c.l.b16 %v4953
  %v4990 = vunpack.c.l.b16 %v4954
  %v4991 = vunpack.c.l.b16 %v4955
  %v4992 = vunpack.c.l.b16 %v4956
  %v4993 = vpack.c.b16 %v4978, %v4977
  %v4994 = vpack.c.b16 %v4980, %v4979
  %v4995 = vpack.c.b16 %v4982, %v4981
  %v4996 = vpack.c.b16 %v4984, %v4983
  %v4997 = vpack.c.b16 %v4986, %v4985
  %v4998 = vpack.c.b16 %v4988, %v4987
  %v4999 = vpack.c.b16 %v4990, %v4989
  %v5000 = vpack.c.b16 %v4992, %v4991
  %5009 = vmatprep.subr.bf16.mxu0 0
  %5010 = vmatpush1.bf16.msra.mxu0 %v5000
  %5011 = vmatprep.subr.bf16.mxu0 0
  %5012 = vmatpush1.bf16.msra.mxu0 %v4999
  %5013 = vmatprep.subr.bf16.mxu0 0
  %5014 = vmatpush1.bf16.msra.mxu0 %v4998
  %5015 = vmatprep.subr.bf16.mxu0 0
  %5016 = vmatpush1.bf16.msra.mxu0 %v4997
  %5017 = vmatprep.subr.bf16.mxu0 0
  %5018 = vmatpush1.bf16.msra.mxu0 %v4996
  %5019 = vmatprep.subr.bf16.mxu0 0
  %5020 = vmatpush1.bf16.msra.mxu0 %v4995
  %5021 = vmatprep.subr.bf16.mxu0 0
  %5022 = vmatpush1.bf16.msra.mxu0 %v4994
  %5023 = vmatprep.subr.bf16.mxu0 0
  %5024 = vmatpush1.bf16.msra.mxu0 %v4993
  %5025 = vmatprep.subr.bf16.mxu0 0
  %5026 = vmatpush2.bf16.msra.mxu0 0
  %5027 = vmatprep.subr.bf16.mxu0 0
  %5028 = vmatpush2.bf16.msra.mxu0 0
  %5029 = vmatprep.subr.bf16.mxu0 0
  %5030 = vmatpush2.bf16.msra.mxu0 0
  %5031 = vmatprep.subr.bf16.mxu0 0
  %5032 = vmatpush2.bf16.msra.mxu0 0
  %5033 = vmatprep.subr.bf16.mxu0 0
  %5034 = vmatpush2.bf16.msra.mxu0 0
  %5035 = vmatprep.subr.bf16.mxu0 0
  %5036 = vmatpush2.bf16.msra.mxu0 0
  %5037 = vmatprep.subr.bf16.mxu0 0
  %5038 = vmatpush2.bf16.msra.mxu0 0
  %5039 = vmatprep.subr.bf16.mxu0 0
  %5040 = vmatpush2.bf16.msra.mxu0 0
  %5041 = vmatprep.mubr.bf16.mxu0 0
  %5042 = vmatmul.mubr.bf16.gmra.mxu0 %v4932
  %v5043 = vpop.f32.mrf.mxu0
  %v5044 = vadd.f32 %v4960, %v5043
  %v5045 = vpop.f32.mrf.mxu0
  %v5046 = vpop.f32.mrf.mxu0
  %v5047 = vadd.f32 %v4960, %v5046
  %v5048 = vpop.f32.mrf.mxu0
  %5049 = vmatprep.mubr.bf16.mxu0 0
  %5050 = vmatmul.mubr.bf16.gmra.mxu0 %v4933
  %v5051 = vpop.f32.mrf.mxu0
  %v5052 = vadd.f32 %v4960, %v5051
  %v5053 = vpop.f32.mrf.mxu0
  %v5054 = vpop.f32.mrf.mxu0
  %v5055 = vadd.f32 %v4960, %v5054
  %v5056 = vpop.f32.mrf.mxu0
  %5057 = vmatprep.mubr.bf16.mxu0 0
  %5058 = vmatmul.mubr.bf16.gmra.mxu0 %v4934
  %v5059 = vpop.f32.mrf.mxu0
  %v5060 = vadd.f32 %v4960, %v5059
  %v5061 = vpop.f32.mrf.mxu0
  %v5062 = vpop.f32.mrf.mxu0
  %v5063 = vadd.f32 %v4960, %v5062
  %v5064 = vpop.f32.mrf.mxu0
  %5065 = vmatprep.mubr.bf16.mxu0 0
  %5066 = vmatmul.mubr.bf16.gmra.mxu0 %v4935
  %v5067 = vpop.f32.mrf.mxu0
  %v5068 = vadd.f32 %v4960, %v5067
  %v5069 = vpop.f32.mrf.mxu0
  %v5070 = vpop.f32.mrf.mxu0
  %v5071 = vadd.f32 %v4960, %v5070
  %v5072 = vpop.f32.mrf.mxu0
  %5073 = vmatprep.mubr.bf16.mxu0 0
  %5074 = vmatmul.mubr.bf16.gmra.mxu0 %v4936
  %v5075 = vpop.f32.mrf.mxu0
  %v5076 = vadd.f32 %v4960, %v5075
  %v5077 = vpop.f32.mrf.mxu0
  %v5078 = vpop.f32.mrf.mxu0
  %v5079 = vadd.f32 %v4960, %v5078
  %v5080 = vpop.f32.mrf.mxu0
  %5081 = vmatprep.mubr.bf16.mxu0 0
  %5082 = vmatmul.mubr.bf16.gmra.mxu0 %v4937
  %v5083 = vpop.f32.mrf.mxu0
  %v5084 = vadd.f32 %v4960, %v5083
  %v5085 = vpop.f32.mrf.mxu0
  %v5086 = vpop.f32.mrf.mxu0
  %v5087 = vadd.f32 %v4960, %v5086
  %v5088 = vpop.f32.mrf.mxu0
  %5089 = vmatprep.mubr.bf16.mxu0 0
  %5090 = vmatmul.mubr.bf16.gmra.mxu0 %v4938
  %v5091 = vpop.f32.mrf.mxu0
  %v5092 = vadd.f32 %v4960, %v5091
  %v5093 = vpop.f32.mrf.mxu0
  %v5094 = vpop.f32.mrf.mxu0
  %v5095 = vadd.f32 %v4960, %v5094
  %v5096 = vpop.f32.mrf.mxu0
  %5097 = vmatprep.mubr.bf16.mxu0 0
  %5098 = vmatmul.mubr.bf16.gmra.mxu0 %v4939
  %v5099 = vpop.f32.mrf.mxu0
  %v5100 = vadd.f32 %v4960, %v5099
  %v5101 = vpop.f32.mrf.mxu0
  %v5102 = vpop.f32.mrf.mxu0
  %v5103 = vadd.f32 %v4960, %v5102
  %v5104 = vpop.f32.mrf.mxu0
  %5105 = vdwg.mxu0
  %v5106 = vadd.f32 %v5044, %v3680
  %v5107 = vadd.f32 %v5047, %v3681
  %v5108 = vadd.f32 %v5052, %v3682
  %v5109 = vadd.f32 %v5055, %v3683
  %v5110 = vadd.f32 %v5060, %v3684
  %v5111 = vadd.f32 %v5063, %v3685
  %v5112 = vadd.f32 %v5068, %v3686
  %v5113 = vadd.f32 %v5071, %v3687
  %v5114 = vadd.f32 %v5076, %v3688
  %v5115 = vadd.f32 %v5079, %v3689
  %v5116 = vadd.f32 %v5084, %v3690
  %v5117 = vadd.f32 %v5087, %v3691
  %v5118 = vadd.f32 %v5092, %v3692
  %v5119 = vadd.f32 %v5095, %v3693
  %v5120 = vadd.f32 %v5100, %v3694
  %v5121 = vadd.f32 %v5103, %v3695
  %5122 = vadd.xlane.f32.xlu0 %v5106
  %v5123 = vpop.xlane.xlu0 %5122
  %5124 = vadd.xlane.f32.xlu0 %v5107
  %v5125 = vpop.xlane.xlu0 %5124
  %5126 = vadd.xlane.f32.xlu0 %v5108
  %v5127 = vpop.xlane.xlu0 %5126
  %5128 = vadd.xlane.f32.xlu0 %v5109
  %v5129 = vpop.xlane.xlu0 %5128
  %5130 = vadd.xlane.f32.xlu0 %v5110
  %v5131 = vpop.xlane.xlu0 %5130
  %5132 = vadd.xlane.f32.xlu0 %v5111
  %v5133 = vpop.xlane.xlu0 %5132
  %5134 = vadd.xlane.f32.xlu0 %v5112
  %v5135 = vpop.xlane.xlu0 %5134
  %5136 = vadd.xlane.f32.xlu0 %v5113
  %v5137 = vpop.xlane.xlu0 %5136
  %5138 = vadd.xlane.f32.xlu0 %v5114
  %v5139 = vpop.xlane.xlu0 %5138
  %5140 = vadd.xlane.f32.xlu0 %v5115
  %v5141 = vpop.xlane.xlu0 %5140
  %5142 = vadd.xlane.f32.xlu0 %v5116
  %v5143 = vpop.xlane.xlu0 %5142
  %5144 = vadd.xlane.f32.xlu0 %v5117
  %v5145 = vpop.xlane.xlu0 %5144
  %5146 = vadd.xlane.f32.xlu0 %v5118
  %v5147 = vpop.xlane.xlu0 %5146
  %5148 = vadd.xlane.f32.xlu0 %v5119
  %v5149 = vpop.xlane.xlu0 %5148
  %5150 = vadd.xlane.f32.xlu0 %v5120
  %v5151 = vpop.xlane.xlu0 %5150
  %5152 = vadd.xlane.f32.xlu0 %v5121
  %v5153 = vpop.xlane.xlu0 %5152
  %v5154 = vmul.f32 %v5123, 0.03125
  %v5155 = vmul.f32 %v5125, 0.03125
  %v5156 = vmul.f32 %v5127, 0.03125
  %v5157 = vmul.f32 %v5129, 0.03125
  %v5158 = vmul.f32 %v5131, 0.03125
  %v5159 = vmul.f32 %v5133, 0.03125
  %v5160 = vmul.f32 %v5135, 0.03125
  %v5161 = vmul.f32 %v5137, 0.03125
  %v5162 = vmul.f32 %v5139, 0.03125
  %v5163 = vmul.f32 %v5141, 0.03125
  %v5164 = vmul.f32 %v5143, 0.03125
  %v5165 = vmul.f32 %v5145, 0.03125
  %v5166 = vmul.f32 %v5147, 0.03125
  %v5167 = vmul.f32 %v5149, 0.03125
  %v5168 = vmul.f32 %v5151, 0.03125
  %v5169 = vmul.f32 %v5153, 0.03125
  %v5170 = vsub.f32 %v5106, %v5154
  %v5171 = vsub.f32 %v5107, %v5155
  %v5172 = vsub.f32 %v5108, %v5156
  %v5173 = vsub.f32 %v5109, %v5157
  %v5174 = vsub.f32 %v5110, %v5158
  %v5175 = vsub.f32 %v5111, %v5159
  %v5176 = vsub.f32 %v5112, %v5160
  %v5177 = vsub.f32 %v5113, %v5161
  %v5178 = vsub.f32 %v5114, %v5162
  %v5179 = vsub.f32 %v5115, %v5163
  %v5180 = vsub.f32 %v5116, %v5164
  %v5181 = vsub.f32 %v5117, %v5165
  %v5182 = vsub.f32 %v5118, %v5166
  %v5183 = vsub.f32 %v5119, %v5167
  %v5184 = vsub.f32 %v5120, %v5168
  %v5185 = vsub.f32 %v5121, %v5169
  %v5186 = vsel %vm23, %v5170, 0.0
  %v5187 = vsel %vm23, %v5171, 0.0
  %v5188 = vsel %vm23, %v5172, 0.0
  %v5189 = vsel %vm23, %v5173, 0.0
  %v5190 = vsel %vm23, %v5174, 0.0
  %v5191 = vsel %vm23, %v5175, 0.0
  %v5192 = vsel %vm23, %v5176, 0.0
  %v5193 = vsel %vm23, %v5177, 0.0
  %v5194 = vsel %vm23, %v5178, 0.0
  %v5195 = vsel %vm23, %v5179, 0.0
  %v5196 = vsel %vm23, %v5180, 0.0
  %v5197 = vsel %vm23, %v5181, 0.0
  %v5198 = vsel %vm23, %v5182, 0.0
  %v5199 = vsel %vm23, %v5183, 0.0
  %v5200 = vsel %vm23, %v5184, 0.0
  %v5201 = vsel %vm23, %v5185, 0.0
  %v5202 = vmul.f32 %v5186, %v5186
  %v5203 = vmul.f32 %v5187, %v5187
  %v5204 = vmul.f32 %v5188, %v5188
  %v5205 = vmul.f32 %v5189, %v5189
  %v5206 = vmul.f32 %v5190, %v5190
  %v5207 = vmul.f32 %v5191, %v5191
  %v5208 = vmul.f32 %v5192, %v5192
  %v5209 = vmul.f32 %v5193, %v5193
  %v5210 = vmul.f32 %v5194, %v5194
  %v5211 = vmul.f32 %v5195, %v5195
  %v5212 = vmul.f32 %v5196, %v5196
  %v5213 = vmul.f32 %v5197, %v5197
  %v5214 = vmul.f32 %v5198, %v5198
  %v5215 = vmul.f32 %v5199, %v5199
  %v5216 = vmul.f32 %v5200, %v5200
  %v5217 = vmul.f32 %v5201, %v5201
  %5218 = vadd.xlane.f32.xlu0 %v5202
  %v5219 = vpop.xlane.xlu0 %5218
  %5220 = vadd.xlane.f32.xlu0 %v5203
  %v5221 = vpop.xlane.xlu0 %5220
  %5222 = vadd.xlane.f32.xlu0 %v5204
  %v5223 = vpop.xlane.xlu0 %5222
  %5224 = vadd.xlane.f32.xlu0 %v5205
  %v5225 = vpop.xlane.xlu0 %5224
  %5226 = vadd.xlane.f32.xlu0 %v5206
  %v5227 = vpop.xlane.xlu0 %5226
  %5228 = vadd.xlane.f32.xlu0 %v5207
  %v5229 = vpop.xlane.xlu0 %5228
  %5230 = vadd.xlane.f32.xlu0 %v5208
  %v5231 = vpop.xlane.xlu0 %5230
  %5232 = vadd.xlane.f32.xlu0 %v5209
  %v5233 = vpop.xlane.xlu0 %5232
  %5234 = vadd.xlane.f32.xlu0 %v5210
  %v5235 = vpop.xlane.xlu0 %5234
  %5236 = vadd.xlane.f32.xlu0 %v5211
  %v5237 = vpop.xlane.xlu0 %5236
  %5238 = vadd.xlane.f32.xlu0 %v5212
  %v5239 = vpop.xlane.xlu0 %5238
  %5240 = vadd.xlane.f32.xlu0 %v5213
  %v5241 = vpop.xlane.xlu0 %5240
  %5242 = vadd.xlane.f32.xlu0 %v5214
  %v5243 = vpop.xlane.xlu0 %5242
  %5244 = vadd.xlane.f32.xlu0 %v5215
  %v5245 = vpop.xlane.xlu0 %5244
  %5246 = vadd.xlane.f32.xlu0 %v5216
  %v5247 = vpop.xlane.xlu0 %5246
  %5248 = vadd.xlane.f32.xlu0 %v5217
  %v5249 = vpop.xlane.xlu0 %5248
  %v5250 = vmul.f32 %v5219, 0.03125
  %v5251 = vmul.f32 %v5221, 0.03125
  %v5252 = vmul.f32 %v5223, 0.03125
  %v5253 = vmul.f32 %v5225, 0.03125
  %v5254 = vmul.f32 %v5227, 0.03125
  %v5255 = vmul.f32 %v5229, 0.03125
  %v5256 = vmul.f32 %v5231, 0.03125
  %v5257 = vmul.f32 %v5233, 0.03125
  %v5258 = vmul.f32 %v5235, 0.03125
  %v5259 = vmul.f32 %v5237, 0.03125
  %v5260 = vmul.f32 %v5239, 0.03125
  %v5261 = vmul.f32 %v5241, 0.03125
  %v5262 = vmul.f32 %v5243, 0.03125
  %v5263 = vmul.f32 %v5245, 0.03125
  %v5264 = vmul.f32 %v5247, 0.03125
  %v5265 = vmul.f32 %v5249, 0.03125
  %v5266 = vadd.f32 %v5250, 1e-12
  %v5267 = vadd.f32 %v5251, 1e-12
  %v5268 = vadd.f32 %v5252, 1e-12
  %v5269 = vadd.f32 %v5253, 1e-12
  %v5270 = vadd.f32 %v5254, 1e-12
  %v5271 = vadd.f32 %v5255, 1e-12
  %v5272 = vadd.f32 %v5256, 1e-12
  %v5273 = vadd.f32 %v5257, 1e-12
  %v5274 = vadd.f32 %v5258, 1e-12
  %v5275 = vadd.f32 %v5259, 1e-12
  %v5276 = vadd.f32 %v5260, 1e-12
  %v5277 = vadd.f32 %v5261, 1e-12
  %v5278 = vadd.f32 %v5262, 1e-12
  %v5279 = vadd.f32 %v5263, 1e-12
  %v5280 = vadd.f32 %v5264, 1e-12
  %v5281 = vadd.f32 %v5265, 1e-12
  %v5282 = vrsqrt.pop %v5266
  %v5283 = vrsqrt.pop %v5267
  %v5284 = vrsqrt.pop %v5268
  %v5285 = vrsqrt.pop %v5269
  %v5286 = vrsqrt.pop %v5270
  %v5287 = vrsqrt.pop %v5271
  %v5288 = vrsqrt.pop %v5272
  %v5289 = vrsqrt.pop %v5273
  %v5290 = vrsqrt.pop %v5274
  %v5291 = vrsqrt.pop %v5275
  %v5292 = vrsqrt.pop %v5276
  %v5293 = vrsqrt.pop %v5277
  %v5294 = vrsqrt.pop %v5278
  %v5295 = vrsqrt.pop %v5279
  %v5296 = vrsqrt.pop %v5280
  %v5297 = vrsqrt.pop %v5281
  %v5298 = vmul.f32 %v5186, %v5282
  %v5299 = vmul.f32 %v5187, %v5283
  %v5300 = vmul.f32 %v5188, %v5284
  %v5301 = vmul.f32 %v5189, %v5285
  %v5302 = vmul.f32 %v5190, %v5286
  %v5303 = vmul.f32 %v5191, %v5287
  %v5304 = vmul.f32 %v5192, %v5288
  %v5305 = vmul.f32 %v5193, %v5289
  %v5306 = vmul.f32 %v5194, %v5290
  %v5307 = vmul.f32 %v5195, %v5291
  %v5308 = vmul.f32 %v5196, %v5292
  %v5309 = vmul.f32 %v5197, %v5293
  %v5310 = vmul.f32 %v5198, %v5294
  %v5311 = vmul.f32 %v5199, %v5295
  %v5312 = vmul.f32 %v5200, %v5296
  %v5313 = vmul.f32 %v5201, %v5297
  %v5314 = vlaneseq
  %v5315 = vshrl.u32 %v5314, 7
  %v5316 = vsub.s32 2, %v5315
  %v5317 = vrot.slane %v3697, %v5316
  %v5318 = vmul.f32 %v5298, %v5317
  %v5319 = vmul.f32 %v5299, %v5317
  %v5320 = vmul.f32 %v5300, %v5317
  %v5321 = vmul.f32 %v5301, %v5317
  %v5322 = vmul.f32 %v5302, %v5317
  %v5323 = vmul.f32 %v5303, %v5317
  %v5324 = vmul.f32 %v5304, %v5317
  %v5325 = vmul.f32 %v5305, %v5317
  %v5326 = vmul.f32 %v5306, %v5317
  %v5327 = vmul.f32 %v5307, %v5317
  %v5328 = vmul.f32 %v5308, %v5317
  %v5329 = vmul.f32 %v5309, %v5317
  %v5330 = vmul.f32 %v5310, %v5317
  %v5331 = vmul.f32 %v5311, %v5317
  %v5332 = vmul.f32 %v5312, %v5317
  %v5333 = vmul.f32 %v5313, %v5317
  %v5334 = vlaneseq
  %v5335 = vshrl.u32 %v5334, 7
  %v5336 = vsub.s32 3, %v5335
  %v5337 = vrot.slane %v3697, %v5336
  %v5338 = vadd.f32 %v5318, %v5337
  %v5339 = vadd.f32 %v5319, %v5337
  %v5340 = vadd.f32 %v5320, %v5337
  %v5341 = vadd.f32 %v5321, %v5337
  %v5342 = vadd.f32 %v5322, %v5337
  %v5343 = vadd.f32 %v5323, %v5337
  %v5344 = vadd.f32 %v5324, %v5337
  %v5345 = vadd.f32 %v5325, %v5337
  %v5346 = vadd.f32 %v5326, %v5337
  %v5347 = vadd.f32 %v5327, %v5337
  %v5348 = vadd.f32 %v5328, %v5337
  %v5349 = vadd.f32 %v5329, %v5337
  %v5350 = vadd.f32 %v5330, %v5337
  %v5351 = vadd.f32 %v5331, %v5337
  %v5352 = vadd.f32 %v5332, %v5337
  %v5353 = vadd.f32 %v5333, %v5337
  %v5354 = vpack.c.bf16 %v5339, %v5338
  %v5355 = vpack.c.bf16 %v5341, %v5340
  %v5356 = vpack.c.bf16 %v5343, %v5342
  %v5357 = vpack.c.bf16 %v5345, %v5344
  %v5358 = vpack.c.bf16 %v5347, %v5346
  %v5359 = vpack.c.bf16 %v5349, %v5348
  %v5360 = vpack.c.bf16 %v5351, %v5350
  %v5361 = vpack.c.bf16 %v5353, %v5352
  %s5362 = scalar_lea.vmem %s3, 384
  %v5363 = vld [vmem:[%s5362] sm:$0xf]
  %v5364 = vld [vmem:[%s5362 + $0x4] sm:$0xf]
  %v5365 = vld [vmem:[%s5362 + $0x8] sm:$0xf]
  %v5366 = vld [vmem:[%s5362 + $0xc] sm:$0xf]
  %v5367 = vld [vmem:[%s5362 + $0x10] sm:$0xf]
  %v5368 = vld [vmem:[%s5362 + $0x14] sm:$0xf]
  %v5369 = vld [vmem:[%s5362 + $0x18] sm:$0xf]
  %v5370 = vld [vmem:[%s5362 + $0x1c] sm:$0xf]
  %v5371 = vld [vmem:[%s5362 + $0x20] sm:$0xf]
  %v5372 = vld [vmem:[%s5362 + $0x24] sm:$0xf]
  %v5373 = vld [vmem:[%s5362 + $0x28] sm:$0xf]
  %v5374 = vld [vmem:[%s5362 + $0x2c] sm:$0xf]
  %v5375 = vld [vmem:[%s5362 + $0x30] sm:$0xf]
  %v5376 = vld [vmem:[%s5362 + $0x34] sm:$0xf]
  %v5377 = vld [vmem:[%s5362 + $0x38] sm:$0xf]
  %v5378 = vld [vmem:[%s5362 + $0x3c] sm:$0xf]
  %v5379 = vlaneseq
  %v5380 = vshrl.u32 %v5379, 7
  %v5381 = vsub.s32 4, %v5380
  %v5382 = vrot.slane %v3697, %v5381
  %v5399 = vunpack.c.l.b16 %v5363
  %v5400 = vunpack.c.l.b16 %v5364
  %v5401 = vunpack.c.l.b16 %v5365
  %v5402 = vunpack.c.l.b16 %v5366
  %v5403 = vunpack.c.l.b16 %v5367
  %v5404 = vunpack.c.l.b16 %v5368
  %v5405 = vunpack.c.l.b16 %v5369
  %v5406 = vunpack.c.l.b16 %v5370
  %v5407 = vunpack.c.l.b16 %v5371
  %v5408 = vunpack.c.l.b16 %v5372
  %v5409 = vunpack.c.l.b16 %v5373
  %v5410 = vunpack.c.l.b16 %v5374
  %v5411 = vunpack.c.l.b16 %v5375
  %v5412 = vunpack.c.l.b16 %v5376
  %v5413 = vunpack.c.l.b16 %v5377
  %v5414 = vunpack.c.l.b16 %v5378
  %v5415 = vpack.c.b16 %v5400, %v5399
  %v5416 = vpack.c.b16 %v5402, %v5401
  %v5417 = vpack.c.b16 %v5404, %v5403
  %v5418 = vpack.c.b16 %v5406, %v5405
  %v5419 = vpack.c.b16 %v5408, %v5407
  %v5420 = vpack.c.b16 %v5410, %v5409
  %v5421 = vpack.c.b16 %v5412, %v5411
  %v5422 = vpack.c.b16 %v5414, %v5413
  %5431 = vmatprep.subr.bf16.mxu0 0
  %5432 = vmatpush1.bf16.msra.mxu0 %v5422
  %5433 = vmatprep.subr.bf16.mxu0 0
  %5434 = vmatpush1.bf16.msra.mxu0 %v5421
  %5435 = vmatprep.subr.bf16.mxu0 0
  %5436 = vmatpush1.bf16.msra.mxu0 %v5420
  %5437 = vmatprep.subr.bf16.mxu0 0
  %5438 = vmatpush1.bf16.msra.mxu0 %v5419
  %5439 = vmatprep.subr.bf16.mxu0 0
  %5440 = vmatpush1.bf16.msra.mxu0 %v5418
  %5441 = vmatprep.subr.bf16.mxu0 0
  %5442 = vmatpush1.bf16.msra.mxu0 %v5417
  %5443 = vmatprep.subr.bf16.mxu0 0
  %5444 = vmatpush1.bf16.msra.mxu0 %v5416
  %5445 = vmatprep.subr.bf16.mxu0 0
  %5446 = vmatpush1.bf16.msra.mxu0 %v5415
  %5447 = vmatprep.subr.bf16.mxu0 0
  %5448 = vmatpush2.bf16.msra.mxu0 0
  %5449 = vmatprep.subr.bf16.mxu0 0
  %5450 = vmatpush2.bf16.msra.mxu0 0
  %5451 = vmatprep.subr.bf16.mxu0 0
  %5452 = vmatpush2.bf16.msra.mxu0 0
  %5453 = vmatprep.subr.bf16.mxu0 0
  %5454 = vmatpush2.bf16.msra.mxu0 0
  %5455 = vmatprep.subr.bf16.mxu0 0
  %5456 = vmatpush2.bf16.msra.mxu0 0
  %5457 = vmatprep.subr.bf16.mxu0 0
  %5458 = vmatpush2.bf16.msra.mxu0 0
  %5459 = vmatprep.subr.bf16.mxu0 0
  %5460 = vmatpush2.bf16.msra.mxu0 0
  %5461 = vmatprep.subr.bf16.mxu0 0
  %5462 = vmatpush2.bf16.msra.mxu0 0
  %5463 = vmatprep.mubr.bf16.mxu0 0
  %5464 = vmatmul.mubr.bf16.gmra.mxu0 %v5354
  %v5465 = vpop.f32.mrf.mxu0
  %v5466 = vadd.f32 %v5382, %v5465
  %v5467 = vpop.f32.mrf.mxu0
  %v5468 = vpop.f32.mrf.mxu0
  %v5469 = vadd.f32 %v5382, %v5468
  %v5470 = vpop.f32.mrf.mxu0
  %5471 = vmatprep.mubr.bf16.mxu0 0
  %5472 = vmatmul.mubr.bf16.gmra.mxu0 %v5355
  %v5473 = vpop.f32.mrf.mxu0
  %v5474 = vadd.f32 %v5382, %v5473
  %v5475 = vpop.f32.mrf.mxu0
  %v5476 = vpop.f32.mrf.mxu0
  %v5477 = vadd.f32 %v5382, %v5476
  %v5478 = vpop.f32.mrf.mxu0
  %5479 = vmatprep.mubr.bf16.mxu0 0
  %5480 = vmatmul.mubr.bf16.gmra.mxu0 %v5356
  %v5481 = vpop.f32.mrf.mxu0
  %v5482 = vadd.f32 %v5382, %v5481
  %v5483 = vpop.f32.mrf.mxu0
  %v5484 = vpop.f32.mrf.mxu0
  %v5485 = vadd.f32 %v5382, %v5484
  %v5486 = vpop.f32.mrf.mxu0
  %5487 = vmatprep.mubr.bf16.mxu0 0
  %5488 = vmatmul.mubr.bf16.gmra.mxu0 %v5357
  %v5489 = vpop.f32.mrf.mxu0
  %v5490 = vadd.f32 %v5382, %v5489
  %v5491 = vpop.f32.mrf.mxu0
  %v5492 = vpop.f32.mrf.mxu0
  %v5493 = vadd.f32 %v5382, %v5492
  %v5494 = vpop.f32.mrf.mxu0
  %5495 = vmatprep.mubr.bf16.mxu0 0
  %5496 = vmatmul.mubr.bf16.gmra.mxu0 %v5358
  %v5497 = vpop.f32.mrf.mxu0
  %v5498 = vadd.f32 %v5382, %v5497
  %v5499 = vpop.f32.mrf.mxu0
  %v5500 = vpop.f32.mrf.mxu0
  %v5501 = vadd.f32 %v5382, %v5500
  %v5502 = vpop.f32.mrf.mxu0
  %5503 = vmatprep.mubr.bf16.mxu0 0
  %5504 = vmatmul.mubr.bf16.gmra.mxu0 %v5359
  %v5505 = vpop.f32.mrf.mxu0
  %v5506 = vadd.f32 %v5382, %v5505
  %v5507 = vpop.f32.mrf.mxu0
  %v5508 = vpop.f32.mrf.mxu0
  %v5509 = vadd.f32 %v5382, %v5508
  %v5510 = vpop.f32.mrf.mxu0
  %5511 = vmatprep.mubr.bf16.mxu0 0
  %5512 = vmatmul.mubr.bf16.gmra.mxu0 %v5360
  %v5513 = vpop.f32.mrf.mxu0
  %v5514 = vadd.f32 %v5382, %v5513
  %v5515 = vpop.f32.mrf.mxu0
  %v5516 = vpop.f32.mrf.mxu0
  %v5517 = vadd.f32 %v5382, %v5516
  %v5518 = vpop.f32.mrf.mxu0
  %5519 = vmatprep.mubr.bf16.mxu0 0
  %5520 = vmatmul.mubr.bf16.gmra.mxu0 %v5361
  %v5521 = vpop.f32.mrf.mxu0
  %v5522 = vadd.f32 %v5382, %v5521
  %v5523 = vpop.f32.mrf.mxu0
  %v5524 = vpop.f32.mrf.mxu0
  %v5525 = vadd.f32 %v5382, %v5524
  %v5526 = vpop.f32.mrf.mxu0
  %5527 = vdwg.mxu0
  %v5528 = vmul.f32 %v5466, 0.70710677
  %v5529 = vmul.f32 %v5469, 0.70710677
  %v5530 = vmul.f32 %v5474, 0.70710677
  %v5531 = vmul.f32 %v5477, 0.70710677
  %v5532 = vmul.f32 %v5482, 0.70710677
  %v5533 = vmul.f32 %v5485, 0.70710677
  %v5534 = vmul.f32 %v5490, 0.70710677
  %v5535 = vmul.f32 %v5493, 0.70710677
  %v5536 = vmul.f32 %v5498, 0.70710677
  %v5537 = vmul.f32 %v5501, 0.70710677
  %v5538 = vmul.f32 %v5506, 0.70710677
  %v5539 = vmul.f32 %v5509, 0.70710677
  %v5540 = vmul.f32 %v5514, 0.70710677
  %v5541 = vmul.f32 %v5517, 0.70710677
  %v5542 = vmul.f32 %v5522, 0.70710677
  %v5543 = vmul.f32 %v5525, 0.70710677
  %v5544 = vmax.f32 %v5528, -3.832507
  %v5545 = vmax.f32 %v5529, -3.832507
  %v5546 = vmax.f32 %v5530, -3.832507
  %v5547 = vmax.f32 %v5531, -3.832507
  %v5548 = vmax.f32 %v5532, -3.832507
  %v5549 = vmax.f32 %v5533, -3.832507
  %v5550 = vmax.f32 %v5534, -3.832507
  %v5551 = vmax.f32 %v5535, -3.832507
  %v5552 = vmax.f32 %v5536, -3.832507
  %v5553 = vmax.f32 %v5537, -3.832507
  %v5554 = vmax.f32 %v5538, -3.832507
  %v5555 = vmax.f32 %v5539, -3.832507
  %v5556 = vmax.f32 %v5540, -3.832507
  %v5557 = vmax.f32 %v5541, -3.832507
  %v5558 = vmax.f32 %v5542, -3.832507
  %v5559 = vmax.f32 %v5543, -3.832507
  %v5560 = vmin.f32 %v5544, 3.832507
  %v5561 = vmin.f32 %v5545, 3.832507
  %v5562 = vmin.f32 %v5546, 3.832507
  %v5563 = vmin.f32 %v5547, 3.832507
  %v5564 = vmin.f32 %v5548, 3.832507
  %v5565 = vmin.f32 %v5549, 3.832507
  %v5566 = vmin.f32 %v5550, 3.832507
  %v5567 = vmin.f32 %v5551, 3.832507
  %v5568 = vmin.f32 %v5552, 3.832507
  %v5569 = vmin.f32 %v5553, 3.832507
  %v5570 = vmin.f32 %v5554, 3.832507
  %v5571 = vmin.f32 %v5555, 3.832507
  %v5572 = vmin.f32 %v5556, 3.832507
  %v5573 = vmin.f32 %v5557, 3.832507
  %v5574 = vmin.f32 %v5558, 3.832507
  %v5575 = vmin.f32 %v5559, 3.832507
  %v5576 = vmul.f32 %v5560, %v5560
  %v5577 = vmul.f32 %v5561, %v5561
  %v5578 = vmul.f32 %v5562, %v5562
  %v5579 = vmul.f32 %v5563, %v5563
  %v5580 = vmul.f32 %v5564, %v5564
  %v5581 = vmul.f32 %v5565, %v5565
  %v5582 = vmul.f32 %v5566, %v5566
  %v5583 = vmul.f32 %v5567, %v5567
  %v5584 = vmul.f32 %v5568, %v5568
  %v5585 = vmul.f32 %v5569, %v5569
  %v5586 = vmul.f32 %v5570, %v5570
  %v5587 = vmul.f32 %v5571, %v5571
  %v5588 = vmul.f32 %v5572, %v5572
  %v5589 = vmul.f32 %v5573, %v5573
  %v5590 = vmul.f32 %v5574, %v5574
  %v5591 = vmul.f32 %v5575, %v5575
  %v5592 = vmul.f32 %v5576, 0.00022905065
  %v5593 = vmul.f32 %v5577, 0.00022905065
  %v5594 = vmul.f32 %v5578, 0.00022905065
  %v5595 = vmul.f32 %v5579, 0.00022905065
  %v5596 = vmul.f32 %v5580, 0.00022905065
  %v5597 = vmul.f32 %v5581, 0.00022905065
  %v5598 = vmul.f32 %v5582, 0.00022905065
  %v5599 = vmul.f32 %v5583, 0.00022905065
  %v5600 = vmul.f32 %v5584, 0.00022905065
  %v5601 = vmul.f32 %v5585, 0.00022905065
  %v5602 = vmul.f32 %v5586, 0.00022905065
  %v5603 = vmul.f32 %v5587, 0.00022905065
  %v5604 = vmul.f32 %v5588, 0.00022905065
  %v5605 = vmul.f32 %v5589, 0.00022905065
  %v5606 = vmul.f32 %v5590, 0.00022905065
  %v5607 = vmul.f32 %v5591, 0.00022905065
  %v5608 = vadd.f32 %v5592, 0.003408291
  %v5609 = vadd.f32 %v5593, 0.003408291
  %v5610 = vadd.f32 %v5594, 0.003408291
  %v5611 = vadd.f32 %v5595, 0.003408291
  %v5612 = vadd.f32 %v5596, 0.003408291
  %v5613 = vadd.f32 %v5597, 0.003408291
  %v5614 = vadd.f32 %v5598, 0.003408291
  %v5615 = vadd.f32 %v5599, 0.003408291
  %v5616 = vadd.f32 %v5600, 0.003408291
  %v5617 = vadd.f32 %v5601, 0.003408291
  %v5618 = vadd.f32 %v5602, 0.003408291
  %v5619 = vadd.f32 %v5603, 0.003408291
  %v5620 = vadd.f32 %v5604, 0.003408291
  %v5621 = vadd.f32 %v5605, 0.003408291
  %v5622 = vadd.f32 %v5606, 0.003408291
  %v5623 = vadd.f32 %v5607, 0.003408291
  %v5624 = vmul.f32 %v5608, %v5576
  %v5625 = vmul.f32 %v5609, %v5577
  %v5626 = vmul.f32 %v5610, %v5578
  %v5627 = vmul.f32 %v5611, %v5579
  %v5628 = vmul.f32 %v5612, %v5580
  %v5629 = vmul.f32 %v5613, %v5581
  %v5630 = vmul.f32 %v5614, %v5582
  %v5631 = vmul.f32 %v5615, %v5583
  %v5632 = vmul.f32 %v5616, %v5584
  %v5633 = vmul.f32 %v5617, %v5585
  %v5634 = vmul.f32 %v5618, %v5586
  %v5635 = vmul.f32 %v5619, %v5587
  %v5636 = vmul.f32 %v5620, %v5588
  %v5637 = vmul.f32 %v5621, %v5589
  %v5638 = vmul.f32 %v5622, %v5590
  %v5639 = vmul.f32 %v5623, %v5591
  %v5640 = vadd.f32 %v5624, 0.050955694
  %v5641 = vadd.f32 %v5625, 0.050955694
  %v5642 = vadd.f32 %v5626, 0.050955694
  %v5643 = vadd.f32 %v5627, 0.050955694
  %v5644 = vadd.f32 %v5628, 0.050955694
  %v5645 = vadd.f32 %v5629, 0.050955694
  %v5646 = vadd.f32 %v5630, 0.050955694
  %v5647 = vadd.f32 %v5631, 0.050955694
  %v5648 = vadd.f32 %v5632, 0.050955694
  %v5649 = vadd.f32 %v5633, 0.050955694
  %v5650 = vadd.f32 %v5634, 0.050955694
  %v5651 = vadd.f32 %v5635, 0.050955694
  %v5652 = vadd.f32 %v5636, 0.050955694
  %v5653 = vadd.f32 %v5637, 0.050955694
  %v5654 = vadd.f32 %v5638, 0.050955694
  %v5655 = vadd.f32 %v5639, 0.050955694
  %v5656 = vmul.f32 %v5640, %v5576
  %v5657 = vmul.f32 %v5641, %v5577
  %v5658 = vmul.f32 %v5642, %v5578
  %v5659 = vmul.f32 %v5643, %v5579
  %v5660 = vmul.f32 %v5644, %v5580
  %v5661 = vmul.f32 %v5645, %v5581
  %v5662 = vmul.f32 %v5646, %v5582
  %v5663 = vmul.f32 %v5647, %v5583
  %v5664 = vmul.f32 %v5648, %v5584
  %v5665 = vmul.f32 %v5649, %v5585
  %v5666 = vmul.f32 %v5650, %v5586
  %v5667 = vmul.f32 %v5651, %v5587
  %v5668 = vmul.f32 %v5652, %v5588
  %v5669 = vmul.f32 %v5653, %v5589
  %v5670 = vmul.f32 %v5654, %v5590
  %v5671 = vmul.f32 %v5655, %v5591
  %v5672 = vadd.f32 %v5656, 0.18520832
  %v5673 = vadd.f32 %v5657, 0.18520832
  %v5674 = vadd.f32 %v5658, 0.18520832
  %v5675 = vadd.f32 %v5659, 0.18520832
  %v5676 = vadd.f32 %v5660, 0.18520832
  %v5677 = vadd.f32 %v5661, 0.18520832
  %v5678 = vadd.f32 %v5662, 0.18520832
  %v5679 = vadd.f32 %v5663, 0.18520832
  %v5680 = vadd.f32 %v5664, 0.18520832
  %v5681 = vadd.f32 %v5665, 0.18520832
  %v5682 = vadd.f32 %v5666, 0.18520832
  %v5683 = vadd.f32 %v5667, 0.18520832
  %v5684 = vadd.f32 %v5668, 0.18520832
  %v5685 = vadd.f32 %v5669, 0.18520832
  %v5686 = vadd.f32 %v5670, 0.18520832
  %v5687 = vadd.f32 %v5671, 0.18520832
  %v5688 = vmul.f32 %v5672, %v5576
  %v5689 = vmul.f32 %v5673, %v5577
  %v5690 = vmul.f32 %v5674, %v5578
  %v5691 = vmul.f32 %v5675, %v5579
  %v5692 = vmul.f32 %v5676, %v5580
  %v5693 = vmul.f32 %v5677, %v5581
  %v5694 = vmul.f32 %v5678, %v5582
  %v5695 = vmul.f32 %v5679, %v5583
  %v5696 = vmul.f32 %v5680, %v5584
  %v5697 = vmul.f32 %v5681, %v5585
  %v5698 = vmul.f32 %v5682, %v5586
  %v5699 = vmul.f32 %v5683, %v5587
  %v5700 = vmul.f32 %v5684, %v5588
  %v5701 = vmul.f32 %v5685, %v5589
  %v5702 = vmul.f32 %v5686, %v5590
  %v5703 = vmul.f32 %v5687, %v5591
  %v5704 = vadd.f32 %v5688, 1.1283791
  %v5705 = vadd.f32 %v5689, 1.1283791
  %v5706 = vadd.f32 %v5690, 1.1283791
  %v5707 = vadd.f32 %v5691, 1.1283791
  %v5708 = vadd.f32 %v5692, 1.1283791
  %v5709 = vadd.f32 %v5693, 1.1283791
  %v5710 = vadd.f32 %v5694, 1.1283791
  %v5711 = vadd.f32 %v5695, 1.1283791
  %v5712 = vadd.f32 %v5696, 1.1283791
  %v5713 = vadd.f32 %v5697, 1.1283791
  %v5714 = vadd.f32 %v5698, 1.1283791
  %v5715 = vadd.f32 %v5699, 1.1283791
  %v5716 = vadd.f32 %v5700, 1.1283791
  %v5717 = vadd.f32 %v5701, 1.1283791
  %v5718 = vadd.f32 %v5702, 1.1283791
  %v5719 = vadd.f32 %v5703, 1.1283791
  %v5720 = vmul.f32 %v5576, -1.1791603e-07
  %v5721 = vmul.f32 %v5577, -1.1791603e-07
  %v5722 = vmul.f32 %v5578, -1.1791603e-07
  %v5723 = vmul.f32 %v5579, -1.1791603e-07
  %v5724 = vmul.f32 %v5580, -1.1791603e-07
  %v5725 = vmul.f32 %v5581, -1.1791603e-07
  %v5726 = vmul.f32 %v5582, -1.1791603e-07
  %v5727 = vmul.f32 %v5583, -1.1791603e-07
  %v5728 = vmul.f32 %v5584, -1.1791603e-07
  %v5729 = vmul.f32 %v5585, -1.1791603e-07
  %v5730 = vmul.f32 %v5586, -1.1791603e-07
  %v5731 = vmul.f32 %v5587, -1.1791603e-07
  %v5732 = vmul.f32 %v5588, -1.1791603e-07
  %v5733 = vmul.f32 %v5589, -1.1791603e-07
  %v5734 = vmul.f32 %v5590, -1.1791603e-07
  %v5735 = vmul.f32 %v5591, -1.1791603e-07
  %v5736 = vadd.f32 %v5720, 2.3547966e-05
  %v5737 = vadd.f32 %v5721, 2.3547966e-05
  %v5738 = vadd.f32 %v5722, 2.3547966e-05
  %v5739 = vadd.f32 %v5723, 2.3547966e-05
  %v5740 = vadd.f32 %v5724, 2.3547966e-05
  %v5741 = vadd.f32 %v5725, 2.3547966e-05
  %v5742 = vadd.f32 %v5726, 2.3547966e-05
  %v5743 = vadd.f32 %v5727, 2.3547966e-05
  %v5744 = vadd.f32 %v5728, 2.3547966e-05
  %v5745 = vadd.f32 %v5729, 2.3547966e-05
  %v5746 = vadd.f32 %v5730, 2.3547966e-05
  %v5747 = vadd.f32 %v5731, 2.3547966e-05
  %v5748 = vadd.f32 %v5732, 2.3547966e-05
  %v5749 = vadd.f32 %v5733, 2.3547966e-05
  %v5750 = vadd.f32 %v5734, 2.3547966e-05
  %v5751 = vadd.f32 %v5735, 2.3547966e-05
  %v5752 = vmul.f32 %v5736, %v5576
  %v5753 = vmul.f32 %v5737, %v5577
  %v5754 = vmul.f32 %v5738, %v5578
  %v5755 = vmul.f32 %v5739, %v5579
  %v5756 = vmul.f32 %v5740, %v5580
  %v5757 = vmul.f32 %v5741, %v5581
  %v5758 = vmul.f32 %v5742, %v5582
  %v5759 = vmul.f32 %v5743, %v5583
  %v5760 = vmul.f32 %v5744, %v5584
  %v5761 = vmul.f32 %v5745, %v5585
  %v5762 = vmul.f32 %v5746, %v5586
  %v5763 = vmul.f32 %v5747, %v5587
  %v5764 = vmul.f32 %v5748, %v5588
  %v5765 = vmul.f32 %v5749, %v5589
  %v5766 = vmul.f32 %v5750, %v5590
  %v5767 = vmul.f32 %v5751, %v5591
  %v5768 = vadd.f32 %v5752, 0.0010179626
  %v5769 = vadd.f32 %v5753, 0.0010179626
  %v5770 = vadd.f32 %v5754, 0.0010179626
  %v5771 = vadd.f32 %v5755, 0.0010179626
  %v5772 = vadd.f32 %v5756, 0.0010179626
  %v5773 = vadd.f32 %v5757, 0.0010179626
  %v5774 = vadd.f32 %v5758, 0.0010179626
  %v5775 = vadd.f32 %v5759, 0.0010179626
  %v5776 = vadd.f32 %v5760, 0.0010179626
  %v5777 = vadd.f32 %v5761, 0.0010179626
  %v5778 = vadd.f32 %v5762, 0.0010179626
  %v5779 = vadd.f32 %v5763, 0.0010179626
  %v5780 = vadd.f32 %v5764, 0.0010179626
  %v5781 = vadd.f32 %v5765, 0.0010179626
  %v5782 = vadd.f32 %v5766, 0.0010179626
  %v5783 = vadd.f32 %v5767, 0.0010179626
  %v5784 = vmul.f32 %v5768, %v5576
  %v5785 = vmul.f32 %v5769, %v5577
  %v5786 = vmul.f32 %v5770, %v5578
  %v5787 = vmul.f32 %v5771, %v5579
  %v5788 = vmul.f32 %v5772, %v5580
  %v5789 = vmul.f32 %v5773, %v5581
  %v5790 = vmul.f32 %v5774, %v5582
  %v5791 = vmul.f32 %v5775, %v5583
  %v5792 = vmul.f32 %v5776, %v5584
  %v5793 = vmul.f32 %v5777, %v5585
  %v5794 = vmul.f32 %v5778, %v5586
  %v5795 = vmul.f32 %v5779, %v5587
  %v5796 = vmul.f32 %v5780, %v5588
  %v5797 = vmul.f32 %v5781, %v5589
  %v5798 = vmul.f32 %v5782, %v5590
  %v5799 = vmul.f32 %v5783, %v5591
  %v5800 = vadd.f32 %v5784, 0.01407047
  %v5801 = vadd.f32 %v5785, 0.01407047
  %v5802 = vadd.f32 %v5786, 0.01407047
  %v5803 = vadd.f32 %v5787, 0.01407047
  %v5804 = vadd.f32 %v5788, 0.01407047
  %v5805 = vadd.f32 %v5789, 0.01407047
  %v5806 = vadd.f32 %v5790, 0.01407047
  %v5807 = vadd.f32 %v5791, 0.01407047
  %v5808 = vadd.f32 %v5792, 0.01407047
  %v5809 = vadd.f32 %v5793, 0.01407047
  %v5810 = vadd.f32 %v5794, 0.01407047
  %v5811 = vadd.f32 %v5795, 0.01407047
  %v5812 = vadd.f32 %v5796, 0.01407047
  %v5813 = vadd.f32 %v5797, 0.01407047
  %v5814 = vadd.f32 %v5798, 0.01407047
  %v5815 = vadd.f32 %v5799, 0.01407047
  %v5816 = vmul.f32 %v5800, %v5576
  %v5817 = vmul.f32 %v5801, %v5577
  %v5818 = vmul.f32 %v5802, %v5578
  %v5819 = vmul.f32 %v5803, %v5579
  %v5820 = vmul.f32 %v5804, %v5580
  %v5821 = vmul.f32 %v5805, %v5581
  %v5822 = vmul.f32 %v5806, %v5582
  %v5823 = vmul.f32 %v5807, %v5583
  %v5824 = vmul.f32 %v5808, %v5584
  %v5825 = vmul.f32 %v5809, %v5585
  %v5826 = vmul.f32 %v5810, %v5586
  %v5827 = vmul.f32 %v5811, %v5587
  %v5828 = vmul.f32 %v5812, %v5588
  %v5829 = vmul.f32 %v5813, %v5589
  %v5830 = vmul.f32 %v5814, %v5590
  %v5831 = vmul.f32 %v5815, %v5591
  %v5832 = vadd.f32 %v5816, 0.11098505
  %v5833 = vadd.f32 %v5817, 0.11098505
  %v5834 = vadd.f32 %v5818, 0.11098505
  %v5835 = vadd.f32 %v5819, 0.11098505
  %v5836 = vadd.f32 %v5820, 0.11098505
  %v5837 = vadd.f32 %v5821, 0.11098505
  %v5838 = vadd.f32 %v5822, 0.11098505
  %v5839 = vadd.f32 %v5823, 0.11098505
  %v5840 = vadd.f32 %v5824, 0.11098505
  %v5841 = vadd.f32 %v5825, 0.11098505
  %v5842 = vadd.f32 %v5826, 0.11098505
  %v5843 = vadd.f32 %v5827, 0.11098505
  %v5844 = vadd.f32 %v5828, 0.11098505
  %v5845 = vadd.f32 %v5829, 0.11098505
  %v5846 = vadd.f32 %v5830, 0.11098505
  %v5847 = vadd.f32 %v5831, 0.11098505
  %v5848 = vmul.f32 %v5832, %v5576
  %v5849 = vmul.f32 %v5833, %v5577
  %v5850 = vmul.f32 %v5834, %v5578
  %v5851 = vmul.f32 %v5835, %v5579
  %v5852 = vmul.f32 %v5836, %v5580
  %v5853 = vmul.f32 %v5837, %v5581
  %v5854 = vmul.f32 %v5838, %v5582
  %v5855 = vmul.f32 %v5839, %v5583
  %v5856 = vmul.f32 %v5840, %v5584
  %v5857 = vmul.f32 %v5841, %v5585
  %v5858 = vmul.f32 %v5842, %v5586
  %v5859 = vmul.f32 %v5843, %v5587
  %v5860 = vmul.f32 %v5844, %v5588
  %v5861 = vmul.f32 %v5845, %v5589
  %v5862 = vmul.f32 %v5846, %v5590
  %v5863 = vmul.f32 %v5847, %v5591
  %v5864 = vadd.f32 %v5848, 0.49746925
  %v5865 = vadd.f32 %v5849, 0.49746925
  %v5866 = vadd.f32 %v5850, 0.49746925
  %v5867 = vadd.f32 %v5851, 0.49746925
  %v5868 = vadd.f32 %v5852, 0.49746925
  %v5869 = vadd.f32 %v5853, 0.49746925
  %v5870 = vadd.f32 %v5854, 0.49746925
  %v5871 = vadd.f32 %v5855, 0.49746925
  %v5872 = vadd.f32 %v5856, 0.49746925
  %v5873 = vadd.f32 %v5857, 0.49746925
  %v5874 = vadd.f32 %v5858, 0.49746925
  %v5875 = vadd.f32 %v5859, 0.49746925
  %v5876 = vadd.f32 %v5860, 0.49746925
  %v5877 = vadd.f32 %v5861, 0.49746925
  %v5878 = vadd.f32 %v5862, 0.49746925
  %v5879 = vadd.f32 %v5863, 0.49746925
  %v5880 = vmul.f32 %v5864, %v5576
  %v5881 = vmul.f32 %v5865, %v5577
  %v5882 = vmul.f32 %v5866, %v5578
  %v5883 = vmul.f32 %v5867, %v5579
  %v5884 = vmul.f32 %v5868, %v5580
  %v5885 = vmul.f32 %v5869, %v5581
  %v5886 = vmul.f32 %v5870, %v5582
  %v5887 = vmul.f32 %v5871, %v5583
  %v5888 = vmul.f32 %v5872, %v5584
  %v5889 = vmul.f32 %v5873, %v5585
  %v5890 = vmul.f32 %v5874, %v5586
  %v5891 = vmul.f32 %v5875, %v5587
  %v5892 = vmul.f32 %v5876, %v5588
  %v5893 = vmul.f32 %v5877, %v5589
  %v5894 = vmul.f32 %v5878, %v5590
  %v5895 = vmul.f32 %v5879, %v5591
  %v5896 = vadd.f32 %v5880, 1.0
  %v5897 = vadd.f32 %v5881, 1.0
  %v5898 = vadd.f32 %v5882, 1.0
  %v5899 = vadd.f32 %v5883, 1.0
  %v5900 = vadd.f32 %v5884, 1.0
  %v5901 = vadd.f32 %v5885, 1.0
  %v5902 = vadd.f32 %v5886, 1.0
  %v5903 = vadd.f32 %v5887, 1.0
  %v5904 = vadd.f32 %v5888, 1.0
  %v5905 = vadd.f32 %v5889, 1.0
  %v5906 = vadd.f32 %v5890, 1.0
  %v5907 = vadd.f32 %v5891, 1.0
  %v5908 = vadd.f32 %v5892, 1.0
  %v5909 = vadd.f32 %v5893, 1.0
  %v5910 = vadd.f32 %v5894, 1.0
  %v5911 = vadd.f32 %v5895, 1.0
  %v5912 = vmul.f32 %v5560, %v5704
  %v5913 = vmul.f32 %v5561, %v5705
  %v5914 = vmul.f32 %v5562, %v5706
  %v5915 = vmul.f32 %v5563, %v5707
  %v5916 = vmul.f32 %v5564, %v5708
  %v5917 = vmul.f32 %v5565, %v5709
  %v5918 = vmul.f32 %v5566, %v5710
  %v5919 = vmul.f32 %v5567, %v5711
  %v5920 = vmul.f32 %v5568, %v5712
  %v5921 = vmul.f32 %v5569, %v5713
  %v5922 = vmul.f32 %v5570, %v5714
  %v5923 = vmul.f32 %v5571, %v5715
  %v5924 = vmul.f32 %v5572, %v5716
  %v5925 = vmul.f32 %v5573, %v5717
  %v5926 = vmul.f32 %v5574, %v5718
  %v5927 = vmul.f32 %v5575, %v5719
  %v5928 = vrcp.pop %v5896
  %v5929 = vmul.f32 %v5912, %v5928
  %v5930 = vrcp.pop %v5897
  %v5931 = vmul.f32 %v5913, %v5930
  %v5932 = vrcp.pop %v5898
  %v5933 = vmul.f32 %v5914, %v5932
  %v5934 = vrcp.pop %v5899
  %v5935 = vmul.f32 %v5915, %v5934
  %v5936 = vrcp.pop %v5900
  %v5937 = vmul.f32 %v5916, %v5936
  %v5938 = vrcp.pop %v5901
  %v5939 = vmul.f32 %v5917, %v5938
  %v5940 = vrcp.pop %v5902
  %v5941 = vmul.f32 %v5918, %v5940
  %v5942 = vrcp.pop %v5903
  %v5943 = vmul.f32 %v5919, %v5942
  %v5944 = vrcp.pop %v5904
  %v5945 = vmul.f32 %v5920, %v5944
  %v5946 = vrcp.pop %v5905
  %v5947 = vmul.f32 %v5921, %v5946
  %v5948 = vrcp.pop %v5906
  %v5949 = vmul.f32 %v5922, %v5948
  %v5950 = vrcp.pop %v5907
  %v5951 = vmul.f32 %v5923, %v5950
  %v5952 = vrcp.pop %v5908
  %v5953 = vmul.f32 %v5924, %v5952
  %v5954 = vrcp.pop %v5909
  %v5955 = vmul.f32 %v5925, %v5954
  %v5956 = vrcp.pop %v5910
  %v5957 = vmul.f32 %v5926, %v5956
  %v5958 = vrcp.pop %v5911
  %v5959 = vmul.f32 %v5927, %v5958
  %v5960 = vmul.f32 %v5466, 0.5
  %v5961 = vmul.f32 %v5469, 0.5
  %v5962 = vmul.f32 %v5474, 0.5
  %v5963 = vmul.f32 %v5477, 0.5
  %v5964 = vmul.f32 %v5482, 0.5
  %v5965 = vmul.f32 %v5485, 0.5
  %v5966 = vmul.f32 %v5490, 0.5
  %v5967 = vmul.f32 %v5493, 0.5
  %v5968 = vmul.f32 %v5498, 0.5
  %v5969 = vmul.f32 %v5501, 0.5
  %v5970 = vmul.f32 %v5506, 0.5
  %v5971 = vmul.f32 %v5509, 0.5
  %v5972 = vmul.f32 %v5514, 0.5
  %v5973 = vmul.f32 %v5517, 0.5
  %v5974 = vmul.f32 %v5522, 0.5
  %v5975 = vmul.f32 %v5525, 0.5
  %v5976 = vadd.f32 %v5929, 1.0
  %v5977 = vadd.f32 %v5931, 1.0
  %v5978 = vadd.f32 %v5933, 1.0
  %v5979 = vadd.f32 %v5935, 1.0
  %v5980 = vadd.f32 %v5937, 1.0
  %v5981 = vadd.f32 %v5939, 1.0
  %v5982 = vadd.f32 %v5941, 1.0
  %v5983 = vadd.f32 %v5943, 1.0
  %v5984 = vadd.f32 %v5945, 1.0
  %v5985 = vadd.f32 %v5947, 1.0
  %v5986 = vadd.f32 %v5949, 1.0
  %v5987 = vadd.f32 %v5951, 1.0
  %v5988 = vadd.f32 %v5953, 1.0
  %v5989 = vadd.f32 %v5955, 1.0
  %v5990 = vadd.f32 %v5957, 1.0
  %v5991 = vadd.f32 %v5959, 1.0
  %v5992 = vmul.f32 %v5960, %v5976
  %v5993 = vmul.f32 %v5961, %v5977
  %v5994 = vmul.f32 %v5962, %v5978
  %v5995 = vmul.f32 %v5963, %v5979
  %v5996 = vmul.f32 %v5964, %v5980
  %v5997 = vmul.f32 %v5965, %v5981
  %v5998 = vmul.f32 %v5966, %v5982
  %v5999 = vmul.f32 %v5967, %v5983
  %v6000 = vmul.f32 %v5968, %v5984
  %v6001 = vmul.f32 %v5969, %v5985
  %v6002 = vmul.f32 %v5970, %v5986
  %v6003 = vmul.f32 %v5971, %v5987
  %v6004 = vmul.f32 %v5972, %v5988
  %v6005 = vmul.f32 %v5973, %v5989
  %v6006 = vmul.f32 %v5974, %v5990
  %v6007 = vmul.f32 %v5975, %v5991
  %v6008 = vpack.c.bf16 %v5993, %v5992
  %v6009 = vpack.c.bf16 %v5995, %v5994
  %v6010 = vpack.c.bf16 %v5997, %v5996
  %v6011 = vpack.c.bf16 %v5999, %v5998
  %v6012 = vpack.c.bf16 %v6001, %v6000
  %v6013 = vpack.c.bf16 %v6003, %v6002
  %v6014 = vpack.c.bf16 %v6005, %v6004
  %v6015 = vpack.c.bf16 %v6007, %v6006
  %s6016 = scalar_lea.vmem %s3, 448
  %v6017 = vld [vmem:[%s6016] sm:$0xf]
  %v6018 = vld [vmem:[%s6016 + $0x4] sm:$0xf]
  %v6019 = vld [vmem:[%s6016 + $0x8] sm:$0xf]
  %v6020 = vld [vmem:[%s6016 + $0xc] sm:$0xf]
  %v6021 = vld [vmem:[%s6016 + $0x10] sm:$0xf]
  %v6022 = vld [vmem:[%s6016 + $0x14] sm:$0xf]
  %v6023 = vld [vmem:[%s6016 + $0x18] sm:$0xf]
  %v6024 = vld [vmem:[%s6016 + $0x1c] sm:$0xf]
  %v6025 = vld [vmem:[%s6016 + $0x20] sm:$0xf]
  %v6026 = vld [vmem:[%s6016 + $0x24] sm:$0xf]
  %v6027 = vld [vmem:[%s6016 + $0x28] sm:$0xf]
  %v6028 = vld [vmem:[%s6016 + $0x2c] sm:$0xf]
  %v6029 = vld [vmem:[%s6016 + $0x30] sm:$0xf]
  %v6030 = vld [vmem:[%s6016 + $0x34] sm:$0xf]
  %v6031 = vld [vmem:[%s6016 + $0x38] sm:$0xf]
  %v6032 = vld [vmem:[%s6016 + $0x3c] sm:$0xf]
  %v6033 = vlaneseq
  %v6034 = vshrl.u32 %v6033, 7
  %v6035 = vsub.s32 5, %v6034
  %v6036 = vrot.slane %v3697, %v6035
  %v6053 = vunpack.c.l.b16 %v6017
  %v6054 = vunpack.c.l.b16 %v6018
  %v6055 = vunpack.c.l.b16 %v6019
  %v6056 = vunpack.c.l.b16 %v6020
  %v6057 = vunpack.c.l.b16 %v6021
  %v6058 = vunpack.c.l.b16 %v6022
  %v6059 = vunpack.c.l.b16 %v6023
  %v6060 = vunpack.c.l.b16 %v6024
  %v6061 = vunpack.c.l.b16 %v6025
  %v6062 = vunpack.c.l.b16 %v6026
  %v6063 = vunpack.c.l.b16 %v6027
  %v6064 = vunpack.c.l.b16 %v6028
  %v6065 = vunpack.c.l.b16 %v6029
  %v6066 = vunpack.c.l.b16 %v6030
  %v6067 = vunpack.c.l.b16 %v6031
  %v6068 = vunpack.c.l.b16 %v6032
  %v6069 = vpack.c.b16 %v6054, %v6053
  %v6070 = vpack.c.b16 %v6056, %v6055
  %v6071 = vpack.c.b16 %v6058, %v6057
  %v6072 = vpack.c.b16 %v6060, %v6059
  %v6073 = vpack.c.b16 %v6062, %v6061
  %v6074 = vpack.c.b16 %v6064, %v6063
  %v6075 = vpack.c.b16 %v6066, %v6065
  %v6076 = vpack.c.b16 %v6068, %v6067
  %6085 = vmatprep.subr.bf16.mxu0 0
  %6086 = vmatpush1.bf16.msra.mxu0 %v6076
  %6087 = vmatprep.subr.bf16.mxu0 0
  %6088 = vmatpush1.bf16.msra.mxu0 %v6075
  %6089 = vmatprep.subr.bf16.mxu0 0
  %6090 = vmatpush1.bf16.msra.mxu0 %v6074
  %6091 = vmatprep.subr.bf16.mxu0 0
  %6092 = vmatpush1.bf16.msra.mxu0 %v6073
  %6093 = vmatprep.subr.bf16.mxu0 0
  %6094 = vmatpush1.bf16.msra.mxu0 %v6072
  %6095 = vmatprep.subr.bf16.mxu0 0
  %6096 = vmatpush1.bf16.msra.mxu0 %v6071
  %6097 = vmatprep.subr.bf16.mxu0 0
  %6098 = vmatpush1.bf16.msra.mxu0 %v6070
  %6099 = vmatprep.subr.bf16.mxu0 0
  %6100 = vmatpush1.bf16.msra.mxu0 %v6069
  %6101 = vmatprep.subr.bf16.mxu0 0
  %6102 = vmatpush2.bf16.msra.mxu0 0
  %6103 = vmatprep.subr.bf16.mxu0 0
  %6104 = vmatpush2.bf16.msra.mxu0 0
  %6105 = vmatprep.subr.bf16.mxu0 0
  %6106 = vmatpush2.bf16.msra.mxu0 0
  %6107 = vmatprep.subr.bf16.mxu0 0
  %6108 = vmatpush2.bf16.msra.mxu0 0
  %6109 = vmatprep.subr.bf16.mxu0 0
  %6110 = vmatpush2.bf16.msra.mxu0 0
  %6111 = vmatprep.subr.bf16.mxu0 0
  %6112 = vmatpush2.bf16.msra.mxu0 0
  %6113 = vmatprep.subr.bf16.mxu0 0
  %6114 = vmatpush2.bf16.msra.mxu0 0
  %6115 = vmatprep.subr.bf16.mxu0 0
  %6116 = vmatpush2.bf16.msra.mxu0 0
  %6117 = vmatprep.mubr.bf16.mxu0 0
  %6118 = vmatmul.mubr.bf16.gmra.mxu0 %v6008
  %v6119 = vpop.f32.mrf.mxu0
  %v6120 = vadd.f32 %v6036, %v6119
  %v6121 = vpop.f32.mrf.mxu0
  %v6122 = vpop.f32.mrf.mxu0
  %v6123 = vadd.f32 %v6036, %v6122
  %v6124 = vpop.f32.mrf.mxu0
  %6125 = vmatprep.mubr.bf16.mxu0 0
  %6126 = vmatmul.mubr.bf16.gmra.mxu0 %v6009
  %v6127 = vpop.f32.mrf.mxu0
  %v6128 = vadd.f32 %v6036, %v6127
  %v6129 = vpop.f32.mrf.mxu0
  %v6130 = vpop.f32.mrf.mxu0
  %v6131 = vadd.f32 %v6036, %v6130
  %v6132 = vpop.f32.mrf.mxu0
  %6133 = vmatprep.mubr.bf16.mxu0 0
  %6134 = vmatmul.mubr.bf16.gmra.mxu0 %v6010
  %v6135 = vpop.f32.mrf.mxu0
  %v6136 = vadd.f32 %v6036, %v6135
  %v6137 = vpop.f32.mrf.mxu0
  %v6138 = vpop.f32.mrf.mxu0
  %v6139 = vadd.f32 %v6036, %v6138
  %v6140 = vpop.f32.mrf.mxu0
  %6141 = vmatprep.mubr.bf16.mxu0 0
  %6142 = vmatmul.mubr.bf16.gmra.mxu0 %v6011
  %v6143 = vpop.f32.mrf.mxu0
  %v6144 = vadd.f32 %v6036, %v6143
  %v6145 = vpop.f32.mrf.mxu0
  %v6146 = vpop.f32.mrf.mxu0
  %v6147 = vadd.f32 %v6036, %v6146
  %v6148 = vpop.f32.mrf.mxu0
  %6149 = vmatprep.mubr.bf16.mxu0 0
  %6150 = vmatmul.mubr.bf16.gmra.mxu0 %v6012
  %v6151 = vpop.f32.mrf.mxu0
  %v6152 = vadd.f32 %v6036, %v6151
  %v6153 = vpop.f32.mrf.mxu0
  %v6154 = vpop.f32.mrf.mxu0
  %v6155 = vadd.f32 %v6036, %v6154
  %v6156 = vpop.f32.mrf.mxu0
  %6157 = vmatprep.mubr.bf16.mxu0 0
  %6158 = vmatmul.mubr.bf16.gmra.mxu0 %v6013
  %v6159 = vpop.f32.mrf.mxu0
  %v6160 = vadd.f32 %v6036, %v6159
  %v6161 = vpop.f32.mrf.mxu0
  %v6162 = vpop.f32.mrf.mxu0
  %v6163 = vadd.f32 %v6036, %v6162
  %v6164 = vpop.f32.mrf.mxu0
  %6165 = vmatprep.mubr.bf16.mxu0 0
  %6166 = vmatmul.mubr.bf16.gmra.mxu0 %v6014
  %v6167 = vpop.f32.mrf.mxu0
  %v6168 = vadd.f32 %v6036, %v6167
  %v6169 = vpop.f32.mrf.mxu0
  %v6170 = vpop.f32.mrf.mxu0
  %v6171 = vadd.f32 %v6036, %v6170
  %v6172 = vpop.f32.mrf.mxu0
  %6173 = vmatprep.mubr.bf16.mxu0 0
  %6174 = vmatmul.mubr.bf16.gmra.mxu0 %v6015
  %v6175 = vpop.f32.mrf.mxu0
  %v6176 = vadd.f32 %v6036, %v6175
  %v6177 = vpop.f32.mrf.mxu0
  %v6178 = vpop.f32.mrf.mxu0
  %v6179 = vadd.f32 %v6036, %v6178
  %v6180 = vpop.f32.mrf.mxu0
  %6181 = vdwg.mxu0
  %v6182 = vadd.f32 %v6120, %v5338
  %v6183 = vadd.f32 %v6123, %v5339
  %v6184 = vadd.f32 %v6128, %v5340
  %v6185 = vadd.f32 %v6131, %v5341
  %v6186 = vadd.f32 %v6136, %v5342
  %v6187 = vadd.f32 %v6139, %v5343
  %v6188 = vadd.f32 %v6144, %v5344
  %v6189 = vadd.f32 %v6147, %v5345
  %v6190 = vadd.f32 %v6152, %v5346
  %v6191 = vadd.f32 %v6155, %v5347
  %v6192 = vadd.f32 %v6160, %v5348
  %v6193 = vadd.f32 %v6163, %v5349
  %v6194 = vadd.f32 %v6168, %v5350
  %v6195 = vadd.f32 %v6171, %v5351
  %v6196 = vadd.f32 %v6176, %v5352
  %v6197 = vadd.f32 %v6179, %v5353
  %6198 = vadd.xlane.f32.xlu0 %v6182
  %v6199 = vpop.xlane.xlu0 %6198
  %6200 = vadd.xlane.f32.xlu0 %v6183
  %v6201 = vpop.xlane.xlu0 %6200
  %6202 = vadd.xlane.f32.xlu0 %v6184
  %v6203 = vpop.xlane.xlu0 %6202
  %6204 = vadd.xlane.f32.xlu0 %v6185
  %v6205 = vpop.xlane.xlu0 %6204
  %6206 = vadd.xlane.f32.xlu0 %v6186
  %v6207 = vpop.xlane.xlu0 %6206
  %6208 = vadd.xlane.f32.xlu0 %v6187
  %v6209 = vpop.xlane.xlu0 %6208
  %6210 = vadd.xlane.f32.xlu0 %v6188
  %v6211 = vpop.xlane.xlu0 %6210
  %6212 = vadd.xlane.f32.xlu0 %v6189
  %v6213 = vpop.xlane.xlu0 %6212
  %6214 = vadd.xlane.f32.xlu0 %v6190
  %v6215 = vpop.xlane.xlu0 %6214
  %6216 = vadd.xlane.f32.xlu0 %v6191
  %v6217 = vpop.xlane.xlu0 %6216
  %6218 = vadd.xlane.f32.xlu0 %v6192
  %v6219 = vpop.xlane.xlu0 %6218
  %6220 = vadd.xlane.f32.xlu0 %v6193
  %v6221 = vpop.xlane.xlu0 %6220
  %6222 = vadd.xlane.f32.xlu0 %v6194
  %v6223 = vpop.xlane.xlu0 %6222
  %6224 = vadd.xlane.f32.xlu0 %v6195
  %v6225 = vpop.xlane.xlu0 %6224
  %6226 = vadd.xlane.f32.xlu0 %v6196
  %v6227 = vpop.xlane.xlu0 %6226
  %6228 = vadd.xlane.f32.xlu0 %v6197
  %v6229 = vpop.xlane.xlu0 %6228
  %v6230 = vmul.f32 %v6199, 0.03125
  %v6231 = vmul.f32 %v6201, 0.03125
  %v6232 = vmul.f32 %v6203, 0.03125
  %v6233 = vmul.f32 %v6205, 0.03125
  %v6234 = vmul.f32 %v6207, 0.03125
  %v6235 = vmul.f32 %v6209, 0.03125
  %v6236 = vmul.f32 %v6211, 0.03125
  %v6237 = vmul.f32 %v6213, 0.03125
  %v6238 = vmul.f32 %v6215, 0.03125
  %v6239 = vmul.f32 %v6217, 0.03125
  %v6240 = vmul.f32 %v6219, 0.03125
  %v6241 = vmul.f32 %v6221, 0.03125
  %v6242 = vmul.f32 %v6223, 0.03125
  %v6243 = vmul.f32 %v6225, 0.03125
  %v6244 = vmul.f32 %v6227, 0.03125
  %v6245 = vmul.f32 %v6229, 0.03125
  %v6246 = vsub.f32 %v6182, %v6230
  %v6247 = vsub.f32 %v6183, %v6231
  %v6248 = vsub.f32 %v6184, %v6232
  %v6249 = vsub.f32 %v6185, %v6233
  %v6250 = vsub.f32 %v6186, %v6234
  %v6251 = vsub.f32 %v6187, %v6235
  %v6252 = vsub.f32 %v6188, %v6236
  %v6253 = vsub.f32 %v6189, %v6237
  %v6254 = vsub.f32 %v6190, %v6238
  %v6255 = vsub.f32 %v6191, %v6239
  %v6256 = vsub.f32 %v6192, %v6240
  %v6257 = vsub.f32 %v6193, %v6241
  %v6258 = vsub.f32 %v6194, %v6242
  %v6259 = vsub.f32 %v6195, %v6243
  %v6260 = vsub.f32 %v6196, %v6244
  %v6261 = vsub.f32 %v6197, %v6245
  %v6262 = vsel %vm23, %v6246, 0.0
  %v6263 = vsel %vm23, %v6247, 0.0
  %v6264 = vsel %vm23, %v6248, 0.0
  %v6265 = vsel %vm23, %v6249, 0.0
  %v6266 = vsel %vm23, %v6250, 0.0
  %v6267 = vsel %vm23, %v6251, 0.0
  %v6268 = vsel %vm23, %v6252, 0.0
  %v6269 = vsel %vm23, %v6253, 0.0
  %v6270 = vsel %vm23, %v6254, 0.0
  %v6271 = vsel %vm23, %v6255, 0.0
  %v6272 = vsel %vm23, %v6256, 0.0
  %v6273 = vsel %vm23, %v6257, 0.0
  %v6274 = vsel %vm23, %v6258, 0.0
  %v6275 = vsel %vm23, %v6259, 0.0
  %v6276 = vsel %vm23, %v6260, 0.0
  %v6277 = vsel %vm23, %v6261, 0.0
  %v6278 = vmul.f32 %v6262, %v6262
  %v6279 = vmul.f32 %v6263, %v6263
  %v6280 = vmul.f32 %v6264, %v6264
  %v6281 = vmul.f32 %v6265, %v6265
  %v6282 = vmul.f32 %v6266, %v6266
  %v6283 = vmul.f32 %v6267, %v6267
  %v6284 = vmul.f32 %v6268, %v6268
  %v6285 = vmul.f32 %v6269, %v6269
  %v6286 = vmul.f32 %v6270, %v6270
  %v6287 = vmul.f32 %v6271, %v6271
  %v6288 = vmul.f32 %v6272, %v6272
  %v6289 = vmul.f32 %v6273, %v6273
  %v6290 = vmul.f32 %v6274, %v6274
  %v6291 = vmul.f32 %v6275, %v6275
  %v6292 = vmul.f32 %v6276, %v6276
  %v6293 = vmul.f32 %v6277, %v6277
  %6294 = vadd.xlane.f32.xlu0 %v6278
  %v6295 = vpop.xlane.xlu0 %6294
  %6296 = vadd.xlane.f32.xlu0 %v6279
  %v6297 = vpop.xlane.xlu0 %6296
  %6298 = vadd.xlane.f32.xlu0 %v6280
  %v6299 = vpop.xlane.xlu0 %6298
  %6300 = vadd.xlane.f32.xlu0 %v6281
  %v6301 = vpop.xlane.xlu0 %6300
  %6302 = vadd.xlane.f32.xlu0 %v6282
  %v6303 = vpop.xlane.xlu0 %6302
  %6304 = vadd.xlane.f32.xlu0 %v6283
  %v6305 = vpop.xlane.xlu0 %6304
  %6306 = vadd.xlane.f32.xlu0 %v6284
  %v6307 = vpop.xlane.xlu0 %6306
  %6308 = vadd.xlane.f32.xlu0 %v6285
  %v6309 = vpop.xlane.xlu0 %6308
  %6310 = vadd.xlane.f32.xlu0 %v6286
  %v6311 = vpop.xlane.xlu0 %6310
  %6312 = vadd.xlane.f32.xlu0 %v6287
  %v6313 = vpop.xlane.xlu0 %6312
  %6314 = vadd.xlane.f32.xlu0 %v6288
  %v6315 = vpop.xlane.xlu0 %6314
  %6316 = vadd.xlane.f32.xlu0 %v6289
  %v6317 = vpop.xlane.xlu0 %6316
  %6318 = vadd.xlane.f32.xlu0 %v6290
  %v6319 = vpop.xlane.xlu0 %6318
  %6320 = vadd.xlane.f32.xlu0 %v6291
  %v6321 = vpop.xlane.xlu0 %6320
  %6322 = vadd.xlane.f32.xlu0 %v6292
  %v6323 = vpop.xlane.xlu0 %6322
  %6324 = vadd.xlane.f32.xlu0 %v6293
  %v6325 = vpop.xlane.xlu0 %6324
  %v6326 = vmul.f32 %v6295, 0.03125
  %v6327 = vmul.f32 %v6297, 0.03125
  %v6328 = vmul.f32 %v6299, 0.03125
  %v6329 = vmul.f32 %v6301, 0.03125
  %v6330 = vmul.f32 %v6303, 0.03125
  %v6331 = vmul.f32 %v6305, 0.03125
  %v6332 = vmul.f32 %v6307, 0.03125
  %v6333 = vmul.f32 %v6309, 0.03125
  %v6334 = vmul.f32 %v6311, 0.03125
  %v6335 = vmul.f32 %v6313, 0.03125
  %v6336 = vmul.f32 %v6315, 0.03125
  %v6337 = vmul.f32 %v6317, 0.03125
  %v6338 = vmul.f32 %v6319, 0.03125
  %v6339 = vmul.f32 %v6321, 0.03125
  %v6340 = vmul.f32 %v6323, 0.03125
  %v6341 = vmul.f32 %v6325, 0.03125
  %v6342 = vadd.f32 %v6326, 1e-12
  %v6343 = vadd.f32 %v6327, 1e-12
  %v6344 = vadd.f32 %v6328, 1e-12
  %v6345 = vadd.f32 %v6329, 1e-12
  %v6346 = vadd.f32 %v6330, 1e-12
  %v6347 = vadd.f32 %v6331, 1e-12
  %v6348 = vadd.f32 %v6332, 1e-12
  %v6349 = vadd.f32 %v6333, 1e-12
  %v6350 = vadd.f32 %v6334, 1e-12
  %v6351 = vadd.f32 %v6335, 1e-12
  %v6352 = vadd.f32 %v6336, 1e-12
  %v6353 = vadd.f32 %v6337, 1e-12
  %v6354 = vadd.f32 %v6338, 1e-12
  %v6355 = vadd.f32 %v6339, 1e-12
  %v6356 = vadd.f32 %v6340, 1e-12
  %v6357 = vadd.f32 %v6341, 1e-12
  %v6358 = vrsqrt.pop %v6342
  %v6359 = vrsqrt.pop %v6343
  %v6360 = vrsqrt.pop %v6344
  %v6361 = vrsqrt.pop %v6345
  %v6362 = vrsqrt.pop %v6346
  %v6363 = vrsqrt.pop %v6347
  %v6364 = vrsqrt.pop %v6348
  %v6365 = vrsqrt.pop %v6349
  %v6366 = vrsqrt.pop %v6350
  %v6367 = vrsqrt.pop %v6351
  %v6368 = vrsqrt.pop %v6352
  %v6369 = vrsqrt.pop %v6353
  %v6370 = vrsqrt.pop %v6354
  %v6371 = vrsqrt.pop %v6355
  %v6372 = vrsqrt.pop %v6356
  %v6373 = vrsqrt.pop %v6357
  %v6374 = vmul.f32 %v6262, %v6358
  %v6375 = vmul.f32 %v6263, %v6359
  %v6376 = vmul.f32 %v6264, %v6360
  %v6377 = vmul.f32 %v6265, %v6361
  %v6378 = vmul.f32 %v6266, %v6362
  %v6379 = vmul.f32 %v6267, %v6363
  %v6380 = vmul.f32 %v6268, %v6364
  %v6381 = vmul.f32 %v6269, %v6365
  %v6382 = vmul.f32 %v6270, %v6366
  %v6383 = vmul.f32 %v6271, %v6367
  %v6384 = vmul.f32 %v6272, %v6368
  %v6385 = vmul.f32 %v6273, %v6369
  %v6386 = vmul.f32 %v6274, %v6370
  %v6387 = vmul.f32 %v6275, %v6371
  %v6388 = vmul.f32 %v6276, %v6372
  %v6389 = vmul.f32 %v6277, %v6373
  %v6390 = vlaneseq
  %v6391 = vshrl.u32 %v6390, 7
  %v6392 = vsub.s32 6, %v6391
  %v6393 = vrot.slane %v3697, %v6392
  %v6394 = vmul.f32 %v6374, %v6393
  %v6395 = vmul.f32 %v6375, %v6393
  %v6396 = vmul.f32 %v6376, %v6393
  %v6397 = vmul.f32 %v6377, %v6393
  %v6398 = vmul.f32 %v6378, %v6393
  %v6399 = vmul.f32 %v6379, %v6393
  %v6400 = vmul.f32 %v6380, %v6393
  %v6401 = vmul.f32 %v6381, %v6393
  %v6402 = vmul.f32 %v6382, %v6393
  %v6403 = vmul.f32 %v6383, %v6393
  %v6404 = vmul.f32 %v6384, %v6393
  %v6405 = vmul.f32 %v6385, %v6393
  %v6406 = vmul.f32 %v6386, %v6393
  %v6407 = vmul.f32 %v6387, %v6393
  %v6408 = vmul.f32 %v6388, %v6393
  %v6409 = vmul.f32 %v6389, %v6393
  %v6410 = vlaneseq
  %v6411 = vshrl.u32 %v6410, 7
  %v6412 = vsub.s32 7, %v6411
  %v6413 = vrot.slane %v3697, %v6412
  %v6414 = vadd.f32 %v6394, %v6413
  %v6415 = vadd.f32 %v6395, %v6413
  %v6416 = vadd.f32 %v6396, %v6413
  %v6417 = vadd.f32 %v6397, %v6413
  %v6418 = vadd.f32 %v6398, %v6413
  %v6419 = vadd.f32 %v6399, %v6413
  %v6420 = vadd.f32 %v6400, %v6413
  %v6421 = vadd.f32 %v6401, %v6413
  %v6422 = vadd.f32 %v6402, %v6413
  %v6423 = vadd.f32 %v6403, %v6413
  %v6424 = vadd.f32 %v6404, %v6413
  %v6425 = vadd.f32 %v6405, %v6413
  %v6426 = vadd.f32 %v6406, %v6413
  %v6427 = vadd.f32 %v6407, %v6413
  %v6428 = vadd.f32 %v6408, %v6413
  %v6429 = vadd.f32 %v6409, %v6413
  %v6430 = vmul.u32 %v274, 16
  %vm6431 = vcmp.eq.s32.totalorder %v22, %v6430
  %vm6432 = vcmp.lt.s32.totalorder %v274, 8
  %vm6433 = vmand %vm6431, %vm6432
  %v6434 = vsel %vm6433, 1, 0
  %v6435 = vcvt.s32.f32 %v6434
  %v6436 = vpack.c.bf16 %v6435, %v6435
  %v6437 = vpack.c.bf16 %v6415, %v6414
  %v6438 = vpack.c.bf16 %v6417, %v6416
  %v6439 = vpack.c.bf16 %v6419, %v6418
  %v6440 = vpack.c.bf16 %v6421, %v6420
  %v6441 = vpack.c.bf16 %v6423, %v6422
  %v6442 = vpack.c.bf16 %v6425, %v6424
  %v6443 = vpack.c.bf16 %v6427, %v6426
  %v6444 = vpack.c.bf16 %v6429, %v6428
  %6445 = vmatprep.subr.bf16.mxu0 0
  %6446 = vmatpush1.bf16.msra.mxu0 %v6444
  %6447 = vmatprep.subr.bf16.mxu0 0
  %6448 = vmatpush1.bf16.msra.mxu0 %v6443
  %6449 = vmatprep.subr.bf16.mxu0 0
  %6450 = vmatpush1.bf16.msra.mxu0 %v6442
  %6451 = vmatprep.subr.bf16.mxu0 0
  %6452 = vmatpush1.bf16.msra.mxu0 %v6441
  %6453 = vmatprep.subr.bf16.mxu0 0
  %6454 = vmatpush1.bf16.msra.mxu0 %v6440
  %6455 = vmatprep.subr.bf16.mxu0 0
  %6456 = vmatpush1.bf16.msra.mxu0 %v6439
  %6457 = vmatprep.subr.bf16.mxu0 0
  %6458 = vmatpush1.bf16.msra.mxu0 %v6438
  %6459 = vmatprep.subr.bf16.mxu0 0
  %6460 = vmatpush1.bf16.msra.mxu0 %v6437
  %6461 = vmatprep.subr.bf16.mxu0 0
  %6462 = vmatpush2.bf16.msra.mxu0 0
  %6463 = vmatprep.subr.bf16.mxu0 0
  %6464 = vmatpush2.bf16.msra.mxu0 0
  %6465 = vmatprep.subr.bf16.mxu0 0
  %6466 = vmatpush2.bf16.msra.mxu0 0
  %6467 = vmatprep.subr.bf16.mxu0 0
  %6468 = vmatpush2.bf16.msra.mxu0 0
  %6469 = vmatprep.subr.bf16.mxu0 0
  %6470 = vmatpush2.bf16.msra.mxu0 0
  %6471 = vmatprep.subr.bf16.mxu0 0
  %6472 = vmatpush2.bf16.msra.mxu0 0
  %6473 = vmatprep.subr.bf16.mxu0 0
  %6474 = vmatpush2.bf16.msra.mxu0 0
  %6475 = vmatprep.subr.bf16.mxu0 0
  %6476 = vmatpush2.bf16.msra.mxu0 0
  %6477 = vmatprep.mubr.bf16.mxu0 0
  %6478 = vmatmul.mubr.bf16.gmra.mxu0 %v6436
  %v6479 = vpop.f32.mrf.mxu0
  %v6480 = vadd.f32 0.0, %v6479
  %v6481 = vpop.f32.mrf.mxu0
  %v6482 = vpop.f32.mrf.mxu0
  %v6483 = vpop.f32.mrf.mxu0
  %6484 = vdwg.mxu0
  %v6485 = vpack.c.bf16 %v6480, %v6480
  %s6486 = scalar_lea.vmem %s3, 512
  %v6487 = vld [vmem:[%s6486] sm:$0xf]
  %v6488 = vld [vmem:[%s6486 + $0x4] sm:$0xf]
  %v6489 = vld [vmem:[%s6486 + $0x8] sm:$0xf]
  %v6490 = vld [vmem:[%s6486 + $0xc] sm:$0xf]
  %v6491 = vld [vmem:[%s6486 + $0x10] sm:$0xf]
  %v6492 = vld [vmem:[%s6486 + $0x14] sm:$0xf]
  %v6493 = vld [vmem:[%s6486 + $0x18] sm:$0xf]
  %v6494 = vld [vmem:[%s6486 + $0x1c] sm:$0xf]
  %v6495 = vld [vmem:[%s6486 + $0x20] sm:$0xf]
  %v6496 = vld [vmem:[%s6486 + $0x24] sm:$0xf]
  %v6497 = vld [vmem:[%s6486 + $0x28] sm:$0xf]
  %v6498 = vld [vmem:[%s6486 + $0x2c] sm:$0xf]
  %v6499 = vld [vmem:[%s6486 + $0x30] sm:$0xf]
  %v6500 = vld [vmem:[%s6486 + $0x34] sm:$0xf]
  %v6501 = vld [vmem:[%s6486 + $0x38] sm:$0xf]
  %v6502 = vld [vmem:[%s6486 + $0x3c] sm:$0xf]
  %v6503 = vlaneseq
  %v6504 = vshrl.u32 %v6503, 7
  %v6505 = vsub.s32 2, %v6504
  %v6506 = vrot.slane %v24, %v6505
  %v6523 = vunpack.c.l.b16 %v6487
  %v6524 = vunpack.c.l.b16 %v6488
  %v6525 = vunpack.c.l.b16 %v6489
  %v6526 = vunpack.c.l.b16 %v6490
  %v6527 = vunpack.c.l.b16 %v6491
  %v6528 = vunpack.c.l.b16 %v6492
  %v6529 = vunpack.c.l.b16 %v6493
  %v6530 = vunpack.c.l.b16 %v6494
  %v6531 = vunpack.c.l.b16 %v6495
  %v6532 = vunpack.c.l.b16 %v6496
  %v6533 = vunpack.c.l.b16 %v6497
  %v6534 = vunpack.c.l.b16 %v6498
  %v6535 = vunpack.c.l.b16 %v6499
  %v6536 = vunpack.c.l.b16 %v6500
  %v6537 = vunpack.c.l.b16 %v6501
  %v6538 = vunpack.c.l.b16 %v6502
  %v6539 = vpack.c.b16 %v6524, %v6523
  %v6540 = vpack.c.b16 %v6526, %v6525
  %v6541 = vpack.c.b16 %v6528, %v6527
  %v6542 = vpack.c.b16 %v6530, %v6529
  %v6543 = vpack.c.b16 %v6532, %v6531
  %v6544 = vpack.c.b16 %v6534, %v6533
  %v6545 = vpack.c.b16 %v6536, %v6535
  %v6546 = vpack.c.b16 %v6538, %v6537
  %6555 = vmatprep.subr.bf16.mxu0 0
  %6556 = vmatpush1.bf16.msra.mxu0 %v6546
  %6557 = vmatprep.subr.bf16.mxu0 0
  %6558 = vmatpush1.bf16.msra.mxu0 %v6545
  %6559 = vmatprep.subr.bf16.mxu0 0
  %6560 = vmatpush1.bf16.msra.mxu0 %v6544
  %6561 = vmatprep.subr.bf16.mxu0 0
  %6562 = vmatpush1.bf16.msra.mxu0 %v6543
  %6563 = vmatprep.subr.bf16.mxu0 0
  %6564 = vmatpush1.bf16.msra.mxu0 %v6542
  %6565 = vmatprep.subr.bf16.mxu0 0
  %6566 = vmatpush1.bf16.msra.mxu0 %v6541
  %6567 = vmatprep.subr.bf16.mxu0 0
  %6568 = vmatpush1.bf16.msra.mxu0 %v6540
  %6569 = vmatprep.subr.bf16.mxu0 0
  %6570 = vmatpush1.bf16.msra.mxu0 %v6539
  %6571 = vmatprep.subr.bf16.mxu0 0
  %6572 = vmatpush2.bf16.msra.mxu0 0
  %6573 = vmatprep.subr.bf16.mxu0 0
  %6574 = vmatpush2.bf16.msra.mxu0 0
  %6575 = vmatprep.subr.bf16.mxu0 0
  %6576 = vmatpush2.bf16.msra.mxu0 0
  %6577 = vmatprep.subr.bf16.mxu0 0
  %6578 = vmatpush2.bf16.msra.mxu0 0
  %6579 = vmatprep.subr.bf16.mxu0 0
  %6580 = vmatpush2.bf16.msra.mxu0 0
  %6581 = vmatprep.subr.bf16.mxu0 0
  %6582 = vmatpush2.bf16.msra.mxu0 0
  %6583 = vmatprep.subr.bf16.mxu0 0
  %6584 = vmatpush2.bf16.msra.mxu0 0
  %6585 = vmatprep.subr.bf16.mxu0 0
  %6586 = vmatpush2.bf16.msra.mxu0 0
  %6587 = vmatprep.mubr.bf16.mxu0 0
  %6588 = vmatmul.mubr.bf16.gmra.mxu0 %v6485
  %v6589 = vpop.f32.mrf.mxu0
  %v6590 = vadd.f32 %v6506, %v6589
  %v6591 = vpop.f32.mrf.mxu0
  %v6592 = vpop.f32.mrf.mxu0
  %v6593 = vpop.f32.mrf.mxu0
  %6594 = vdwg.mxu0
  %6595 = vst [vmem:[%s5] sm:$0xff] %v6590
  // Predicated region
  $region22: #{bert_fc_forward.1} parent=0 // pred_check
    _
  $region23: #{bert_fc_forward.1} parent=0 // pred_check_branch
    %6597 = sbr.rel (0) target = $region25
  $region24: #{bert_fc_forward.1} parent=0 // pred_region
    _
  $region25: #{bert_fc_forward.1} parent=0 // pred_fallthru
    _
  // Predicated region
  $region26: #{bert_fc_forward.1} parent=0 // pred_check
    _
  $region27: #{bert_fc_forward.1} parent=0 // pred_check_branch
    %6599 = sbr.rel (0) target = $region29
  $region28: #{bert_fc_forward.1} parent=0 // pred_region
    _
  $region29: #{bert_fc_forward.1} parent=0 // pred_fallthru
    _

</llo_original>
